<compile_context>
chip_gen: v7x
topology: tpu7x:2x2x1
jax: 0.10.0
libtpu: 0.0.40
codegen_flags: <defaults>
</compile_context>

<pallas_src>
import functools

import jax
import jax.numpy as jnp
from jax.experimental import pallas as pl
from jax.experimental.pallas import tpu as pltpu


# ---------------------------------------------------------------------------
# Generation-aware VMEM budget (v7x: 64 MiB/TC, v5e/v6e: 128 MiB)
# ---------------------------------------------------------------------------
def _default_vmem_limit():
    try:
        cap = int(pltpu.get_tpu_info().vmem_capacity_bytes)
    except Exception:
        cap = 64 * 1024 * 1024  # conservative: v7x per-TensorCore VMEM
    return min(cap * 3 // 4, 96 * 1024 * 1024)  # leave ~25% headroom


_VMEM_LIMIT = _default_vmem_limit()


def _round_up(x, m):
    return (x + m - 1) // m * m


def _pick_tiles(M, N, K, *, out_bytes=2, n_extra=0):
    """Choose (tm, tn, tk) and padded (Mp, Np, Kp).

    Prefers a single grid step with the whole (padded) problem resident in VMEM — these
    GEMMs are tiny and overhead-bound (~0.35 us fixed cost per step) — and only falls
    back to (8,128)-aligned multi-step tiling when the VMEM budget would be exceeded.
    """
    budget = _VMEM_LIMIT // 2

    def cost(tm, tn, tk):
        dbuf_in = 2 * (tm * tk + tk * tn) * 2 + 2 * n_extra * tm * tn * 2  # bf16 inputs
        dbuf_out = 2 * tm * tn * out_bytes
        return dbuf_in + dbuf_out + tm * tn * 4 + 4 * tn * 4               # + acc + vecs

    Mp, Np, Kp = _round_up(M, 8), _round_up(N, 128), _round_up(K, 8)
    if cost(Mp, Np, Kp) <= budget:
        # Single grid step; tk = full K dim is legal even when K is not a multiple of 128
        # (block covers the full last dim of x / full sublane dim of w).
        return (Mp, Np, Kp), (Mp, Np, Kp)

    tm, tn, tk = min(Mp, 256), min(Np, 256), min(_round_up(K, 128), 2048)
    while cost(tm, tn, tk) > budget and tk > 128:
        tk = max(128, (tk // 2) // 128 * 128)
    while cost(tm, tn, tk) > budget and tm > 8:
        tm = max(8, (tm // 2) // 8 * 8)
    while cost(tm, tn, tk) > budget and tn > 128:
        tn = max(128, (tn // 2) // 128 * 128)
    return (tm, tn, tk), (_round_up(M, tm), _round_up(N, tn), _round_up(K, tk))


# ---------------------------------------------------------------------------
# Pallas kernels: bf16 x bf16 -> f32 accumulate over K, fused epilogues
# ---------------------------------------------------------------------------
def _gemm_bias_act_kernel(relu, x_ref, w_ref, b_ref, o_ref, acc_ref):
    k = pl.program_id(2)

    @pl.when(k == 0)
    def _init():
        acc_ref[...] = jnp.zeros_like(acc_ref)

    acc_ref[...] += jnp.dot(x_ref[...], w_ref[...], preferred_element_type=jnp.float32)

    @pl.when(k == pl.num_programs(2) - 1)
    def _finalize():
        y = acc_ref[...] + b_ref[...]                      # f32 epilogue
        if relu:
            y = jnp.maximum(y, 0.0)
        o_ref[...] = y.astype(o_ref.dtype)


def _gemm_bias_relu_add_kernel(x_ref, w_ref, b_ref, add_ref, o_ref, acc_ref):
    """GEMM + bias + ReLU, then add an extra lane-aligned buffer (label embedding).

    The weight/bias columns beyond the real Cout are zero-padded, so after ReLU those
    lanes are exactly 0 and the add places the label embedding there verbatim (and it is
    NOT passed through the ReLU, matching torch.cat([relu(conv1), label_embed], dim=1)).
    """
    k = pl.program_id(2)

    @pl.when(k == 0)
    def _init():
        acc_ref[...] = jnp.zeros_like(acc_ref)

    acc_ref[...] += jnp.dot(x_ref[...], w_ref[...], preferred_element_type=jnp.float32)

    @pl.when(k == pl.num_programs(2) - 1)
    def _finalize():
        y = jnp.maximum(acc_ref[...] + b_ref[...], 0.0)
        y = y + add_ref[...].astype(jnp.float32)
        o_ref[...] = y.astype(o_ref.dtype)


def _gemm_bn_relu_kernel(m_real, eps, x_ref, w_ref, g_ref, beta_ref, o_ref, acc_ref):
    """GEMM with training-mode BatchNorm + ReLU fused into the k==last epilogue.

    Requires a single M tile (the whole batch*spatial extent is in acc_ref at finalize);
    per-channel stats are independent across j tiles.  The conv bias cancels under the
    BN mean subtraction and is therefore omitted.  Padded rows are masked out of the
    statistics, and variance uses the centered (cancellation-safe) formulation.
    """
    k = pl.program_id(2)

    @pl.when(k == 0)
    def _init():
        acc_ref[...] = jnp.zeros_like(acc_ref)

    acc_ref[...] += jnp.dot(x_ref[...], w_ref[...], preferred_element_type=jnp.float32)

    @pl.when(k == pl.num_programs(2) - 1)
    def _finalize():
        acc = acc_ref[...]                                        # (tm, tn) f32
        inv_m = 1.0 / m_real
        row = jax.lax.broadcasted_iota(jnp.int32, acc.shape, 0)
        valid = row < m_real
        mean = jnp.sum(jnp.where(valid, acc, 0.0), axis=0, keepdims=True) * inv_m
        cent = jnp.where(valid, acc - mean, 0.0)
        var = jnp.sum(cent * cent, axis=0, keepdims=True) * inv_m  # biased batch variance
        scale = jax.lax.rsqrt(var + eps) * g_ref[...]
        y = (acc - mean) * scale + beta_ref[...]
        o_ref[...] = jnp.maximum(y, 0.0).astype(o_ref.dtype)


# ---------------------------------------------------------------------------
# Tiled GEMM wrapper (lane-dense padded output, bf16 operands, f32 accum)
# ---------------------------------------------------------------------------
def _matmul_fused(x, w, b, *, mode, add=None, gamma=None, beta=None, eps=1e-5,
                  m_real=None, out_dtype=jnp.bfloat16):
    """(M,K) @ (K,N) with a fused epilogue.  Returns padded (Mp, Np) array + n_out."""
    M, K = x.shape
    N = w.shape[1]
    A = add.shape[1] if add is not None else 0
    n_out = N + A
    (tm, tn, tk), (Mp, Np, Kp) = _pick_tiles(
        M, n_out, K, out_bytes=jnp.dtype(out_dtype).itemsize,
        n_extra=1 if add is not None else 0)

    xp = jnp.pad(x.astype(jnp.bfloat16), ((0, Mp - M), (0, Kp - K)))
    wp = jnp.pad(w.astype(jnp.bfloat16), ((0, Kp - K), (0, Np - N)))

    grid = (Mp // tm, Np // tn, Kp // tk)
    x_spec = pl.BlockSpec((tm, tk), lambda i, j, k: (i, k))
    w_spec = pl.BlockSpec((tk, tn), lambda i, j, k: (k, j))
    vec_spec = pl.BlockSpec((1, tn), lambda i, j, k: (0, j))
    mat_spec = pl.BlockSpec((tm, tn), lambda i, j, k: (i, j))
    scratch = [pltpu.VMEM((tm, tn), jnp.float32)]
    cparams = pltpu.CompilerParams(
        dimension_semantics=("parallel", "parallel", "arbitrary"),
        vmem_limit_bytes=_VMEM_LIMIT)
    out_shape = jax.ShapeDtypeStruct((Mp, Np), out_dtype)

    if mode == "bn_relu":
        if Mp != tm:
            # TODO(synk): re-introduce the two-pass (stats + normalize) BatchNorm kernels
            # as a fallback for shapes whose M extent does not fit a single tile.
            raise NotImplementedError("fused BatchNorm requires a single M tile")
        gp = jnp.pad(gamma.astype(jnp.float32), (0, Np - N)).reshape(1, Np)
        bp = jnp.pad(beta.astype(jnp.float32), (0, Np - N)).reshape(1, Np)
        out = pl.pallas_call(
            functools.partial(_gemm_bn_relu_kernel, int(m_real), float(eps)),
            out_shape=out_shape,
            grid_spec=pltpu.PrefetchScalarGridSpec(
                num_scalar_prefetch=0, grid=grid,
                in_specs=[x_spec, w_spec, vec_spec, vec_spec],
                out_specs=mat_spec, scratch_shapes=scratch),
            compiler_params=cparams,
        )(xp, wp, gp, bp)
    elif mode == "bias_relu_add":
        bp = jnp.pad(b.astype(jnp.float32), (0, Np - N)).reshape(1, Np)
        addp = jnp.pad(add.astype(jnp.bfloat16), ((0, Mp - M), (N, Np - N - A)))
        out = pl.pallas_call(
            _gemm_bias_relu_add_kernel,
            out_shape=out_shape,
            grid_spec=pltpu.PrefetchScalarGridSpec(
                num_scalar_prefetch=0, grid=grid,
                in_specs=[x_spec, w_spec, vec_spec, mat_spec],
                out_specs=mat_spec, scratch_shapes=scratch),
            compiler_params=cparams,
        )(xp, wp, bp, addp)
    else:  # "bias_relu" / "bias"
        bp = jnp.pad(b.astype(jnp.float32), (0, Np - N)).reshape(1, Np)
        out = pl.pallas_call(
            functools.partial(_gemm_bias_act_kernel, mode == "bias_relu"),
            out_shape=out_shape,
            grid_spec=pltpu.PrefetchScalarGridSpec(
                num_scalar_prefetch=0, grid=grid,
                in_specs=[x_spec, w_spec, vec_spec],
                out_specs=mat_spec, scratch_shapes=scratch),
            compiler_params=cparams,
        )(xp, wp, bp)
    return out, n_out


# ---------------------------------------------------------------------------
# Conv glue (NHWC internal layout; im2col built in bf16 by XLA — see TODO at top)
# ---------------------------------------------------------------------------
def _im2col_nhwc(x, kh, kw, stride, pad):
    """x: (B,H,W,C) -> patches (B*Ho*Wo, kh*kw*C), feature order = (ki, kj, c)."""
    if pad > 0:
        x = jnp.pad(x, ((0, 0), (pad, pad), (pad, pad), (0, 0)))
    B, H, W, C = x.shape
    Ho = (H - kh) // stride + 1
    Wo = (W - kw) // stride + 1
    cols = []
    for i in range(kh):
        for j in range(kw):
            cols.append(x[:, i:i + stride * Ho:stride, j:j + stride * Wo:stride, :])
    p = jnp.concatenate(cols, axis=-1)                 # (B, Ho, Wo, kh*kw*C)
    return p.reshape(B * Ho * Wo, kh * kw * C), Ho, Wo


def conv2d_nhwc(x, w, b, stride, pad, *, act="relu", bn=None, eps=1e-5,
                lane_append=None, out_dtype=jnp.bfloat16):
    """x: (B,H,W,Cin) NHWC; w: PyTorch layout (Cout,Cin,kh,kw).  Returns NHWC.

    lane_append: optional (B*Ho*Wo, A) array appended as extra output channels inside the
    GEMM epilogue (used to fuse the label-embedding concat into conv1).
    """
    B = x.shape[0]
    Cout, Cin, kh, kw = w.shape
    patches, Ho, Wo = _im2col_nhwc(x.astype(jnp.bfloat16), kh, kw, stride, pad)
    wmat = jnp.transpose(w, (2, 3, 1, 0)).reshape(kh * kw * Cin, Cout)
    M = patches.shape[0]

    if bn is not None:
        gamma, beta = bn
        y_pad, n_out = _matmul_fused(patches, wmat, None, mode="bn_relu",
                                     gamma=gamma, beta=beta, eps=eps, m_real=M,
                                     out_dtype=out_dtype)
    elif lane_append is not None:
        y_pad, n_out = _matmul_fused(patches, wmat, b, mode="bias_relu_add",
                                     add=lane_append, out_dtype=out_dtype)
    else:
        y_pad, n_out = _matmul_fused(patches, wmat, b,
                                     mode="bias_relu" if act == "relu" else "bias",
                                     out_dtype=out_dtype)
    return y_pad[:M, :n_out].reshape(B, Ho, Wo, n_out)


# ---------------------------------------------------------------------------
# Encoder.forward  (PyTorch-compatible NCHW interface)
# ---------------------------------------------------------------------------
def encoder_forward(params, x, label):
    p = params
    B, _, H, W = x.shape
    h = jnp.transpose(x, (0, 2, 3, 1))                                    # NHWC internally

    # Label embedding rows, one per conv1 output pixel; fused into conv1's epilogue as
    # channels [64:128) of its lane-padded output (replaces the slice + concat).
    le = p["label_emb"][label].astype(jnp.bfloat16)                       # (B, 64)
    Ho1, Wo1 = H // 2, W // 2
    le_rows = jnp.broadcast_to(le[:, None, :], (B, Ho1 * Wo1, le.shape[-1]))
    le_rows = le_rows.reshape(B * Ho1 * Wo1, le.shape[-1])

    h = conv2d_nhwc(h, p["c1_w"], p["c1_b"], 2, 1, act="relu",
                    lane_append=le_rows)                                  # (B,H/2,W/2,128)
    h = conv2d_nhwc(h, p["c2_w"], p["c2_b"], 2, 1, act="relu")            # (B,H/4,W/4,128)
    h = conv2d_nhwc(h, p["c3_w"], p["c3_b"], 2, 1, act="relu")            # (B,H/8,W/8,256)
    h = conv2d_nhwc(h, p["c4_w"], p["c4_b"], 2, 1,
                    bn=(p["bn_g"], p["bn_b"]), out_dtype=jnp.float32)     # BN+ReLU, 512 ch

    return jnp.transpose(h, (0, 3, 1, 2))                                 # back to NCHW


# ---------------------------------------------------------------------------
# Pure-JAX reference (for correctness check)
# ---------------------------------------------------------------------------
def encoder_forward_ref(params, x, label, eps=1e-5):
    p = params

    def conv(x, w, b):
        y = jax.lax.conv_general_dilated(
            x, w, (2, 2), [(1, 1), (1, 1)],
            dimension_numbers=("NCHW", "OIHW", "NCHW"))
        return y + b.reshape(1, -1, 1, 1)

    B, _, H, W = x.shape
    h = jax.nn.relu(conv(x, p["c1_w"], p["c1_b"]))
    le = p["label_emb"][label].reshape(B, -1, 1, 1)
    le = jnp.broadcast_to(le, (B, le.shape[1], H // 2, W // 2))
    h = jnp.concatenate([h, le], axis=1)
    h = jax.nn.relu(conv(h, p["c2_w"], p["c2_b"]))
    h = jax.nn.relu(conv(h, p["c3_w"], p["c3_b"]))
    h = conv(h, p["c4_w"], p["c4_b"])
    mean = jnp.mean(h, axis=(0, 2, 3), keepdims=True)
    var = jnp.mean((h - mean) ** 2, axis=(0, 2, 3), keepdims=True)
    h = (h - mean) * jax.lax.rsqrt(var + eps)
    h = h * p["bn_g"].reshape(1, -1, 1, 1) + p["bn_b"].reshape(1, -1, 1, 1)
    return jax.nn.relu(h)


# ---------------------------------------------------------------------------
# Deterministic synthetic parameters (shapes from the PyTorch __init__)
# ---------------------------------------------------------------------------
def init_params(key):
    keys = iter(jax.random.split(key, 16))

    def u(shape, bound):
        return jax.random.uniform(next(keys), shape, jnp.float32, -bound, bound)

    def conv(cout, cin, kh, kw):
        bound = 1.0 / (cin * kh * kw) ** 0.5
        return u((cout, cin, kh, kw), bound), u((cout,), bound)

    p = {}
    p["label_emb"] = jax.random.normal(next(keys), (2, 64), jnp.float32)
    p["c1_w"], p["c1_b"] = conv(64, 1, 4, 4)
    p["c2_w"], p["c2_b"] = conv(128, 128, 4, 4)      # 64 conv + 64 label channels
    p["c3_w"], p["c3_b"] = conv(256, 128, 4, 4)
    p["c4_w"], p["c4_b"] = conv(512, 256, 4, 4)
    p["bn_g"] = jnp.ones((512,), jnp.float32)
    p["bn_b"] = jnp.zeros((512,), jnp.float32)
    return p


if __name__ == "__main__":
    key = jax.random.PRNGKey(0)
    kp, kx, kl = jax.random.split(key, 3)
    params = init_params(kp)

    x = jax.random.normal(kx, (2, 1, 32, 32), jnp.float32)
    label = jax.random.randint(kl, (2,), 0, 2, dtype=jnp.int32)

    out = jax.jit(encoder_forward)(params, x, label)
    jax.block_until_ready(out)

    ref = jax.jit(encoder_forward_ref)(params, x, label)
    jax.block_until_ready(ref)

    assert out.shape == (2, 512, 2, 2)
    assert out.dtype == jnp.float32
    assert bool(jnp.all(jnp.isfinite(out)))
    assert bool(jnp.all(out >= 0.0))                           # ReLU output
    assert bool(jnp.allclose(out, ref, rtol=0.05, atol=0.05))  # bf16 MXU vs f32 reference
    print("KERNEL_OK")
</pallas_src>

<mosaic_0001>
module attributes {stable_mosaic.version = 11 : i64} {
  func.func @_gemm_bias_relu_add_kernel(%arg0: i32, %arg1: i32, %arg2: i32, %arg3: memref<512x16xbf16, #tpu.memory_space<vmem>>, %arg4: memref<16x128xbf16, #tpu.memory_space<vmem>>, %arg5: memref<1x128xf32, #tpu.memory_space<vmem>>, %arg6: memref<512x128xbf16, #tpu.memory_space<vmem>>, %arg7: memref<512x128xbf16, #tpu.memory_space<vmem>>, %arg8: memref<512x128xf32, #tpu.memory_space<vmem>>) attributes {dimension_semantics = [#tpu.dimension_semantics<parallel>, #tpu.dimension_semantics<parallel>, #tpu.dimension_semantics<arbitrary>], iteration_bounds = array<i64: 1, 1, 1>, scalar_prefetch = 0 : i64, scratch_operands = 1 : i64, tpu.core_type = #tpu.core_type<tc>, window_params = [{transform_indices = @transform_0, window_bounds = array<i64: 512, 16>}, {transform_indices = @transform_1, window_bounds = array<i64: 16, 128>}, {transform_indices = @transform_2, window_bounds = array<i64: 1, 128>}, {transform_indices = @transform_3, window_bounds = array<i64: 512, 128>}, {transform_indices = @transform_4, window_bounds = array<i64: 512, 128>}]} {
    %c0_i32 = arith.constant 0 : i32
    %0 = arith.cmpi eq, %arg2, %c0_i32 : i32
    %1 = arith.extui %0 : i1 to i32
    %c0_i32_0 = arith.constant 0 : i32
    %2 = arith.cmpi ne, %1, %c0_i32_0 : i32
    scf.if %2 {
      %cst_10 = arith.constant 0.000000e+00 : f32
      %12 = vector.broadcast %cst_10 : f32 to vector<512x128xf32>
      %c0_11 = arith.constant 0 : index
      %c0_12 = arith.constant 0 : index
      %13 = vector.load %arg8[%c0_11, %c0_12] : memref<512x128xf32, #tpu.memory_space<vmem>>, vector<512x128xf32>
      tpu.vector_store %arg8[%c0_11, %c0_12], %12 {strides = array<i32>} : memref<512x128xf32, #tpu.memory_space<vmem>>, vector<512x128xf32>,
    } else {
    }
    %c0 = arith.constant 0 : index
    %c0_1 = arith.constant 0 : index
    %3 = vector.load %arg8[%c0, %c0_1] : memref<512x128xf32, #tpu.memory_space<vmem>>, vector<512x128xf32>
    %c0_2 = arith.constant 0 : index
    %c0_3 = arith.constant 0 : index
    %4 = vector.load %arg3[%c0_2, %c0_3] : memref<512x16xbf16, #tpu.memory_space<vmem>>, vector<512x16xbf16>
    %c0_4 = arith.constant 0 : index
    %c0_5 = arith.constant 0 : index
    %5 = vector.load %arg4[%c0_4, %c0_5] : memref<16x128xbf16, #tpu.memory_space<vmem>>, vector<16x128xbf16>
    %cst = arith.constant dense<0.000000e+00> : vector<512x128xf32>
    %6 = tpu.matmul %4, %5, %cst {dimension_numbers = #tpu.dot_dimension_numbers<[1], [0], [0], [1], [0, 0, 1, 1], [], []>} : vector<512x16xbf16>, vector<16x128xbf16>, vector<512x128xf32> -> vector<512x128xf32>
    %7 = arith.addf %3, %6 : vector<512x128xf32>
    %c0_6 = arith.constant 0 : index
    %c0_7 = arith.constant 0 : index
    %8 = vector.load %arg8[%c0_6, %c0_7] : memref<512x128xf32, #tpu.memory_space<vmem>>, vector<512x128xf32>
    tpu.vector_store %arg8[%c0_6, %c0_7], %7 {strides = array<i32>} : memref<512x128xf32, #tpu.memory_space<vmem>>, vector<512x128xf32>,
    %c0_i32_8 = arith.constant 0 : i32
    %9 = arith.cmpi eq, %arg2, %c0_i32_8 : i32
    %10 = arith.extui %9 : i1 to i32
    %c0_i32_9 = arith.constant 0 : i32
    %11 = arith.cmpi ne, %10, %c0_i32_9 : i32
    scf.if %11 {
      %c0_10 = arith.constant 0 : index
      %c0_11 = arith.constant 0 : index
      %12 = vector.load %arg8[%c0_10, %c0_11] : memref<512x128xf32, #tpu.memory_space<vmem>>, vector<512x128xf32>
      %c0_12 = arith.constant 0 : index
      %c0_13 = arith.constant 0 : index
      %13 = vector.load %arg5[%c0_12, %c0_13] : memref<1x128xf32, #tpu.memory_space<vmem>>, vector<1x128xf32>
      %14 = vector.broadcast %13 : vector<1x128xf32> to vector<512x128xf32>
      %15 = arith.addf %12, %14 : vector<512x128xf32>
      %cst_14 = arith.constant 0.000000e+00 : f32
      %16 = vector.broadcast %cst_14 : f32 to vector<512x128xf32>
      %17 = arith.maximumf %15, %16 : vector<512x128xf32>
      %c0_15 = arith.constant 0 : index
      %c0_16 = arith.constant 0 : index
      %18 = vector.load %arg6[%c0_15, %c0_16] : memref<512x128xbf16, #tpu.memory_space<vmem>>, vector<512x128xbf16>
      %19 = arith.extf %18 : vector<512x128xbf16> to vector<512x128xf32>
      %20 = arith.addf %17, %19 : vector<512x128xf32>
      %21 = arith.truncf %20 : vector<512x128xf32> to vector<512x128xbf16>
      %c0_17 = arith.constant 0 : index
      %c0_18 = arith.constant 0 : index
      %22 = vector.load %arg7[%c0_17, %c0_18] : memref<512x128xbf16, #tpu.memory_space<vmem>>, vector<512x128xbf16>
      tpu.vector_store %arg7[%c0_17, %c0_18], %21 {strides = array<i32>} : memref<512x128xbf16, #tpu.memory_space<vmem>>, vector<512x128xbf16>,
    } else {
    }
    return
  }
  func.func @transform_0(%arg0: i32, %arg1: i32, %arg2: i32) -> (i32, i32) {
    %c0_i32 = arith.constant 0 : i32
    return %arg0, %arg2 : i32, i32
  }
  func.func @transform_1(%arg0: i32, %arg1: i32, %arg2: i32) -> (i32, i32) {
    %c0_i32 = arith.constant 0 : i32
    return %arg2, %arg1 : i32, i32
  }
  func.func @transform_2(%arg0: i32, %arg1: i32, %arg2: i32) -> (i32, i32) {
    %c0_i32 = arith.constant 0 : i32
    %c0_i32_0 = arith.constant 0 : i32
    return %c0_i32, %arg1 : i32, i32
  }
  func.func @transform_3(%arg0: i32, %arg1: i32, %arg2: i32) -> (i32, i32) {
    %c0_i32 = arith.constant 0 : i32
    return %arg0, %arg1 : i32, i32
  }
  func.func @transform_4(%arg0: i32, %arg1: i32, %arg2: i32) -> (i32, i32) {
    %c0_i32 = arith.constant 0 : i32
    return %arg0, %arg1 : i32, i32
  }
}

module attributes {stable_mosaic.version = 11 : i64} {
  func.func @_gemm_bias_act_kernel(%arg0: i32, %arg1: i32, %arg2: i32, %arg3: memref<128x2048xbf16, #tpu.memory_space<vmem>>, %arg4: memref<2048x128xbf16, #tpu.memory_space<vmem>>, %arg5: memref<1x128xf32, #tpu.memory_space<vmem>>, %arg6: memref<128x128xbf16, #tpu.memory_space<vmem>>, %arg7: memref<128x128xf32, #tpu.memory_space<vmem>>) attributes {dimension_semantics = [#tpu.dimension_semantics<parallel>, #tpu.dimension_semantics<parallel>, #tpu.dimension_semantics<arbitrary>], iteration_bounds = array<i64: 1, 1, 1>, scalar_prefetch = 0 : i64, scratch_operands = 1 : i64, tpu.core_type = #tpu.core_type<tc>, window_params = [{transform_indices = @transform_0, window_bounds = array<i64: 128, 2048>}, {transform_indices = @transform_1, window_bounds = array<i64: 2048, 128>}, {transform_indices = @transform_2, window_bounds = array<i64: 1, 128>}, {transform_indices = @transform_3, window_bounds = array<i64: 128, 128>}]} {
    %c0_i32 = arith.constant 0 : i32
    %0 = arith.cmpi eq, %arg2, %c0_i32 : i32
    %1 = arith.extui %0 : i1 to i32
    %c0_i32_0 = arith.constant 0 : i32
    %2 = arith.cmpi ne, %1, %c0_i32_0 : i32
    scf.if %2 {
      %cst_10 = arith.constant 0.000000e+00 : f32
      %12 = vector.broadcast %cst_10 : f32 to vector<128x128xf32>
      %c0_11 = arith.constant 0 : index
      %c0_12 = arith.constant 0 : index
      %13 = vector.load %arg7[%c0_11, %c0_12] : memref<128x128xf32, #tpu.memory_space<vmem>>, vector<128x128xf32>
      tpu.vector_store %arg7[%c0_11, %c0_12], %12 {strides = array<i32>} : memref<128x128xf32, #tpu.memory_space<vmem>>, vector<128x128xf32>,
    } else {
    }
    %c0 = arith.constant 0 : index
    %c0_1 = arith.constant 0 : index
    %3 = vector.load %arg7[%c0, %c0_1] : memref<128x128xf32, #tpu.memory_space<vmem>>, vector<128x128xf32>
    %c0_2 = arith.constant 0 : index
    %c0_3 = arith.constant 0 : index
    %4 = vector.load %arg3[%c0_2, %c0_3] : memref<128x2048xbf16, #tpu.memory_space<vmem>>, vector<128x2048xbf16>
    %c0_4 = arith.constant 0 : index
    %c0_5 = arith.constant 0 : index
    %5 = vector.load %arg4[%c0_4, %c0_5] : memref<2048x128xbf16, #tpu.memory_space<vmem>>, vector<2048x128xbf16>
    %cst = arith.constant dense<0.000000e+00> : vector<128x128xf32>
    %6 = tpu.matmul %4, %5, %cst {dimension_numbers = #tpu.dot_dimension_numbers<[1], [0], [0], [1], [0, 0, 1, 1], [], []>} : vector<128x2048xbf16>, vector<2048x128xbf16>, vector<128x128xf32> -> vector<128x128xf32>
    %7 = arith.addf %3, %6 : vector<128x128xf32>
    %c0_6 = arith.constant 0 : index
    %c0_7 = arith.constant 0 : index
    %8 = vector.load %arg7[%c0_6, %c0_7] : memref<128x128xf32, #tpu.memory_space<vmem>>, vector<128x128xf32>
    tpu.vector_store %arg7[%c0_6, %c0_7], %7 {strides = array<i32>} : memref<128x128xf32, #tpu.memory_space<vmem>>, vector<128x128xf32>,
    %c0_i32_8 = arith.constant 0 : i32
    %9 = arith.cmpi eq, %arg2, %c0_i32_8 : i32
    %10 = arith.extui %9 : i1 to i32
    %c0_i32_9 = arith.constant 0 : i32
    %11 = arith.cmpi ne, %10, %c0_i32_9 : i32
    scf.if %11 {
      %c0_10 = arith.constant 0 : index
      %c0_11 = arith.constant 0 : index
      %12 = vector.load %arg7[%c0_10, %c0_11] : memref<128x128xf32, #tpu.memory_space<vmem>>, vector<128x128xf32>
      %c0_12 = arith.constant 0 : index
      %c0_13 = arith.constant 0 : index
      %13 = vector.load %arg5[%c0_12, %c0_13] : memref<1x128xf32, #tpu.memory_space<vmem>>, vector<1x128xf32>
      %14 = vector.broadcast %13 : vector<1x128xf32> to vector<128x128xf32>
      %15 = arith.addf %12, %14 : vector<128x128xf32>
      %cst_14 = arith.constant 0.000000e+00 : f32
      %16 = vector.broadcast %cst_14 : f32 to vector<128x128xf32>
      %17 = arith.maximumf %15, %16 : vector<128x128xf32>
      %18 = arith.truncf %17 : vector<128x128xf32> to vector<128x128xbf16>
      %c0_15 = arith.constant 0 : index
      %c0_16 = arith.constant 0 : index
      %19 = vector.load %arg6[%c0_15, %c0_16] : memref<128x128xbf16, #tpu.memory_space<vmem>>, vector<128x128xbf16>
      tpu.vector_store %arg6[%c0_15, %c0_16], %18 {strides = array<i32>} : memref<128x128xbf16, #tpu.memory_space<vmem>>, vector<128x128xbf16>,
    } else {
    }
    return
  }
  func.func @transform_0(%arg0: i32, %arg1: i32, %arg2: i32) -> (i32, i32) {
    %c0_i32 = arith.constant 0 : i32
    return %arg0, %arg2 : i32, i32
  }
  func.func @transform_1(%arg0: i32, %arg1: i32, %arg2: i32) -> (i32, i32) {
    %c0_i32 = arith.constant 0 : i32
    return %arg2, %arg1 : i32, i32
  }
  func.func @transform_2(%arg0: i32, %arg1: i32, %arg2: i32) -> (i32, i32) {
    %c0_i32 = arith.constant 0 : i32
    %c0_i32_0 = arith.constant 0 : i32
    return %c0_i32, %arg1 : i32, i32
  }
  func.func @transform_3(%arg0: i32, %arg1: i32, %arg2: i32) -> (i32, i32) {
    %c0_i32 = arith.constant 0 : i32
    return %arg0, %arg1 : i32, i32
  }
}

module attributes {stable_mosaic.version = 11 : i64} {
  func.func @_gemm_bias_act_kernel(%arg0: i32, %arg1: i32, %arg2: i32, %arg3: memref<32x2048xbf16, #tpu.memory_space<vmem>>, %arg4: memref<2048x256xbf16, #tpu.memory_space<vmem>>, %arg5: memref<1x256xf32, #tpu.memory_space<vmem>>, %arg6: memref<32x256xbf16, #tpu.memory_space<vmem>>, %arg7: memref<32x256xf32, #tpu.memory_space<vmem>>) attributes {dimension_semantics = [#tpu.dimension_semantics<parallel>, #tpu.dimension_semantics<parallel>, #tpu.dimension_semantics<arbitrary>], iteration_bounds = array<i64: 1, 1, 1>, scalar_prefetch = 0 : i64, scratch_operands = 1 : i64, tpu.core_type = #tpu.core_type<tc>, window_params = [{transform_indices = @transform_0, window_bounds = array<i64: 32, 2048>}, {transform_indices = @transform_1, window_bounds = array<i64: 2048, 256>}, {transform_indices = @transform_2, window_bounds = array<i64: 1, 256>}, {transform_indices = @transform_3, window_bounds = array<i64: 32, 256>}]} {
    %c0_i32 = arith.constant 0 : i32
    %0 = arith.cmpi eq, %arg2, %c0_i32 : i32
    %1 = arith.extui %0 : i1 to i32
    %c0_i32_0 = arith.constant 0 : i32
    %2 = arith.cmpi ne, %1, %c0_i32_0 : i32
    scf.if %2 {
      %cst_10 = arith.constant 0.000000e+00 : f32
      %12 = vector.broadcast %cst_10 : f32 to vector<32x256xf32>
      %c0_11 = arith.constant 0 : index
      %c0_12 = arith.constant 0 : index
      %13 = vector.load %arg7[%c0_11, %c0_12] : memref<32x256xf32, #tpu.memory_space<vmem>>, vector<32x256xf32>
      tpu.vector_store %arg7[%c0_11, %c0_12], %12 {strides = array<i32>} : memref<32x256xf32, #tpu.memory_space<vmem>>, vector<32x256xf32>,
    } else {
    }
    %c0 = arith.constant 0 : index
    %c0_1 = arith.constant 0 : index
    %3 = vector.load %arg7[%c0, %c0_1] : memref<32x256xf32, #tpu.memory_space<vmem>>, vector<32x256xf32>
    %c0_2 = arith.constant 0 : index
    %c0_3 = arith.constant 0 : index
    %4 = vector.load %arg3[%c0_2, %c0_3] : memref<32x2048xbf16, #tpu.memory_space<vmem>>, vector<32x2048xbf16>
    %c0_4 = arith.constant 0 : index
    %c0_5 = arith.constant 0 : index
    %5 = vector.load %arg4[%c0_4, %c0_5] : memref<2048x256xbf16, #tpu.memory_space<vmem>>, vector<2048x256xbf16>
    %cst = arith.constant dense<0.000000e+00> : vector<32x256xf32>
    %6 = tpu.matmul %4, %5, %cst {dimension_numbers = #tpu.dot_dimension_numbers<[1], [0], [0], [1], [0, 0, 1, 1], [], []>} : vector<32x2048xbf16>, vector<2048x256xbf16>, vector<32x256xf32> -> vector<32x256xf32>
    %7 = arith.addf %3, %6 : vector<32x256xf32>
    %c0_6 = arith.constant 0 : index
    %c0_7 = arith.constant 0 : index
    %8 = vector.load %arg7[%c0_6, %c0_7] : memref<32x256xf32, #tpu.memory_space<vmem>>, vector<32x256xf32>
    tpu.vector_store %arg7[%c0_6, %c0_7], %7 {strides = array<i32>} : memref<32x256xf32, #tpu.memory_space<vmem>>, vector<32x256xf32>,
    %c0_i32_8 = arith.constant 0 : i32
    %9 = arith.cmpi eq, %arg2, %c0_i32_8 : i32
    %10 = arith.extui %9 : i1 to i32
    %c0_i32_9 = arith.constant 0 : i32
    %11 = arith.cmpi ne, %10, %c0_i32_9 : i32
    scf.if %11 {
      %c0_10 = arith.constant 0 : index
      %c0_11 = arith.constant 0 : index
      %12 = vector.load %arg7[%c0_10, %c0_11] : memref<32x256xf32, #tpu.memory_space<vmem>>, vector<32x256xf32>
      %c0_12 = arith.constant 0 : index
      %c0_13 = arith.constant 0 : index
      %13 = vector.load %arg5[%c0_12, %c0_13] : memref<1x256xf32, #tpu.memory_space<vmem>>, vector<1x256xf32>
      %14 = vector.broadcast %13 : vector<1x256xf32> to vector<32x256xf32>
      %15 = arith.addf %12, %14 : vector<32x256xf32>
      %cst_14 = arith.constant 0.000000e+00 : f32
      %16 = vector.broadcast %cst_14 : f32 to vector<32x256xf32>
      %17 = arith.maximumf %15, %16 : vector<32x256xf32>
      %18 = arith.truncf %17 : vector<32x256xf32> to vector<32x256xbf16>
      %c0_15 = arith.constant 0 : index
      %c0_16 = arith.constant 0 : index
      %19 = vector.load %arg6[%c0_15, %c0_16] : memref<32x256xbf16, #tpu.memory_space<vmem>>, vector<32x256xbf16>
      tpu.vector_store %arg6[%c0_15, %c0_16], %18 {strides = array<i32>} : memref<32x256xbf16, #tpu.memory_space<vmem>>, vector<32x256xbf16>,
    } else {
    }
    return
  }
  func.func @transform_0(%arg0: i32, %arg1: i32, %arg2: i32) -> (i32, i32) {
    %c0_i32 = arith.constant 0 : i32
    return %arg0, %arg2 : i32, i32
  }
  func.func @transform_1(%arg0: i32, %arg1: i32, %arg2: i32) -> (i32, i32) {
    %c0_i32 = arith.constant 0 : i32
    return %arg2, %arg1 : i32, i32
  }
  func.func @transform_2(%arg0: i32, %arg1: i32, %arg2: i32) -> (i32, i32) {
    %c0_i32 = arith.constant 0 : i32
    %c0_i32_0 = arith.constant 0 : i32
    return %c0_i32, %arg1 : i32, i32
  }
  func.func @transform_3(%arg0: i32, %arg1: i32, %arg2: i32) -> (i32, i32) {
    %c0_i32 = arith.constant 0 : i32
    return %arg0, %arg1 : i32, i32
  }
}

module attributes {stable_mosaic.version = 11 : i64} {
  func.func @_gemm_bn_relu_kernel(%arg0: i32, %arg1: i32, %arg2: i32, %arg3: memref<8x4096xbf16, #tpu.memory_space<vmem>>, %arg4: memref<4096x512xbf16, #tpu.memory_space<vmem>>, %arg5: memref<1x512xf32, #tpu.memory_space<vmem>>, %arg6: memref<1x512xf32, #tpu.memory_space<vmem>>, %arg7: memref<8x512xf32, #tpu.memory_space<vmem>>, %arg8: memref<8x512xf32, #tpu.memory_space<vmem>>) attributes {dimension_semantics = [#tpu.dimension_semantics<parallel>, #tpu.dimension_semantics<parallel>, #tpu.dimension_semantics<arbitrary>], iteration_bounds = array<i64: 1, 1, 1>, scalar_prefetch = 0 : i64, scratch_operands = 1 : i64, tpu.core_type = #tpu.core_type<tc>, window_params = [{transform_indices = @transform_0, window_bounds = array<i64: 8, 4096>}, {transform_indices = @transform_1, window_bounds = array<i64: 4096, 512>}, {transform_indices = @transform_2, window_bounds = array<i64: 1, 512>}, {transform_indices = @transform_3, window_bounds = array<i64: 1, 512>}, {transform_indices = @transform_4, window_bounds = array<i64: 8, 512>}]} {
    %c0_i32 = arith.constant 0 : i32
    %0 = arith.cmpi eq, %arg2, %c0_i32 : i32
    %1 = arith.extui %0 : i1 to i32
    %c0_i32_0 = arith.constant 0 : i32
    %2 = arith.cmpi ne, %1, %c0_i32_0 : i32
    scf.if %2 {
      %cst_10 = arith.constant 0.000000e+00 : f32
      %12 = vector.broadcast %cst_10 : f32 to vector<8x512xf32>
      %c0_11 = arith.constant 0 : index
      %c0_12 = arith.constant 0 : index
      %13 = vector.load %arg8[%c0_11, %c0_12] : memref<8x512xf32, #tpu.memory_space<vmem>>, vector<8x512xf32>
      tpu.vector_store %arg8[%c0_11, %c0_12], %12 {strides = array<i32>} : memref<8x512xf32, #tpu.memory_space<vmem>>, vector<8x512xf32>,
    } else {
    }
    %c0 = arith.constant 0 : index
    %c0_1 = arith.constant 0 : index
    %3 = vector.load %arg8[%c0, %c0_1] : memref<8x512xf32, #tpu.memory_space<vmem>>, vector<8x512xf32>
    %c0_2 = arith.constant 0 : index
    %c0_3 = arith.constant 0 : index
    %4 = vector.load %arg3[%c0_2, %c0_3] : memref<8x4096xbf16, #tpu.memory_space<vmem>>, vector<8x4096xbf16>
    %c0_4 = arith.constant 0 : index
    %c0_5 = arith.constant 0 : index
    %5 = vector.load %arg4[%c0_4, %c0_5] : memref<4096x512xbf16, #tpu.memory_space<vmem>>, vector<4096x512xbf16>
    %cst = arith.constant dense<0.000000e+00> : vector<8x512xf32>
    %6 = tpu.matmul %4, %5, %cst {dimension_numbers = #tpu.dot_dimension_numbers<[1], [0], [0], [1], [0, 0, 1, 1], [], []>} : vector<8x4096xbf16>, vector<4096x512xbf16>, vector<8x512xf32> -> vector<8x512xf32>
    %7 = arith.addf %3, %6 : vector<8x512xf32>
    %c0_6 = arith.constant 0 : index
    %c0_7 = arith.constant 0 : index
    %8 = vector.load %arg8[%c0_6, %c0_7] : memref<8x512xf32, #tpu.memory_space<vmem>>, vector<8x512xf32>
    tpu.vector_store %arg8[%c0_6, %c0_7], %7 {strides = array<i32>} : memref<8x512xf32, #tpu.memory_space<vmem>>, vector<8x512xf32>,
    %c0_i32_8 = arith.constant 0 : i32
    %9 = arith.cmpi eq, %arg2, %c0_i32_8 : i32
    %10 = arith.extui %9 : i1 to i32
    %c0_i32_9 = arith.constant 0 : i32
    %11 = arith.cmpi ne, %10, %c0_i32_9 : i32
    scf.if %11 {
      %c0_10 = arith.constant 0 : index
      %c0_11 = arith.constant 0 : index
      %12 = vector.load %arg8[%c0_10, %c0_11] : memref<8x512xf32, #tpu.memory_space<vmem>>, vector<8x512xf32>
      %13 = tpu.iota {dimensions = array<i32: 0>} : vector<8x512xi32>
      %c8_i32 = arith.constant 8 : i32
      %14 = vector.broadcast %c8_i32 : i32 to vector<8x512xi32>
      %15 = arith.cmpi slt, %13, %14 : vector<8x512xi32>
      %cst_12 = arith.constant 0.000000e+00 : f32
      %16 = vector.broadcast %cst_12 : f32 to vector<8x512xf32>
      %17 = arith.select %15, %12, %16 : vector<8x512xi1>, vector<8x512xf32>
      %cst_13 = arith.constant dense<0.000000e+00> : vector<512xf32>
      %18 = vector.multi_reduction <add>, %17, %cst_13 [0] : vector<8x512xf32> to vector<512xf32>
      %19 = vector.shape_cast %18 : vector<512xf32> to vector<1x512xf32>
      %cst_14 = arith.constant 1.250000e-01 : f32
      %20 = vector.broadcast %cst_14 : f32 to vector<1x512xf32>
      %21 = arith.mulf %19, %20 : vector<1x512xf32>
      %22 = vector.broadcast %21 : vector<1x512xf32> to vector<8x512xf32>
      %23 = arith.subf %12, %22 : vector<8x512xf32>
      %cst_15 = arith.constant 0.000000e+00 : f32
      %24 = vector.broadcast %cst_15 : f32 to vector<8x512xf32>
      %25 = arith.select %15, %23, %24 : vector<8x512xi1>, vector<8x512xf32>
      %26 = arith.mulf %25, %25 : vector<8x512xf32>
      %cst_16 = arith.constant dense<0.000000e+00> : vector<512xf32>
      %27 = vector.multi_reduction <add>, %26, %cst_16 [0] : vector<8x512xf32> to vector<512xf32>
      %28 = vector.shape_cast %27 : vector<512xf32> to vector<1x512xf32>
      %cst_17 = arith.constant 1.250000e-01 : f32
      %29 = vector.broadcast %cst_17 : f32 to vector<1x512xf32>
      %30 = arith.mulf %28, %29 : vector<1x512xf32>
      %cst_18 = arith.constant 9.99999974E-6 : f32
      %31 = vector.broadcast %cst_18 : f32 to vector<1x512xf32>
      %32 = arith.addf %30, %31 : vector<1x512xf32>
      %33 = math.rsqrt %32 : vector<1x512xf32>
      %c0_19 = arith.constant 0 : index
      %c0_20 = arith.constant 0 : index
      %34 = vector.load %arg5[%c0_19, %c0_20] : memref<1x512xf32, #tpu.memory_space<vmem>>, vector<1x512xf32>
      %35 = arith.mulf %33, %34 : vector<1x512xf32>
      %36 = vector.broadcast %21 : vector<1x512xf32> to vector<8x512xf32>
      %37 = arith.subf %12, %36 : vector<8x512xf32>
      %38 = vector.broadcast %35 : vector<1x512xf32> to vector<8x512xf32>
      %39 = arith.mulf %37, %38 : vector<8x512xf32>
      %c0_21 = arith.constant 0 : index
      %c0_22 = arith.constant 0 : index
      %40 = vector.load %arg6[%c0_21, %c0_22] : memref<1x512xf32, #tpu.memory_space<vmem>>, vector<1x512xf32>
      %41 = vector.broadcast %40 : vector<1x512xf32> to vector<8x512xf32>
      %42 = arith.addf %39, %41 : vector<8x512xf32>
      %cst_23 = arith.constant 0.000000e+00 : f32
      %43 = vector.broadcast %cst_23 : f32 to vector<8x512xf32>
      %44 = arith.maximumf %42, %43 : vector<8x512xf32>
      %c0_24 = arith.constant 0 : index
      %c0_25 = arith.constant 0 : index
      %45 = vector.load %arg7[%c0_24, %c0_25] : memref<8x512xf32, #tpu.memory_space<vmem>>, vector<8x512xf32>
      tpu.vector_store %arg7[%c0_24, %c0_25], %44 {strides = array<i32>} : memref<8x512xf32, #tpu.memory_space<vmem>>, vector<8x512xf32>,
    } else {
    }
    return
  }
  func.func @transform_0(%arg0: i32, %arg1: i32, %arg2: i32) -> (i32, i32) {
    %c0_i32 = arith.constant 0 : i32
    return %arg0, %arg2 : i32, i32
  }
  func.func @transform_1(%arg0: i32, %arg1: i32, %arg2: i32) -> (i32, i32) {
    %c0_i32 = arith.constant 0 : i32
    return %arg2, %arg1 : i32, i32
  }
  func.func @transform_2(%arg0: i32, %arg1: i32, %arg2: i32) -> (i32, i32) {
    %c0_i32 = arith.constant 0 : i32
    %c0_i32_0 = arith.constant 0 : i32
    return %c0_i32, %arg1 : i32, i32
  }
  func.func @transform_3(%arg0: i32, %arg1: i32, %arg2: i32) -> (i32, i32) {
    %c0_i32 = arith.constant 0 : i32
    %c0_i32_0 = arith.constant 0 : i32
    return %c0_i32, %arg1 : i32, i32
  }
  func.func @transform_4(%arg0: i32, %arg1: i32, %arg2: i32) -> (i32, i32) {
    %c0_i32 = arith.constant 0 : i32
    return %arg0, %arg1 : i32, i32
  }
}

</mosaic_0001>

<llo_original>
// kernel: encoder_forward.4
$region0: #{encoder_forward.4}
  #allocation0 [shape = 'u32[]', space=smem, size = 0x4, offset = 0x4, fixed_abs, tag = 'smem constant byte address 0x4 - core index']
  #allocation1 [shape = 'u32[144,128]{1,0:T(1,128)}', space=vmem, size = 0x12000, scoped, tag = 'internal scratch']
  #allocation2 [shape = 'f32[512,128]{1,0:T(8,128)}', space=vmem, size = 0x40000, scoped, tag = 'scratch operand']
  %s0 = inlined_call_operand.vmem [shape: bf16[512,16], index: 0, kind: input, shape index: {}]
  %s1 = inlined_call_operand.vmem [shape: bf16[16,128], index: 1, kind: input, shape index: {}]
  %s2 = inlined_call_operand.vmem [shape: f32[1,128], index: 2, kind: input, shape index: {}]
  %s3 = inlined_call_operand.vmem [shape: bf16[512,128], index: 3, kind: input, shape index: {}]
  %s4 = inlined_call_operand.vmem [shape: bf16[512,128], index: 4, kind: output, shape index: {}]
  %s5 = sld [smem:[#allocation0]]
  $region34: #{encoder_forward.4} parent=0
    _
  %s7 = ssub.s32 1, %s5
  %s8 = scalar_select 0, %s7, %s5
  // Predicated region
  $region2: #{encoder_forward.4} parent=0 // pred_check
    _
  $region3: #{encoder_forward.4} parent=0 // pred_check_branch
    %10 = sbr.rel (0) target = $region5
  $region4: #{encoder_forward.4} parent=0 // pred_region
    _
  $region5: #{encoder_forward.4} parent=0 // pred_fallthru
    _
  // Predicated region
  $region6: #{encoder_forward.4} parent=0 // pred_check
    _
  $region7: #{encoder_forward.4} parent=0 // pred_check_branch
    %12 = sbr.rel (0) target = $region9
  $region8: #{encoder_forward.4} parent=0 // pred_region
    _
  $region9: #{encoder_forward.4} parent=0 // pred_fallthru
    _
  // Predicated region
  $region10: #{encoder_forward.4} parent=0 // pred_check
    _
  $region11: #{encoder_forward.4} parent=0 // pred_check_branch
    %14 = sbr.rel (0) target = $region13
  $region12: #{encoder_forward.4} parent=0 // pred_region
    _
  $region13: #{encoder_forward.4} parent=0 // pred_fallthru
    _
  // Predicated region
  $region14: #{encoder_forward.4} parent=0 // pred_check
    _
  $region15: #{encoder_forward.4} parent=0 // pred_check_branch
    %16 = sbr.rel (0) target = $region17
  $region16: #{encoder_forward.4} parent=0 // pred_region
    _
  $region17: #{encoder_forward.4} parent=0 // pred_fallthru
    _
  %p18 = scmp.eq.s32.totalorder 0, 0
  // Predicated region
  $region18: #{encoder_forward.4} parent=0 // pred_check
    %p19 = pneg %p18
  $region19: #{encoder_forward.4} parent=0 // pred_check_branch
    %21 = sbr.rel (%p19) target = $region21
  $region20: #{encoder_forward.4} parent=0 // pred_region
    %22 = vst [vmem:[#allocation2] sm:$0xff] 0.0
    %23 = vst [vmem:[#allocation2 + $0x8] sm:$0xff] 0.0
    %24 = vst [vmem:[#allocation2 + $0x10] sm:$0xff] 0.0
    %25 = vst [vmem:[#allocation2 + $0x18] sm:$0xff] 0.0
    %26 = vst [vmem:[#allocation2 + $0x20] sm:$0xff] 0.0
    %27 = vst [vmem:[#allocation2 + $0x28] sm:$0xff] 0.0
    %28 = vst [vmem:[#allocation2 + $0x30] sm:$0xff] 0.0
    %29 = vst [vmem:[#allocation2 + $0x38] sm:$0xff] 0.0
    %30 = vst [vmem:[#allocation2 + $0x40] sm:$0xff] 0.0
    %31 = vst [vmem:[#allocation2 + $0x48] sm:$0xff] 0.0
    %32 = vst [vmem:[#allocation2 + $0x50] sm:$0xff] 0.0
    %33 = vst [vmem:[#allocation2 + $0x58] sm:$0xff] 0.0
    %34 = vst [vmem:[#allocation2 + $0x60] sm:$0xff] 0.0
    %35 = vst [vmem:[#allocation2 + $0x68] sm:$0xff] 0.0
    %36 = vst [vmem:[#allocation2 + $0x70] sm:$0xff] 0.0
    %37 = vst [vmem:[#allocation2 + $0x78] sm:$0xff] 0.0
    %38 = vst [vmem:[#allocation2 + $0x80] sm:$0xff] 0.0
    %39 = vst [vmem:[#allocation2 + $0x88] sm:$0xff] 0.0
    %40 = vst [vmem:[#allocation2 + $0x90] sm:$0xff] 0.0
    %41 = vst [vmem:[#allocation2 + $0x98] sm:$0xff] 0.0
    %42 = vst [vmem:[#allocation2 + $0xa0] sm:$0xff] 0.0
    %43 = vst [vmem:[#allocation2 + $0xa8] sm:$0xff] 0.0
    %44 = vst [vmem:[#allocation2 + $0xb0] sm:$0xff] 0.0
    %45 = vst [vmem:[#allocation2 + $0xb8] sm:$0xff] 0.0
    %46 = vst [vmem:[#allocation2 + $0xc0] sm:$0xff] 0.0
    %47 = vst [vmem:[#allocation2 + $0xc8] sm:$0xff] 0.0
    %48 = vst [vmem:[#allocation2 + $0xd0] sm:$0xff] 0.0
    %49 = vst [vmem:[#allocation2 + $0xd8] sm:$0xff] 0.0
    %50 = vst [vmem:[#allocation2 + $0xe0] sm:$0xff] 0.0
    %51 = vst [vmem:[#allocation2 + $0xe8] sm:$0xff] 0.0
    %52 = vst [vmem:[#allocation2 + $0xf0] sm:$0xff] 0.0
    %53 = vst [vmem:[#allocation2 + $0xf8] sm:$0xff] 0.0
    %54 = vst [vmem:[#allocation2 + $0x100] sm:$0xff] 0.0
    %55 = vst [vmem:[#allocation2 + $0x108] sm:$0xff] 0.0
    %56 = vst [vmem:[#allocation2 + $0x110] sm:$0xff] 0.0
    %57 = vst [vmem:[#allocation2 + $0x118] sm:$0xff] 0.0
    %58 = vst [vmem:[#allocation2 + $0x120] sm:$0xff] 0.0
    %59 = vst [vmem:[#allocation2 + $0x128] sm:$0xff] 0.0
    %60 = vst [vmem:[#allocation2 + $0x130] sm:$0xff] 0.0
    %61 = vst [vmem:[#allocation2 + $0x138] sm:$0xff] 0.0
    %62 = vst [vmem:[#allocation2 + $0x140] sm:$0xff] 0.0
    %63 = vst [vmem:[#allocation2 + $0x148] sm:$0xff] 0.0
    %64 = vst [vmem:[#allocation2 + $0x150] sm:$0xff] 0.0
    %65 = vst [vmem:[#allocation2 + $0x158] sm:$0xff] 0.0
    %66 = vst [vmem:[#allocation2 + $0x160] sm:$0xff] 0.0
    %67 = vst [vmem:[#allocation2 + $0x168] sm:$0xff] 0.0
    %68 = vst [vmem:[#allocation2 + $0x170] sm:$0xff] 0.0
    %69 = vst [vmem:[#allocation2 + $0x178] sm:$0xff] 0.0
    %70 = vst [vmem:[#allocation2 + $0x180] sm:$0xff] 0.0
    %71 = vst [vmem:[#allocation2 + $0x188] sm:$0xff] 0.0
    %72 = vst [vmem:[#allocation2 + $0x190] sm:$0xff] 0.0
    %73 = vst [vmem:[#allocation2 + $0x198] sm:$0xff] 0.0
    %74 = vst [vmem:[#allocation2 + $0x1a0] sm:$0xff] 0.0
    %75 = vst [vmem:[#allocation2 + $0x1a8] sm:$0xff] 0.0
    %76 = vst [vmem:[#allocation2 + $0x1b0] sm:$0xff] 0.0
    %77 = vst [vmem:[#allocation2 + $0x1b8] sm:$0xff] 0.0
    %78 = vst [vmem:[#allocation2 + $0x1c0] sm:$0xff] 0.0
    %79 = vst [vmem:[#allocation2 + $0x1c8] sm:$0xff] 0.0
    %80 = vst [vmem:[#allocation2 + $0x1d0] sm:$0xff] 0.0
    %81 = vst [vmem:[#allocation2 + $0x1d8] sm:$0xff] 0.0
    %82 = vst [vmem:[#allocation2 + $0x1e0] sm:$0xff] 0.0
    %83 = vst [vmem:[#allocation2 + $0x1e8] sm:$0xff] 0.0
    %84 = vst [vmem:[#allocation2 + $0x1f0] sm:$0xff] 0.0
    %85 = vst [vmem:[#allocation2 + $0x1f8] sm:$0xff] 0.0
  $region21: #{encoder_forward.4} parent=0 // pred_fallthru
    _
  %v86 = vld [vmem:[#allocation2] sm:$0xff]
  %v87 = vld [vmem:[#allocation2 + $0x8] sm:$0xff]
  %v88 = vld [vmem:[#allocation2 + $0x10] sm:$0xff]
  %v89 = vld [vmem:[#allocation2 + $0x18] sm:$0xff]
  %v90 = vld [vmem:[#allocation2 + $0x20] sm:$0xff]
  %v91 = vld [vmem:[#allocation2 + $0x28] sm:$0xff]
  %v92 = vld [vmem:[#allocation2 + $0x30] sm:$0xff]
  %v93 = vld [vmem:[#allocation2 + $0x38] sm:$0xff]
  %v94 = vld [vmem:[#allocation2 + $0x40] sm:$0xff]
  %v95 = vld [vmem:[#allocation2 + $0x48] sm:$0xff]
  %v96 = vld [vmem:[#allocation2 + $0x50] sm:$0xff]
  %v97 = vld [vmem:[#allocation2 + $0x58] sm:$0xff]
  %v98 = vld [vmem:[#allocation2 + $0x60] sm:$0xff]
  %v99 = vld [vmem:[#allocation2 + $0x68] sm:$0xff]
  %v100 = vld [vmem:[#allocation2 + $0x70] sm:$0xff]
  %v101 = vld [vmem:[#allocation2 + $0x78] sm:$0xff]
  %v102 = vld [vmem:[#allocation2 + $0x80] sm:$0xff]
  %v103 = vld [vmem:[#allocation2 + $0x88] sm:$0xff]
  %v104 = vld [vmem:[#allocation2 + $0x90] sm:$0xff]
  %v105 = vld [vmem:[#allocation2 + $0x98] sm:$0xff]
  %v106 = vld [vmem:[#allocation2 + $0xa0] sm:$0xff]
  %v107 = vld [vmem:[#allocation2 + $0xa8] sm:$0xff]
  %v108 = vld [vmem:[#allocation2 + $0xb0] sm:$0xff]
  %v109 = vld [vmem:[#allocation2 + $0xb8] sm:$0xff]
  %v110 = vld [vmem:[#allocation2 + $0xc0] sm:$0xff]
  %v111 = vld [vmem:[#allocation2 + $0xc8] sm:$0xff]
  %v112 = vld [vmem:[#allocation2 + $0xd0] sm:$0xff]
  %v113 = vld [vmem:[#allocation2 + $0xd8] sm:$0xff]
  %v114 = vld [vmem:[#allocation2 + $0xe0] sm:$0xff]
  %v115 = vld [vmem:[#allocation2 + $0xe8] sm:$0xff]
  %v116 = vld [vmem:[#allocation2 + $0xf0] sm:$0xff]
  %v117 = vld [vmem:[#allocation2 + $0xf8] sm:$0xff]
  %v118 = vld [vmem:[#allocation2 + $0x100] sm:$0xff]
  %v119 = vld [vmem:[#allocation2 + $0x108] sm:$0xff]
  %v120 = vld [vmem:[#allocation2 + $0x110] sm:$0xff]
  %v121 = vld [vmem:[#allocation2 + $0x118] sm:$0xff]
  %v122 = vld [vmem:[#allocation2 + $0x120] sm:$0xff]
  %v123 = vld [vmem:[#allocation2 + $0x128] sm:$0xff]
  %v124 = vld [vmem:[#allocation2 + $0x130] sm:$0xff]
  %v125 = vld [vmem:[#allocation2 + $0x138] sm:$0xff]
  %v126 = vld [vmem:[#allocation2 + $0x140] sm:$0xff]
  %v127 = vld [vmem:[#allocation2 + $0x148] sm:$0xff]
  %v128 = vld [vmem:[#allocation2 + $0x150] sm:$0xff]
  %v129 = vld [vmem:[#allocation2 + $0x158] sm:$0xff]
  %v130 = vld [vmem:[#allocation2 + $0x160] sm:$0xff]
  %v131 = vld [vmem:[#allocation2 + $0x168] sm:$0xff]
  %v132 = vld [vmem:[#allocation2 + $0x170] sm:$0xff]
  %v133 = vld [vmem:[#allocation2 + $0x178] sm:$0xff]
  %v134 = vld [vmem:[#allocation2 + $0x180] sm:$0xff]
  %v135 = vld [vmem:[#allocation2 + $0x188] sm:$0xff]
  %v136 = vld [vmem:[#allocation2 + $0x190] sm:$0xff]
  %v137 = vld [vmem:[#allocation2 + $0x198] sm:$0xff]
  %v138 = vld [vmem:[#allocation2 + $0x1a0] sm:$0xff]
  %v139 = vld [vmem:[#allocation2 + $0x1a8] sm:$0xff]
  %v140 = vld [vmem:[#allocation2 + $0x1b0] sm:$0xff]
  %v141 = vld [vmem:[#allocation2 + $0x1b8] sm:$0xff]
  %v142 = vld [vmem:[#allocation2 + $0x1c0] sm:$0xff]
  %v143 = vld [vmem:[#allocation2 + $0x1c8] sm:$0xff]
  %v144 = vld [vmem:[#allocation2 + $0x1d0] sm:$0xff]
  %v145 = vld [vmem:[#allocation2 + $0x1d8] sm:$0xff]
  %v146 = vld [vmem:[#allocation2 + $0x1e0] sm:$0xff]
  %v147 = vld [vmem:[#allocation2 + $0x1e8] sm:$0xff]
  %v148 = vld [vmem:[#allocation2 + $0x1f0] sm:$0xff]
  %v149 = vld [vmem:[#allocation2 + $0x1f8] sm:$0xff]
  %v150 = vld [vmem:[%s0] sm:$0xf]
  %v151 = vld [vmem:[%s0 + $0x4] sm:$0xf]
  %v152 = vld [vmem:[%s0 + $0x8] sm:$0xf]
  %v153 = vld [vmem:[%s0 + $0xc] sm:$0xf]
  %v154 = vld [vmem:[%s0 + $0x10] sm:$0xf]
  %v155 = vld [vmem:[%s0 + $0x14] sm:$0xf]
  %v156 = vld [vmem:[%s0 + $0x18] sm:$0xf]
  %v157 = vld [vmem:[%s0 + $0x1c] sm:$0xf]
  %v158 = vld [vmem:[%s0 + $0x20] sm:$0xf]
  %v159 = vld [vmem:[%s0 + $0x24] sm:$0xf]
  %v160 = vld [vmem:[%s0 + $0x28] sm:$0xf]
  %v161 = vld [vmem:[%s0 + $0x2c] sm:$0xf]
  %v162 = vld [vmem:[%s0 + $0x30] sm:$0xf]
  %v163 = vld [vmem:[%s0 + $0x34] sm:$0xf]
  %v164 = vld [vmem:[%s0 + $0x38] sm:$0xf]
  %v165 = vld [vmem:[%s0 + $0x3c] sm:$0xf]
  %v166 = vld [vmem:[%s0 + $0x40] sm:$0xf]
  %v167 = vld [vmem:[%s0 + $0x44] sm:$0xf]
  %v168 = vld [vmem:[%s0 + $0x48] sm:$0xf]
  %v169 = vld [vmem:[%s0 + $0x4c] sm:$0xf]
  %v170 = vld [vmem:[%s0 + $0x50] sm:$0xf]
  %v171 = vld [vmem:[%s0 + $0x54] sm:$0xf]
  %v172 = vld [vmem:[%s0 + $0x58] sm:$0xf]
  %v173 = vld [vmem:[%s0 + $0x5c] sm:$0xf]
  %v174 = vld [vmem:[%s0 + $0x60] sm:$0xf]
  %v175 = vld [vmem:[%s0 + $0x64] sm:$0xf]
  %v176 = vld [vmem:[%s0 + $0x68] sm:$0xf]
  %v177 = vld [vmem:[%s0 + $0x6c] sm:$0xf]
  %v178 = vld [vmem:[%s0 + $0x70] sm:$0xf]
  %v179 = vld [vmem:[%s0 + $0x74] sm:$0xf]
  %v180 = vld [vmem:[%s0 + $0x78] sm:$0xf]
  %v181 = vld [vmem:[%s0 + $0x7c] sm:$0xf]
  %v182 = vld [vmem:[%s0 + $0x80] sm:$0xf]
  %v183 = vld [vmem:[%s0 + $0x84] sm:$0xf]
  %v184 = vld [vmem:[%s0 + $0x88] sm:$0xf]
  %v185 = vld [vmem:[%s0 + $0x8c] sm:$0xf]
  %v186 = vld [vmem:[%s0 + $0x90] sm:$0xf]
  %v187 = vld [vmem:[%s0 + $0x94] sm:$0xf]
  %v188 = vld [vmem:[%s0 + $0x98] sm:$0xf]
  %v189 = vld [vmem:[%s0 + $0x9c] sm:$0xf]
  %v190 = vld [vmem:[%s0 + $0xa0] sm:$0xf]
  %v191 = vld [vmem:[%s0 + $0xa4] sm:$0xf]
  %v192 = vld [vmem:[%s0 + $0xa8] sm:$0xf]
  %v193 = vld [vmem:[%s0 + $0xac] sm:$0xf]
  %v194 = vld [vmem:[%s0 + $0xb0] sm:$0xf]
  %v195 = vld [vmem:[%s0 + $0xb4] sm:$0xf]
  %v196 = vld [vmem:[%s0 + $0xb8] sm:$0xf]
  %v197 = vld [vmem:[%s0 + $0xbc] sm:$0xf]
  %v198 = vld [vmem:[%s0 + $0xc0] sm:$0xf]
  %v199 = vld [vmem:[%s0 + $0xc4] sm:$0xf]
  %v200 = vld [vmem:[%s0 + $0xc8] sm:$0xf]
  %v201 = vld [vmem:[%s0 + $0xcc] sm:$0xf]
  %v202 = vld [vmem:[%s0 + $0xd0] sm:$0xf]
  %v203 = vld [vmem:[%s0 + $0xd4] sm:$0xf]
  %v204 = vld [vmem:[%s0 + $0xd8] sm:$0xf]
  %v205 = vld [vmem:[%s0 + $0xdc] sm:$0xf]
  %v206 = vld [vmem:[%s0 + $0xe0] sm:$0xf]
  %v207 = vld [vmem:[%s0 + $0xe4] sm:$0xf]
  %v208 = vld [vmem:[%s0 + $0xe8] sm:$0xf]
  %v209 = vld [vmem:[%s0 + $0xec] sm:$0xf]
  %v210 = vld [vmem:[%s0 + $0xf0] sm:$0xf]
  %v211 = vld [vmem:[%s0 + $0xf4] sm:$0xf]
  %v212 = vld [vmem:[%s0 + $0xf8] sm:$0xf]
  %v213 = vld [vmem:[%s0 + $0xfc] sm:$0xf]
  %v214 = vld [vmem:[%s1] sm:$0xf]
  %v215 = vld [vmem:[%s1 + $0x4] sm:$0xf]
  %v280 = vunpack.c.l.b16 %v150
  %v281 = vunpack.c.l.b16 %v151
  %v282 = vunpack.c.l.b16 %v152
  %v283 = vunpack.c.l.b16 %v153
  %v284 = vunpack.c.l.b16 %v154
  %v285 = vunpack.c.l.b16 %v155
  %v286 = vunpack.c.l.b16 %v156
  %v287 = vunpack.c.l.b16 %v157
  %v288 = vunpack.c.l.b16 %v158
  %v289 = vunpack.c.l.b16 %v159
  %v290 = vunpack.c.l.b16 %v160
  %v291 = vunpack.c.l.b16 %v161
  %v292 = vunpack.c.l.b16 %v162
  %v293 = vunpack.c.l.b16 %v163
  %v294 = vunpack.c.l.b16 %v164
  %v295 = vunpack.c.l.b16 %v165
  %v296 = vunpack.c.l.b16 %v166
  %v297 = vunpack.c.l.b16 %v167
  %v298 = vunpack.c.l.b16 %v168
  %v299 = vunpack.c.l.b16 %v169
  %v300 = vunpack.c.l.b16 %v170
  %v301 = vunpack.c.l.b16 %v171
  %v302 = vunpack.c.l.b16 %v172
  %v303 = vunpack.c.l.b16 %v173
  %v304 = vunpack.c.l.b16 %v174
  %v305 = vunpack.c.l.b16 %v175
  %v306 = vunpack.c.l.b16 %v176
  %v307 = vunpack.c.l.b16 %v177
  %v308 = vunpack.c.l.b16 %v178
  %v309 = vunpack.c.l.b16 %v179
  %v310 = vunpack.c.l.b16 %v180
  %v311 = vunpack.c.l.b16 %v181
  %v312 = vunpack.c.l.b16 %v182
  %v313 = vunpack.c.l.b16 %v183
  %v314 = vunpack.c.l.b16 %v184
  %v315 = vunpack.c.l.b16 %v185
  %v316 = vunpack.c.l.b16 %v186
  %v317 = vunpack.c.l.b16 %v187
  %v318 = vunpack.c.l.b16 %v188
  %v319 = vunpack.c.l.b16 %v189
  %v320 = vunpack.c.l.b16 %v190
  %v321 = vunpack.c.l.b16 %v191
  %v322 = vunpack.c.l.b16 %v192
  %v323 = vunpack.c.l.b16 %v193
  %v324 = vunpack.c.l.b16 %v194
  %v325 = vunpack.c.l.b16 %v195
  %v326 = vunpack.c.l.b16 %v196
  %v327 = vunpack.c.l.b16 %v197
  %v328 = vunpack.c.l.b16 %v198
  %v329 = vunpack.c.l.b16 %v199
  %v330 = vunpack.c.l.b16 %v200
  %v331 = vunpack.c.l.b16 %v201
  %v332 = vunpack.c.l.b16 %v202
  %v333 = vunpack.c.l.b16 %v203
  %v334 = vunpack.c.l.b16 %v204
  %v335 = vunpack.c.l.b16 %v205
  %v336 = vunpack.c.l.b16 %v206
  %v337 = vunpack.c.l.b16 %v207
  %v338 = vunpack.c.l.b16 %v208
  %v339 = vunpack.c.l.b16 %v209
  %v340 = vunpack.c.l.b16 %v210
  %v341 = vunpack.c.l.b16 %v211
  %v342 = vunpack.c.l.b16 %v212
  %v343 = vunpack.c.l.b16 %v213
  %v344 = vpack.c.b16 %v281, %v280
  %v345 = vpack.c.b16 %v283, %v282
  %v346 = vpack.c.b16 %v285, %v284
  %v347 = vpack.c.b16 %v287, %v286
  %v348 = vpack.c.b16 %v289, %v288
  %v349 = vpack.c.b16 %v291, %v290
  %v350 = vpack.c.b16 %v293, %v292
  %v351 = vpack.c.b16 %v295, %v294
  %v352 = vpack.c.b16 %v297, %v296
  %v353 = vpack.c.b16 %v299, %v298
  %v354 = vpack.c.b16 %v301, %v300
  %v355 = vpack.c.b16 %v303, %v302
  %v356 = vpack.c.b16 %v305, %v304
  %v357 = vpack.c.b16 %v307, %v306
  %v358 = vpack.c.b16 %v309, %v308
  %v359 = vpack.c.b16 %v311, %v310
  %v360 = vpack.c.b16 %v313, %v312
  %v361 = vpack.c.b16 %v315, %v314
  %v362 = vpack.c.b16 %v317, %v316
  %v363 = vpack.c.b16 %v319, %v318
  %v364 = vpack.c.b16 %v321, %v320
  %v365 = vpack.c.b16 %v323, %v322
  %v366 = vpack.c.b16 %v325, %v324
  %v367 = vpack.c.b16 %v327, %v326
  %v368 = vpack.c.b16 %v329, %v328
  %v369 = vpack.c.b16 %v331, %v330
  %v370 = vpack.c.b16 %v333, %v332
  %v371 = vpack.c.b16 %v335, %v334
  %v372 = vpack.c.b16 %v337, %v336
  %v373 = vpack.c.b16 %v339, %v338
  %v374 = vpack.c.b16 %v341, %v340
  %v375 = vpack.c.b16 %v343, %v342
  %v378 = vunpack.c.l.b16 %v214
  %v379 = vunpack.c.l.b16 %v215
  %v380 = vpack.c.b16 %v379, %v378
  %vm382 = vcmask 130048
  %v384 = vsel %vm382, %v344, 0
  %v387 = vsel %vm382, %v345, 0
  %v390 = vsel %vm382, %v346, 0
  %v393 = vsel %vm382, %v347, 0
  %v396 = vsel %vm382, %v348, 0
  %v399 = vsel %vm382, %v349, 0
  %v402 = vsel %vm382, %v350, 0
  %v405 = vsel %vm382, %v351, 0
  %v408 = vsel %vm382, %v352, 0
  %v411 = vsel %vm382, %v353, 0
  %v414 = vsel %vm382, %v354, 0
  %v417 = vsel %vm382, %v355, 0
  %v420 = vsel %vm382, %v356, 0
  %v423 = vsel %vm382, %v357, 0
  %v426 = vsel %vm382, %v358, 0
  %v429 = vsel %vm382, %v359, 0
  %v432 = vsel %vm382, %v360, 0
  %v435 = vsel %vm382, %v361, 0
  %v438 = vsel %vm382, %v362, 0
  %v441 = vsel %vm382, %v363, 0
  %v444 = vsel %vm382, %v364, 0
  %v447 = vsel %vm382, %v365, 0
  %v450 = vsel %vm382, %v366, 0
  %v453 = vsel %vm382, %v367, 0
  %v456 = vsel %vm382, %v368, 0
  %v459 = vsel %vm382, %v369, 0
  %v462 = vsel %vm382, %v370, 0
  %v465 = vsel %vm382, %v371, 0
  %v468 = vsel %vm382, %v372, 0
  %v471 = vsel %vm382, %v373, 0
  %v474 = vsel %vm382, %v374, 0
  %v477 = vsel %vm382, %v375, 0
  %479 = vmatprep.subr.bf16.mxu0 0
  %480 = vmatpush1.bf16.msra.mxu0 %v380
  %481 = vmatprep.subr.bf16.mxu0 0
  %482 = vmatpush1.bf16.msra.mxu0 0
  %483 = vmatprep.subr.bf16.mxu0 0
  %484 = vmatpush1.bf16.msra.mxu0 0
  %485 = vmatprep.subr.bf16.mxu0 0
  %486 = vmatpush1.bf16.msra.mxu0 0
  %487 = vmatprep.subr.bf16.mxu0 0
  %488 = vmatpush1.bf16.msra.mxu0 0
  %489 = vmatprep.subr.bf16.mxu0 0
  %490 = vmatpush1.bf16.msra.mxu0 0
  %491 = vmatprep.subr.bf16.mxu0 0
  %492 = vmatpush1.bf16.msra.mxu0 0
  %493 = vmatprep.subr.bf16.mxu0 0
  %494 = vmatpush1.bf16.msra.mxu0 0
  %495 = vmatprep.subr.bf16.mxu0 0
  %496 = vmatpush1.bf16.msra.mxu0 0
  %497 = vmatprep.subr.bf16.mxu0 0
  %498 = vmatpush1.bf16.msra.mxu0 0
  %499 = vmatprep.subr.bf16.mxu0 0
  %500 = vmatpush1.bf16.msra.mxu0 0
  %501 = vmatprep.subr.bf16.mxu0 0
  %502 = vmatpush1.bf16.msra.mxu0 0
  %503 = vmatprep.subr.bf16.mxu0 0
  %504 = vmatpush1.bf16.msra.mxu0 0
  %505 = vmatprep.subr.bf16.mxu0 0
  %506 = vmatpush1.bf16.msra.mxu0 0
  %507 = vmatprep.subr.bf16.mxu0 0
  %508 = vmatpush1.bf16.msra.mxu0 0
  %509 = vmatprep.subr.bf16.mxu0 0
  %510 = vmatpush1.bf16.msra.mxu0 0
  %511 = vmatprep.mubr.bf16.mxu0 0
  %512 = vmatmul.mubr.bf16.gmra.mrb[0].mxu0 %v384
  %v513 = vpop.f32.mrb[0].mxu0
  %v514 = vadd.f32 0.0, %v513
  %v515 = vpop.f32.mrb[0].mxu0
  %v516 = vpop.f32.mrb[0].mxu0
  %v517 = vadd.f32 0.0, %v516
  %v518 = vpop.f32.mrb[0].mxu0
  %519 = vmatprep.mubr.bf16.mxu0 0
  %520 = vmatmul.mubr.bf16.gmra.mrb[0].mxu0 %v387
  %v521 = vpop.f32.mrb[0].mxu0
  %v522 = vadd.f32 0.0, %v521
  %v523 = vpop.f32.mrb[0].mxu0
  %v524 = vpop.f32.mrb[0].mxu0
  %v525 = vadd.f32 0.0, %v524
  %v526 = vpop.f32.mrb[0].mxu0
  %527 = vmatprep.mubr.bf16.mxu0 0
  %528 = vmatmul.mubr.bf16.gmra.mrb[0].mxu0 %v390
  %v529 = vpop.f32.mrb[0].mxu0
  %v530 = vadd.f32 0.0, %v529
  %v531 = vpop.f32.mrb[0].mxu0
  %v532 = vpop.f32.mrb[0].mxu0
  %v533 = vadd.f32 0.0, %v532
  %v534 = vpop.f32.mrb[0].mxu0
  %535 = vmatprep.mubr.bf16.mxu0 0
  %536 = vmatmul.mubr.bf16.gmra.mrb[0].mxu0 %v393
  %v537 = vpop.f32.mrb[0].mxu0
  %v538 = vadd.f32 0.0, %v537
  %v539 = vpop.f32.mrb[0].mxu0
  %v540 = vpop.f32.mrb[0].mxu0
  %v541 = vadd.f32 0.0, %v540
  %v542 = vpop.f32.mrb[0].mxu0
  %543 = vmatprep.mubr.bf16.mxu0 0
  %544 = vmatmul.mubr.bf16.gmra.mrb[0].mxu0 %v396
  %v545 = vpop.f32.mrb[0].mxu0
  %v546 = vadd.f32 0.0, %v545
  %v547 = vpop.f32.mrb[0].mxu0
  %v548 = vpop.f32.mrb[0].mxu0
  %v549 = vadd.f32 0.0, %v548
  %v550 = vpop.f32.mrb[0].mxu0
  %551 = vmatprep.mubr.bf16.mxu0 0
  %552 = vmatmul.mubr.bf16.gmra.mrb[0].mxu0 %v399
  %v553 = vpop.f32.mrb[0].mxu0
  %v554 = vadd.f32 0.0, %v553
  %v555 = vpop.f32.mrb[0].mxu0
  %v556 = vpop.f32.mrb[0].mxu0
  %v557 = vadd.f32 0.0, %v556
  %v558 = vpop.f32.mrb[0].mxu0
  %559 = vmatprep.mubr.bf16.mxu0 0
  %560 = vmatmul.mubr.bf16.gmra.mrb[0].mxu0 %v402
  %v561 = vpop.f32.mrb[0].mxu0
  %v562 = vadd.f32 0.0, %v561
  %v563 = vpop.f32.mrb[0].mxu0
  %v564 = vpop.f32.mrb[0].mxu0
  %v565 = vadd.f32 0.0, %v564
  %v566 = vpop.f32.mrb[0].mxu0
  %567 = vmatprep.mubr.bf16.mxu0 0
  %568 = vmatmul.mubr.bf16.gmra.mrb[0].mxu0 %v405
  %v569 = vpop.f32.mrb[0].mxu0
  %v570 = vadd.f32 0.0, %v569
  %v571 = vpop.f32.mrb[0].mxu0
  %v572 = vpop.f32.mrb[0].mxu0
  %v573 = vadd.f32 0.0, %v572
  %v574 = vpop.f32.mrb[0].mxu0
  %575 = vmatprep.mubr.bf16.mxu0 0
  %576 = vmatmul.mubr.bf16.gmra.mrb[0].mxu0 %v408
  %v577 = vpop.f32.mrb[0].mxu0
  %v578 = vadd.f32 0.0, %v577
  %v579 = vpop.f32.mrb[0].mxu0
  %v580 = vpop.f32.mrb[0].mxu0
  %v581 = vadd.f32 0.0, %v580
  %v582 = vpop.f32.mrb[0].mxu0
  %583 = vmatprep.mubr.bf16.mxu0 0
  %584 = vmatmul.mubr.bf16.gmra.mrb[0].mxu0 %v411
  %v585 = vpop.f32.mrb[0].mxu0
  %v586 = vadd.f32 0.0, %v585
  %v587 = vpop.f32.mrb[0].mxu0
  %v588 = vpop.f32.mrb[0].mxu0
  %v589 = vadd.f32 0.0, %v588
  %v590 = vpop.f32.mrb[0].mxu0
  %591 = vmatprep.mubr.bf16.mxu0 0
  %592 = vmatmul.mubr.bf16.gmra.mrb[0].mxu0 %v414
  %v593 = vpop.f32.mrb[0].mxu0
  %v594 = vadd.f32 0.0, %v593
  %v595 = vpop.f32.mrb[0].mxu0
  %v596 = vpop.f32.mrb[0].mxu0
  %v597 = vadd.f32 0.0, %v596
  %v598 = vpop.f32.mrb[0].mxu0
  %599 = vmatprep.mubr.bf16.mxu0 0
  %600 = vmatmul.mubr.bf16.gmra.mrb[0].mxu0 %v417
  %v601 = vpop.f32.mrb[0].mxu0
  %v602 = vadd.f32 0.0, %v601
  %v603 = vpop.f32.mrb[0].mxu0
  %v604 = vpop.f32.mrb[0].mxu0
  %v605 = vadd.f32 0.0, %v604
  %v606 = vpop.f32.mrb[0].mxu0
  %607 = vmatprep.mubr.bf16.mxu0 0
  %608 = vmatmul.mubr.bf16.gmra.mrb[0].mxu0 %v420
  %v609 = vpop.f32.mrb[0].mxu0
  %v610 = vadd.f32 0.0, %v609
  %v611 = vpop.f32.mrb[0].mxu0
  %v612 = vpop.f32.mrb[0].mxu0
  %v613 = vadd.f32 0.0, %v612
  %v614 = vpop.f32.mrb[0].mxu0
  %615 = vmatprep.mubr.bf16.mxu0 0
  %616 = vmatmul.mubr.bf16.gmra.mrb[0].mxu0 %v423
  %v617 = vpop.f32.mrb[0].mxu0
  %v618 = vadd.f32 0.0, %v617
  %v619 = vpop.f32.mrb[0].mxu0
  %v620 = vpop.f32.mrb[0].mxu0
  %v621 = vadd.f32 0.0, %v620
  %v622 = vpop.f32.mrb[0].mxu0
  %623 = vmatprep.mubr.bf16.mxu0 0
  %624 = vmatmul.mubr.bf16.gmra.mrb[0].mxu0 %v426
  %v625 = vpop.f32.mrb[0].mxu0
  %v626 = vadd.f32 0.0, %v625
  %v627 = vpop.f32.mrb[0].mxu0
  %v628 = vpop.f32.mrb[0].mxu0
  %v629 = vadd.f32 0.0, %v628
  %v630 = vpop.f32.mrb[0].mxu0
  %631 = vmatprep.mubr.bf16.mxu0 0
  %632 = vmatmul.mubr.bf16.gmra.mrb[0].mxu0 %v429
  %v633 = vpop.f32.mrb[0].mxu0
  %v634 = vadd.f32 0.0, %v633
  %v635 = vpop.f32.mrb[0].mxu0
  %v636 = vpop.f32.mrb[0].mxu0
  %v637 = vadd.f32 0.0, %v636
  %v638 = vpop.f32.mrb[0].mxu0
  %639 = vmatprep.mubr.bf16.mxu0 0
  %640 = vmatmul.mubr.bf16.gmra.mrb[0].mxu0 %v432
  %v641 = vpop.f32.mrb[0].mxu0
  %v642 = vadd.f32 0.0, %v641
  %v643 = vpop.f32.mrb[0].mxu0
  %v644 = vpop.f32.mrb[0].mxu0
  %v645 = vadd.f32 0.0, %v644
  %v646 = vpop.f32.mrb[0].mxu0
  %647 = vmatprep.mubr.bf16.mxu0 0
  %648 = vmatmul.mubr.bf16.gmra.mrb[0].mxu0 %v435
  %v649 = vpop.f32.mrb[0].mxu0
  %v650 = vadd.f32 0.0, %v649
  %v651 = vpop.f32.mrb[0].mxu0
  %v652 = vpop.f32.mrb[0].mxu0
  %v653 = vadd.f32 0.0, %v652
  %v654 = vpop.f32.mrb[0].mxu0
  %655 = vmatprep.mubr.bf16.mxu0 0
  %656 = vmatmul.mubr.bf16.gmra.mrb[0].mxu0 %v438
  %v657 = vpop.f32.mrb[0].mxu0
  %v658 = vadd.f32 0.0, %v657
  %v659 = vpop.f32.mrb[0].mxu0
  %v660 = vpop.f32.mrb[0].mxu0
  %v661 = vadd.f32 0.0, %v660
  %v662 = vpop.f32.mrb[0].mxu0
  %663 = vmatprep.mubr.bf16.mxu0 0
  %664 = vmatmul.mubr.bf16.gmra.mrb[0].mxu0 %v441
  %v665 = vpop.f32.mrb[0].mxu0
  %v666 = vadd.f32 0.0, %v665
  %v667 = vpop.f32.mrb[0].mxu0
  %v668 = vpop.f32.mrb[0].mxu0
  %v669 = vadd.f32 0.0, %v668
  %v670 = vpop.f32.mrb[0].mxu0
  %671 = vmatprep.mubr.bf16.mxu0 0
  %672 = vmatmul.mubr.bf16.gmra.mrb[0].mxu0 %v444
  %v673 = vpop.f32.mrb[0].mxu0
  %v674 = vadd.f32 0.0, %v673
  %v675 = vpop.f32.mrb[0].mxu0
  %v676 = vpop.f32.mrb[0].mxu0
  %v677 = vadd.f32 0.0, %v676
  %v678 = vpop.f32.mrb[0].mxu0
  %679 = vmatprep.mubr.bf16.mxu0 0
  %680 = vmatmul.mubr.bf16.gmra.mrb[0].mxu0 %v447
  %v681 = vpop.f32.mrb[0].mxu0
  %v682 = vadd.f32 0.0, %v681
  %v683 = vpop.f32.mrb[0].mxu0
  %v684 = vpop.f32.mrb[0].mxu0
  %v685 = vadd.f32 0.0, %v684
  %v686 = vpop.f32.mrb[0].mxu0
  %687 = vmatprep.mubr.bf16.mxu0 0
  %688 = vmatmul.mubr.bf16.gmra.mrb[0].mxu0 %v450
  %v689 = vpop.f32.mrb[0].mxu0
  %v690 = vadd.f32 0.0, %v689
  %v691 = vpop.f32.mrb[0].mxu0
  %v692 = vpop.f32.mrb[0].mxu0
  %v693 = vadd.f32 0.0, %v692
  %v694 = vpop.f32.mrb[0].mxu0
  %695 = vmatprep.mubr.bf16.mxu0 0
  %696 = vmatmul.mubr.bf16.gmra.mrb[0].mxu0 %v453
  %v697 = vpop.f32.mrb[0].mxu0
  %v698 = vadd.f32 0.0, %v697
  %v699 = vpop.f32.mrb[0].mxu0
  %v700 = vpop.f32.mrb[0].mxu0
  %v701 = vadd.f32 0.0, %v700
  %v702 = vpop.f32.mrb[0].mxu0
  %703 = vmatprep.mubr.bf16.mxu0 0
  %704 = vmatmul.mubr.bf16.gmra.mrb[0].mxu0 %v456
  %v705 = vpop.f32.mrb[0].mxu0
  %v706 = vadd.f32 0.0, %v705
  %v707 = vpop.f32.mrb[0].mxu0
  %v708 = vpop.f32.mrb[0].mxu0
  %v709 = vadd.f32 0.0, %v708
  %v710 = vpop.f32.mrb[0].mxu0
  %711 = vmatprep.mubr.bf16.mxu0 0
  %712 = vmatmul.mubr.bf16.gmra.mrb[0].mxu0 %v459
  %v713 = vpop.f32.mrb[0].mxu0
  %v714 = vadd.f32 0.0, %v713
  %v715 = vpop.f32.mrb[0].mxu0
  %v716 = vpop.f32.mrb[0].mxu0
  %v717 = vadd.f32 0.0, %v716
  %v718 = vpop.f32.mrb[0].mxu0
  %719 = vmatprep.mubr.bf16.mxu0 0
  %720 = vmatmul.mubr.bf16.gmra.mrb[0].mxu0 %v462
  %v721 = vpop.f32.mrb[0].mxu0
  %v722 = vadd.f32 0.0, %v721
  %v723 = vpop.f32.mrb[0].mxu0
  %v724 = vpop.f32.mrb[0].mxu0
  %v725 = vadd.f32 0.0, %v724
  %v726 = vpop.f32.mrb[0].mxu0
  %727 = vmatprep.mubr.bf16.mxu0 0
  %728 = vmatmul.mubr.bf16.gmra.mrb[0].mxu0 %v465
  %v729 = vpop.f32.mrb[0].mxu0
  %v730 = vadd.f32 0.0, %v729
  %v731 = vpop.f32.mrb[0].mxu0
  %v732 = vpop.f32.mrb[0].mxu0
  %v733 = vadd.f32 0.0, %v732
  %v734 = vpop.f32.mrb[0].mxu0
  %735 = vmatprep.mubr.bf16.mxu0 0
  %736 = vmatmul.mubr.bf16.gmra.mrb[0].mxu0 %v468
  %v737 = vpop.f32.mrb[0].mxu0
  %v738 = vadd.f32 0.0, %v737
  %v739 = vpop.f32.mrb[0].mxu0
  %v740 = vpop.f32.mrb[0].mxu0
  %v741 = vadd.f32 0.0, %v740
  %v742 = vpop.f32.mrb[0].mxu0
  %743 = vmatprep.mubr.bf16.mxu0 0
  %744 = vmatmul.mubr.bf16.gmra.mrb[0].mxu0 %v471
  %v745 = vpop.f32.mrb[0].mxu0
  %v746 = vadd.f32 0.0, %v745
  %v747 = vpop.f32.mrb[0].mxu0
  %v748 = vpop.f32.mrb[0].mxu0
  %v749 = vadd.f32 0.0, %v748
  %v750 = vpop.f32.mrb[0].mxu0
  %751 = vmatprep.mubr.bf16.mxu0 0
  %752 = vmatmul.mubr.bf16.gmra.mrb[0].mxu0 %v474
  %v753 = vpop.f32.mrb[0].mxu0
  %v754 = vadd.f32 0.0, %v753
  %v755 = vpop.f32.mrb[0].mxu0
  %v756 = vpop.f32.mrb[0].mxu0
  %v757 = vadd.f32 0.0, %v756
  %v758 = vpop.f32.mrb[0].mxu0
  %759 = vmatprep.mubr.bf16.mxu0 0
  %760 = vmatmul.mubr.bf16.gmra.mrb[0].mxu0 %v477
  %v761 = vpop.f32.mrb[0].mxu0
  %v762 = vadd.f32 0.0, %v761
  %v763 = vpop.f32.mrb[0].mxu0
  %v764 = vpop.f32.mrb[0].mxu0
  %v765 = vadd.f32 0.0, %v764
  %v766 = vpop.f32.mrb[0].mxu0
  %767 = vdwg.mxu0
  %v768 = vadd.f32 %v86, %v514
  %v769 = vadd.f32 %v87, %v517
  %v770 = vadd.f32 %v88, %v522
  %v771 = vadd.f32 %v89, %v525
  %v772 = vadd.f32 %v90, %v530
  %v773 = vadd.f32 %v91, %v533
  %v774 = vadd.f32 %v92, %v538
  %v775 = vadd.f32 %v93, %v541
  %v776 = vadd.f32 %v94, %v546
  %v777 = vadd.f32 %v95, %v549
  %v778 = vadd.f32 %v96, %v554
  %v779 = vadd.f32 %v97, %v557
  %v780 = vadd.f32 %v98, %v562
  %v781 = vadd.f32 %v99, %v565
  %v782 = vadd.f32 %v100, %v570
  %v783 = vadd.f32 %v101, %v573
  %v784 = vadd.f32 %v102, %v578
  %v785 = vadd.f32 %v103, %v581
  %v786 = vadd.f32 %v104, %v586
  %v787 = vadd.f32 %v105, %v589
  %v788 = vadd.f32 %v106, %v594
  %v789 = vadd.f32 %v107, %v597
  %v790 = vadd.f32 %v108, %v602
  %v791 = vadd.f32 %v109, %v605
  %v792 = vadd.f32 %v110, %v610
  %v793 = vadd.f32 %v111, %v613
  %v794 = vadd.f32 %v112, %v618
  %v795 = vadd.f32 %v113, %v621
  %v796 = vadd.f32 %v114, %v626
  %v797 = vadd.f32 %v115, %v629
  %v798 = vadd.f32 %v116, %v634
  %v799 = vadd.f32 %v117, %v637
  %v800 = vadd.f32 %v118, %v642
  %v801 = vadd.f32 %v119, %v645
  %v802 = vadd.f32 %v120, %v650
  %v803 = vadd.f32 %v121, %v653
  %v804 = vadd.f32 %v122, %v658
  %v805 = vadd.f32 %v123, %v661
  %v806 = vadd.f32 %v124, %v666
  %v807 = vadd.f32 %v125, %v669
  %v808 = vadd.f32 %v126, %v674
  %v809 = vadd.f32 %v127, %v677
  %v810 = vadd.f32 %v128, %v682
  %v811 = vadd.f32 %v129, %v685
  %v812 = vadd.f32 %v130, %v690
  %v813 = vadd.f32 %v131, %v693
  %v814 = vadd.f32 %v132, %v698
  %v815 = vadd.f32 %v133, %v701
  %v816 = vadd.f32 %v134, %v706
  %v817 = vadd.f32 %v135, %v709
  %v818 = vadd.f32 %v136, %v714
  %v819 = vadd.f32 %v137, %v717
  %v820 = vadd.f32 %v138, %v722
  %v821 = vadd.f32 %v139, %v725
  %v822 = vadd.f32 %v140, %v730
  %v823 = vadd.f32 %v141, %v733
  %v824 = vadd.f32 %v142, %v738
  %v825 = vadd.f32 %v143, %v741
  %v826 = vadd.f32 %v144, %v746
  %v827 = vadd.f32 %v145, %v749
  %v828 = vadd.f32 %v146, %v754
  %v829 = vadd.f32 %v147, %v757
  %v830 = vadd.f32 %v148, %v762
  %v831 = vadd.f32 %v149, %v765
  %832 = vst [vmem:[#allocation2] sm:$0xff] %v768
  %833 = vst [vmem:[#allocation2 + $0x8] sm:$0xff] %v769
  %834 = vst [vmem:[#allocation2 + $0x10] sm:$0xff] %v770
  %835 = vst [vmem:[#allocation2 + $0x18] sm:$0xff] %v771
  %836 = vst [vmem:[#allocation2 + $0x20] sm:$0xff] %v772
  %837 = vst [vmem:[#allocation2 + $0x28] sm:$0xff] %v773
  %838 = vst [vmem:[#allocation2 + $0x30] sm:$0xff] %v774
  %839 = vst [vmem:[#allocation2 + $0x38] sm:$0xff] %v775
  %840 = vst [vmem:[#allocation2 + $0x40] sm:$0xff] %v776
  %841 = vst [vmem:[#allocation2 + $0x48] sm:$0xff] %v777
  %842 = vst [vmem:[#allocation2 + $0x50] sm:$0xff] %v778
  %843 = vst [vmem:[#allocation2 + $0x58] sm:$0xff] %v779
  %844 = vst [vmem:[#allocation2 + $0x60] sm:$0xff] %v780
  %845 = vst [vmem:[#allocation2 + $0x68] sm:$0xff] %v781
  %846 = vst [vmem:[#allocation2 + $0x70] sm:$0xff] %v782
  %847 = vst [vmem:[#allocation2 + $0x78] sm:$0xff] %v783
  %848 = vst [vmem:[#allocation2 + $0x80] sm:$0xff] %v784
  %849 = vst [vmem:[#allocation2 + $0x88] sm:$0xff] %v785
  %850 = vst [vmem:[#allocation2 + $0x90] sm:$0xff] %v786
  %851 = vst [vmem:[#allocation2 + $0x98] sm:$0xff] %v787
  %852 = vst [vmem:[#allocation2 + $0xa0] sm:$0xff] %v788
  %853 = vst [vmem:[#allocation2 + $0xa8] sm:$0xff] %v789
  %854 = vst [vmem:[#allocation2 + $0xb0] sm:$0xff] %v790
  %855 = vst [vmem:[#allocation2 + $0xb8] sm:$0xff] %v791
  %856 = vst [vmem:[#allocation2 + $0xc0] sm:$0xff] %v792
  %857 = vst [vmem:[#allocation2 + $0xc8] sm:$0xff] %v793
  %858 = vst [vmem:[#allocation2 + $0xd0] sm:$0xff] %v794
  %859 = vst [vmem:[#allocation2 + $0xd8] sm:$0xff] %v795
  %860 = vst [vmem:[#allocation2 + $0xe0] sm:$0xff] %v796
  %861 = vst [vmem:[#allocation2 + $0xe8] sm:$0xff] %v797
  %862 = vst [vmem:[#allocation2 + $0xf0] sm:$0xff] %v798
  %863 = vst [vmem:[#allocation2 + $0xf8] sm:$0xff] %v799
  %864 = vst [vmem:[#allocation2 + $0x100] sm:$0xff] %v800
  %865 = vst [vmem:[#allocation2 + $0x108] sm:$0xff] %v801
  %866 = vst [vmem:[#allocation2 + $0x110] sm:$0xff] %v802
  %867 = vst [vmem:[#allocation2 + $0x118] sm:$0xff] %v803
  %868 = vst [vmem:[#allocation2 + $0x120] sm:$0xff] %v804
  %869 = vst [vmem:[#allocation2 + $0x128] sm:$0xff] %v805
  %870 = vst [vmem:[#allocation2 + $0x130] sm:$0xff] %v806
  %871 = vst [vmem:[#allocation2 + $0x138] sm:$0xff] %v807
  %872 = vst [vmem:[#allocation2 + $0x140] sm:$0xff] %v808
  %873 = vst [vmem:[#allocation2 + $0x148] sm:$0xff] %v809
  %874 = vst [vmem:[#allocation2 + $0x150] sm:$0xff] %v810
  %875 = vst [vmem:[#allocation2 + $0x158] sm:$0xff] %v811
  %876 = vst [vmem:[#allocation2 + $0x160] sm:$0xff] %v812
  %877 = vst [vmem:[#allocation2 + $0x168] sm:$0xff] %v813
  %878 = vst [vmem:[#allocation2 + $0x170] sm:$0xff] %v814
  %879 = vst [vmem:[#allocation2 + $0x178] sm:$0xff] %v815
  %880 = vst [vmem:[#allocation2 + $0x180] sm:$0xff] %v816
  %881 = vst [vmem:[#allocation2 + $0x188] sm:$0xff] %v817
  %882 = vst [vmem:[#allocation2 + $0x190] sm:$0xff] %v818
  %883 = vst [vmem:[#allocation2 + $0x198] sm:$0xff] %v819
  %884 = vst [vmem:[#allocation2 + $0x1a0] sm:$0xff] %v820
  %885 = vst [vmem:[#allocation2 + $0x1a8] sm:$0xff] %v821
  %886 = vst [vmem:[#allocation2 + $0x1b0] sm:$0xff] %v822
  %887 = vst [vmem:[#allocation2 + $0x1b8] sm:$0xff] %v823
  %888 = vst [vmem:[#allocation2 + $0x1c0] sm:$0xff] %v824
  %889 = vst [vmem:[#allocation2 + $0x1c8] sm:$0xff] %v825
  %890 = vst [vmem:[#allocation2 + $0x1d0] sm:$0xff] %v826
  %891 = vst [vmem:[#allocation2 + $0x1d8] sm:$0xff] %v827
  %892 = vst [vmem:[#allocation2 + $0x1e0] sm:$0xff] %v828
  %893 = vst [vmem:[#allocation2 + $0x1e8] sm:$0xff] %v829
  %894 = vst [vmem:[#allocation2 + $0x1f0] sm:$0xff] %v830
  %895 = vst [vmem:[#allocation2 + $0x1f8] sm:$0xff] %v831
  // Predicated region
  $region22: #{encoder_forward.4} parent=0 // pred_check
    %p896 = pneg %p18
  $region23: #{encoder_forward.4} parent=0 // pred_check_branch
    %898 = sbr.rel (%p896) target = $region25
  $region24: #{encoder_forward.4} parent=0 // pred_region
    %v899 = vld [vmem:[#allocation2] sm:$0xff]
    %v900 = vld [vmem:[#allocation2 + $0x8] sm:$0xff]
    %v901 = vld [vmem:[#allocation2 + $0x10] sm:$0xff]
    %v902 = vld [vmem:[#allocation2 + $0x18] sm:$0xff]
    %v903 = vld [vmem:[#allocation2 + $0x20] sm:$0xff]
    %v904 = vld [vmem:[#allocation2 + $0x28] sm:$0xff]
    %v905 = vld [vmem:[#allocation2 + $0x30] sm:$0xff]
    %v906 = vld [vmem:[#allocation2 + $0x38] sm:$0xff]
    %v907 = vld [vmem:[#allocation2 + $0x40] sm:$0xff]
    %v908 = vld [vmem:[#allocation2 + $0x48] sm:$0xff]
    %v909 = vld [vmem:[#allocation2 + $0x50] sm:$0xff]
    %v910 = vld [vmem:[#allocation2 + $0x58] sm:$0xff]
    %v911 = vld [vmem:[#allocation2 + $0x60] sm:$0xff]
    %v912 = vld [vmem:[#allocation2 + $0x68] sm:$0xff]
    %v913 = vld [vmem:[#allocation2 + $0x70] sm:$0xff]
    %v914 = vld [vmem:[#allocation2 + $0x78] sm:$0xff]
    %v915 = vld [vmem:[#allocation2 + $0x80] sm:$0xff]
    %v916 = vld [vmem:[#allocation2 + $0x88] sm:$0xff]
    %v917 = vld [vmem:[#allocation2 + $0x90] sm:$0xff]
    %v918 = vld [vmem:[#allocation2 + $0x98] sm:$0xff]
    %v919 = vld [vmem:[#allocation2 + $0xa0] sm:$0xff]
    %v920 = vld [vmem:[#allocation2 + $0xa8] sm:$0xff]
    %v921 = vld [vmem:[#allocation2 + $0xb0] sm:$0xff]
    %v922 = vld [vmem:[#allocation2 + $0xb8] sm:$0xff]
    %v923 = vld [vmem:[#allocation2 + $0xc0] sm:$0xff]
    %v924 = vld [vmem:[#allocation2 + $0xc8] sm:$0xff]
    %v925 = vld [vmem:[#allocation2 + $0xd0] sm:$0xff]
    %v926 = vld [vmem:[#allocation2 + $0xd8] sm:$0xff]
    %v927 = vld [vmem:[#allocation2 + $0xe0] sm:$0xff]
    %v928 = vld [vmem:[#allocation2 + $0xe8] sm:$0xff]
    %v929 = vld [vmem:[#allocation2 + $0xf0] sm:$0xff]
    %v930 = vld [vmem:[#allocation2 + $0xf8] sm:$0xff]
    %v931 = vld [vmem:[#allocation2 + $0x100] sm:$0xff]
    %v932 = vld [vmem:[#allocation2 + $0x108] sm:$0xff]
    %v933 = vld [vmem:[#allocation2 + $0x110] sm:$0xff]
    %v934 = vld [vmem:[#allocation2 + $0x118] sm:$0xff]
    %v935 = vld [vmem:[#allocation2 + $0x120] sm:$0xff]
    %v936 = vld [vmem:[#allocation2 + $0x128] sm:$0xff]
    %v937 = vld [vmem:[#allocation2 + $0x130] sm:$0xff]
    %v938 = vld [vmem:[#allocation2 + $0x138] sm:$0xff]
    %v939 = vld [vmem:[#allocation2 + $0x140] sm:$0xff]
    %v940 = vld [vmem:[#allocation2 + $0x148] sm:$0xff]
    %v941 = vld [vmem:[#allocation2 + $0x150] sm:$0xff]
    %v942 = vld [vmem:[#allocation2 + $0x158] sm:$0xff]
    %v943 = vld [vmem:[#allocation2 + $0x160] sm:$0xff]
    %v944 = vld [vmem:[#allocation2 + $0x168] sm:$0xff]
    %v945 = vld [vmem:[#allocation2 + $0x170] sm:$0xff]
    %v946 = vld [vmem:[#allocation2 + $0x178] sm:$0xff]
    %v947 = vld [vmem:[#allocation2 + $0x180] sm:$0xff]
    %v948 = vld [vmem:[#allocation2 + $0x188] sm:$0xff]
    %v949 = vld [vmem:[#allocation2 + $0x190] sm:$0xff]
    %v950 = vld [vmem:[#allocation2 + $0x198] sm:$0xff]
    %v951 = vld [vmem:[#allocation2 + $0x1a0] sm:$0xff]
    %v952 = vld [vmem:[#allocation2 + $0x1a8] sm:$0xff]
    %v953 = vld [vmem:[#allocation2 + $0x1b0] sm:$0xff]
    %v954 = vld [vmem:[#allocation2 + $0x1b8] sm:$0xff]
    %v955 = vld [vmem:[#allocation2 + $0x1c0] sm:$0xff]
    %v956 = vld [vmem:[#allocation2 + $0x1c8] sm:$0xff]
    %v957 = vld [vmem:[#allocation2 + $0x1d0] sm:$0xff]
    %v958 = vld [vmem:[#allocation2 + $0x1d8] sm:$0xff]
    %v959 = vld [vmem:[#allocation2 + $0x1e0] sm:$0xff]
    %v960 = vld [vmem:[#allocation2 + $0x1e8] sm:$0xff]
    %v961 = vld [vmem:[#allocation2 + $0x1f0] sm:$0xff]
    %v962 = vld [vmem:[#allocation2 + $0x1f8] sm:$0xff]
    %v963 = vld [vmem:[%s2] sm:$0x1]
    %v965 = vlaneseq
    %v966 = vshrl.u32 %v965, 7
    %v967 = vsub.s32 0, %v966
    %v968 = vrot.slane %v963, %v967
    %v970 = vadd.f32 %v899, %v968
    %v971 = vadd.f32 %v900, %v968
    %v972 = vadd.f32 %v901, %v968
    %v973 = vadd.f32 %v902, %v968
    %v974 = vadd.f32 %v903, %v968
    %v975 = vadd.f32 %v904, %v968
    %v976 = vadd.f32 %v905, %v968
    %v977 = vadd.f32 %v906, %v968
    %v978 = vadd.f32 %v907, %v968
    %v979 = vadd.f32 %v908, %v968
    %v980 = vadd.f32 %v909, %v968
    %v981 = vadd.f32 %v910, %v968
    %v982 = vadd.f32 %v911, %v968
    %v983 = vadd.f32 %v912, %v968
    %v984 = vadd.f32 %v913, %v968
    %v985 = vadd.f32 %v914, %v968
    %v986 = vadd.f32 %v915, %v968
    %v987 = vadd.f32 %v916, %v968
    %v988 = vadd.f32 %v917, %v968
    %v989 = vadd.f32 %v918, %v968
    %v990 = vadd.f32 %v919, %v968
    %v991 = vadd.f32 %v920, %v968
    %v992 = vadd.f32 %v921, %v968
    %v993 = vadd.f32 %v922, %v968
    %v994 = vadd.f32 %v923, %v968
    %v995 = vadd.f32 %v924, %v968
    %v996 = vadd.f32 %v925, %v968
    %v997 = vadd.f32 %v926, %v968
    %v998 = vadd.f32 %v927, %v968
    %v999 = vadd.f32 %v928, %v968
    %v1000 = vadd.f32 %v929, %v968
    %v1001 = vadd.f32 %v930, %v968
    %v1002 = vadd.f32 %v931, %v968
    %v1003 = vadd.f32 %v932, %v968
    %v1004 = vadd.f32 %v933, %v968
    %v1005 = vadd.f32 %v934, %v968
    %v1006 = vadd.f32 %v935, %v968
    %v1007 = vadd.f32 %v936, %v968
    %v1008 = vadd.f32 %v937, %v968
    %v1009 = vadd.f32 %v938, %v968
    %v1010 = vadd.f32 %v939, %v968
    %v1011 = vadd.f32 %v940, %v968
    %v1012 = vadd.f32 %v941, %v968
    %v1013 = vadd.f32 %v942, %v968
    %v1014 = vadd.f32 %v943, %v968
    %v1015 = vadd.f32 %v944, %v968
    %v1016 = vadd.f32 %v945, %v968
    %v1017 = vadd.f32 %v946, %v968
    %v1018 = vadd.f32 %v947, %v968
    %v1019 = vadd.f32 %v948, %v968
    %v1020 = vadd.f32 %v949, %v968
    %v1021 = vadd.f32 %v950, %v968
    %v1022 = vadd.f32 %v951, %v968
    %v1023 = vadd.f32 %v952, %v968
    %v1024 = vadd.f32 %v953, %v968
    %v1025 = vadd.f32 %v954, %v968
    %v1026 = vadd.f32 %v955, %v968
    %v1027 = vadd.f32 %v956, %v968
    %v1028 = vadd.f32 %v957, %v968
    %v1029 = vadd.f32 %v958, %v968
    %v1030 = vadd.f32 %v959, %v968
    %v1031 = vadd.f32 %v960, %v968
    %v1032 = vadd.f32 %v961, %v968
    %v1033 = vadd.f32 %v962, %v968
    %v1034 = vmax.f32 %v970, 0.0
    %v1035 = vmax.f32 %v971, 0.0
    %v1036 = vmax.f32 %v972, 0.0
    %v1037 = vmax.f32 %v973, 0.0
    %v1038 = vmax.f32 %v974, 0.0
    %v1039 = vmax.f32 %v975, 0.0
    %v1040 = vmax.f32 %v976, 0.0
    %v1041 = vmax.f32 %v977, 0.0
    %v1042 = vmax.f32 %v978, 0.0
    %v1043 = vmax.f32 %v979, 0.0
    %v1044 = vmax.f32 %v980, 0.0
    %v1045 = vmax.f32 %v981, 0.0
    %v1046 = vmax.f32 %v982, 0.0
    %v1047 = vmax.f32 %v983, 0.0
    %v1048 = vmax.f32 %v984, 0.0
    %v1049 = vmax.f32 %v985, 0.0
    %v1050 = vmax.f32 %v986, 0.0
    %v1051 = vmax.f32 %v987, 0.0
    %v1052 = vmax.f32 %v988, 0.0
    %v1053 = vmax.f32 %v989, 0.0
    %v1054 = vmax.f32 %v990, 0.0
    %v1055 = vmax.f32 %v991, 0.0
    %v1056 = vmax.f32 %v992, 0.0
    %v1057 = vmax.f32 %v993, 0.0
    %v1058 = vmax.f32 %v994, 0.0
    %v1059 = vmax.f32 %v995, 0.0
    %v1060 = vmax.f32 %v996, 0.0
    %v1061 = vmax.f32 %v997, 0.0
    %v1062 = vmax.f32 %v998, 0.0
    %v1063 = vmax.f32 %v999, 0.0
    %v1064 = vmax.f32 %v1000, 0.0
    %v1065 = vmax.f32 %v1001, 0.0
    %v1066 = vmax.f32 %v1002, 0.0
    %v1067 = vmax.f32 %v1003, 0.0
    %v1068 = vmax.f32 %v1004, 0.0
    %v1069 = vmax.f32 %v1005, 0.0
    %v1070 = vmax.f32 %v1006, 0.0
    %v1071 = vmax.f32 %v1007, 0.0
    %v1072 = vmax.f32 %v1008, 0.0
    %v1073 = vmax.f32 %v1009, 0.0
    %v1074 = vmax.f32 %v1010, 0.0
    %v1075 = vmax.f32 %v1011, 0.0
    %v1076 = vmax.f32 %v1012, 0.0
    %v1077 = vmax.f32 %v1013, 0.0
    %v1078 = vmax.f32 %v1014, 0.0
    %v1079 = vmax.f32 %v1015, 0.0
    %v1080 = vmax.f32 %v1016, 0.0
    %v1081 = vmax.f32 %v1017, 0.0
    %v1082 = vmax.f32 %v1018, 0.0
    %v1083 = vmax.f32 %v1019, 0.0
    %v1084 = vmax.f32 %v1020, 0.0
    %v1085 = vmax.f32 %v1021, 0.0
    %v1086 = vmax.f32 %v1022, 0.0
    %v1087 = vmax.f32 %v1023, 0.0
    %v1088 = vmax.f32 %v1024, 0.0
    %v1089 = vmax.f32 %v1025, 0.0
    %v1090 = vmax.f32 %v1026, 0.0
    %v1091 = vmax.f32 %v1027, 0.0
    %v1092 = vmax.f32 %v1028, 0.0
    %v1093 = vmax.f32 %v1029, 0.0
    %v1094 = vmax.f32 %v1030, 0.0
    %v1095 = vmax.f32 %v1031, 0.0
    %v1096 = vmax.f32 %v1032, 0.0
    %v1097 = vmax.f32 %v1033, 0.0
    %v1098 = vld [vmem:[%s3] sm:$0xf]
    %v1099 = vld [vmem:[%s3 + $0x4] sm:$0xf]
    %v1100 = vld [vmem:[%s3 + $0x8] sm:$0xf]
    %v1101 = vld [vmem:[%s3 + $0xc] sm:$0xf]
    %v1102 = vld [vmem:[%s3 + $0x10] sm:$0xf]
    %v1103 = vld [vmem:[%s3 + $0x14] sm:$0xf]
    %v1104 = vld [vmem:[%s3 + $0x18] sm:$0xf]
    %v1105 = vld [vmem:[%s3 + $0x1c] sm:$0xf]
    %v1106 = vld [vmem:[%s3 + $0x20] sm:$0xf]
    %v1107 = vld [vmem:[%s3 + $0x24] sm:$0xf]
    %v1108 = vld [vmem:[%s3 + $0x28] sm:$0xf]
    %v1109 = vld [vmem:[%s3 + $0x2c] sm:$0xf]
    %v1110 = vld [vmem:[%s3 + $0x30] sm:$0xf]
    %v1111 = vld [vmem:[%s3 + $0x34] sm:$0xf]
    %v1112 = vld [vmem:[%s3 + $0x38] sm:$0xf]
    %v1113 = vld [vmem:[%s3 + $0x3c] sm:$0xf]
    %v1114 = vld [vmem:[%s3 + $0x40] sm:$0xf]
    %v1115 = vld [vmem:[%s3 + $0x44] sm:$0xf]
    %v1116 = vld [vmem:[%s3 + $0x48] sm:$0xf]
    %v1117 = vld [vmem:[%s3 + $0x4c] sm:$0xf]
    %v1118 = vld [vmem:[%s3 + $0x50] sm:$0xf]
    %v1119 = vld [vmem:[%s3 + $0x54] sm:$0xf]
    %v1120 = vld [vmem:[%s3 + $0x58] sm:$0xf]
    %v1121 = vld [vmem:[%s3 + $0x5c] sm:$0xf]
    %v1122 = vld [vmem:[%s3 + $0x60] sm:$0xf]
    %v1123 = vld [vmem:[%s3 + $0x64] sm:$0xf]
    %v1124 = vld [vmem:[%s3 + $0x68] sm:$0xf]
    %v1125 = vld [vmem:[%s3 + $0x6c] sm:$0xf]
    %v1126 = vld [vmem:[%s3 + $0x70] sm:$0xf]
    %v1127 = vld [vmem:[%s3 + $0x74] sm:$0xf]
    %v1128 = vld [vmem:[%s3 + $0x78] sm:$0xf]
    %v1129 = vld [vmem:[%s3 + $0x7c] sm:$0xf]
    %v1130 = vld [vmem:[%s3 + $0x80] sm:$0xf]
    %v1131 = vld [vmem:[%s3 + $0x84] sm:$0xf]
    %v1132 = vld [vmem:[%s3 + $0x88] sm:$0xf]
    %v1133 = vld [vmem:[%s3 + $0x8c] sm:$0xf]
    %v1134 = vld [vmem:[%s3 + $0x90] sm:$0xf]
    %v1135 = vld [vmem:[%s3 + $0x94] sm:$0xf]
    %v1136 = vld [vmem:[%s3 + $0x98] sm:$0xf]
    %v1137 = vld [vmem:[%s3 + $0x9c] sm:$0xf]
    %v1138 = vld [vmem:[%s3 + $0xa0] sm:$0xf]
    %v1139 = vld [vmem:[%s3 + $0xa4] sm:$0xf]
    %v1140 = vld [vmem:[%s3 + $0xa8] sm:$0xf]
    %v1141 = vld [vmem:[%s3 + $0xac] sm:$0xf]
    %v1142 = vld [vmem:[%s3 + $0xb0] sm:$0xf]
    %v1143 = vld [vmem:[%s3 + $0xb4] sm:$0xf]
    %v1144 = vld [vmem:[%s3 + $0xb8] sm:$0xf]
    %v1145 = vld [vmem:[%s3 + $0xbc] sm:$0xf]
    %v1146 = vld [vmem:[%s3 + $0xc0] sm:$0xf]
    %v1147 = vld [vmem:[%s3 + $0xc4] sm:$0xf]
    %v1148 = vld [vmem:[%s3 + $0xc8] sm:$0xf]
    %v1149 = vld [vmem:[%s3 + $0xcc] sm:$0xf]
    %v1150 = vld [vmem:[%s3 + $0xd0] sm:$0xf]
    %v1151 = vld [vmem:[%s3 + $0xd4] sm:$0xf]
    %v1152 = vld [vmem:[%s3 + $0xd8] sm:$0xf]
    %v1153 = vld [vmem:[%s3 + $0xdc] sm:$0xf]
    %v1154 = vld [vmem:[%s3 + $0xe0] sm:$0xf]
    %v1155 = vld [vmem:[%s3 + $0xe4] sm:$0xf]
    %v1156 = vld [vmem:[%s3 + $0xe8] sm:$0xf]
    %v1157 = vld [vmem:[%s3 + $0xec] sm:$0xf]
    %v1158 = vld [vmem:[%s3 + $0xf0] sm:$0xf]
    %v1159 = vld [vmem:[%s3 + $0xf4] sm:$0xf]
    %v1160 = vld [vmem:[%s3 + $0xf8] sm:$0xf]
    %v1161 = vld [vmem:[%s3 + $0xfc] sm:$0xf]
    %v1162 = vunpack.c.l.bf16 %v1098
    %v1163 = vunpack.c.l.bf16 %v1099
    %v1164 = vunpack.c.l.bf16 %v1100
    %v1165 = vunpack.c.l.bf16 %v1101
    %v1166 = vunpack.c.l.bf16 %v1102
    %v1167 = vunpack.c.l.bf16 %v1103
    %v1168 = vunpack.c.l.bf16 %v1104
    %v1169 = vunpack.c.l.bf16 %v1105
    %v1170 = vunpack.c.l.bf16 %v1106
    %v1171 = vunpack.c.l.bf16 %v1107
    %v1172 = vunpack.c.l.bf16 %v1108
    %v1173 = vunpack.c.l.bf16 %v1109
    %v1174 = vunpack.c.l.bf16 %v1110
    %v1175 = vunpack.c.l.bf16 %v1111
    %v1176 = vunpack.c.l.bf16 %v1112
    %v1177 = vunpack.c.l.bf16 %v1113
    %v1178 = vunpack.c.l.bf16 %v1114
    %v1179 = vunpack.c.l.bf16 %v1115
    %v1180 = vunpack.c.l.bf16 %v1116
    %v1181 = vunpack.c.l.bf16 %v1117
    %v1182 = vunpack.c.l.bf16 %v1118
    %v1183 = vunpack.c.l.bf16 %v1119
    %v1184 = vunpack.c.l.bf16 %v1120
    %v1185 = vunpack.c.l.bf16 %v1121
    %v1186 = vunpack.c.l.bf16 %v1122
    %v1187 = vunpack.c.l.bf16 %v1123
    %v1188 = vunpack.c.l.bf16 %v1124
    %v1189 = vunpack.c.l.bf16 %v1125
    %v1190 = vunpack.c.l.bf16 %v1126
    %v1191 = vunpack.c.l.bf16 %v1127
    %v1192 = vunpack.c.l.bf16 %v1128
    %v1193 = vunpack.c.l.bf16 %v1129
    %v1194 = vunpack.c.l.bf16 %v1130
    %v1195 = vunpack.c.l.bf16 %v1131
    %v1196 = vunpack.c.l.bf16 %v1132
    %v1197 = vunpack.c.l.bf16 %v1133
    %v1198 = vunpack.c.l.bf16 %v1134
    %v1199 = vunpack.c.l.bf16 %v1135
    %v1200 = vunpack.c.l.bf16 %v1136
    %v1201 = vunpack.c.l.bf16 %v1137
    %v1202 = vunpack.c.l.bf16 %v1138
    %v1203 = vunpack.c.l.bf16 %v1139
    %v1204 = vunpack.c.l.bf16 %v1140
    %v1205 = vunpack.c.l.bf16 %v1141
    %v1206 = vunpack.c.l.bf16 %v1142
    %v1207 = vunpack.c.l.bf16 %v1143
    %v1208 = vunpack.c.l.bf16 %v1144
    %v1209 = vunpack.c.l.bf16 %v1145
    %v1210 = vunpack.c.l.bf16 %v1146
    %v1211 = vunpack.c.l.bf16 %v1147
    %v1212 = vunpack.c.l.bf16 %v1148
    %v1213 = vunpack.c.l.bf16 %v1149
    %v1214 = vunpack.c.l.bf16 %v1150
    %v1215 = vunpack.c.l.bf16 %v1151
    %v1216 = vunpack.c.l.bf16 %v1152
    %v1217 = vunpack.c.l.bf16 %v1153
    %v1218 = vunpack.c.l.bf16 %v1154
    %v1219 = vunpack.c.l.bf16 %v1155
    %v1220 = vunpack.c.l.bf16 %v1156
    %v1221 = vunpack.c.l.bf16 %v1157
    %v1222 = vunpack.c.l.bf16 %v1158
    %v1223 = vunpack.c.l.bf16 %v1159
    %v1224 = vunpack.c.l.bf16 %v1160
    %v1225 = vunpack.c.l.bf16 %v1161
    %v1226 = vadd.f32 %v1034, %v1162
    %v1227 = vadd.f32 %v1035, %v1163
    %v1228 = vadd.f32 %v1036, %v1164
    %v1229 = vadd.f32 %v1037, %v1165
    %v1230 = vadd.f32 %v1038, %v1166
    %v1231 = vadd.f32 %v1039, %v1167
    %v1232 = vadd.f32 %v1040, %v1168
    %v1233 = vadd.f32 %v1041, %v1169
    %v1234 = vadd.f32 %v1042, %v1170
    %v1235 = vadd.f32 %v1043, %v1171
    %v1236 = vadd.f32 %v1044, %v1172
    %v1237 = vadd.f32 %v1045, %v1173
    %v1238 = vadd.f32 %v1046, %v1174
    %v1239 = vadd.f32 %v1047, %v1175
    %v1240 = vadd.f32 %v1048, %v1176
    %v1241 = vadd.f32 %v1049, %v1177
    %v1242 = vadd.f32 %v1050, %v1178
    %v1243 = vadd.f32 %v1051, %v1179
    %v1244 = vadd.f32 %v1052, %v1180
    %v1245 = vadd.f32 %v1053, %v1181
    %v1246 = vadd.f32 %v1054, %v1182
    %v1247 = vadd.f32 %v1055, %v1183
    %v1248 = vadd.f32 %v1056, %v1184
    %v1249 = vadd.f32 %v1057, %v1185
    %v1250 = vadd.f32 %v1058, %v1186
    %v1251 = vadd.f32 %v1059, %v1187
    %v1252 = vadd.f32 %v1060, %v1188
    %v1253 = vadd.f32 %v1061, %v1189
    %v1254 = vadd.f32 %v1062, %v1190
    %v1255 = vadd.f32 %v1063, %v1191
    %v1256 = vadd.f32 %v1064, %v1192
    %v1257 = vadd.f32 %v1065, %v1193
    %v1258 = vadd.f32 %v1066, %v1194
    %v1259 = vadd.f32 %v1067, %v1195
    %v1260 = vadd.f32 %v1068, %v1196
    %v1261 = vadd.f32 %v1069, %v1197
    %v1262 = vadd.f32 %v1070, %v1198
    %v1263 = vadd.f32 %v1071, %v1199
    %v1264 = vadd.f32 %v1072, %v1200
    %v1265 = vadd.f32 %v1073, %v1201
    %v1266 = vadd.f32 %v1074, %v1202
    %v1267 = vadd.f32 %v1075, %v1203
    %v1268 = vadd.f32 %v1076, %v1204
    %v1269 = vadd.f32 %v1077, %v1205
    %v1270 = vadd.f32 %v1078, %v1206
    %v1271 = vadd.f32 %v1079, %v1207
    %v1272 = vadd.f32 %v1080, %v1208
    %v1273 = vadd.f32 %v1081, %v1209
    %v1274 = vadd.f32 %v1082, %v1210
    %v1275 = vadd.f32 %v1083, %v1211
    %v1276 = vadd.f32 %v1084, %v1212
    %v1277 = vadd.f32 %v1085, %v1213
    %v1278 = vadd.f32 %v1086, %v1214
    %v1279 = vadd.f32 %v1087, %v1215
    %v1280 = vadd.f32 %v1088, %v1216
    %v1281 = vadd.f32 %v1089, %v1217
    %v1282 = vadd.f32 %v1090, %v1218
    %v1283 = vadd.f32 %v1091, %v1219
    %v1284 = vadd.f32 %v1092, %v1220
    %v1285 = vadd.f32 %v1093, %v1221
    %v1286 = vadd.f32 %v1094, %v1222
    %v1287 = vadd.f32 %v1095, %v1223
    %v1288 = vadd.f32 %v1096, %v1224
    %v1289 = vadd.f32 %v1097, %v1225
    %v1290 = vpack.c.bf16 %v1227, %v1226
    %v1291 = vpack.c.bf16 %v1229, %v1228
    %v1292 = vpack.c.bf16 %v1231, %v1230
    %v1293 = vpack.c.bf16 %v1233, %v1232
    %v1294 = vpack.c.bf16 %v1235, %v1234
    %v1295 = vpack.c.bf16 %v1237, %v1236
    %v1296 = vpack.c.bf16 %v1239, %v1238
    %v1297 = vpack.c.bf16 %v1241, %v1240
    %v1298 = vpack.c.bf16 %v1243, %v1242
    %v1299 = vpack.c.bf16 %v1245, %v1244
    %v1300 = vpack.c.bf16 %v1247, %v1246
    %v1301 = vpack.c.bf16 %v1249, %v1248
    %v1302 = vpack.c.bf16 %v1251, %v1250
    %v1303 = vpack.c.bf16 %v1253, %v1252
    %v1304 = vpack.c.bf16 %v1255, %v1254
    %v1305 = vpack.c.bf16 %v1257, %v1256
    %v1306 = vpack.c.bf16 %v1259, %v1258
    %v1307 = vpack.c.bf16 %v1261, %v1260
    %v1308 = vpack.c.bf16 %v1263, %v1262
    %v1309 = vpack.c.bf16 %v1265, %v1264
    %v1310 = vpack.c.bf16 %v1267, %v1266
    %v1311 = vpack.c.bf16 %v1269, %v1268
    %v1312 = vpack.c.bf16 %v1271, %v1270
    %v1313 = vpack.c.bf16 %v1273, %v1272
    %v1314 = vpack.c.bf16 %v1275, %v1274
    %v1315 = vpack.c.bf16 %v1277, %v1276
    %v1316 = vpack.c.bf16 %v1279, %v1278
    %v1317 = vpack.c.bf16 %v1281, %v1280
    %v1318 = vpack.c.bf16 %v1283, %v1282
    %v1319 = vpack.c.bf16 %v1285, %v1284
    %v1320 = vpack.c.bf16 %v1287, %v1286
    %v1321 = vpack.c.bf16 %v1289, %v1288
    %v1354 = vunpack.c.l.b16 %v1290
    %v1355 = vunpack.c.h.b16 %v1290
    %v1356 = vunpack.c.l.b16 %v1291
    %v1357 = vunpack.c.h.b16 %v1291
    %v1358 = vunpack.c.l.b16 %v1292
    %v1359 = vunpack.c.h.b16 %v1292
    %v1360 = vunpack.c.l.b16 %v1293
    %v1361 = vunpack.c.h.b16 %v1293
    %v1362 = vunpack.c.l.b16 %v1294
    %v1363 = vunpack.c.h.b16 %v1294
    %v1364 = vunpack.c.l.b16 %v1295
    %v1365 = vunpack.c.h.b16 %v1295
    %v1366 = vunpack.c.l.b16 %v1296
    %v1367 = vunpack.c.h.b16 %v1296
    %v1368 = vunpack.c.l.b16 %v1297
    %v1369 = vunpack.c.h.b16 %v1297
    %v1370 = vunpack.c.l.b16 %v1298
    %v1371 = vunpack.c.h.b16 %v1298
    %v1372 = vunpack.c.l.b16 %v1299
    %v1373 = vunpack.c.h.b16 %v1299
    %v1374 = vunpack.c.l.b16 %v1300
    %v1375 = vunpack.c.h.b16 %v1300
    %v1376 = vunpack.c.l.b16 %v1301
    %v1377 = vunpack.c.h.b16 %v1301
    %v1378 = vunpack.c.l.b16 %v1302
    %v1379 = vunpack.c.h.b16 %v1302
    %v1380 = vunpack.c.l.b16 %v1303
    %v1381 = vunpack.c.h.b16 %v1303
    %v1382 = vunpack.c.l.b16 %v1304
    %v1383 = vunpack.c.h.b16 %v1304
    %v1384 = vunpack.c.l.b16 %v1305
    %v1385 = vunpack.c.h.b16 %v1305
    %v1386 = vunpack.c.l.b16 %v1306
    %v1387 = vunpack.c.h.b16 %v1306
    %v1388 = vunpack.c.l.b16 %v1307
    %v1389 = vunpack.c.h.b16 %v1307
    %v1390 = vunpack.c.l.b16 %v1308
    %v1391 = vunpack.c.h.b16 %v1308
    %v1392 = vunpack.c.l.b16 %v1309
    %v1393 = vunpack.c.h.b16 %v1309
    %v1394 = vunpack.c.l.b16 %v1310
    %v1395 = vunpack.c.h.b16 %v1310
    %v1396 = vunpack.c.l.b16 %v1311
    %v1397 = vunpack.c.h.b16 %v1311
    %v1398 = vunpack.c.l.b16 %v1312
    %v1399 = vunpack.c.h.b16 %v1312
    %v1400 = vunpack.c.l.b16 %v1313
    %v1401 = vunpack.c.h.b16 %v1313
    %v1402 = vunpack.c.l.b16 %v1314
    %v1403 = vunpack.c.h.b16 %v1314
    %v1404 = vunpack.c.l.b16 %v1315
    %v1405 = vunpack.c.h.b16 %v1315
    %v1406 = vunpack.c.l.b16 %v1316
    %v1407 = vunpack.c.h.b16 %v1316
    %v1408 = vunpack.c.l.b16 %v1317
    %v1409 = vunpack.c.h.b16 %v1317
    %v1410 = vunpack.c.l.b16 %v1318
    %v1411 = vunpack.c.h.b16 %v1318
    %v1412 = vunpack.c.l.b16 %v1319
    %v1413 = vunpack.c.h.b16 %v1319
    %v1414 = vunpack.c.l.b16 %v1320
    %v1415 = vunpack.c.h.b16 %v1320
    %v1416 = vunpack.c.l.b16 %v1321
    %v1417 = vunpack.c.h.b16 %v1321
    %v1418 = vpack.c.b16 %v1354, %v1354
    %v1419 = vpack.c.b16 %v1355, %v1355
    %v1420 = vpack.c.b16 %v1356, %v1356
    %v1421 = vpack.c.b16 %v1357, %v1357
    %v1422 = vpack.c.b16 %v1358, %v1358
    %v1423 = vpack.c.b16 %v1359, %v1359
    %v1424 = vpack.c.b16 %v1360, %v1360
    %v1425 = vpack.c.b16 %v1361, %v1361
    %v1426 = vpack.c.b16 %v1362, %v1362
    %v1427 = vpack.c.b16 %v1363, %v1363
    %v1428 = vpack.c.b16 %v1364, %v1364
    %v1429 = vpack.c.b16 %v1365, %v1365
    %v1430 = vpack.c.b16 %v1366, %v1366
    %v1431 = vpack.c.b16 %v1367, %v1367
    %v1432 = vpack.c.b16 %v1368, %v1368
    %v1433 = vpack.c.b16 %v1369, %v1369
    %v1434 = vpack.c.b16 %v1370, %v1370
    %v1435 = vpack.c.b16 %v1371, %v1371
    %v1436 = vpack.c.b16 %v1372, %v1372
    %v1437 = vpack.c.b16 %v1373, %v1373
    %v1438 = vpack.c.b16 %v1374, %v1374
    %v1439 = vpack.c.b16 %v1375, %v1375
    %v1440 = vpack.c.b16 %v1376, %v1376
    %v1441 = vpack.c.b16 %v1377, %v1377
    %v1442 = vpack.c.b16 %v1378, %v1378
    %v1443 = vpack.c.b16 %v1379, %v1379
    %v1444 = vpack.c.b16 %v1380, %v1380
    %v1445 = vpack.c.b16 %v1381, %v1381
    %v1446 = vpack.c.b16 %v1382, %v1382
    %v1447 = vpack.c.b16 %v1383, %v1383
    %v1448 = vpack.c.b16 %v1384, %v1384
    %v1449 = vpack.c.b16 %v1385, %v1385
    %v1450 = vpack.c.b16 %v1386, %v1386
    %v1451 = vpack.c.b16 %v1387, %v1387
    %v1452 = vpack.c.b16 %v1388, %v1388
    %v1453 = vpack.c.b16 %v1389, %v1389
    %v1454 = vpack.c.b16 %v1390, %v1390
    %v1455 = vpack.c.b16 %v1391, %v1391
    %v1456 = vpack.c.b16 %v1392, %v1392
    %v1457 = vpack.c.b16 %v1393, %v1393
    %v1458 = vpack.c.b16 %v1394, %v1394
    %v1459 = vpack.c.b16 %v1395, %v1395
    %v1460 = vpack.c.b16 %v1396, %v1396
    %v1461 = vpack.c.b16 %v1397, %v1397
    %v1462 = vpack.c.b16 %v1398, %v1398
    %v1463 = vpack.c.b16 %v1399, %v1399
    %v1464 = vpack.c.b16 %v1400, %v1400
    %v1465 = vpack.c.b16 %v1401, %v1401
    %v1466 = vpack.c.b16 %v1402, %v1402
    %v1467 = vpack.c.b16 %v1403, %v1403
    %v1468 = vpack.c.b16 %v1404, %v1404
    %v1469 = vpack.c.b16 %v1405, %v1405
    %v1470 = vpack.c.b16 %v1406, %v1406
    %v1471 = vpack.c.b16 %v1407, %v1407
    %v1472 = vpack.c.b16 %v1408, %v1408
    %v1473 = vpack.c.b16 %v1409, %v1409
    %v1474 = vpack.c.b16 %v1410, %v1410
    %v1475 = vpack.c.b16 %v1411, %v1411
    %v1476 = vpack.c.b16 %v1412, %v1412
    %v1477 = vpack.c.b16 %v1413, %v1413
    %v1478 = vpack.c.b16 %v1414, %v1414
    %v1479 = vpack.c.b16 %v1415, %v1415
    %v1480 = vpack.c.b16 %v1416, %v1416
    %v1481 = vpack.c.b16 %v1417, %v1417
    %1546 = vst [vmem:[%s4] sm:$0xf] %v1418
    %1547 = vst [vmem:[%s4 + $0x4] sm:$0xf] %v1419
    %1548 = vst [vmem:[%s4 + $0x8] sm:$0xf] %v1420
    %1549 = vst [vmem:[%s4 + $0xc] sm:$0xf] %v1421
    %1550 = vst [vmem:[%s4 + $0x10] sm:$0xf] %v1422
    %1551 = vst [vmem:[%s4 + $0x14] sm:$0xf] %v1423
    %1552 = vst [vmem:[%s4 + $0x18] sm:$0xf] %v1424
    %1553 = vst [vmem:[%s4 + $0x1c] sm:$0xf] %v1425
    %1554 = vst [vmem:[%s4 + $0x20] sm:$0xf] %v1426
    %1555 = vst [vmem:[%s4 + $0x24] sm:$0xf] %v1427
    %1556 = vst [vmem:[%s4 + $0x28] sm:$0xf] %v1428
    %1557 = vst [vmem:[%s4 + $0x2c] sm:$0xf] %v1429
    %1558 = vst [vmem:[%s4 + $0x30] sm:$0xf] %v1430
    %1559 = vst [vmem:[%s4 + $0x34] sm:$0xf] %v1431
    %1560 = vst [vmem:[%s4 + $0x38] sm:$0xf] %v1432
    %1561 = vst [vmem:[%s4 + $0x3c] sm:$0xf] %v1433
    %1562 = vst [vmem:[%s4 + $0x40] sm:$0xf] %v1434
    %1563 = vst [vmem:[%s4 + $0x44] sm:$0xf] %v1435
    %1564 = vst [vmem:[%s4 + $0x48] sm:$0xf] %v1436
    %1565 = vst [vmem:[%s4 + $0x4c] sm:$0xf] %v1437
    %1566 = vst [vmem:[%s4 + $0x50] sm:$0xf] %v1438
    %1567 = vst [vmem:[%s4 + $0x54] sm:$0xf] %v1439
    %1568 = vst [vmem:[%s4 + $0x58] sm:$0xf] %v1440
    %1569 = vst [vmem:[%s4 + $0x5c] sm:$0xf] %v1441
    %1570 = vst [vmem:[%s4 + $0x60] sm:$0xf] %v1442
    %1571 = vst [vmem:[%s4 + $0x64] sm:$0xf] %v1443
    %1572 = vst [vmem:[%s4 + $0x68] sm:$0xf] %v1444
    %1573 = vst [vmem:[%s4 + $0x6c] sm:$0xf] %v1445
    %1574 = vst [vmem:[%s4 + $0x70] sm:$0xf] %v1446
    %1575 = vst [vmem:[%s4 + $0x74] sm:$0xf] %v1447
    %1576 = vst [vmem:[%s4 + $0x78] sm:$0xf] %v1448
    %1577 = vst [vmem:[%s4 + $0x7c] sm:$0xf] %v1449
    %1578 = vst [vmem:[%s4 + $0x80] sm:$0xf] %v1450
    %1579 = vst [vmem:[%s4 + $0x84] sm:$0xf] %v1451
    %1580 = vst [vmem:[%s4 + $0x88] sm:$0xf] %v1452
    %1581 = vst [vmem:[%s4 + $0x8c] sm:$0xf] %v1453
    %1582 = vst [vmem:[%s4 + $0x90] sm:$0xf] %v1454
    %1583 = vst [vmem:[%s4 + $0x94] sm:$0xf] %v1455
    %1584 = vst [vmem:[%s4 + $0x98] sm:$0xf] %v1456
    %1585 = vst [vmem:[%s4 + $0x9c] sm:$0xf] %v1457
    %1586 = vst [vmem:[%s4 + $0xa0] sm:$0xf] %v1458
    %1587 = vst [vmem:[%s4 + $0xa4] sm:$0xf] %v1459
    %1588 = vst [vmem:[%s4 + $0xa8] sm:$0xf] %v1460
    %1589 = vst [vmem:[%s4 + $0xac] sm:$0xf] %v1461
    %1590 = vst [vmem:[%s4 + $0xb0] sm:$0xf] %v1462
    %1591 = vst [vmem:[%s4 + $0xb4] sm:$0xf] %v1463
    %1592 = vst [vmem:[%s4 + $0xb8] sm:$0xf] %v1464
    %1593 = vst [vmem:[%s4 + $0xbc] sm:$0xf] %v1465
    %1594 = vst [vmem:[%s4 + $0xc0] sm:$0xf] %v1466
    %1595 = vst [vmem:[%s4 + $0xc4] sm:$0xf] %v1467
    %1596 = vst [vmem:[%s4 + $0xc8] sm:$0xf] %v1468
    %1597 = vst [vmem:[%s4 + $0xcc] sm:$0xf] %v1469
    %1598 = vst [vmem:[%s4 + $0xd0] sm:$0xf] %v1470
    %1599 = vst [vmem:[%s4 + $0xd4] sm:$0xf] %v1471
    %1600 = vst [vmem:[%s4 + $0xd8] sm:$0xf] %v1472
    %1601 = vst [vmem:[%s4 + $0xdc] sm:$0xf] %v1473
    %1602 = vst [vmem:[%s4 + $0xe0] sm:$0xf] %v1474
    %1603 = vst [vmem:[%s4 + $0xe4] sm:$0xf] %v1475
    %1604 = vst [vmem:[%s4 + $0xe8] sm:$0xf] %v1476
    %1605 = vst [vmem:[%s4 + $0xec] sm:$0xf] %v1477
    %1606 = vst [vmem:[%s4 + $0xf0] sm:$0xf] %v1478
    %1607 = vst [vmem:[%s4 + $0xf4] sm:$0xf] %v1479
    %1608 = vst [vmem:[%s4 + $0xf8] sm:$0xf] %v1480
    %1609 = vst [vmem:[%s4 + $0xfc] sm:$0xf] %v1481
  $region25: #{encoder_forward.4} parent=0 // pred_fallthru
    _
  // Predicated region
  $region26: #{encoder_forward.4} parent=0 // pred_check
    _
  $region27: #{encoder_forward.4} parent=0 // pred_check_branch
    %1611 = sbr.rel (0) target = $region29
  $region28: #{encoder_forward.4} parent=0 // pred_region
    _
  $region29: #{encoder_forward.4} parent=0 // pred_fallthru
    _
  // Predicated region
  $region30: #{encoder_forward.4} parent=0 // pred_check
    _
  $region31: #{encoder_forward.4} parent=0 // pred_check_branch
    %1613 = sbr.rel (0) target = $region33
  $region32: #{encoder_forward.4} parent=0 // pred_region
    _
  $region33: #{encoder_forward.4} parent=0 // pred_fallthru
    _

// kernel: encoder_forward.5
$region0: #{encoder_forward.5}
  #allocation0 [shape = 'u32[]', space=smem, size = 0x4, offset = 0x4, fixed_abs, tag = 'smem constant byte address 0x4 - core index']
  #allocation1 [shape = 'u32[144,128]{1,0:T(1,128)}', space=vmem, size = 0x12000, scoped, tag = 'internal scratch']
  #allocation2 [shape = 'f32[128,128]{1,0:T(8,128)}', space=vmem, size = 0x10000, scoped, tag = 'scratch operand']
  %s0 = inlined_call_operand.vmem [shape: bf16[128,2048], index: 0, kind: input, shape index: {}]
  %s1 = inlined_call_operand.vmem [shape: bf16[2048,128], index: 1, kind: input, shape index: {}]
  %s2 = inlined_call_operand.vmem [shape: f32[1,128], index: 2, kind: input, shape index: {}]
  %s3 = inlined_call_operand.vmem [shape: bf16[128,128], index: 3, kind: output, shape index: {}]
  %s4 = sld [smem:[#allocation0]]
  $region30: #{encoder_forward.5} parent=0
    _
  %s6 = ssub.s32 1, %s4
  %s7 = scalar_select 0, %s6, %s4
  // Predicated region
  $region2: #{encoder_forward.5} parent=0 // pred_check
    _
  $region3: #{encoder_forward.5} parent=0 // pred_check_branch
    %9 = sbr.rel (0) target = $region5
  $region4: #{encoder_forward.5} parent=0 // pred_region
    _
  $region5: #{encoder_forward.5} parent=0 // pred_fallthru
    _
  // Predicated region
  $region6: #{encoder_forward.5} parent=0 // pred_check
    _
  $region7: #{encoder_forward.5} parent=0 // pred_check_branch
    %11 = sbr.rel (0) target = $region9
  $region8: #{encoder_forward.5} parent=0 // pred_region
    _
  $region9: #{encoder_forward.5} parent=0 // pred_fallthru
    _
  // Predicated region
  $region10: #{encoder_forward.5} parent=0 // pred_check
    _
  $region11: #{encoder_forward.5} parent=0 // pred_check_branch
    %13 = sbr.rel (0) target = $region13
  $region12: #{encoder_forward.5} parent=0 // pred_region
    _
  $region13: #{encoder_forward.5} parent=0 // pred_fallthru
    _
  %p15 = scmp.eq.s32.totalorder 0, 0
  // Predicated region
  $region14: #{encoder_forward.5} parent=0 // pred_check
    %p16 = pneg %p15
  $region15: #{encoder_forward.5} parent=0 // pred_check_branch
    %18 = sbr.rel (%p16) target = $region17
  $region16: #{encoder_forward.5} parent=0 // pred_region
    %19 = vst [vmem:[#allocation2] sm:$0xff] 0.0
    %20 = vst [vmem:[#allocation2 + $0x8] sm:$0xff] 0.0
    %21 = vst [vmem:[#allocation2 + $0x10] sm:$0xff] 0.0
    %22 = vst [vmem:[#allocation2 + $0x18] sm:$0xff] 0.0
    %23 = vst [vmem:[#allocation2 + $0x20] sm:$0xff] 0.0
    %24 = vst [vmem:[#allocation2 + $0x28] sm:$0xff] 0.0
    %25 = vst [vmem:[#allocation2 + $0x30] sm:$0xff] 0.0
    %26 = vst [vmem:[#allocation2 + $0x38] sm:$0xff] 0.0
    %27 = vst [vmem:[#allocation2 + $0x40] sm:$0xff] 0.0
    %28 = vst [vmem:[#allocation2 + $0x48] sm:$0xff] 0.0
    %29 = vst [vmem:[#allocation2 + $0x50] sm:$0xff] 0.0
    %30 = vst [vmem:[#allocation2 + $0x58] sm:$0xff] 0.0
    %31 = vst [vmem:[#allocation2 + $0x60] sm:$0xff] 0.0
    %32 = vst [vmem:[#allocation2 + $0x68] sm:$0xff] 0.0
    %33 = vst [vmem:[#allocation2 + $0x70] sm:$0xff] 0.0
    %34 = vst [vmem:[#allocation2 + $0x78] sm:$0xff] 0.0
  $region17: #{encoder_forward.5} parent=0 // pred_fallthru
    _
  %v35 = vld [vmem:[#allocation2] sm:$0xff]
  %v36 = vld [vmem:[#allocation2 + $0x8] sm:$0xff]
  %v37 = vld [vmem:[#allocation2 + $0x10] sm:$0xff]
  %v38 = vld [vmem:[#allocation2 + $0x18] sm:$0xff]
  %v39 = vld [vmem:[#allocation2 + $0x20] sm:$0xff]
  %v40 = vld [vmem:[#allocation2 + $0x28] sm:$0xff]
  %v41 = vld [vmem:[#allocation2 + $0x30] sm:$0xff]
  %v42 = vld [vmem:[#allocation2 + $0x38] sm:$0xff]
  %v43 = vld [vmem:[#allocation2 + $0x40] sm:$0xff]
  %v44 = vld [vmem:[#allocation2 + $0x48] sm:$0xff]
  %v45 = vld [vmem:[#allocation2 + $0x50] sm:$0xff]
  %v46 = vld [vmem:[#allocation2 + $0x58] sm:$0xff]
  %v47 = vld [vmem:[#allocation2 + $0x60] sm:$0xff]
  %v48 = vld [vmem:[#allocation2 + $0x68] sm:$0xff]
  %v49 = vld [vmem:[#allocation2 + $0x70] sm:$0xff]
  %v50 = vld [vmem:[#allocation2 + $0x78] sm:$0xff]
  %v51 = vld [vmem:[%s0] sm:$0xff]
  %v52 = vld [vmem:[%s0 + $0x8] sm:$0xff]
  %v53 = vld [vmem:[%s0 + $0x10] sm:$0xff]
  %v54 = vld [vmem:[%s0 + $0x18] sm:$0xff]
  %v55 = vld [vmem:[%s0 + $0x20] sm:$0xff]
  %v56 = vld [vmem:[%s0 + $0x28] sm:$0xff]
  %v57 = vld [vmem:[%s0 + $0x30] sm:$0xff]
  %v58 = vld [vmem:[%s0 + $0x38] sm:$0xff]
  %v59 = vld [vmem:[%s0 + $0x40] sm:$0xff]
  %v60 = vld [vmem:[%s0 + $0x48] sm:$0xff]
  %v61 = vld [vmem:[%s0 + $0x50] sm:$0xff]
  %v62 = vld [vmem:[%s0 + $0x58] sm:$0xff]
  %v63 = vld [vmem:[%s0 + $0x60] sm:$0xff]
  %v64 = vld [vmem:[%s0 + $0x68] sm:$0xff]
  %v65 = vld [vmem:[%s0 + $0x70] sm:$0xff]
  %v66 = vld [vmem:[%s0 + $0x78] sm:$0xff]
  %v67 = vld [vmem:[%s0 + $0x80] sm:$0xff]
  %v68 = vld [vmem:[%s0 + $0x88] sm:$0xff]
  %v69 = vld [vmem:[%s0 + $0x90] sm:$0xff]
  %v70 = vld [vmem:[%s0 + $0x98] sm:$0xff]
  %v71 = vld [vmem:[%s0 + $0xa0] sm:$0xff]
  %v72 = vld [vmem:[%s0 + $0xa8] sm:$0xff]
  %v73 = vld [vmem:[%s0 + $0xb0] sm:$0xff]
  %v74 = vld [vmem:[%s0 + $0xb8] sm:$0xff]
  %v75 = vld [vmem:[%s0 + $0xc0] sm:$0xff]
  %v76 = vld [vmem:[%s0 + $0xc8] sm:$0xff]
  %v77 = vld [vmem:[%s0 + $0xd0] sm:$0xff]
  %v78 = vld [vmem:[%s0 + $0xd8] sm:$0xff]
  %v79 = vld [vmem:[%s0 + $0xe0] sm:$0xff]
  %v80 = vld [vmem:[%s0 + $0xe8] sm:$0xff]
  %v81 = vld [vmem:[%s0 + $0xf0] sm:$0xff]
  %v82 = vld [vmem:[%s0 + $0xf8] sm:$0xff]
  %v83 = vld [vmem:[%s0 + $0x100] sm:$0xff]
  %v84 = vld [vmem:[%s0 + $0x108] sm:$0xff]
  %v85 = vld [vmem:[%s0 + $0x110] sm:$0xff]
  %v86 = vld [vmem:[%s0 + $0x118] sm:$0xff]
  %v87 = vld [vmem:[%s0 + $0x120] sm:$0xff]
  %v88 = vld [vmem:[%s0 + $0x128] sm:$0xff]
  %v89 = vld [vmem:[%s0 + $0x130] sm:$0xff]
  %v90 = vld [vmem:[%s0 + $0x138] sm:$0xff]
  %v91 = vld [vmem:[%s0 + $0x140] sm:$0xff]
  %v92 = vld [vmem:[%s0 + $0x148] sm:$0xff]
  %v93 = vld [vmem:[%s0 + $0x150] sm:$0xff]
  %v94 = vld [vmem:[%s0 + $0x158] sm:$0xff]
  %v95 = vld [vmem:[%s0 + $0x160] sm:$0xff]
  %v96 = vld [vmem:[%s0 + $0x168] sm:$0xff]
  %v97 = vld [vmem:[%s0 + $0x170] sm:$0xff]
  %v98 = vld [vmem:[%s0 + $0x178] sm:$0xff]
  %v99 = vld [vmem:[%s0 + $0x180] sm:$0xff]
  %v100 = vld [vmem:[%s0 + $0x188] sm:$0xff]
  %v101 = vld [vmem:[%s0 + $0x190] sm:$0xff]
  %v102 = vld [vmem:[%s0 + $0x198] sm:$0xff]
  %v103 = vld [vmem:[%s0 + $0x1a0] sm:$0xff]
  %v104 = vld [vmem:[%s0 + $0x1a8] sm:$0xff]
  %v105 = vld [vmem:[%s0 + $0x1b0] sm:$0xff]
  %v106 = vld [vmem:[%s0 + $0x1b8] sm:$0xff]
  %v107 = vld [vmem:[%s0 + $0x1c0] sm:$0xff]
  %v108 = vld [vmem:[%s0 + $0x1c8] sm:$0xff]
  %v109 = vld [vmem:[%s0 + $0x1d0] sm:$0xff]
  %v110 = vld [vmem:[%s0 + $0x1d8] sm:$0xff]
  %v111 = vld [vmem:[%s0 + $0x1e0] sm:$0xff]
  %v112 = vld [vmem:[%s0 + $0x1e8] sm:$0xff]
  %v113 = vld [vmem:[%s0 + $0x1f0] sm:$0xff]
  %v114 = vld [vmem:[%s0 + $0x1f8] sm:$0xff]
  %v115 = vld [vmem:[%s0 + $0x200] sm:$0xff]
  %v116 = vld [vmem:[%s0 + $0x208] sm:$0xff]
  %v117 = vld [vmem:[%s0 + $0x210] sm:$0xff]
  %v118 = vld [vmem:[%s0 + $0x218] sm:$0xff]
  %v119 = vld [vmem:[%s0 + $0x220] sm:$0xff]
  %v120 = vld [vmem:[%s0 + $0x228] sm:$0xff]
  %v121 = vld [vmem:[%s0 + $0x230] sm:$0xff]
  %v122 = vld [vmem:[%s0 + $0x238] sm:$0xff]
  %v123 = vld [vmem:[%s0 + $0x240] sm:$0xff]
  %v124 = vld [vmem:[%s0 + $0x248] sm:$0xff]
  %v125 = vld [vmem:[%s0 + $0x250] sm:$0xff]
  %v126 = vld [vmem:[%s0 + $0x258] sm:$0xff]
  %v127 = vld [vmem:[%s0 + $0x260] sm:$0xff]
  %v128 = vld [vmem:[%s0 + $0x268] sm:$0xff]
  %v129 = vld [vmem:[%s0 + $0x270] sm:$0xff]
  %v130 = vld [vmem:[%s0 + $0x278] sm:$0xff]
  %v131 = vld [vmem:[%s0 + $0x280] sm:$0xff]
  %v132 = vld [vmem:[%s0 + $0x288] sm:$0xff]
  %v133 = vld [vmem:[%s0 + $0x290] sm:$0xff]
  %v134 = vld [vmem:[%s0 + $0x298] sm:$0xff]
  %v135 = vld [vmem:[%s0 + $0x2a0] sm:$0xff]
  %v136 = vld [vmem:[%s0 + $0x2a8] sm:$0xff]
  %v137 = vld [vmem:[%s0 + $0x2b0] sm:$0xff]
  %v138 = vld [vmem:[%s0 + $0x2b8] sm:$0xff]
  %v139 = vld [vmem:[%s0 + $0x2c0] sm:$0xff]
  %v140 = vld [vmem:[%s0 + $0x2c8] sm:$0xff]
  %v141 = vld [vmem:[%s0 + $0x2d0] sm:$0xff]
  %v142 = vld [vmem:[%s0 + $0x2d8] sm:$0xff]
  %v143 = vld [vmem:[%s0 + $0x2e0] sm:$0xff]
  %v144 = vld [vmem:[%s0 + $0x2e8] sm:$0xff]
  %v145 = vld [vmem:[%s0 + $0x2f0] sm:$0xff]
  %v146 = vld [vmem:[%s0 + $0x2f8] sm:$0xff]
  %v147 = vld [vmem:[%s0 + $0x300] sm:$0xff]
  %v148 = vld [vmem:[%s0 + $0x308] sm:$0xff]
  %v149 = vld [vmem:[%s0 + $0x310] sm:$0xff]
  %v150 = vld [vmem:[%s0 + $0x318] sm:$0xff]
  %v151 = vld [vmem:[%s0 + $0x320] sm:$0xff]
  %v152 = vld [vmem:[%s0 + $0x328] sm:$0xff]
  %v153 = vld [vmem:[%s0 + $0x330] sm:$0xff]
  %v154 = vld [vmem:[%s0 + $0x338] sm:$0xff]
  %v155 = vld [vmem:[%s0 + $0x340] sm:$0xff]
  %v156 = vld [vmem:[%s0 + $0x348] sm:$0xff]
  %v157 = vld [vmem:[%s0 + $0x350] sm:$0xff]
  %v158 = vld [vmem:[%s0 + $0x358] sm:$0xff]
  %v159 = vld [vmem:[%s0 + $0x360] sm:$0xff]
  %v160 = vld [vmem:[%s0 + $0x368] sm:$0xff]
  %v161 = vld [vmem:[%s0 + $0x370] sm:$0xff]
  %v162 = vld [vmem:[%s0 + $0x378] sm:$0xff]
  %v163 = vld [vmem:[%s0 + $0x380] sm:$0xff]
  %v164 = vld [vmem:[%s0 + $0x388] sm:$0xff]
  %v165 = vld [vmem:[%s0 + $0x390] sm:$0xff]
  %v166 = vld [vmem:[%s0 + $0x398] sm:$0xff]
  %v167 = vld [vmem:[%s0 + $0x3a0] sm:$0xff]
  %v168 = vld [vmem:[%s0 + $0x3a8] sm:$0xff]
  %v169 = vld [vmem:[%s0 + $0x3b0] sm:$0xff]
  %v170 = vld [vmem:[%s0 + $0x3b8] sm:$0xff]
  %v171 = vld [vmem:[%s0 + $0x3c0] sm:$0xff]
  %v172 = vld [vmem:[%s0 + $0x3c8] sm:$0xff]
  %v173 = vld [vmem:[%s0 + $0x3d0] sm:$0xff]
  %v174 = vld [vmem:[%s0 + $0x3d8] sm:$0xff]
  %v175 = vld [vmem:[%s0 + $0x3e0] sm:$0xff]
  %v176 = vld [vmem:[%s0 + $0x3e8] sm:$0xff]
  %v177 = vld [vmem:[%s0 + $0x3f0] sm:$0xff]
  %v178 = vld [vmem:[%s0 + $0x3f8] sm:$0xff]
  %v179 = vld [vmem:[%s1] sm:$0xf]
  %v180 = vld [vmem:[%s1 + $0x4] sm:$0xf]
  %v181 = vld [vmem:[%s1 + $0x8] sm:$0xf]
  %v182 = vld [vmem:[%s1 + $0xc] sm:$0xf]
  %v183 = vld [vmem:[%s1 + $0x10] sm:$0xf]
  %v184 = vld [vmem:[%s1 + $0x14] sm:$0xf]
  %v185 = vld [vmem:[%s1 + $0x18] sm:$0xf]
  %v186 = vld [vmem:[%s1 + $0x1c] sm:$0xf]
  %v187 = vld [vmem:[%s1 + $0x20] sm:$0xf]
  %v188 = vld [vmem:[%s1 + $0x24] sm:$0xf]
  %v189 = vld [vmem:[%s1 + $0x28] sm:$0xf]
  %v190 = vld [vmem:[%s1 + $0x2c] sm:$0xf]
  %v191 = vld [vmem:[%s1 + $0x30] sm:$0xf]
  %v192 = vld [vmem:[%s1 + $0x34] sm:$0xf]
  %v193 = vld [vmem:[%s1 + $0x38] sm:$0xf]
  %v194 = vld [vmem:[%s1 + $0x3c] sm:$0xf]
  %v195 = vld [vmem:[%s1 + $0x40] sm:$0xf]
  %v196 = vld [vmem:[%s1 + $0x44] sm:$0xf]
  %v197 = vld [vmem:[%s1 + $0x48] sm:$0xf]
  %v198 = vld [vmem:[%s1 + $0x4c] sm:$0xf]
  %v199 = vld [vmem:[%s1 + $0x50] sm:$0xf]
  %v200 = vld [vmem:[%s1 + $0x54] sm:$0xf]
  %v201 = vld [vmem:[%s1 + $0x58] sm:$0xf]
  %v202 = vld [vmem:[%s1 + $0x5c] sm:$0xf]
  %v203 = vld [vmem:[%s1 + $0x60] sm:$0xf]
  %v204 = vld [vmem:[%s1 + $0x64] sm:$0xf]
  %v205 = vld [vmem:[%s1 + $0x68] sm:$0xf]
  %v206 = vld [vmem:[%s1 + $0x6c] sm:$0xf]
  %v207 = vld [vmem:[%s1 + $0x70] sm:$0xf]
  %v208 = vld [vmem:[%s1 + $0x74] sm:$0xf]
  %v209 = vld [vmem:[%s1 + $0x78] sm:$0xf]
  %v210 = vld [vmem:[%s1 + $0x7c] sm:$0xf]
  %v211 = vld [vmem:[%s1 + $0x80] sm:$0xf]
  %v212 = vld [vmem:[%s1 + $0x84] sm:$0xf]
  %v213 = vld [vmem:[%s1 + $0x88] sm:$0xf]
  %v214 = vld [vmem:[%s1 + $0x8c] sm:$0xf]
  %v215 = vld [vmem:[%s1 + $0x90] sm:$0xf]
  %v216 = vld [vmem:[%s1 + $0x94] sm:$0xf]
  %v217 = vld [vmem:[%s1 + $0x98] sm:$0xf]
  %v218 = vld [vmem:[%s1 + $0x9c] sm:$0xf]
  %v219 = vld [vmem:[%s1 + $0xa0] sm:$0xf]
  %v220 = vld [vmem:[%s1 + $0xa4] sm:$0xf]
  %v221 = vld [vmem:[%s1 + $0xa8] sm:$0xf]
  %v222 = vld [vmem:[%s1 + $0xac] sm:$0xf]
  %v223 = vld [vmem:[%s1 + $0xb0] sm:$0xf]
  %v224 = vld [vmem:[%s1 + $0xb4] sm:$0xf]
  %v225 = vld [vmem:[%s1 + $0xb8] sm:$0xf]
  %v226 = vld [vmem:[%s1 + $0xbc] sm:$0xf]
  %v227 = vld [vmem:[%s1 + $0xc0] sm:$0xf]
  %v228 = vld [vmem:[%s1 + $0xc4] sm:$0xf]
  %v229 = vld [vmem:[%s1 + $0xc8] sm:$0xf]
  %v230 = vld [vmem:[%s1 + $0xcc] sm:$0xf]
  %v231 = vld [vmem:[%s1 + $0xd0] sm:$0xf]
  %v232 = vld [vmem:[%s1 + $0xd4] sm:$0xf]
  %v233 = vld [vmem:[%s1 + $0xd8] sm:$0xf]
  %v234 = vld [vmem:[%s1 + $0xdc] sm:$0xf]
  %v235 = vld [vmem:[%s1 + $0xe0] sm:$0xf]
  %v236 = vld [vmem:[%s1 + $0xe4] sm:$0xf]
  %v237 = vld [vmem:[%s1 + $0xe8] sm:$0xf]
  %v238 = vld [vmem:[%s1 + $0xec] sm:$0xf]
  %v239 = vld [vmem:[%s1 + $0xf0] sm:$0xf]
  %v240 = vld [vmem:[%s1 + $0xf4] sm:$0xf]
  %v241 = vld [vmem:[%s1 + $0xf8] sm:$0xf]
  %v242 = vld [vmem:[%s1 + $0xfc] sm:$0xf]
  %v243 = vld [vmem:[%s1 + $0x100] sm:$0xf]
  %v244 = vld [vmem:[%s1 + $0x104] sm:$0xf]
  %v245 = vld [vmem:[%s1 + $0x108] sm:$0xf]
  %v246 = vld [vmem:[%s1 + $0x10c] sm:$0xf]
  %v247 = vld [vmem:[%s1 + $0x110] sm:$0xf]
  %v248 = vld [vmem:[%s1 + $0x114] sm:$0xf]
  %v249 = vld [vmem:[%s1 + $0x118] sm:$0xf]
  %v250 = vld [vmem:[%s1 + $0x11c] sm:$0xf]
  %v251 = vld [vmem:[%s1 + $0x120] sm:$0xf]
  %v252 = vld [vmem:[%s1 + $0x124] sm:$0xf]
  %v253 = vld [vmem:[%s1 + $0x128] sm:$0xf]
  %v254 = vld [vmem:[%s1 + $0x12c] sm:$0xf]
  %v255 = vld [vmem:[%s1 + $0x130] sm:$0xf]
  %v256 = vld [vmem:[%s1 + $0x134] sm:$0xf]
  %v257 = vld [vmem:[%s1 + $0x138] sm:$0xf]
  %v258 = vld [vmem:[%s1 + $0x13c] sm:$0xf]
  %v259 = vld [vmem:[%s1 + $0x140] sm:$0xf]
  %v260 = vld [vmem:[%s1 + $0x144] sm:$0xf]
  %v261 = vld [vmem:[%s1 + $0x148] sm:$0xf]
  %v262 = vld [vmem:[%s1 + $0x14c] sm:$0xf]
  %v263 = vld [vmem:[%s1 + $0x150] sm:$0xf]
  %v264 = vld [vmem:[%s1 + $0x154] sm:$0xf]
  %v265 = vld [vmem:[%s1 + $0x158] sm:$0xf]
  %v266 = vld [vmem:[%s1 + $0x15c] sm:$0xf]
  %v267 = vld [vmem:[%s1 + $0x160] sm:$0xf]
  %v268 = vld [vmem:[%s1 + $0x164] sm:$0xf]
  %v269 = vld [vmem:[%s1 + $0x168] sm:$0xf]
  %v270 = vld [vmem:[%s1 + $0x16c] sm:$0xf]
  %v271 = vld [vmem:[%s1 + $0x170] sm:$0xf]
  %v272 = vld [vmem:[%s1 + $0x174] sm:$0xf]
  %v273 = vld [vmem:[%s1 + $0x178] sm:$0xf]
  %v274 = vld [vmem:[%s1 + $0x17c] sm:$0xf]
  %v275 = vld [vmem:[%s1 + $0x180] sm:$0xf]
  %v276 = vld [vmem:[%s1 + $0x184] sm:$0xf]
  %v277 = vld [vmem:[%s1 + $0x188] sm:$0xf]
  %v278 = vld [vmem:[%s1 + $0x18c] sm:$0xf]
  %v279 = vld [vmem:[%s1 + $0x190] sm:$0xf]
  %v280 = vld [vmem:[%s1 + $0x194] sm:$0xf]
  %v281 = vld [vmem:[%s1 + $0x198] sm:$0xf]
  %v282 = vld [vmem:[%s1 + $0x19c] sm:$0xf]
  %v283 = vld [vmem:[%s1 + $0x1a0] sm:$0xf]
  %v284 = vld [vmem:[%s1 + $0x1a4] sm:$0xf]
  %v285 = vld [vmem:[%s1 + $0x1a8] sm:$0xf]
  %v286 = vld [vmem:[%s1 + $0x1ac] sm:$0xf]
  %v287 = vld [vmem:[%s1 + $0x1b0] sm:$0xf]
  %v288 = vld [vmem:[%s1 + $0x1b4] sm:$0xf]
  %v289 = vld [vmem:[%s1 + $0x1b8] sm:$0xf]
  %v290 = vld [vmem:[%s1 + $0x1bc] sm:$0xf]
  %v291 = vld [vmem:[%s1 + $0x1c0] sm:$0xf]
  %v292 = vld [vmem:[%s1 + $0x1c4] sm:$0xf]
  %v293 = vld [vmem:[%s1 + $0x1c8] sm:$0xf]
  %v294 = vld [vmem:[%s1 + $0x1cc] sm:$0xf]
  %v295 = vld [vmem:[%s1 + $0x1d0] sm:$0xf]
  %v296 = vld [vmem:[%s1 + $0x1d4] sm:$0xf]
  %v297 = vld [vmem:[%s1 + $0x1d8] sm:$0xf]
  %v298 = vld [vmem:[%s1 + $0x1dc] sm:$0xf]
  %v299 = vld [vmem:[%s1 + $0x1e0] sm:$0xf]
  %v300 = vld [vmem:[%s1 + $0x1e4] sm:$0xf]
  %v301 = vld [vmem:[%s1 + $0x1e8] sm:$0xf]
  %v302 = vld [vmem:[%s1 + $0x1ec] sm:$0xf]
  %v303 = vld [vmem:[%s1 + $0x1f0] sm:$0xf]
  %v304 = vld [vmem:[%s1 + $0x1f4] sm:$0xf]
  %v305 = vld [vmem:[%s1 + $0x1f8] sm:$0xf]
  %v306 = vld [vmem:[%s1 + $0x1fc] sm:$0xf]
  %v307 = vld [vmem:[%s1 + $0x200] sm:$0xf]
  %v308 = vld [vmem:[%s1 + $0x204] sm:$0xf]
  %v309 = vld [vmem:[%s1 + $0x208] sm:$0xf]
  %v310 = vld [vmem:[%s1 + $0x20c] sm:$0xf]
  %v311 = vld [vmem:[%s1 + $0x210] sm:$0xf]
  %v312 = vld [vmem:[%s1 + $0x214] sm:$0xf]
  %v313 = vld [vmem:[%s1 + $0x218] sm:$0xf]
  %v314 = vld [vmem:[%s1 + $0x21c] sm:$0xf]
  %v315 = vld [vmem:[%s1 + $0x220] sm:$0xf]
  %v316 = vld [vmem:[%s1 + $0x224] sm:$0xf]
  %v317 = vld [vmem:[%s1 + $0x228] sm:$0xf]
  %v318 = vld [vmem:[%s1 + $0x22c] sm:$0xf]
  %v319 = vld [vmem:[%s1 + $0x230] sm:$0xf]
  %v320 = vld [vmem:[%s1 + $0x234] sm:$0xf]
  %v321 = vld [vmem:[%s1 + $0x238] sm:$0xf]
  %v322 = vld [vmem:[%s1 + $0x23c] sm:$0xf]
  %v323 = vld [vmem:[%s1 + $0x240] sm:$0xf]
  %v324 = vld [vmem:[%s1 + $0x244] sm:$0xf]
  %v325 = vld [vmem:[%s1 + $0x248] sm:$0xf]
  %v326 = vld [vmem:[%s1 + $0x24c] sm:$0xf]
  %v327 = vld [vmem:[%s1 + $0x250] sm:$0xf]
  %v328 = vld [vmem:[%s1 + $0x254] sm:$0xf]
  %v329 = vld [vmem:[%s1 + $0x258] sm:$0xf]
  %v330 = vld [vmem:[%s1 + $0x25c] sm:$0xf]
  %v331 = vld [vmem:[%s1 + $0x260] sm:$0xf]
  %v332 = vld [vmem:[%s1 + $0x264] sm:$0xf]
  %v333 = vld [vmem:[%s1 + $0x268] sm:$0xf]
  %v334 = vld [vmem:[%s1 + $0x26c] sm:$0xf]
  %v335 = vld [vmem:[%s1 + $0x270] sm:$0xf]
  %v336 = vld [vmem:[%s1 + $0x274] sm:$0xf]
  %v337 = vld [vmem:[%s1 + $0x278] sm:$0xf]
  %v338 = vld [vmem:[%s1 + $0x27c] sm:$0xf]
  %v339 = vld [vmem:[%s1 + $0x280] sm:$0xf]
  %v340 = vld [vmem:[%s1 + $0x284] sm:$0xf]
  %v341 = vld [vmem:[%s1 + $0x288] sm:$0xf]
  %v342 = vld [vmem:[%s1 + $0x28c] sm:$0xf]
  %v343 = vld [vmem:[%s1 + $0x290] sm:$0xf]
  %v344 = vld [vmem:[%s1 + $0x294] sm:$0xf]
  %v345 = vld [vmem:[%s1 + $0x298] sm:$0xf]
  %v346 = vld [vmem:[%s1 + $0x29c] sm:$0xf]
  %v347 = vld [vmem:[%s1 + $0x2a0] sm:$0xf]
  %v348 = vld [vmem:[%s1 + $0x2a4] sm:$0xf]
  %v349 = vld [vmem:[%s1 + $0x2a8] sm:$0xf]
  %v350 = vld [vmem:[%s1 + $0x2ac] sm:$0xf]
  %v351 = vld [vmem:[%s1 + $0x2b0] sm:$0xf]
  %v352 = vld [vmem:[%s1 + $0x2b4] sm:$0xf]
  %v353 = vld [vmem:[%s1 + $0x2b8] sm:$0xf]
  %v354 = vld [vmem:[%s1 + $0x2bc] sm:$0xf]
  %v355 = vld [vmem:[%s1 + $0x2c0] sm:$0xf]
  %v356 = vld [vmem:[%s1 + $0x2c4] sm:$0xf]
  %v357 = vld [vmem:[%s1 + $0x2c8] sm:$0xf]
  %v358 = vld [vmem:[%s1 + $0x2cc] sm:$0xf]
  %v359 = vld [vmem:[%s1 + $0x2d0] sm:$0xf]
  %v360 = vld [vmem:[%s1 + $0x2d4] sm:$0xf]
  %v361 = vld [vmem:[%s1 + $0x2d8] sm:$0xf]
  %v362 = vld [vmem:[%s1 + $0x2dc] sm:$0xf]
  %v363 = vld [vmem:[%s1 + $0x2e0] sm:$0xf]
  %v364 = vld [vmem:[%s1 + $0x2e4] sm:$0xf]
  %v365 = vld [vmem:[%s1 + $0x2e8] sm:$0xf]
  %v366 = vld [vmem:[%s1 + $0x2ec] sm:$0xf]
  %v367 = vld [vmem:[%s1 + $0x2f0] sm:$0xf]
  %v368 = vld [vmem:[%s1 + $0x2f4] sm:$0xf]
  %v369 = vld [vmem:[%s1 + $0x2f8] sm:$0xf]
  %v370 = vld [vmem:[%s1 + $0x2fc] sm:$0xf]
  %v371 = vld [vmem:[%s1 + $0x300] sm:$0xf]
  %v372 = vld [vmem:[%s1 + $0x304] sm:$0xf]
  %v373 = vld [vmem:[%s1 + $0x308] sm:$0xf]
  %v374 = vld [vmem:[%s1 + $0x30c] sm:$0xf]
  %v375 = vld [vmem:[%s1 + $0x310] sm:$0xf]
  %v376 = vld [vmem:[%s1 + $0x314] sm:$0xf]
  %v377 = vld [vmem:[%s1 + $0x318] sm:$0xf]
  %v378 = vld [vmem:[%s1 + $0x31c] sm:$0xf]
  %v379 = vld [vmem:[%s1 + $0x320] sm:$0xf]
  %v380 = vld [vmem:[%s1 + $0x324] sm:$0xf]
  %v381 = vld [vmem:[%s1 + $0x328] sm:$0xf]
  %v382 = vld [vmem:[%s1 + $0x32c] sm:$0xf]
  %v383 = vld [vmem:[%s1 + $0x330] sm:$0xf]
  %v384 = vld [vmem:[%s1 + $0x334] sm:$0xf]
  %v385 = vld [vmem:[%s1 + $0x338] sm:$0xf]
  %v386 = vld [vmem:[%s1 + $0x33c] sm:$0xf]
  %v387 = vld [vmem:[%s1 + $0x340] sm:$0xf]
  %v388 = vld [vmem:[%s1 + $0x344] sm:$0xf]
  %v389 = vld [vmem:[%s1 + $0x348] sm:$0xf]
  %v390 = vld [vmem:[%s1 + $0x34c] sm:$0xf]
  %v391 = vld [vmem:[%s1 + $0x350] sm:$0xf]
  %v392 = vld [vmem:[%s1 + $0x354] sm:$0xf]
  %v393 = vld [vmem:[%s1 + $0x358] sm:$0xf]
  %v394 = vld [vmem:[%s1 + $0x35c] sm:$0xf]
  %v395 = vld [vmem:[%s1 + $0x360] sm:$0xf]
  %v396 = vld [vmem:[%s1 + $0x364] sm:$0xf]
  %v397 = vld [vmem:[%s1 + $0x368] sm:$0xf]
  %v398 = vld [vmem:[%s1 + $0x36c] sm:$0xf]
  %v399 = vld [vmem:[%s1 + $0x370] sm:$0xf]
  %v400 = vld [vmem:[%s1 + $0x374] sm:$0xf]
  %v401 = vld [vmem:[%s1 + $0x378] sm:$0xf]
  %v402 = vld [vmem:[%s1 + $0x37c] sm:$0xf]
  %v403 = vld [vmem:[%s1 + $0x380] sm:$0xf]
  %v404 = vld [vmem:[%s1 + $0x384] sm:$0xf]
  %v405 = vld [vmem:[%s1 + $0x388] sm:$0xf]
  %v406 = vld [vmem:[%s1 + $0x38c] sm:$0xf]
  %v407 = vld [vmem:[%s1 + $0x390] sm:$0xf]
  %v408 = vld [vmem:[%s1 + $0x394] sm:$0xf]
  %v409 = vld [vmem:[%s1 + $0x398] sm:$0xf]
  %v410 = vld [vmem:[%s1 + $0x39c] sm:$0xf]
  %v411 = vld [vmem:[%s1 + $0x3a0] sm:$0xf]
  %v412 = vld [vmem:[%s1 + $0x3a4] sm:$0xf]
  %v413 = vld [vmem:[%s1 + $0x3a8] sm:$0xf]
  %v414 = vld [vmem:[%s1 + $0x3ac] sm:$0xf]
  %v415 = vld [vmem:[%s1 + $0x3b0] sm:$0xf]
  %v416 = vld [vmem:[%s1 + $0x3b4] sm:$0xf]
  %v417 = vld [vmem:[%s1 + $0x3b8] sm:$0xf]
  %v418 = vld [vmem:[%s1 + $0x3bc] sm:$0xf]
  %v419 = vld [vmem:[%s1 + $0x3c0] sm:$0xf]
  %v420 = vld [vmem:[%s1 + $0x3c4] sm:$0xf]
  %v421 = vld [vmem:[%s1 + $0x3c8] sm:$0xf]
  %v422 = vld [vmem:[%s1 + $0x3cc] sm:$0xf]
  %v423 = vld [vmem:[%s1 + $0x3d0] sm:$0xf]
  %v424 = vld [vmem:[%s1 + $0x3d4] sm:$0xf]
  %v425 = vld [vmem:[%s1 + $0x3d8] sm:$0xf]
  %v426 = vld [vmem:[%s1 + $0x3dc] sm:$0xf]
  %v427 = vld [vmem:[%s1 + $0x3e0] sm:$0xf]
  %v428 = vld [vmem:[%s1 + $0x3e4] sm:$0xf]
  %v429 = vld [vmem:[%s1 + $0x3e8] sm:$0xf]
  %v430 = vld [vmem:[%s1 + $0x3ec] sm:$0xf]
  %v431 = vld [vmem:[%s1 + $0x3f0] sm:$0xf]
  %v432 = vld [vmem:[%s1 + $0x3f4] sm:$0xf]
  %v433 = vld [vmem:[%s1 + $0x3f8] sm:$0xf]
  %v434 = vld [vmem:[%s1 + $0x3fc] sm:$0xf]
  %v563 = vunpack.c.l.b16 %v51
  %v564 = vunpack.c.h.b16 %v51
  %v565 = vunpack.c.l.b16 %v52
  %v566 = vunpack.c.h.b16 %v52
  %v567 = vunpack.c.l.b16 %v53
  %v568 = vunpack.c.h.b16 %v53
  %v569 = vunpack.c.l.b16 %v54
  %v570 = vunpack.c.h.b16 %v54
  %v571 = vunpack.c.l.b16 %v55
  %v572 = vunpack.c.h.b16 %v55
  %v573 = vunpack.c.l.b16 %v56
  %v574 = vunpack.c.h.b16 %v56
  %v575 = vunpack.c.l.b16 %v57
  %v576 = vunpack.c.h.b16 %v57
  %v577 = vunpack.c.l.b16 %v58
  %v578 = vunpack.c.h.b16 %v58
  %v579 = vunpack.c.l.b16 %v59
  %v580 = vunpack.c.h.b16 %v59
  %v581 = vunpack.c.l.b16 %v60
  %v582 = vunpack.c.h.b16 %v60
  %v583 = vunpack.c.l.b16 %v61
  %v584 = vunpack.c.h.b16 %v61
  %v585 = vunpack.c.l.b16 %v62
  %v586 = vunpack.c.h.b16 %v62
  %v587 = vunpack.c.l.b16 %v63
  %v588 = vunpack.c.h.b16 %v63
  %v589 = vunpack.c.l.b16 %v64
  %v590 = vunpack.c.h.b16 %v64
  %v591 = vunpack.c.l.b16 %v65
  %v592 = vunpack.c.h.b16 %v65
  %v593 = vunpack.c.l.b16 %v66
  %v594 = vunpack.c.h.b16 %v66
  %v595 = vunpack.c.l.b16 %v67
  %v596 = vunpack.c.h.b16 %v67
  %v597 = vunpack.c.l.b16 %v68
  %v598 = vunpack.c.h.b16 %v68
  %v599 = vunpack.c.l.b16 %v69
  %v600 = vunpack.c.h.b16 %v69
  %v601 = vunpack.c.l.b16 %v70
  %v602 = vunpack.c.h.b16 %v70
  %v603 = vunpack.c.l.b16 %v71
  %v604 = vunpack.c.h.b16 %v71
  %v605 = vunpack.c.l.b16 %v72
  %v606 = vunpack.c.h.b16 %v72
  %v607 = vunpack.c.l.b16 %v73
  %v608 = vunpack.c.h.b16 %v73
  %v609 = vunpack.c.l.b16 %v74
  %v610 = vunpack.c.h.b16 %v74
  %v611 = vunpack.c.l.b16 %v75
  %v612 = vunpack.c.h.b16 %v75
  %v613 = vunpack.c.l.b16 %v76
  %v614 = vunpack.c.h.b16 %v76
  %v615 = vunpack.c.l.b16 %v77
  %v616 = vunpack.c.h.b16 %v77
  %v617 = vunpack.c.l.b16 %v78
  %v618 = vunpack.c.h.b16 %v78
  %v619 = vunpack.c.l.b16 %v79
  %v620 = vunpack.c.h.b16 %v79
  %v621 = vunpack.c.l.b16 %v80
  %v622 = vunpack.c.h.b16 %v80
  %v623 = vunpack.c.l.b16 %v81
  %v624 = vunpack.c.h.b16 %v81
  %v625 = vunpack.c.l.b16 %v82
  %v626 = vunpack.c.h.b16 %v82
  %v627 = vunpack.c.l.b16 %v83
  %v628 = vunpack.c.h.b16 %v83
  %v629 = vunpack.c.l.b16 %v84
  %v630 = vunpack.c.h.b16 %v84
  %v631 = vunpack.c.l.b16 %v85
  %v632 = vunpack.c.h.b16 %v85
  %v633 = vunpack.c.l.b16 %v86
  %v634 = vunpack.c.h.b16 %v86
  %v635 = vunpack.c.l.b16 %v87
  %v636 = vunpack.c.h.b16 %v87
  %v637 = vunpack.c.l.b16 %v88
  %v638 = vunpack.c.h.b16 %v88
  %v639 = vunpack.c.l.b16 %v89
  %v640 = vunpack.c.h.b16 %v89
  %v641 = vunpack.c.l.b16 %v90
  %v642 = vunpack.c.h.b16 %v90
  %v643 = vunpack.c.l.b16 %v91
  %v644 = vunpack.c.h.b16 %v91
  %v645 = vunpack.c.l.b16 %v92
  %v646 = vunpack.c.h.b16 %v92
  %v647 = vunpack.c.l.b16 %v93
  %v648 = vunpack.c.h.b16 %v93
  %v649 = vunpack.c.l.b16 %v94
  %v650 = vunpack.c.h.b16 %v94
  %v651 = vunpack.c.l.b16 %v95
  %v652 = vunpack.c.h.b16 %v95
  %v653 = vunpack.c.l.b16 %v96
  %v654 = vunpack.c.h.b16 %v96
  %v655 = vunpack.c.l.b16 %v97
  %v656 = vunpack.c.h.b16 %v97
  %v657 = vunpack.c.l.b16 %v98
  %v658 = vunpack.c.h.b16 %v98
  %v659 = vunpack.c.l.b16 %v99
  %v660 = vunpack.c.h.b16 %v99
  %v661 = vunpack.c.l.b16 %v100
  %v662 = vunpack.c.h.b16 %v100
  %v663 = vunpack.c.l.b16 %v101
  %v664 = vunpack.c.h.b16 %v101
  %v665 = vunpack.c.l.b16 %v102
  %v666 = vunpack.c.h.b16 %v102
  %v667 = vunpack.c.l.b16 %v103
  %v668 = vunpack.c.h.b16 %v103
  %v669 = vunpack.c.l.b16 %v104
  %v670 = vunpack.c.h.b16 %v104
  %v671 = vunpack.c.l.b16 %v105
  %v672 = vunpack.c.h.b16 %v105
  %v673 = vunpack.c.l.b16 %v106
  %v674 = vunpack.c.h.b16 %v106
  %v675 = vunpack.c.l.b16 %v107
  %v676 = vunpack.c.h.b16 %v107
  %v677 = vunpack.c.l.b16 %v108
  %v678 = vunpack.c.h.b16 %v108
  %v679 = vunpack.c.l.b16 %v109
  %v680 = vunpack.c.h.b16 %v109
  %v681 = vunpack.c.l.b16 %v110
  %v682 = vunpack.c.h.b16 %v110
  %v683 = vunpack.c.l.b16 %v111
  %v684 = vunpack.c.h.b16 %v111
  %v685 = vunpack.c.l.b16 %v112
  %v686 = vunpack.c.h.b16 %v112
  %v687 = vunpack.c.l.b16 %v113
  %v688 = vunpack.c.h.b16 %v113
  %v689 = vunpack.c.l.b16 %v114
  %v690 = vunpack.c.h.b16 %v114
  %v691 = vunpack.c.l.b16 %v115
  %v692 = vunpack.c.h.b16 %v115
  %v693 = vunpack.c.l.b16 %v116
  %v694 = vunpack.c.h.b16 %v116
  %v695 = vunpack.c.l.b16 %v117
  %v696 = vunpack.c.h.b16 %v117
  %v697 = vunpack.c.l.b16 %v118
  %v698 = vunpack.c.h.b16 %v118
  %v699 = vunpack.c.l.b16 %v119
  %v700 = vunpack.c.h.b16 %v119
  %v701 = vunpack.c.l.b16 %v120
  %v702 = vunpack.c.h.b16 %v120
  %v703 = vunpack.c.l.b16 %v121
  %v704 = vunpack.c.h.b16 %v121
  %v705 = vunpack.c.l.b16 %v122
  %v706 = vunpack.c.h.b16 %v122
  %v707 = vunpack.c.l.b16 %v123
  %v708 = vunpack.c.h.b16 %v123
  %v709 = vunpack.c.l.b16 %v124
  %v710 = vunpack.c.h.b16 %v124
  %v711 = vunpack.c.l.b16 %v125
  %v712 = vunpack.c.h.b16 %v125
  %v713 = vunpack.c.l.b16 %v126
  %v714 = vunpack.c.h.b16 %v126
  %v715 = vunpack.c.l.b16 %v127
  %v716 = vunpack.c.h.b16 %v127
  %v717 = vunpack.c.l.b16 %v128
  %v718 = vunpack.c.h.b16 %v128
  %v719 = vunpack.c.l.b16 %v129
  %v720 = vunpack.c.h.b16 %v129
  %v721 = vunpack.c.l.b16 %v130
  %v722 = vunpack.c.h.b16 %v130
  %v723 = vunpack.c.l.b16 %v131
  %v724 = vunpack.c.h.b16 %v131
  %v725 = vunpack.c.l.b16 %v132
  %v726 = vunpack.c.h.b16 %v132
  %v727 = vunpack.c.l.b16 %v133
  %v728 = vunpack.c.h.b16 %v133
  %v729 = vunpack.c.l.b16 %v134
  %v730 = vunpack.c.h.b16 %v134
  %v731 = vunpack.c.l.b16 %v135
  %v732 = vunpack.c.h.b16 %v135
  %v733 = vunpack.c.l.b16 %v136
  %v734 = vunpack.c.h.b16 %v136
  %v735 = vunpack.c.l.b16 %v137
  %v736 = vunpack.c.h.b16 %v137
  %v737 = vunpack.c.l.b16 %v138
  %v738 = vunpack.c.h.b16 %v138
  %v739 = vunpack.c.l.b16 %v139
  %v740 = vunpack.c.h.b16 %v139
  %v741 = vunpack.c.l.b16 %v140
  %v742 = vunpack.c.h.b16 %v140
  %v743 = vunpack.c.l.b16 %v141
  %v744 = vunpack.c.h.b16 %v141
  %v745 = vunpack.c.l.b16 %v142
  %v746 = vunpack.c.h.b16 %v142
  %v747 = vunpack.c.l.b16 %v143
  %v748 = vunpack.c.h.b16 %v143
  %v749 = vunpack.c.l.b16 %v144
  %v750 = vunpack.c.h.b16 %v144
  %v751 = vunpack.c.l.b16 %v145
  %v752 = vunpack.c.h.b16 %v145
  %v753 = vunpack.c.l.b16 %v146
  %v754 = vunpack.c.h.b16 %v146
  %v755 = vunpack.c.l.b16 %v147
  %v756 = vunpack.c.h.b16 %v147
  %v757 = vunpack.c.l.b16 %v148
  %v758 = vunpack.c.h.b16 %v148
  %v759 = vunpack.c.l.b16 %v149
  %v760 = vunpack.c.h.b16 %v149
  %v761 = vunpack.c.l.b16 %v150
  %v762 = vunpack.c.h.b16 %v150
  %v763 = vunpack.c.l.b16 %v151
  %v764 = vunpack.c.h.b16 %v151
  %v765 = vunpack.c.l.b16 %v152
  %v766 = vunpack.c.h.b16 %v152
  %v767 = vunpack.c.l.b16 %v153
  %v768 = vunpack.c.h.b16 %v153
  %v769 = vunpack.c.l.b16 %v154
  %v770 = vunpack.c.h.b16 %v154
  %v771 = vunpack.c.l.b16 %v155
  %v772 = vunpack.c.h.b16 %v155
  %v773 = vunpack.c.l.b16 %v156
  %v774 = vunpack.c.h.b16 %v156
  %v775 = vunpack.c.l.b16 %v157
  %v776 = vunpack.c.h.b16 %v157
  %v777 = vunpack.c.l.b16 %v158
  %v778 = vunpack.c.h.b16 %v158
  %v779 = vunpack.c.l.b16 %v159
  %v780 = vunpack.c.h.b16 %v159
  %v781 = vunpack.c.l.b16 %v160
  %v782 = vunpack.c.h.b16 %v160
  %v783 = vunpack.c.l.b16 %v161
  %v784 = vunpack.c.h.b16 %v161
  %v785 = vunpack.c.l.b16 %v162
  %v786 = vunpack.c.h.b16 %v162
  %v787 = vunpack.c.l.b16 %v163
  %v788 = vunpack.c.h.b16 %v163
  %v789 = vunpack.c.l.b16 %v164
  %v790 = vunpack.c.h.b16 %v164
  %v791 = vunpack.c.l.b16 %v165
  %v792 = vunpack.c.h.b16 %v165
  %v793 = vunpack.c.l.b16 %v166
  %v794 = vunpack.c.h.b16 %v166
  %v795 = vunpack.c.l.b16 %v167
  %v796 = vunpack.c.h.b16 %v167
  %v797 = vunpack.c.l.b16 %v168
  %v798 = vunpack.c.h.b16 %v168
  %v799 = vunpack.c.l.b16 %v169
  %v800 = vunpack.c.h.b16 %v169
  %v801 = vunpack.c.l.b16 %v170
  %v802 = vunpack.c.h.b16 %v170
  %v803 = vunpack.c.l.b16 %v171
  %v804 = vunpack.c.h.b16 %v171
  %v805 = vunpack.c.l.b16 %v172
  %v806 = vunpack.c.h.b16 %v172
  %v807 = vunpack.c.l.b16 %v173
  %v808 = vunpack.c.h.b16 %v173
  %v809 = vunpack.c.l.b16 %v174
  %v810 = vunpack.c.h.b16 %v174
  %v811 = vunpack.c.l.b16 %v175
  %v812 = vunpack.c.h.b16 %v175
  %v813 = vunpack.c.l.b16 %v176
  %v814 = vunpack.c.h.b16 %v176
  %v815 = vunpack.c.l.b16 %v177
  %v816 = vunpack.c.h.b16 %v177
  %v817 = vunpack.c.l.b16 %v178
  %v818 = vunpack.c.h.b16 %v178
  %v819 = vpack.c.b16 %v579, %v563
  %v820 = vpack.c.b16 %v580, %v564
  %v821 = vpack.c.b16 %v581, %v565
  %v822 = vpack.c.b16 %v582, %v566
  %v823 = vpack.c.b16 %v583, %v567
  %v824 = vpack.c.b16 %v584, %v568
  %v825 = vpack.c.b16 %v585, %v569
  %v826 = vpack.c.b16 %v586, %v570
  %v827 = vpack.c.b16 %v587, %v571
  %v828 = vpack.c.b16 %v588, %v572
  %v829 = vpack.c.b16 %v589, %v573
  %v830 = vpack.c.b16 %v590, %v574
  %v831 = vpack.c.b16 %v591, %v575
  %v832 = vpack.c.b16 %v592, %v576
  %v833 = vpack.c.b16 %v593, %v577
  %v834 = vpack.c.b16 %v594, %v578
  %v835 = vpack.c.b16 %v611, %v595
  %v836 = vpack.c.b16 %v612, %v596
  %v837 = vpack.c.b16 %v613, %v597
  %v838 = vpack.c.b16 %v614, %v598
  %v839 = vpack.c.b16 %v615, %v599
  %v840 = vpack.c.b16 %v616, %v600
  %v841 = vpack.c.b16 %v617, %v601
  %v842 = vpack.c.b16 %v618, %v602
  %v843 = vpack.c.b16 %v619, %v603
  %v844 = vpack.c.b16 %v620, %v604
  %v845 = vpack.c.b16 %v621, %v605
  %v846 = vpack.c.b16 %v622, %v606
  %v847 = vpack.c.b16 %v623, %v607
  %v848 = vpack.c.b16 %v624, %v608
  %v849 = vpack.c.b16 %v625, %v609
  %v850 = vpack.c.b16 %v626, %v610
  %v851 = vpack.c.b16 %v643, %v627
  %v852 = vpack.c.b16 %v644, %v628
  %v853 = vpack.c.b16 %v645, %v629
  %v854 = vpack.c.b16 %v646, %v630
  %v855 = vpack.c.b16 %v647, %v631
  %v856 = vpack.c.b16 %v648, %v632
  %v857 = vpack.c.b16 %v649, %v633
  %v858 = vpack.c.b16 %v650, %v634
  %v859 = vpack.c.b16 %v651, %v635
  %v860 = vpack.c.b16 %v652, %v636
  %v861 = vpack.c.b16 %v653, %v637
  %v862 = vpack.c.b16 %v654, %v638
  %v863 = vpack.c.b16 %v655, %v639
  %v864 = vpack.c.b16 %v656, %v640
  %v865 = vpack.c.b16 %v657, %v641
  %v866 = vpack.c.b16 %v658, %v642
  %v867 = vpack.c.b16 %v675, %v659
  %v868 = vpack.c.b16 %v676, %v660
  %v869 = vpack.c.b16 %v677, %v661
  %v870 = vpack.c.b16 %v678, %v662
  %v871 = vpack.c.b16 %v679, %v663
  %v872 = vpack.c.b16 %v680, %v664
  %v873 = vpack.c.b16 %v681, %v665
  %v874 = vpack.c.b16 %v682, %v666
  %v875 = vpack.c.b16 %v683, %v667
  %v876 = vpack.c.b16 %v684, %v668
  %v877 = vpack.c.b16 %v685, %v669
  %v878 = vpack.c.b16 %v686, %v670
  %v879 = vpack.c.b16 %v687, %v671
  %v880 = vpack.c.b16 %v688, %v672
  %v881 = vpack.c.b16 %v689, %v673
  %v882 = vpack.c.b16 %v690, %v674
  %v883 = vpack.c.b16 %v707, %v691
  %v884 = vpack.c.b16 %v708, %v692
  %v885 = vpack.c.b16 %v709, %v693
  %v886 = vpack.c.b16 %v710, %v694
  %v887 = vpack.c.b16 %v711, %v695
  %v888 = vpack.c.b16 %v712, %v696
  %v889 = vpack.c.b16 %v713, %v697
  %v890 = vpack.c.b16 %v714, %v698
  %v891 = vpack.c.b16 %v715, %v699
  %v892 = vpack.c.b16 %v716, %v700
  %v893 = vpack.c.b16 %v717, %v701
  %v894 = vpack.c.b16 %v718, %v702
  %v895 = vpack.c.b16 %v719, %v703
  %v896 = vpack.c.b16 %v720, %v704
  %v897 = vpack.c.b16 %v721, %v705
  %v898 = vpack.c.b16 %v722, %v706
  %v899 = vpack.c.b16 %v739, %v723
  %v900 = vpack.c.b16 %v740, %v724
  %v901 = vpack.c.b16 %v741, %v725
  %v902 = vpack.c.b16 %v742, %v726
  %v903 = vpack.c.b16 %v743, %v727
  %v904 = vpack.c.b16 %v744, %v728
  %v905 = vpack.c.b16 %v745, %v729
  %v906 = vpack.c.b16 %v746, %v730
  %v907 = vpack.c.b16 %v747, %v731
  %v908 = vpack.c.b16 %v748, %v732
  %v909 = vpack.c.b16 %v749, %v733
  %v910 = vpack.c.b16 %v750, %v734
  %v911 = vpack.c.b16 %v751, %v735
  %v912 = vpack.c.b16 %v752, %v736
  %v913 = vpack.c.b16 %v753, %v737
  %v914 = vpack.c.b16 %v754, %v738
  %v915 = vpack.c.b16 %v771, %v755
  %v916 = vpack.c.b16 %v772, %v756
  %v917 = vpack.c.b16 %v773, %v757
  %v918 = vpack.c.b16 %v774, %v758
  %v919 = vpack.c.b16 %v775, %v759
  %v920 = vpack.c.b16 %v776, %v760
  %v921 = vpack.c.b16 %v777, %v761
  %v922 = vpack.c.b16 %v778, %v762
  %v923 = vpack.c.b16 %v779, %v763
  %v924 = vpack.c.b16 %v780, %v764
  %v925 = vpack.c.b16 %v781, %v765
  %v926 = vpack.c.b16 %v782, %v766
  %v927 = vpack.c.b16 %v783, %v767
  %v928 = vpack.c.b16 %v784, %v768
  %v929 = vpack.c.b16 %v785, %v769
  %v930 = vpack.c.b16 %v786, %v770
  %v931 = vpack.c.b16 %v803, %v787
  %v932 = vpack.c.b16 %v804, %v788
  %v933 = vpack.c.b16 %v805, %v789
  %v934 = vpack.c.b16 %v806, %v790
  %v935 = vpack.c.b16 %v807, %v791
  %v936 = vpack.c.b16 %v808, %v792
  %v937 = vpack.c.b16 %v809, %v793
  %v938 = vpack.c.b16 %v810, %v794
  %v939 = vpack.c.b16 %v811, %v795
  %v940 = vpack.c.b16 %v812, %v796
  %v941 = vpack.c.b16 %v813, %v797
  %v942 = vpack.c.b16 %v814, %v798
  %v943 = vpack.c.b16 %v815, %v799
  %v944 = vpack.c.b16 %v816, %v800
  %v945 = vpack.c.b16 %v817, %v801
  %v946 = vpack.c.b16 %v818, %v802
  %v1331 = vunpack.c.l.b16 %v179
  %v1332 = vunpack.c.l.b16 %v180
  %v1333 = vunpack.c.l.b16 %v181
  %v1334 = vunpack.c.l.b16 %v182
  %v1335 = vunpack.c.l.b16 %v183
  %v1336 = vunpack.c.l.b16 %v184
  %v1337 = vunpack.c.l.b16 %v185
  %v1338 = vunpack.c.l.b16 %v186
  %v1339 = vunpack.c.l.b16 %v187
  %v1340 = vunpack.c.l.b16 %v188
  %v1341 = vunpack.c.l.b16 %v189
  %v1342 = vunpack.c.l.b16 %v190
  %v1343 = vunpack.c.l.b16 %v191
  %v1344 = vunpack.c.l.b16 %v192
  %v1345 = vunpack.c.l.b16 %v193
  %v1346 = vunpack.c.l.b16 %v194
  %v1347 = vunpack.c.l.b16 %v195
  %v1348 = vunpack.c.l.b16 %v196
  %v1349 = vunpack.c.l.b16 %v197
  %v1350 = vunpack.c.l.b16 %v198
  %v1351 = vunpack.c.l.b16 %v199
  %v1352 = vunpack.c.l.b16 %v200
  %v1353 = vunpack.c.l.b16 %v201
  %v1354 = vunpack.c.l.b16 %v202
  %v1355 = vunpack.c.l.b16 %v203
  %v1356 = vunpack.c.l.b16 %v204
  %v1357 = vunpack.c.l.b16 %v205
  %v1358 = vunpack.c.l.b16 %v206
  %v1359 = vunpack.c.l.b16 %v207
  %v1360 = vunpack.c.l.b16 %v208
  %v1361 = vunpack.c.l.b16 %v209
  %v1362 = vunpack.c.l.b16 %v210
  %v1363 = vunpack.c.l.b16 %v211
  %v1364 = vunpack.c.l.b16 %v212
  %v1365 = vunpack.c.l.b16 %v213
  %v1366 = vunpack.c.l.b16 %v214
  %v1367 = vunpack.c.l.b16 %v215
  %v1368 = vunpack.c.l.b16 %v216
  %v1369 = vunpack.c.l.b16 %v217
  %v1370 = vunpack.c.l.b16 %v218
  %v1371 = vunpack.c.l.b16 %v219
  %v1372 = vunpack.c.l.b16 %v220
  %v1373 = vunpack.c.l.b16 %v221
  %v1374 = vunpack.c.l.b16 %v222
  %v1375 = vunpack.c.l.b16 %v223
  %v1376 = vunpack.c.l.b16 %v224
  %v1377 = vunpack.c.l.b16 %v225
  %v1378 = vunpack.c.l.b16 %v226
  %v1379 = vunpack.c.l.b16 %v227
  %v1380 = vunpack.c.l.b16 %v228
  %v1381 = vunpack.c.l.b16 %v229
  %v1382 = vunpack.c.l.b16 %v230
  %v1383 = vunpack.c.l.b16 %v231
  %v1384 = vunpack.c.l.b16 %v232
  %v1385 = vunpack.c.l.b16 %v233
  %v1386 = vunpack.c.l.b16 %v234
  %v1387 = vunpack.c.l.b16 %v235
  %v1388 = vunpack.c.l.b16 %v236
  %v1389 = vunpack.c.l.b16 %v237
  %v1390 = vunpack.c.l.b16 %v238
  %v1391 = vunpack.c.l.b16 %v239
  %v1392 = vunpack.c.l.b16 %v240
  %v1393 = vunpack.c.l.b16 %v241
  %v1394 = vunpack.c.l.b16 %v242
  %v1395 = vunpack.c.l.b16 %v243
  %v1396 = vunpack.c.l.b16 %v244
  %v1397 = vunpack.c.l.b16 %v245
  %v1398 = vunpack.c.l.b16 %v246
  %v1399 = vunpack.c.l.b16 %v247
  %v1400 = vunpack.c.l.b16 %v248
  %v1401 = vunpack.c.l.b16 %v249
  %v1402 = vunpack.c.l.b16 %v250
  %v1403 = vunpack.c.l.b16 %v251
  %v1404 = vunpack.c.l.b16 %v252
  %v1405 = vunpack.c.l.b16 %v253
  %v1406 = vunpack.c.l.b16 %v254
  %v1407 = vunpack.c.l.b16 %v255
  %v1408 = vunpack.c.l.b16 %v256
  %v1409 = vunpack.c.l.b16 %v257
  %v1410 = vunpack.c.l.b16 %v258
  %v1411 = vunpack.c.l.b16 %v259
  %v1412 = vunpack.c.l.b16 %v260
  %v1413 = vunpack.c.l.b16 %v261
  %v1414 = vunpack.c.l.b16 %v262
  %v1415 = vunpack.c.l.b16 %v263
  %v1416 = vunpack.c.l.b16 %v264
  %v1417 = vunpack.c.l.b16 %v265
  %v1418 = vunpack.c.l.b16 %v266
  %v1419 = vunpack.c.l.b16 %v267
  %v1420 = vunpack.c.l.b16 %v268
  %v1421 = vunpack.c.l.b16 %v269
  %v1422 = vunpack.c.l.b16 %v270
  %v1423 = vunpack.c.l.b16 %v271
  %v1424 = vunpack.c.l.b16 %v272
  %v1425 = vunpack.c.l.b16 %v273
  %v1426 = vunpack.c.l.b16 %v274
  %v1427 = vunpack.c.l.b16 %v275
  %v1428 = vunpack.c.l.b16 %v276
  %v1429 = vunpack.c.l.b16 %v277
  %v1430 = vunpack.c.l.b16 %v278
  %v1431 = vunpack.c.l.b16 %v279
  %v1432 = vunpack.c.l.b16 %v280
  %v1433 = vunpack.c.l.b16 %v281
  %v1434 = vunpack.c.l.b16 %v282
  %v1435 = vunpack.c.l.b16 %v283
  %v1436 = vunpack.c.l.b16 %v284
  %v1437 = vunpack.c.l.b16 %v285
  %v1438 = vunpack.c.l.b16 %v286
  %v1439 = vunpack.c.l.b16 %v287
  %v1440 = vunpack.c.l.b16 %v288
  %v1441 = vunpack.c.l.b16 %v289
  %v1442 = vunpack.c.l.b16 %v290
  %v1443 = vunpack.c.l.b16 %v291
  %v1444 = vunpack.c.l.b16 %v292
  %v1445 = vunpack.c.l.b16 %v293
  %v1446 = vunpack.c.l.b16 %v294
  %v1447 = vunpack.c.l.b16 %v295
  %v1448 = vunpack.c.l.b16 %v296
  %v1449 = vunpack.c.l.b16 %v297
  %v1450 = vunpack.c.l.b16 %v298
  %v1451 = vunpack.c.l.b16 %v299
  %v1452 = vunpack.c.l.b16 %v300
  %v1453 = vunpack.c.l.b16 %v301
  %v1454 = vunpack.c.l.b16 %v302
  %v1455 = vunpack.c.l.b16 %v303
  %v1456 = vunpack.c.l.b16 %v304
  %v1457 = vunpack.c.l.b16 %v305
  %v1458 = vunpack.c.l.b16 %v306
  %v1459 = vunpack.c.l.b16 %v307
  %v1460 = vunpack.c.l.b16 %v308
  %v1461 = vunpack.c.l.b16 %v309
  %v1462 = vunpack.c.l.b16 %v310
  %v1463 = vunpack.c.l.b16 %v311
  %v1464 = vunpack.c.l.b16 %v312
  %v1465 = vunpack.c.l.b16 %v313
  %v1466 = vunpack.c.l.b16 %v314
  %v1467 = vunpack.c.l.b16 %v315
  %v1468 = vunpack.c.l.b16 %v316
  %v1469 = vunpack.c.l.b16 %v317
  %v1470 = vunpack.c.l.b16 %v318
  %v1471 = vunpack.c.l.b16 %v319
  %v1472 = vunpack.c.l.b16 %v320
  %v1473 = vunpack.c.l.b16 %v321
  %v1474 = vunpack.c.l.b16 %v322
  %v1475 = vunpack.c.l.b16 %v323
  %v1476 = vunpack.c.l.b16 %v324
  %v1477 = vunpack.c.l.b16 %v325
  %v1478 = vunpack.c.l.b16 %v326
  %v1479 = vunpack.c.l.b16 %v327
  %v1480 = vunpack.c.l.b16 %v328
  %v1481 = vunpack.c.l.b16 %v329
  %v1482 = vunpack.c.l.b16 %v330
  %v1483 = vunpack.c.l.b16 %v331
  %v1484 = vunpack.c.l.b16 %v332
  %v1485 = vunpack.c.l.b16 %v333
  %v1486 = vunpack.c.l.b16 %v334
  %v1487 = vunpack.c.l.b16 %v335
  %v1488 = vunpack.c.l.b16 %v336
  %v1489 = vunpack.c.l.b16 %v337
  %v1490 = vunpack.c.l.b16 %v338
  %v1491 = vunpack.c.l.b16 %v339
  %v1492 = vunpack.c.l.b16 %v340
  %v1493 = vunpack.c.l.b16 %v341
  %v1494 = vunpack.c.l.b16 %v342
  %v1495 = vunpack.c.l.b16 %v343
  %v1496 = vunpack.c.l.b16 %v344
  %v1497 = vunpack.c.l.b16 %v345
  %v1498 = vunpack.c.l.b16 %v346
  %v1499 = vunpack.c.l.b16 %v347
  %v1500 = vunpack.c.l.b16 %v348
  %v1501 = vunpack.c.l.b16 %v349
  %v1502 = vunpack.c.l.b16 %v350
  %v1503 = vunpack.c.l.b16 %v351
  %v1504 = vunpack.c.l.b16 %v352
  %v1505 = vunpack.c.l.b16 %v353
  %v1506 = vunpack.c.l.b16 %v354
  %v1507 = vunpack.c.l.b16 %v355
  %v1508 = vunpack.c.l.b16 %v356
  %v1509 = vunpack.c.l.b16 %v357
  %v1510 = vunpack.c.l.b16 %v358
  %v1511 = vunpack.c.l.b16 %v359
  %v1512 = vunpack.c.l.b16 %v360
  %v1513 = vunpack.c.l.b16 %v361
  %v1514 = vunpack.c.l.b16 %v362
  %v1515 = vunpack.c.l.b16 %v363
  %v1516 = vunpack.c.l.b16 %v364
  %v1517 = vunpack.c.l.b16 %v365
  %v1518 = vunpack.c.l.b16 %v366
  %v1519 = vunpack.c.l.b16 %v367
  %v1520 = vunpack.c.l.b16 %v368
  %v1521 = vunpack.c.l.b16 %v369
  %v1522 = vunpack.c.l.b16 %v370
  %v1523 = vunpack.c.l.b16 %v371
  %v1524 = vunpack.c.l.b16 %v372
  %v1525 = vunpack.c.l.b16 %v373
  %v1526 = vunpack.c.l.b16 %v374
  %v1527 = vunpack.c.l.b16 %v375
  %v1528 = vunpack.c.l.b16 %v376
  %v1529 = vunpack.c.l.b16 %v377
  %v1530 = vunpack.c.l.b16 %v378
  %v1531 = vunpack.c.l.b16 %v379
  %v1532 = vunpack.c.l.b16 %v380
  %v1533 = vunpack.c.l.b16 %v381
  %v1534 = vunpack.c.l.b16 %v382
  %v1535 = vunpack.c.l.b16 %v383
  %v1536 = vunpack.c.l.b16 %v384
  %v1537 = vunpack.c.l.b16 %v385
  %v1538 = vunpack.c.l.b16 %v386
  %v1539 = vunpack.c.l.b16 %v387
  %v1540 = vunpack.c.l.b16 %v388
  %v1541 = vunpack.c.l.b16 %v389
  %v1542 = vunpack.c.l.b16 %v390
  %v1543 = vunpack.c.l.b16 %v391
  %v1544 = vunpack.c.l.b16 %v392
  %v1545 = vunpack.c.l.b16 %v393
  %v1546 = vunpack.c.l.b16 %v394
  %v1547 = vunpack.c.l.b16 %v395
  %v1548 = vunpack.c.l.b16 %v396
  %v1549 = vunpack.c.l.b16 %v397
  %v1550 = vunpack.c.l.b16 %v398
  %v1551 = vunpack.c.l.b16 %v399
  %v1552 = vunpack.c.l.b16 %v400
  %v1553 = vunpack.c.l.b16 %v401
  %v1554 = vunpack.c.l.b16 %v402
  %v1555 = vunpack.c.l.b16 %v403
  %v1556 = vunpack.c.l.b16 %v404
  %v1557 = vunpack.c.l.b16 %v405
  %v1558 = vunpack.c.l.b16 %v406
  %v1559 = vunpack.c.l.b16 %v407
  %v1560 = vunpack.c.l.b16 %v408
  %v1561 = vunpack.c.l.b16 %v409
  %v1562 = vunpack.c.l.b16 %v410
  %v1563 = vunpack.c.l.b16 %v411
  %v1564 = vunpack.c.l.b16 %v412
  %v1565 = vunpack.c.l.b16 %v413
  %v1566 = vunpack.c.l.b16 %v414
  %v1567 = vunpack.c.l.b16 %v415
  %v1568 = vunpack.c.l.b16 %v416
  %v1569 = vunpack.c.l.b16 %v417
  %v1570 = vunpack.c.l.b16 %v418
  %v1571 = vunpack.c.l.b16 %v419
  %v1572 = vunpack.c.l.b16 %v420
  %v1573 = vunpack.c.l.b16 %v421
  %v1574 = vunpack.c.l.b16 %v422
  %v1575 = vunpack.c.l.b16 %v423
  %v1576 = vunpack.c.l.b16 %v424
  %v1577 = vunpack.c.l.b16 %v425
  %v1578 = vunpack.c.l.b16 %v426
  %v1579 = vunpack.c.l.b16 %v427
  %v1580 = vunpack.c.l.b16 %v428
  %v1581 = vunpack.c.l.b16 %v429
  %v1582 = vunpack.c.l.b16 %v430
  %v1583 = vunpack.c.l.b16 %v431
  %v1584 = vunpack.c.l.b16 %v432
  %v1585 = vunpack.c.l.b16 %v433
  %v1586 = vunpack.c.l.b16 %v434
  %v1587 = vpack.c.b16 %v1332, %v1331
  %v1588 = vpack.c.b16 %v1334, %v1333
  %v1589 = vpack.c.b16 %v1336, %v1335
  %v1590 = vpack.c.b16 %v1338, %v1337
  %v1591 = vpack.c.b16 %v1340, %v1339
  %v1592 = vpack.c.b16 %v1342, %v1341
  %v1593 = vpack.c.b16 %v1344, %v1343
  %v1594 = vpack.c.b16 %v1346, %v1345
  %v1595 = vpack.c.b16 %v1348, %v1347
  %v1596 = vpack.c.b16 %v1350, %v1349
  %v1597 = vpack.c.b16 %v1352, %v1351
  %v1598 = vpack.c.b16 %v1354, %v1353
  %v1599 = vpack.c.b16 %v1356, %v1355
  %v1600 = vpack.c.b16 %v1358, %v1357
  %v1601 = vpack.c.b16 %v1360, %v1359
  %v1602 = vpack.c.b16 %v1362, %v1361
  %v1603 = vpack.c.b16 %v1364, %v1363
  %v1604 = vpack.c.b16 %v1366, %v1365
  %v1605 = vpack.c.b16 %v1368, %v1367
  %v1606 = vpack.c.b16 %v1370, %v1369
  %v1607 = vpack.c.b16 %v1372, %v1371
  %v1608 = vpack.c.b16 %v1374, %v1373
  %v1609 = vpack.c.b16 %v1376, %v1375
  %v1610 = vpack.c.b16 %v1378, %v1377
  %v1611 = vpack.c.b16 %v1380, %v1379
  %v1612 = vpack.c.b16 %v1382, %v1381
  %v1613 = vpack.c.b16 %v1384, %v1383
  %v1614 = vpack.c.b16 %v1386, %v1385
  %v1615 = vpack.c.b16 %v1388, %v1387
  %v1616 = vpack.c.b16 %v1390, %v1389
  %v1617 = vpack.c.b16 %v1392, %v1391
  %v1618 = vpack.c.b16 %v1394, %v1393
  %v1619 = vpack.c.b16 %v1396, %v1395
  %v1620 = vpack.c.b16 %v1398, %v1397
  %v1621 = vpack.c.b16 %v1400, %v1399
  %v1622 = vpack.c.b16 %v1402, %v1401
  %v1623 = vpack.c.b16 %v1404, %v1403
  %v1624 = vpack.c.b16 %v1406, %v1405
  %v1625 = vpack.c.b16 %v1408, %v1407
  %v1626 = vpack.c.b16 %v1410, %v1409
  %v1627 = vpack.c.b16 %v1412, %v1411
  %v1628 = vpack.c.b16 %v1414, %v1413
  %v1629 = vpack.c.b16 %v1416, %v1415
  %v1630 = vpack.c.b16 %v1418, %v1417
  %v1631 = vpack.c.b16 %v1420, %v1419
  %v1632 = vpack.c.b16 %v1422, %v1421
  %v1633 = vpack.c.b16 %v1424, %v1423
  %v1634 = vpack.c.b16 %v1426, %v1425
  %v1635 = vpack.c.b16 %v1428, %v1427
  %v1636 = vpack.c.b16 %v1430, %v1429
  %v1637 = vpack.c.b16 %v1432, %v1431
  %v1638 = vpack.c.b16 %v1434, %v1433
  %v1639 = vpack.c.b16 %v1436, %v1435
  %v1640 = vpack.c.b16 %v1438, %v1437
  %v1641 = vpack.c.b16 %v1440, %v1439
  %v1642 = vpack.c.b16 %v1442, %v1441
  %v1643 = vpack.c.b16 %v1444, %v1443
  %v1644 = vpack.c.b16 %v1446, %v1445
  %v1645 = vpack.c.b16 %v1448, %v1447
  %v1646 = vpack.c.b16 %v1450, %v1449
  %v1647 = vpack.c.b16 %v1452, %v1451
  %v1648 = vpack.c.b16 %v1454, %v1453
  %v1649 = vpack.c.b16 %v1456, %v1455
  %v1650 = vpack.c.b16 %v1458, %v1457
  %v1651 = vpack.c.b16 %v1460, %v1459
  %v1652 = vpack.c.b16 %v1462, %v1461
  %v1653 = vpack.c.b16 %v1464, %v1463
  %v1654 = vpack.c.b16 %v1466, %v1465
  %v1655 = vpack.c.b16 %v1468, %v1467
  %v1656 = vpack.c.b16 %v1470, %v1469
  %v1657 = vpack.c.b16 %v1472, %v1471
  %v1658 = vpack.c.b16 %v1474, %v1473
  %v1659 = vpack.c.b16 %v1476, %v1475
  %v1660 = vpack.c.b16 %v1478, %v1477
  %v1661 = vpack.c.b16 %v1480, %v1479
  %v1662 = vpack.c.b16 %v1482, %v1481
  %v1663 = vpack.c.b16 %v1484, %v1483
  %v1664 = vpack.c.b16 %v1486, %v1485
  %v1665 = vpack.c.b16 %v1488, %v1487
  %v1666 = vpack.c.b16 %v1490, %v1489
  %v1667 = vpack.c.b16 %v1492, %v1491
  %v1668 = vpack.c.b16 %v1494, %v1493
  %v1669 = vpack.c.b16 %v1496, %v1495
  %v1670 = vpack.c.b16 %v1498, %v1497
  %v1671 = vpack.c.b16 %v1500, %v1499
  %v1672 = vpack.c.b16 %v1502, %v1501
  %v1673 = vpack.c.b16 %v1504, %v1503
  %v1674 = vpack.c.b16 %v1506, %v1505
  %v1675 = vpack.c.b16 %v1508, %v1507
  %v1676 = vpack.c.b16 %v1510, %v1509
  %v1677 = vpack.c.b16 %v1512, %v1511
  %v1678 = vpack.c.b16 %v1514, %v1513
  %v1679 = vpack.c.b16 %v1516, %v1515
  %v1680 = vpack.c.b16 %v1518, %v1517
  %v1681 = vpack.c.b16 %v1520, %v1519
  %v1682 = vpack.c.b16 %v1522, %v1521
  %v1683 = vpack.c.b16 %v1524, %v1523
  %v1684 = vpack.c.b16 %v1526, %v1525
  %v1685 = vpack.c.b16 %v1528, %v1527
  %v1686 = vpack.c.b16 %v1530, %v1529
  %v1687 = vpack.c.b16 %v1532, %v1531
  %v1688 = vpack.c.b16 %v1534, %v1533
  %v1689 = vpack.c.b16 %v1536, %v1535
  %v1690 = vpack.c.b16 %v1538, %v1537
  %v1691 = vpack.c.b16 %v1540, %v1539
  %v1692 = vpack.c.b16 %v1542, %v1541
  %v1693 = vpack.c.b16 %v1544, %v1543
  %v1694 = vpack.c.b16 %v1546, %v1545
  %v1695 = vpack.c.b16 %v1548, %v1547
  %v1696 = vpack.c.b16 %v1550, %v1549
  %v1697 = vpack.c.b16 %v1552, %v1551
  %v1698 = vpack.c.b16 %v1554, %v1553
  %v1699 = vpack.c.b16 %v1556, %v1555
  %v1700 = vpack.c.b16 %v1558, %v1557
  %v1701 = vpack.c.b16 %v1560, %v1559
  %v1702 = vpack.c.b16 %v1562, %v1561
  %v1703 = vpack.c.b16 %v1564, %v1563
  %v1704 = vpack.c.b16 %v1566, %v1565
  %v1705 = vpack.c.b16 %v1568, %v1567
  %v1706 = vpack.c.b16 %v1570, %v1569
  %v1707 = vpack.c.b16 %v1572, %v1571
  %v1708 = vpack.c.b16 %v1574, %v1573
  %v1709 = vpack.c.b16 %v1576, %v1575
  %v1710 = vpack.c.b16 %v1578, %v1577
  %v1711 = vpack.c.b16 %v1580, %v1579
  %v1712 = vpack.c.b16 %v1582, %v1581
  %v1713 = vpack.c.b16 %v1584, %v1583
  %v1714 = vpack.c.b16 %v1586, %v1585
  %1843 = vmatprep.subr.bf16.mxu0 0
  %1844 = vmatpush1.bf16.msra.mxu0 %v1587
  %1845 = vmatprep.subr.bf16.mxu0 0
  %1846 = vmatpush1.bf16.msra.mxu0 %v1588
  %1847 = vmatprep.subr.bf16.mxu0 0
  %1848 = vmatpush1.bf16.msra.mxu0 %v1589
  %1849 = vmatprep.subr.bf16.mxu0 0
  %1850 = vmatpush1.bf16.msra.mxu0 %v1590
  %1851 = vmatprep.subr.bf16.mxu0 0
  %1852 = vmatpush1.bf16.msra.mxu0 %v1591
  %1853 = vmatprep.subr.bf16.mxu0 0
  %1854 = vmatpush1.bf16.msra.mxu0 %v1592
  %1855 = vmatprep.subr.bf16.mxu0 0
  %1856 = vmatpush1.bf16.msra.mxu0 %v1593
  %1857 = vmatprep.subr.bf16.mxu0 0
  %1858 = vmatpush1.bf16.msra.mxu0 %v1594
  %1859 = vmatprep.subr.bf16.mxu0 0
  %1860 = vmatpush1.bf16.msra.mxu0 %v1595
  %1861 = vmatprep.subr.bf16.mxu0 0
  %1862 = vmatpush1.bf16.msra.mxu0 %v1596
  %1863 = vmatprep.subr.bf16.mxu0 0
  %1864 = vmatpush1.bf16.msra.mxu0 %v1597
  %1865 = vmatprep.subr.bf16.mxu0 0
  %1866 = vmatpush1.bf16.msra.mxu0 %v1598
  %1867 = vmatprep.subr.bf16.mxu0 0
  %1868 = vmatpush1.bf16.msra.mxu0 %v1599
  %1869 = vmatprep.subr.bf16.mxu0 0
  %1870 = vmatpush1.bf16.msra.mxu0 %v1600
  %1871 = vmatprep.subr.bf16.mxu0 0
  %1872 = vmatpush1.bf16.msra.mxu0 %v1601
  %1873 = vmatprep.subr.bf16.mxu0 0
  %1874 = vmatpush1.bf16.msra.mxu0 %v1602
  %1875 = vmatprep.mubr.bf16.mxu0 %v820
  %1876 = vmatmul.mubr.bf16.gmra.mrb[0].mxu0 %v819
  %v1877 = vpop.f32.mrb[0].mxu0
  %v1878 = vadd.f32 0.0, %v1877
  %v1879 = vpop.f32.mrb[0].mxu0
  %v1880 = vpop.f32.mrb[0].mxu0
  %v1881 = vadd.f32 0.0, %v1880
  %v1882 = vpop.f32.mrb[0].mxu0
  %1883 = vmatprep.mubr.bf16.mxu0 %v836
  %1884 = vmatmul.mubr.bf16.gmra.mrb[0].mxu0 %v835
  %v1885 = vpop.f32.mrb[0].mxu0
  %v1886 = vadd.f32 0.0, %v1885
  %v1887 = vpop.f32.mrb[0].mxu0
  %v1888 = vpop.f32.mrb[0].mxu0
  %v1889 = vadd.f32 0.0, %v1888
  %v1890 = vpop.f32.mrb[0].mxu0
  %1891 = vmatprep.mubr.bf16.mxu0 %v852
  %1892 = vmatmul.mubr.bf16.gmra.mrb[0].mxu0 %v851
  %v1893 = vpop.f32.mrb[0].mxu0
  %v1894 = vadd.f32 0.0, %v1893
  %v1895 = vpop.f32.mrb[0].mxu0
  %v1896 = vpop.f32.mrb[0].mxu0
  %v1897 = vadd.f32 0.0, %v1896
  %v1898 = vpop.f32.mrb[0].mxu0
  %1899 = vmatprep.mubr.bf16.mxu0 %v868
  %1900 = vmatmul.mubr.bf16.gmra.mrb[0].mxu0 %v867
  %v1901 = vpop.f32.mrb[0].mxu0
  %v1902 = vadd.f32 0.0, %v1901
  %v1903 = vpop.f32.mrb[0].mxu0
  %v1904 = vpop.f32.mrb[0].mxu0
  %v1905 = vadd.f32 0.0, %v1904
  %v1906 = vpop.f32.mrb[0].mxu0
  %1907 = vmatprep.mubr.bf16.mxu0 %v884
  %1908 = vmatmul.mubr.bf16.gmra.mrb[0].mxu0 %v883
  %v1909 = vpop.f32.mrb[0].mxu0
  %v1910 = vadd.f32 0.0, %v1909
  %v1911 = vpop.f32.mrb[0].mxu0
  %v1912 = vpop.f32.mrb[0].mxu0
  %v1913 = vadd.f32 0.0, %v1912
  %v1914 = vpop.f32.mrb[0].mxu0
  %1915 = vmatprep.mubr.bf16.mxu0 %v900
  %1916 = vmatmul.mubr.bf16.gmra.mrb[0].mxu0 %v899
  %v1917 = vpop.f32.mrb[0].mxu0
  %v1918 = vadd.f32 0.0, %v1917
  %v1919 = vpop.f32.mrb[0].mxu0
  %v1920 = vpop.f32.mrb[0].mxu0
  %v1921 = vadd.f32 0.0, %v1920
  %v1922 = vpop.f32.mrb[0].mxu0
  %1923 = vmatprep.mubr.bf16.mxu0 %v916
  %1924 = vmatmul.mubr.bf16.gmra.mrb[0].mxu0 %v915
  %v1925 = vpop.f32.mrb[0].mxu0
  %v1926 = vadd.f32 0.0, %v1925
  %v1927 = vpop.f32.mrb[0].mxu0
  %v1928 = vpop.f32.mrb[0].mxu0
  %v1929 = vadd.f32 0.0, %v1928
  %v1930 = vpop.f32.mrb[0].mxu0
  %1931 = vmatprep.mubr.bf16.mxu0 %v932
  %1932 = vmatmul.mubr.bf16.gmra.mrb[0].mxu0 %v931
  %v1933 = vpop.f32.mrb[0].mxu0
  %v1934 = vadd.f32 0.0, %v1933
  %v1935 = vpop.f32.mrb[0].mxu0
  %v1936 = vpop.f32.mrb[0].mxu0
  %v1937 = vadd.f32 0.0, %v1936
  %v1938 = vpop.f32.mrb[0].mxu0
  %1939 = vdwg.mxu0
  %1940 = vmatprep.subr.bf16.mxu0 0
  %1941 = vmatpush1.bf16.msra.mxu0 %v1603
  %1942 = vmatprep.subr.bf16.mxu0 0
  %1943 = vmatpush1.bf16.msra.mxu0 %v1604
  %1944 = vmatprep.subr.bf16.mxu0 0
  %1945 = vmatpush1.bf16.msra.mxu0 %v1605
  %1946 = vmatprep.subr.bf16.mxu0 0
  %1947 = vmatpush1.bf16.msra.mxu0 %v1606
  %1948 = vmatprep.subr.bf16.mxu0 0
  %1949 = vmatpush1.bf16.msra.mxu0 %v1607
  %1950 = vmatprep.subr.bf16.mxu0 0
  %1951 = vmatpush1.bf16.msra.mxu0 %v1608
  %1952 = vmatprep.subr.bf16.mxu0 0
  %1953 = vmatpush1.bf16.msra.mxu0 %v1609
  %1954 = vmatprep.subr.bf16.mxu0 0
  %1955 = vmatpush1.bf16.msra.mxu0 %v1610
  %1956 = vmatprep.subr.bf16.mxu0 0
  %1957 = vmatpush1.bf16.msra.mxu0 %v1611
  %1958 = vmatprep.subr.bf16.mxu0 0
  %1959 = vmatpush1.bf16.msra.mxu0 %v1612
  %1960 = vmatprep.subr.bf16.mxu0 0
  %1961 = vmatpush1.bf16.msra.mxu0 %v1613
  %1962 = vmatprep.subr.bf16.mxu0 0
  %1963 = vmatpush1.bf16.msra.mxu0 %v1614
  %1964 = vmatprep.subr.bf16.mxu0 0
  %1965 = vmatpush1.bf16.msra.mxu0 %v1615
  %1966 = vmatprep.subr.bf16.mxu0 0
  %1967 = vmatpush1.bf16.msra.mxu0 %v1616
  %1968 = vmatprep.subr.bf16.mxu0 0
  %1969 = vmatpush1.bf16.msra.mxu0 %v1617
  %1970 = vmatprep.subr.bf16.mxu0 0
  %1971 = vmatpush1.bf16.msra.mxu0 %v1618
  %1972 = vmatprep.mubr.bf16.mxu0 %v822
  %1973 = vmatmul.mubr.bf16.gmra.mrb[0].mxu0 %v821
  %v1974 = vpop.f32.mrb[0].mxu0
  %v1975 = vadd.f32 %v1878, %v1974
  %v1976 = vpop.f32.mrb[0].mxu0
  %v1977 = vpop.f32.mrb[0].mxu0
  %v1978 = vadd.f32 %v1881, %v1977
  %v1979 = vpop.f32.mrb[0].mxu0
  %1980 = vmatprep.mubr.bf16.mxu0 %v838
  %1981 = vmatmul.mubr.bf16.gmra.mrb[0].mxu0 %v837
  %v1982 = vpop.f32.mrb[0].mxu0
  %v1983 = vadd.f32 %v1886, %v1982
  %v1984 = vpop.f32.mrb[0].mxu0
  %v1985 = vpop.f32.mrb[0].mxu0
  %v1986 = vadd.f32 %v1889, %v1985
  %v1987 = vpop.f32.mrb[0].mxu0
  %1988 = vmatprep.mubr.bf16.mxu0 %v854
  %1989 = vmatmul.mubr.bf16.gmra.mrb[0].mxu0 %v853
  %v1990 = vpop.f32.mrb[0].mxu0
  %v1991 = vadd.f32 %v1894, %v1990
  %v1992 = vpop.f32.mrb[0].mxu0
  %v1993 = vpop.f32.mrb[0].mxu0
  %v1994 = vadd.f32 %v1897, %v1993
  %v1995 = vpop.f32.mrb[0].mxu0
  %1996 = vmatprep.mubr.bf16.mxu0 %v870
  %1997 = vmatmul.mubr.bf16.gmra.mrb[0].mxu0 %v869
  %v1998 = vpop.f32.mrb[0].mxu0
  %v1999 = vadd.f32 %v1902, %v1998
  %v2000 = vpop.f32.mrb[0].mxu0
  %v2001 = vpop.f32.mrb[0].mxu0
  %v2002 = vadd.f32 %v1905, %v2001
  %v2003 = vpop.f32.mrb[0].mxu0
  %2004 = vmatprep.mubr.bf16.mxu0 %v886
  %2005 = vmatmul.mubr.bf16.gmra.mrb[0].mxu0 %v885
  %v2006 = vpop.f32.mrb[0].mxu0
  %v2007 = vadd.f32 %v1910, %v2006
  %v2008 = vpop.f32.mrb[0].mxu0
  %v2009 = vpop.f32.mrb[0].mxu0
  %v2010 = vadd.f32 %v1913, %v2009
  %v2011 = vpop.f32.mrb[0].mxu0
  %2012 = vmatprep.mubr.bf16.mxu0 %v902
  %2013 = vmatmul.mubr.bf16.gmra.mrb[0].mxu0 %v901
  %v2014 = vpop.f32.mrb[0].mxu0
  %v2015 = vadd.f32 %v1918, %v2014
  %v2016 = vpop.f32.mrb[0].mxu0
  %v2017 = vpop.f32.mrb[0].mxu0
  %v2018 = vadd.f32 %v1921, %v2017
  %v2019 = vpop.f32.mrb[0].mxu0
  %2020 = vmatprep.mubr.bf16.mxu0 %v918
  %2021 = vmatmul.mubr.bf16.gmra.mrb[0].mxu0 %v917
  %v2022 = vpop.f32.mrb[0].mxu0
  %v2023 = vadd.f32 %v1926, %v2022
  %v2024 = vpop.f32.mrb[0].mxu0
  %v2025 = vpop.f32.mrb[0].mxu0
  %v2026 = vadd.f32 %v1929, %v2025
  %v2027 = vpop.f32.mrb[0].mxu0
  %2028 = vmatprep.mubr.bf16.mxu0 %v934
  %2029 = vmatmul.mubr.bf16.gmra.mrb[0].mxu0 %v933
  %v2030 = vpop.f32.mrb[0].mxu0
  %v2031 = vadd.f32 %v1934, %v2030
  %v2032 = vpop.f32.mrb[0].mxu0
  %v2033 = vpop.f32.mrb[0].mxu0
  %v2034 = vadd.f32 %v1937, %v2033
  %v2035 = vpop.f32.mrb[0].mxu0
  %2036 = vdwg.mxu0
  %2037 = vmatprep.subr.bf16.mxu0 0
  %2038 = vmatpush1.bf16.msra.mxu0 %v1619
  %2039 = vmatprep.subr.bf16.mxu0 0
  %2040 = vmatpush1.bf16.msra.mxu0 %v1620
  %2041 = vmatprep.subr.bf16.mxu0 0
  %2042 = vmatpush1.bf16.msra.mxu0 %v1621
  %2043 = vmatprep.subr.bf16.mxu0 0
  %2044 = vmatpush1.bf16.msra.mxu0 %v1622
  %2045 = vmatprep.subr.bf16.mxu0 0
  %2046 = vmatpush1.bf16.msra.mxu0 %v1623
  %2047 = vmatprep.subr.bf16.mxu0 0
  %2048 = vmatpush1.bf16.msra.mxu0 %v1624
  %2049 = vmatprep.subr.bf16.mxu0 0
  %2050 = vmatpush1.bf16.msra.mxu0 %v1625
  %2051 = vmatprep.subr.bf16.mxu0 0
  %2052 = vmatpush1.bf16.msra.mxu0 %v1626
  %2053 = vmatprep.subr.bf16.mxu0 0
  %2054 = vmatpush1.bf16.msra.mxu0 %v1627
  %2055 = vmatprep.subr.bf16.mxu0 0
  %2056 = vmatpush1.bf16.msra.mxu0 %v1628
  %2057 = vmatprep.subr.bf16.mxu0 0
  %2058 = vmatpush1.bf16.msra.mxu0 %v1629
  %2059 = vmatprep.subr.bf16.mxu0 0
  %2060 = vmatpush1.bf16.msra.mxu0 %v1630
  %2061 = vmatprep.subr.bf16.mxu0 0
  %2062 = vmatpush1.bf16.msra.mxu0 %v1631
  %2063 = vmatprep.subr.bf16.mxu0 0
  %2064 = vmatpush1.bf16.msra.mxu0 %v1632
  %2065 = vmatprep.subr.bf16.mxu0 0
  %2066 = vmatpush1.bf16.msra.mxu0 %v1633
  %2067 = vmatprep.subr.bf16.mxu0 0
  %2068 = vmatpush1.bf16.msra.mxu0 %v1634
  %2069 = vmatprep.mubr.bf16.mxu0 %v824
  %2070 = vmatmul.mubr.bf16.gmra.mrb[0].mxu0 %v823
  %v2071 = vpop.f32.mrb[0].mxu0
  %v2072 = vadd.f32 %v1975, %v2071
  %v2073 = vpop.f32.mrb[0].mxu0
  %v2074 = vpop.f32.mrb[0].mxu0
  %v2075 = vadd.f32 %v1978, %v2074
  %v2076 = vpop.f32.mrb[0].mxu0
  %2077 = vmatprep.mubr.bf16.mxu0 %v840
  %2078 = vmatmul.mubr.bf16.gmra.mrb[0].mxu0 %v839
  %v2079 = vpop.f32.mrb[0].mxu0
  %v2080 = vadd.f32 %v1983, %v2079
  %v2081 = vpop.f32.mrb[0].mxu0
  %v2082 = vpop.f32.mrb[0].mxu0
  %v2083 = vadd.f32 %v1986, %v2082
  %v2084 = vpop.f32.mrb[0].mxu0
  %2085 = vmatprep.mubr.bf16.mxu0 %v856
  %2086 = vmatmul.mubr.bf16.gmra.mrb[0].mxu0 %v855
  %v2087 = vpop.f32.mrb[0].mxu0
  %v2088 = vadd.f32 %v1991, %v2087
  %v2089 = vpop.f32.mrb[0].mxu0
  %v2090 = vpop.f32.mrb[0].mxu0
  %v2091 = vadd.f32 %v1994, %v2090
  %v2092 = vpop.f32.mrb[0].mxu0
  %2093 = vmatprep.mubr.bf16.mxu0 %v872
  %2094 = vmatmul.mubr.bf16.gmra.mrb[0].mxu0 %v871
  %v2095 = vpop.f32.mrb[0].mxu0
  %v2096 = vadd.f32 %v1999, %v2095
  %v2097 = vpop.f32.mrb[0].mxu0
  %v2098 = vpop.f32.mrb[0].mxu0
  %v2099 = vadd.f32 %v2002, %v2098
  %v2100 = vpop.f32.mrb[0].mxu0
  %2101 = vmatprep.mubr.bf16.mxu0 %v888
  %2102 = vmatmul.mubr.bf16.gmra.mrb[0].mxu0 %v887
  %v2103 = vpop.f32.mrb[0].mxu0
  %v2104 = vadd.f32 %v2007, %v2103
  %v2105 = vpop.f32.mrb[0].mxu0
  %v2106 = vpop.f32.mrb[0].mxu0
  %v2107 = vadd.f32 %v2010, %v2106
  %v2108 = vpop.f32.mrb[0].mxu0
  %2109 = vmatprep.mubr.bf16.mxu0 %v904
  %2110 = vmatmul.mubr.bf16.gmra.mrb[0].mxu0 %v903
  %v2111 = vpop.f32.mrb[0].mxu0
  %v2112 = vadd.f32 %v2015, %v2111
  %v2113 = vpop.f32.mrb[0].mxu0
  %v2114 = vpop.f32.mrb[0].mxu0
  %v2115 = vadd.f32 %v2018, %v2114
  %v2116 = vpop.f32.mrb[0].mxu0
  %2117 = vmatprep.mubr.bf16.mxu0 %v920
  %2118 = vmatmul.mubr.bf16.gmra.mrb[0].mxu0 %v919
  %v2119 = vpop.f32.mrb[0].mxu0
  %v2120 = vadd.f32 %v2023, %v2119
  %v2121 = vpop.f32.mrb[0].mxu0
  %v2122 = vpop.f32.mrb[0].mxu0
  %v2123 = vadd.f32 %v2026, %v2122
  %v2124 = vpop.f32.mrb[0].mxu0
  %2125 = vmatprep.mubr.bf16.mxu0 %v936
  %2126 = vmatmul.mubr.bf16.gmra.mrb[0].mxu0 %v935
  %v2127 = vpop.f32.mrb[0].mxu0
  %v2128 = vadd.f32 %v2031, %v2127
  %v2129 = vpop.f32.mrb[0].mxu0
  %v2130 = vpop.f32.mrb[0].mxu0
  %v2131 = vadd.f32 %v2034, %v2130
  %v2132 = vpop.f32.mrb[0].mxu0
  %2133 = vdwg.mxu0
  %2134 = vmatprep.subr.bf16.mxu0 0
  %2135 = vmatpush1.bf16.msra.mxu0 %v1635
  %2136 = vmatprep.subr.bf16.mxu0 0
  %2137 = vmatpush1.bf16.msra.mxu0 %v1636
  %2138 = vmatprep.subr.bf16.mxu0 0
  %2139 = vmatpush1.bf16.msra.mxu0 %v1637
  %2140 = vmatprep.subr.bf16.mxu0 0
  %2141 = vmatpush1.bf16.msra.mxu0 %v1638
  %2142 = vmatprep.subr.bf16.mxu0 0
  %2143 = vmatpush1.bf16.msra.mxu0 %v1639
  %2144 = vmatprep.subr.bf16.mxu0 0
  %2145 = vmatpush1.bf16.msra.mxu0 %v1640
  %2146 = vmatprep.subr.bf16.mxu0 0
  %2147 = vmatpush1.bf16.msra.mxu0 %v1641
  %2148 = vmatprep.subr.bf16.mxu0 0
  %2149 = vmatpush1.bf16.msra.mxu0 %v1642
  %2150 = vmatprep.subr.bf16.mxu0 0
  %2151 = vmatpush1.bf16.msra.mxu0 %v1643
  %2152 = vmatprep.subr.bf16.mxu0 0
  %2153 = vmatpush1.bf16.msra.mxu0 %v1644
  %2154 = vmatprep.subr.bf16.mxu0 0
  %2155 = vmatpush1.bf16.msra.mxu0 %v1645
  %2156 = vmatprep.subr.bf16.mxu0 0
  %2157 = vmatpush1.bf16.msra.mxu0 %v1646
  %2158 = vmatprep.subr.bf16.mxu0 0
  %2159 = vmatpush1.bf16.msra.mxu0 %v1647
  %2160 = vmatprep.subr.bf16.mxu0 0
  %2161 = vmatpush1.bf16.msra.mxu0 %v1648
  %2162 = vmatprep.subr.bf16.mxu0 0
  %2163 = vmatpush1.bf16.msra.mxu0 %v1649
  %2164 = vmatprep.subr.bf16.mxu0 0
  %2165 = vmatpush1.bf16.msra.mxu0 %v1650
  %2166 = vmatprep.mubr.bf16.mxu0 %v826
  %2167 = vmatmul.mubr.bf16.gmra.mrb[0].mxu0 %v825
  %v2168 = vpop.f32.mrb[0].mxu0
  %v2169 = vadd.f32 %v2072, %v2168
  %v2170 = vpop.f32.mrb[0].mxu0
  %v2171 = vpop.f32.mrb[0].mxu0
  %v2172 = vadd.f32 %v2075, %v2171
  %v2173 = vpop.f32.mrb[0].mxu0
  %2174 = vmatprep.mubr.bf16.mxu0 %v842
  %2175 = vmatmul.mubr.bf16.gmra.mrb[0].mxu0 %v841
  %v2176 = vpop.f32.mrb[0].mxu0
  %v2177 = vadd.f32 %v2080, %v2176
  %v2178 = vpop.f32.mrb[0].mxu0
  %v2179 = vpop.f32.mrb[0].mxu0
  %v2180 = vadd.f32 %v2083, %v2179
  %v2181 = vpop.f32.mrb[0].mxu0
  %2182 = vmatprep.mubr.bf16.mxu0 %v858
  %2183 = vmatmul.mubr.bf16.gmra.mrb[0].mxu0 %v857
  %v2184 = vpop.f32.mrb[0].mxu0
  %v2185 = vadd.f32 %v2088, %v2184
  %v2186 = vpop.f32.mrb[0].mxu0
  %v2187 = vpop.f32.mrb[0].mxu0
  %v2188 = vadd.f32 %v2091, %v2187
  %v2189 = vpop.f32.mrb[0].mxu0
  %2190 = vmatprep.mubr.bf16.mxu0 %v874
  %2191 = vmatmul.mubr.bf16.gmra.mrb[0].mxu0 %v873
  %v2192 = vpop.f32.mrb[0].mxu0
  %v2193 = vadd.f32 %v2096, %v2192
  %v2194 = vpop.f32.mrb[0].mxu0
  %v2195 = vpop.f32.mrb[0].mxu0
  %v2196 = vadd.f32 %v2099, %v2195
  %v2197 = vpop.f32.mrb[0].mxu0
  %2198 = vmatprep.mubr.bf16.mxu0 %v890
  %2199 = vmatmul.mubr.bf16.gmra.mrb[0].mxu0 %v889
  %v2200 = vpop.f32.mrb[0].mxu0
  %v2201 = vadd.f32 %v2104, %v2200
  %v2202 = vpop.f32.mrb[0].mxu0
  %v2203 = vpop.f32.mrb[0].mxu0
  %v2204 = vadd.f32 %v2107, %v2203
  %v2205 = vpop.f32.mrb[0].mxu0
  %2206 = vmatprep.mubr.bf16.mxu0 %v906
  %2207 = vmatmul.mubr.bf16.gmra.mrb[0].mxu0 %v905
  %v2208 = vpop.f32.mrb[0].mxu0
  %v2209 = vadd.f32 %v2112, %v2208
  %v2210 = vpop.f32.mrb[0].mxu0
  %v2211 = vpop.f32.mrb[0].mxu0
  %v2212 = vadd.f32 %v2115, %v2211
  %v2213 = vpop.f32.mrb[0].mxu0
  %2214 = vmatprep.mubr.bf16.mxu0 %v922
  %2215 = vmatmul.mubr.bf16.gmra.mrb[0].mxu0 %v921
  %v2216 = vpop.f32.mrb[0].mxu0
  %v2217 = vadd.f32 %v2120, %v2216
  %v2218 = vpop.f32.mrb[0].mxu0
  %v2219 = vpop.f32.mrb[0].mxu0
  %v2220 = vadd.f32 %v2123, %v2219
  %v2221 = vpop.f32.mrb[0].mxu0
  %2222 = vmatprep.mubr.bf16.mxu0 %v938
  %2223 = vmatmul.mubr.bf16.gmra.mrb[0].mxu0 %v937
  %v2224 = vpop.f32.mrb[0].mxu0
  %v2225 = vadd.f32 %v2128, %v2224
  %v2226 = vpop.f32.mrb[0].mxu0
  %v2227 = vpop.f32.mrb[0].mxu0
  %v2228 = vadd.f32 %v2131, %v2227
  %v2229 = vpop.f32.mrb[0].mxu0
  %2230 = vdwg.mxu0
  %2231 = vmatprep.subr.bf16.mxu0 0
  %2232 = vmatpush1.bf16.msra.mxu0 %v1651
  %2233 = vmatprep.subr.bf16.mxu0 0
  %2234 = vmatpush1.bf16.msra.mxu0 %v1652
  %2235 = vmatprep.subr.bf16.mxu0 0
  %2236 = vmatpush1.bf16.msra.mxu0 %v1653
  %2237 = vmatprep.subr.bf16.mxu0 0
  %2238 = vmatpush1.bf16.msra.mxu0 %v1654
  %2239 = vmatprep.subr.bf16.mxu0 0
  %2240 = vmatpush1.bf16.msra.mxu0 %v1655
  %2241 = vmatprep.subr.bf16.mxu0 0
  %2242 = vmatpush1.bf16.msra.mxu0 %v1656
  %2243 = vmatprep.subr.bf16.mxu0 0
  %2244 = vmatpush1.bf16.msra.mxu0 %v1657
  %2245 = vmatprep.subr.bf16.mxu0 0
  %2246 = vmatpush1.bf16.msra.mxu0 %v1658
  %2247 = vmatprep.subr.bf16.mxu0 0
  %2248 = vmatpush1.bf16.msra.mxu0 %v1659
  %2249 = vmatprep.subr.bf16.mxu0 0
  %2250 = vmatpush1.bf16.msra.mxu0 %v1660
  %2251 = vmatprep.subr.bf16.mxu0 0
  %2252 = vmatpush1.bf16.msra.mxu0 %v1661
  %2253 = vmatprep.subr.bf16.mxu0 0
  %2254 = vmatpush1.bf16.msra.mxu0 %v1662
  %2255 = vmatprep.subr.bf16.mxu0 0
  %2256 = vmatpush1.bf16.msra.mxu0 %v1663
  %2257 = vmatprep.subr.bf16.mxu0 0
  %2258 = vmatpush1.bf16.msra.mxu0 %v1664
  %2259 = vmatprep.subr.bf16.mxu0 0
  %2260 = vmatpush1.bf16.msra.mxu0 %v1665
  %2261 = vmatprep.subr.bf16.mxu0 0
  %2262 = vmatpush1.bf16.msra.mxu0 %v1666
  %2263 = vmatprep.mubr.bf16.mxu0 %v828
  %2264 = vmatmul.mubr.bf16.gmra.mrb[0].mxu0 %v827
  %v2265 = vpop.f32.mrb[0].mxu0
  %v2266 = vadd.f32 %v2169, %v2265
  %v2267 = vpop.f32.mrb[0].mxu0
  %v2268 = vpop.f32.mrb[0].mxu0
  %v2269 = vadd.f32 %v2172, %v2268
  %v2270 = vpop.f32.mrb[0].mxu0
  %2271 = vmatprep.mubr.bf16.mxu0 %v844
  %2272 = vmatmul.mubr.bf16.gmra.mrb[0].mxu0 %v843
  %v2273 = vpop.f32.mrb[0].mxu0
  %v2274 = vadd.f32 %v2177, %v2273
  %v2275 = vpop.f32.mrb[0].mxu0
  %v2276 = vpop.f32.mrb[0].mxu0
  %v2277 = vadd.f32 %v2180, %v2276
  %v2278 = vpop.f32.mrb[0].mxu0
  %2279 = vmatprep.mubr.bf16.mxu0 %v860
  %2280 = vmatmul.mubr.bf16.gmra.mrb[0].mxu0 %v859
  %v2281 = vpop.f32.mrb[0].mxu0
  %v2282 = vadd.f32 %v2185, %v2281
  %v2283 = vpop.f32.mrb[0].mxu0
  %v2284 = vpop.f32.mrb[0].mxu0
  %v2285 = vadd.f32 %v2188, %v2284
  %v2286 = vpop.f32.mrb[0].mxu0
  %2287 = vmatprep.mubr.bf16.mxu0 %v876
  %2288 = vmatmul.mubr.bf16.gmra.mrb[0].mxu0 %v875
  %v2289 = vpop.f32.mrb[0].mxu0
  %v2290 = vadd.f32 %v2193, %v2289
  %v2291 = vpop.f32.mrb[0].mxu0
  %v2292 = vpop.f32.mrb[0].mxu0
  %v2293 = vadd.f32 %v2196, %v2292
  %v2294 = vpop.f32.mrb[0].mxu0
  %2295 = vmatprep.mubr.bf16.mxu0 %v892
  %2296 = vmatmul.mubr.bf16.gmra.mrb[0].mxu0 %v891
  %v2297 = vpop.f32.mrb[0].mxu0
  %v2298 = vadd.f32 %v2201, %v2297
  %v2299 = vpop.f32.mrb[0].mxu0
  %v2300 = vpop.f32.mrb[0].mxu0
  %v2301 = vadd.f32 %v2204, %v2300
  %v2302 = vpop.f32.mrb[0].mxu0
  %2303 = vmatprep.mubr.bf16.mxu0 %v908
  %2304 = vmatmul.mubr.bf16.gmra.mrb[0].mxu0 %v907
  %v2305 = vpop.f32.mrb[0].mxu0
  %v2306 = vadd.f32 %v2209, %v2305
  %v2307 = vpop.f32.mrb[0].mxu0
  %v2308 = vpop.f32.mrb[0].mxu0
  %v2309 = vadd.f32 %v2212, %v2308
  %v2310 = vpop.f32.mrb[0].mxu0
  %2311 = vmatprep.mubr.bf16.mxu0 %v924
  %2312 = vmatmul.mubr.bf16.gmra.mrb[0].mxu0 %v923
  %v2313 = vpop.f32.mrb[0].mxu0
  %v2314 = vadd.f32 %v2217, %v2313
  %v2315 = vpop.f32.mrb[0].mxu0
  %v2316 = vpop.f32.mrb[0].mxu0
  %v2317 = vadd.f32 %v2220, %v2316
  %v2318 = vpop.f32.mrb[0].mxu0
  %2319 = vmatprep.mubr.bf16.mxu0 %v940
  %2320 = vmatmul.mubr.bf16.gmra.mrb[0].mxu0 %v939
  %v2321 = vpop.f32.mrb[0].mxu0
  %v2322 = vadd.f32 %v2225, %v2321
  %v2323 = vpop.f32.mrb[0].mxu0
  %v2324 = vpop.f32.mrb[0].mxu0
  %v2325 = vadd.f32 %v2228, %v2324
  %v2326 = vpop.f32.mrb[0].mxu0
  %2327 = vdwg.mxu0
  %2328 = vmatprep.subr.bf16.mxu0 0
  %2329 = vmatpush1.bf16.msra.mxu0 %v1667
  %2330 = vmatprep.subr.bf16.mxu0 0
  %2331 = vmatpush1.bf16.msra.mxu0 %v1668
  %2332 = vmatprep.subr.bf16.mxu0 0
  %2333 = vmatpush1.bf16.msra.mxu0 %v1669
  %2334 = vmatprep.subr.bf16.mxu0 0
  %2335 = vmatpush1.bf16.msra.mxu0 %v1670
  %2336 = vmatprep.subr.bf16.mxu0 0
  %2337 = vmatpush1.bf16.msra.mxu0 %v1671
  %2338 = vmatprep.subr.bf16.mxu0 0
  %2339 = vmatpush1.bf16.msra.mxu0 %v1672
  %2340 = vmatprep.subr.bf16.mxu0 0
  %2341 = vmatpush1.bf16.msra.mxu0 %v1673
  %2342 = vmatprep.subr.bf16.mxu0 0
  %2343 = vmatpush1.bf16.msra.mxu0 %v1674
  %2344 = vmatprep.subr.bf16.mxu0 0
  %2345 = vmatpush1.bf16.msra.mxu0 %v1675
  %2346 = vmatprep.subr.bf16.mxu0 0
  %2347 = vmatpush1.bf16.msra.mxu0 %v1676
  %2348 = vmatprep.subr.bf16.mxu0 0
  %2349 = vmatpush1.bf16.msra.mxu0 %v1677
  %2350 = vmatprep.subr.bf16.mxu0 0
  %2351 = vmatpush1.bf16.msra.mxu0 %v1678
  %2352 = vmatprep.subr.bf16.mxu0 0
  %2353 = vmatpush1.bf16.msra.mxu0 %v1679
  %2354 = vmatprep.subr.bf16.mxu0 0
  %2355 = vmatpush1.bf16.msra.mxu0 %v1680
  %2356 = vmatprep.subr.bf16.mxu0 0
  %2357 = vmatpush1.bf16.msra.mxu0 %v1681
  %2358 = vmatprep.subr.bf16.mxu0 0
  %2359 = vmatpush1.bf16.msra.mxu0 %v1682
  %2360 = vmatprep.mubr.bf16.mxu0 %v830
  %2361 = vmatmul.mubr.bf16.gmra.mrb[0].mxu0 %v829
  %v2362 = vpop.f32.mrb[0].mxu0
  %v2363 = vadd.f32 %v2266, %v2362
  %v2364 = vpop.f32.mrb[0].mxu0
  %v2365 = vpop.f32.mrb[0].mxu0
  %v2366 = vadd.f32 %v2269, %v2365
  %v2367 = vpop.f32.mrb[0].mxu0
  %2368 = vmatprep.mubr.bf16.mxu0 %v846
  %2369 = vmatmul.mubr.bf16.gmra.mrb[0].mxu0 %v845
  %v2370 = vpop.f32.mrb[0].mxu0
  %v2371 = vadd.f32 %v2274, %v2370
  %v2372 = vpop.f32.mrb[0].mxu0
  %v2373 = vpop.f32.mrb[0].mxu0
  %v2374 = vadd.f32 %v2277, %v2373
  %v2375 = vpop.f32.mrb[0].mxu0
  %2376 = vmatprep.mubr.bf16.mxu0 %v862
  %2377 = vmatmul.mubr.bf16.gmra.mrb[0].mxu0 %v861
  %v2378 = vpop.f32.mrb[0].mxu0
  %v2379 = vadd.f32 %v2282, %v2378
  %v2380 = vpop.f32.mrb[0].mxu0
  %v2381 = vpop.f32.mrb[0].mxu0
  %v2382 = vadd.f32 %v2285, %v2381
  %v2383 = vpop.f32.mrb[0].mxu0
  %2384 = vmatprep.mubr.bf16.mxu0 %v878
  %2385 = vmatmul.mubr.bf16.gmra.mrb[0].mxu0 %v877
  %v2386 = vpop.f32.mrb[0].mxu0
  %v2387 = vadd.f32 %v2290, %v2386
  %v2388 = vpop.f32.mrb[0].mxu0
  %v2389 = vpop.f32.mrb[0].mxu0
  %v2390 = vadd.f32 %v2293, %v2389
  %v2391 = vpop.f32.mrb[0].mxu0
  %2392 = vmatprep.mubr.bf16.mxu0 %v894
  %2393 = vmatmul.mubr.bf16.gmra.mrb[0].mxu0 %v893
  %v2394 = vpop.f32.mrb[0].mxu0
  %v2395 = vadd.f32 %v2298, %v2394
  %v2396 = vpop.f32.mrb[0].mxu0
  %v2397 = vpop.f32.mrb[0].mxu0
  %v2398 = vadd.f32 %v2301, %v2397
  %v2399 = vpop.f32.mrb[0].mxu0
  %2400 = vmatprep.mubr.bf16.mxu0 %v910
  %2401 = vmatmul.mubr.bf16.gmra.mrb[0].mxu0 %v909
  %v2402 = vpop.f32.mrb[0].mxu0
  %v2403 = vadd.f32 %v2306, %v2402
  %v2404 = vpop.f32.mrb[0].mxu0
  %v2405 = vpop.f32.mrb[0].mxu0
  %v2406 = vadd.f32 %v2309, %v2405
  %v2407 = vpop.f32.mrb[0].mxu0
  %2408 = vmatprep.mubr.bf16.mxu0 %v926
  %2409 = vmatmul.mubr.bf16.gmra.mrb[0].mxu0 %v925
  %v2410 = vpop.f32.mrb[0].mxu0
  %v2411 = vadd.f32 %v2314, %v2410
  %v2412 = vpop.f32.mrb[0].mxu0
  %v2413 = vpop.f32.mrb[0].mxu0
  %v2414 = vadd.f32 %v2317, %v2413
  %v2415 = vpop.f32.mrb[0].mxu0
  %2416 = vmatprep.mubr.bf16.mxu0 %v942
  %2417 = vmatmul.mubr.bf16.gmra.mrb[0].mxu0 %v941
  %v2418 = vpop.f32.mrb[0].mxu0
  %v2419 = vadd.f32 %v2322, %v2418
  %v2420 = vpop.f32.mrb[0].mxu0
  %v2421 = vpop.f32.mrb[0].mxu0
  %v2422 = vadd.f32 %v2325, %v2421
  %v2423 = vpop.f32.mrb[0].mxu0
  %2424 = vdwg.mxu0
  %2425 = vmatprep.subr.bf16.mxu0 0
  %2426 = vmatpush1.bf16.msra.mxu0 %v1683
  %2427 = vmatprep.subr.bf16.mxu0 0
  %2428 = vmatpush1.bf16.msra.mxu0 %v1684
  %2429 = vmatprep.subr.bf16.mxu0 0
  %2430 = vmatpush1.bf16.msra.mxu0 %v1685
  %2431 = vmatprep.subr.bf16.mxu0 0
  %2432 = vmatpush1.bf16.msra.mxu0 %v1686
  %2433 = vmatprep.subr.bf16.mxu0 0
  %2434 = vmatpush1.bf16.msra.mxu0 %v1687
  %2435 = vmatprep.subr.bf16.mxu0 0
  %2436 = vmatpush1.bf16.msra.mxu0 %v1688
  %2437 = vmatprep.subr.bf16.mxu0 0
  %2438 = vmatpush1.bf16.msra.mxu0 %v1689
  %2439 = vmatprep.subr.bf16.mxu0 0
  %2440 = vmatpush1.bf16.msra.mxu0 %v1690
  %2441 = vmatprep.subr.bf16.mxu0 0
  %2442 = vmatpush1.bf16.msra.mxu0 %v1691
  %2443 = vmatprep.subr.bf16.mxu0 0
  %2444 = vmatpush1.bf16.msra.mxu0 %v1692
  %2445 = vmatprep.subr.bf16.mxu0 0
  %2446 = vmatpush1.bf16.msra.mxu0 %v1693
  %2447 = vmatprep.subr.bf16.mxu0 0
  %2448 = vmatpush1.bf16.msra.mxu0 %v1694
  %2449 = vmatprep.subr.bf16.mxu0 0
  %2450 = vmatpush1.bf16.msra.mxu0 %v1695
  %2451 = vmatprep.subr.bf16.mxu0 0
  %2452 = vmatpush1.bf16.msra.mxu0 %v1696
  %2453 = vmatprep.subr.bf16.mxu0 0
  %2454 = vmatpush1.bf16.msra.mxu0 %v1697
  %2455 = vmatprep.subr.bf16.mxu0 0
  %2456 = vmatpush1.bf16.msra.mxu0 %v1698
  %2457 = vmatprep.mubr.bf16.mxu0 %v832
  %2458 = vmatmul.mubr.bf16.gmra.mrb[0].mxu0 %v831
  %v2459 = vpop.f32.mrb[0].mxu0
  %v2460 = vadd.f32 %v2363, %v2459
  %v2461 = vpop.f32.mrb[0].mxu0
  %v2462 = vpop.f32.mrb[0].mxu0
  %v2463 = vadd.f32 %v2366, %v2462
  %v2464 = vpop.f32.mrb[0].mxu0
  %2465 = vmatprep.mubr.bf16.mxu0 %v848
  %2466 = vmatmul.mubr.bf16.gmra.mrb[0].mxu0 %v847
  %v2467 = vpop.f32.mrb[0].mxu0
  %v2468 = vadd.f32 %v2371, %v2467
  %v2469 = vpop.f32.mrb[0].mxu0
  %v2470 = vpop.f32.mrb[0].mxu0
  %v2471 = vadd.f32 %v2374, %v2470
  %v2472 = vpop.f32.mrb[0].mxu0
  %2473 = vmatprep.mubr.bf16.mxu0 %v864
  %2474 = vmatmul.mubr.bf16.gmra.mrb[0].mxu0 %v863
  %v2475 = vpop.f32.mrb[0].mxu0
  %v2476 = vadd.f32 %v2379, %v2475
  %v2477 = vpop.f32.mrb[0].mxu0
  %v2478 = vpop.f32.mrb[0].mxu0
  %v2479 = vadd.f32 %v2382, %v2478
  %v2480 = vpop.f32.mrb[0].mxu0
  %2481 = vmatprep.mubr.bf16.mxu0 %v880
  %2482 = vmatmul.mubr.bf16.gmra.mrb[0].mxu0 %v879
  %v2483 = vpop.f32.mrb[0].mxu0
  %v2484 = vadd.f32 %v2387, %v2483
  %v2485 = vpop.f32.mrb[0].mxu0
  %v2486 = vpop.f32.mrb[0].mxu0
  %v2487 = vadd.f32 %v2390, %v2486
  %v2488 = vpop.f32.mrb[0].mxu0
  %2489 = vmatprep.mubr.bf16.mxu0 %v896
  %2490 = vmatmul.mubr.bf16.gmra.mrb[0].mxu0 %v895
  %v2491 = vpop.f32.mrb[0].mxu0
  %v2492 = vadd.f32 %v2395, %v2491
  %v2493 = vpop.f32.mrb[0].mxu0
  %v2494 = vpop.f32.mrb[0].mxu0
  %v2495 = vadd.f32 %v2398, %v2494
  %v2496 = vpop.f32.mrb[0].mxu0
  %2497 = vmatprep.mubr.bf16.mxu0 %v912
  %2498 = vmatmul.mubr.bf16.gmra.mrb[0].mxu0 %v911
  %v2499 = vpop.f32.mrb[0].mxu0
  %v2500 = vadd.f32 %v2403, %v2499
  %v2501 = vpop.f32.mrb[0].mxu0
  %v2502 = vpop.f32.mrb[0].mxu0
  %v2503 = vadd.f32 %v2406, %v2502
  %v2504 = vpop.f32.mrb[0].mxu0
  %2505 = vmatprep.mubr.bf16.mxu0 %v928
  %2506 = vmatmul.mubr.bf16.gmra.mrb[0].mxu0 %v927
  %v2507 = vpop.f32.mrb[0].mxu0
  %v2508 = vadd.f32 %v2411, %v2507
  %v2509 = vpop.f32.mrb[0].mxu0
  %v2510 = vpop.f32.mrb[0].mxu0
  %v2511 = vadd.f32 %v2414, %v2510
  %v2512 = vpop.f32.mrb[0].mxu0
  %2513 = vmatprep.mubr.bf16.mxu0 %v944
  %2514 = vmatmul.mubr.bf16.gmra.mrb[0].mxu0 %v943
  %v2515 = vpop.f32.mrb[0].mxu0
  %v2516 = vadd.f32 %v2419, %v2515
  %v2517 = vpop.f32.mrb[0].mxu0
  %v2518 = vpop.f32.mrb[0].mxu0
  %v2519 = vadd.f32 %v2422, %v2518
  %v2520 = vpop.f32.mrb[0].mxu0
  %2521 = vdwg.mxu0
  %2522 = vmatprep.subr.bf16.mxu0 0
  %2523 = vmatpush1.bf16.msra.mxu0 %v1699
  %2524 = vmatprep.subr.bf16.mxu0 0
  %2525 = vmatpush1.bf16.msra.mxu0 %v1700
  %2526 = vmatprep.subr.bf16.mxu0 0
  %2527 = vmatpush1.bf16.msra.mxu0 %v1701
  %2528 = vmatprep.subr.bf16.mxu0 0
  %2529 = vmatpush1.bf16.msra.mxu0 %v1702
  %2530 = vmatprep.subr.bf16.mxu0 0
  %2531 = vmatpush1.bf16.msra.mxu0 %v1703
  %2532 = vmatprep.subr.bf16.mxu0 0
  %2533 = vmatpush1.bf16.msra.mxu0 %v1704
  %2534 = vmatprep.subr.bf16.mxu0 0
  %2535 = vmatpush1.bf16.msra.mxu0 %v1705
  %2536 = vmatprep.subr.bf16.mxu0 0
  %2537 = vmatpush1.bf16.msra.mxu0 %v1706
  %2538 = vmatprep.subr.bf16.mxu0 0
  %2539 = vmatpush1.bf16.msra.mxu0 %v1707
  %2540 = vmatprep.subr.bf16.mxu0 0
  %2541 = vmatpush1.bf16.msra.mxu0 %v1708
  %2542 = vmatprep.subr.bf16.mxu0 0
  %2543 = vmatpush1.bf16.msra.mxu0 %v1709
  %2544 = vmatprep.subr.bf16.mxu0 0
  %2545 = vmatpush1.bf16.msra.mxu0 %v1710
  %2546 = vmatprep.subr.bf16.mxu0 0
  %2547 = vmatpush1.bf16.msra.mxu0 %v1711
  %2548 = vmatprep.subr.bf16.mxu0 0
  %2549 = vmatpush1.bf16.msra.mxu0 %v1712
  %2550 = vmatprep.subr.bf16.mxu0 0
  %2551 = vmatpush1.bf16.msra.mxu0 %v1713
  %2552 = vmatprep.subr.bf16.mxu0 0
  %2553 = vmatpush1.bf16.msra.mxu0 %v1714
  %2554 = vmatprep.mubr.bf16.mxu0 %v834
  %2555 = vmatmul.mubr.bf16.gmra.mrb[0].mxu0 %v833
  %v2556 = vpop.f32.mrb[0].mxu0
  %v2557 = vadd.f32 %v2460, %v2556
  %v2558 = vpop.f32.mrb[0].mxu0
  %v2559 = vpop.f32.mrb[0].mxu0
  %v2560 = vadd.f32 %v2463, %v2559
  %v2561 = vpop.f32.mrb[0].mxu0
  %2562 = vmatprep.mubr.bf16.mxu0 %v850
  %2563 = vmatmul.mubr.bf16.gmra.mrb[0].mxu0 %v849
  %v2564 = vpop.f32.mrb[0].mxu0
  %v2565 = vadd.f32 %v2468, %v2564
  %v2566 = vpop.f32.mrb[0].mxu0
  %v2567 = vpop.f32.mrb[0].mxu0
  %v2568 = vadd.f32 %v2471, %v2567
  %v2569 = vpop.f32.mrb[0].mxu0
  %2570 = vmatprep.mubr.bf16.mxu0 %v866
  %2571 = vmatmul.mubr.bf16.gmra.mrb[0].mxu0 %v865
  %v2572 = vpop.f32.mrb[0].mxu0
  %v2573 = vadd.f32 %v2476, %v2572
  %v2574 = vpop.f32.mrb[0].mxu0
  %v2575 = vpop.f32.mrb[0].mxu0
  %v2576 = vadd.f32 %v2479, %v2575
  %v2577 = vpop.f32.mrb[0].mxu0
  %2578 = vmatprep.mubr.bf16.mxu0 %v882
  %2579 = vmatmul.mubr.bf16.gmra.mrb[0].mxu0 %v881
  %v2580 = vpop.f32.mrb[0].mxu0
  %v2581 = vadd.f32 %v2484, %v2580
  %v2582 = vpop.f32.mrb[0].mxu0
  %v2583 = vpop.f32.mrb[0].mxu0
  %v2584 = vadd.f32 %v2487, %v2583
  %v2585 = vpop.f32.mrb[0].mxu0
  %2586 = vmatprep.mubr.bf16.mxu0 %v898
  %2587 = vmatmul.mubr.bf16.gmra.mrb[0].mxu0 %v897
  %v2588 = vpop.f32.mrb[0].mxu0
  %v2589 = vadd.f32 %v2492, %v2588
  %v2590 = vpop.f32.mrb[0].mxu0
  %v2591 = vpop.f32.mrb[0].mxu0
  %v2592 = vadd.f32 %v2495, %v2591
  %v2593 = vpop.f32.mrb[0].mxu0
  %2594 = vmatprep.mubr.bf16.mxu0 %v914
  %2595 = vmatmul.mubr.bf16.gmra.mrb[0].mxu0 %v913
  %v2596 = vpop.f32.mrb[0].mxu0
  %v2597 = vadd.f32 %v2500, %v2596
  %v2598 = vpop.f32.mrb[0].mxu0
  %v2599 = vpop.f32.mrb[0].mxu0
  %v2600 = vadd.f32 %v2503, %v2599
  %v2601 = vpop.f32.mrb[0].mxu0
  %2602 = vmatprep.mubr.bf16.mxu0 %v930
  %2603 = vmatmul.mubr.bf16.gmra.mrb[0].mxu0 %v929
  %v2604 = vpop.f32.mrb[0].mxu0
  %v2605 = vadd.f32 %v2508, %v2604
  %v2606 = vpop.f32.mrb[0].mxu0
  %v2607 = vpop.f32.mrb[0].mxu0
  %v2608 = vadd.f32 %v2511, %v2607
  %v2609 = vpop.f32.mrb[0].mxu0
  %2610 = vmatprep.mubr.bf16.mxu0 %v946
  %2611 = vmatmul.mubr.bf16.gmra.mrb[0].mxu0 %v945
  %v2612 = vpop.f32.mrb[0].mxu0
  %v2613 = vadd.f32 %v2516, %v2612
  %v2614 = vpop.f32.mrb[0].mxu0
  %v2615 = vpop.f32.mrb[0].mxu0
  %v2616 = vadd.f32 %v2519, %v2615
  %v2617 = vpop.f32.mrb[0].mxu0
  %2618 = vdwg.mxu0
  %v2619 = vadd.f32 %v35, %v2557
  %v2620 = vadd.f32 %v36, %v2560
  %v2621 = vadd.f32 %v37, %v2565
  %v2622 = vadd.f32 %v38, %v2568
  %v2623 = vadd.f32 %v39, %v2573
  %v2624 = vadd.f32 %v40, %v2576
  %v2625 = vadd.f32 %v41, %v2581
  %v2626 = vadd.f32 %v42, %v2584
  %v2627 = vadd.f32 %v43, %v2589
  %v2628 = vadd.f32 %v44, %v2592
  %v2629 = vadd.f32 %v45, %v2597
  %v2630 = vadd.f32 %v46, %v2600
  %v2631 = vadd.f32 %v47, %v2605
  %v2632 = vadd.f32 %v48, %v2608
  %v2633 = vadd.f32 %v49, %v2613
  %v2634 = vadd.f32 %v50, %v2616
  %2635 = vst [vmem:[#allocation2] sm:$0xff] %v2619
  %2636 = vst [vmem:[#allocation2 + $0x8] sm:$0xff] %v2620
  %2637 = vst [vmem:[#allocation2 + $0x10] sm:$0xff] %v2621
  %2638 = vst [vmem:[#allocation2 + $0x18] sm:$0xff] %v2622
  %2639 = vst [vmem:[#allocation2 + $0x20] sm:$0xff] %v2623
  %2640 = vst [vmem:[#allocation2 + $0x28] sm:$0xff] %v2624
  %2641 = vst [vmem:[#allocation2 + $0x30] sm:$0xff] %v2625
  %2642 = vst [vmem:[#allocation2 + $0x38] sm:$0xff] %v2626
  %2643 = vst [vmem:[#allocation2 + $0x40] sm:$0xff] %v2627
  %2644 = vst [vmem:[#allocation2 + $0x48] sm:$0xff] %v2628
  %2645 = vst [vmem:[#allocation2 + $0x50] sm:$0xff] %v2629
  %2646 = vst [vmem:[#allocation2 + $0x58] sm:$0xff] %v2630
  %2647 = vst [vmem:[#allocation2 + $0x60] sm:$0xff] %v2631
  %2648 = vst [vmem:[#allocation2 + $0x68] sm:$0xff] %v2632
  %2649 = vst [vmem:[#allocation2 + $0x70] sm:$0xff] %v2633
  %2650 = vst [vmem:[#allocation2 + $0x78] sm:$0xff] %v2634
  // Predicated region
  $region18: #{encoder_forward.5} parent=0 // pred_check
    %p2651 = pneg %p15
  $region19: #{encoder_forward.5} parent=0 // pred_check_branch
    %2653 = sbr.rel (%p2651) target = $region21
  $region20: #{encoder_forward.5} parent=0 // pred_region
    %v2654 = vld [vmem:[#allocation2] sm:$0xff]
    %v2655 = vld [vmem:[#allocation2 + $0x8] sm:$0xff]
    %v2656 = vld [vmem:[#allocation2 + $0x10] sm:$0xff]
    %v2657 = vld [vmem:[#allocation2 + $0x18] sm:$0xff]
    %v2658 = vld [vmem:[#allocation2 + $0x20] sm:$0xff]
    %v2659 = vld [vmem:[#allocation2 + $0x28] sm:$0xff]
    %v2660 = vld [vmem:[#allocation2 + $0x30] sm:$0xff]
    %v2661 = vld [vmem:[#allocation2 + $0x38] sm:$0xff]
    %v2662 = vld [vmem:[#allocation2 + $0x40] sm:$0xff]
    %v2663 = vld [vmem:[#allocation2 + $0x48] sm:$0xff]
    %v2664 = vld [vmem:[#allocation2 + $0x50] sm:$0xff]
    %v2665 = vld [vmem:[#allocation2 + $0x58] sm:$0xff]
    %v2666 = vld [vmem:[#allocation2 + $0x60] sm:$0xff]
    %v2667 = vld [vmem:[#allocation2 + $0x68] sm:$0xff]
    %v2668 = vld [vmem:[#allocation2 + $0x70] sm:$0xff]
    %v2669 = vld [vmem:[#allocation2 + $0x78] sm:$0xff]
    %v2670 = vld [vmem:[%s2] sm:$0x1]
    %v2672 = vlaneseq
    %v2673 = vshrl.u32 %v2672, 7
    %v2674 = vsub.s32 0, %v2673
    %v2675 = vrot.slane %v2670, %v2674
    %v2677 = vadd.f32 %v2654, %v2675
    %v2678 = vadd.f32 %v2655, %v2675
    %v2679 = vadd.f32 %v2656, %v2675
    %v2680 = vadd.f32 %v2657, %v2675
    %v2681 = vadd.f32 %v2658, %v2675
    %v2682 = vadd.f32 %v2659, %v2675
    %v2683 = vadd.f32 %v2660, %v2675
    %v2684 = vadd.f32 %v2661, %v2675
    %v2685 = vadd.f32 %v2662, %v2675
    %v2686 = vadd.f32 %v2663, %v2675
    %v2687 = vadd.f32 %v2664, %v2675
    %v2688 = vadd.f32 %v2665, %v2675
    %v2689 = vadd.f32 %v2666, %v2675
    %v2690 = vadd.f32 %v2667, %v2675
    %v2691 = vadd.f32 %v2668, %v2675
    %v2692 = vadd.f32 %v2669, %v2675
    %v2693 = vmax.f32 %v2677, 0.0
    %v2694 = vmax.f32 %v2678, 0.0
    %v2695 = vmax.f32 %v2679, 0.0
    %v2696 = vmax.f32 %v2680, 0.0
    %v2697 = vmax.f32 %v2681, 0.0
    %v2698 = vmax.f32 %v2682, 0.0
    %v2699 = vmax.f32 %v2683, 0.0
    %v2700 = vmax.f32 %v2684, 0.0
    %v2701 = vmax.f32 %v2685, 0.0
    %v2702 = vmax.f32 %v2686, 0.0
    %v2703 = vmax.f32 %v2687, 0.0
    %v2704 = vmax.f32 %v2688, 0.0
    %v2705 = vmax.f32 %v2689, 0.0
    %v2706 = vmax.f32 %v2690, 0.0
    %v2707 = vmax.f32 %v2691, 0.0
    %v2708 = vmax.f32 %v2692, 0.0
    %v2709 = vpack.c.bf16 %v2694, %v2693
    %v2710 = vpack.c.bf16 %v2696, %v2695
    %v2711 = vpack.c.bf16 %v2698, %v2697
    %v2712 = vpack.c.bf16 %v2700, %v2699
    %v2713 = vpack.c.bf16 %v2702, %v2701
    %v2714 = vpack.c.bf16 %v2704, %v2703
    %v2715 = vpack.c.bf16 %v2706, %v2705
    %v2716 = vpack.c.bf16 %v2708, %v2707
    %v2725 = vunpack.c.l.b16 %v2709
    %v2726 = vunpack.c.h.b16 %v2709
    %v2727 = vunpack.c.l.b16 %v2710
    %v2728 = vunpack.c.h.b16 %v2710
    %v2729 = vunpack.c.l.b16 %v2711
    %v2730 = vunpack.c.h.b16 %v2711
    %v2731 = vunpack.c.l.b16 %v2712
    %v2732 = vunpack.c.h.b16 %v2712
    %v2733 = vunpack.c.l.b16 %v2713
    %v2734 = vunpack.c.h.b16 %v2713
    %v2735 = vunpack.c.l.b16 %v2714
    %v2736 = vunpack.c.h.b16 %v2714
    %v2737 = vunpack.c.l.b16 %v2715
    %v2738 = vunpack.c.h.b16 %v2715
    %v2739 = vunpack.c.l.b16 %v2716
    %v2740 = vunpack.c.h.b16 %v2716
    %v2741 = vpack.c.b16 %v2725, %v2725
    %v2742 = vpack.c.b16 %v2726, %v2726
    %v2743 = vpack.c.b16 %v2727, %v2727
    %v2744 = vpack.c.b16 %v2728, %v2728
    %v2745 = vpack.c.b16 %v2729, %v2729
    %v2746 = vpack.c.b16 %v2730, %v2730
    %v2747 = vpack.c.b16 %v2731, %v2731
    %v2748 = vpack.c.b16 %v2732, %v2732
    %v2749 = vpack.c.b16 %v2733, %v2733
    %v2750 = vpack.c.b16 %v2734, %v2734
    %v2751 = vpack.c.b16 %v2735, %v2735
    %v2752 = vpack.c.b16 %v2736, %v2736
    %v2753 = vpack.c.b16 %v2737, %v2737
    %v2754 = vpack.c.b16 %v2738, %v2738
    %v2755 = vpack.c.b16 %v2739, %v2739
    %v2756 = vpack.c.b16 %v2740, %v2740
    %2773 = vst [vmem:[%s3] sm:$0xf] %v2741
    %2774 = vst [vmem:[%s3 + $0x4] sm:$0xf] %v2742
    %2775 = vst [vmem:[%s3 + $0x8] sm:$0xf] %v2743
    %2776 = vst [vmem:[%s3 + $0xc] sm:$0xf] %v2744
    %2777 = vst [vmem:[%s3 + $0x10] sm:$0xf] %v2745
    %2778 = vst [vmem:[%s3 + $0x14] sm:$0xf] %v2746
    %2779 = vst [vmem:[%s3 + $0x18] sm:$0xf] %v2747
    %2780 = vst [vmem:[%s3 + $0x1c] sm:$0xf] %v2748
    %2781 = vst [vmem:[%s3 + $0x20] sm:$0xf] %v2749
    %2782 = vst [vmem:[%s3 + $0x24] sm:$0xf] %v2750
    %2783 = vst [vmem:[%s3 + $0x28] sm:$0xf] %v2751
    %2784 = vst [vmem:[%s3 + $0x2c] sm:$0xf] %v2752
    %2785 = vst [vmem:[%s3 + $0x30] sm:$0xf] %v2753
    %2786 = vst [vmem:[%s3 + $0x34] sm:$0xf] %v2754
    %2787 = vst [vmem:[%s3 + $0x38] sm:$0xf] %v2755
    %2788 = vst [vmem:[%s3 + $0x3c] sm:$0xf] %v2756
  $region21: #{encoder_forward.5} parent=0 // pred_fallthru
    _
  // Predicated region
  $region22: #{encoder_forward.5} parent=0 // pred_check
    _
  $region23: #{encoder_forward.5} parent=0 // pred_check_branch
    %2790 = sbr.rel (0) target = $region25
  $region24: #{encoder_forward.5} parent=0 // pred_region
    _
  $region25: #{encoder_forward.5} parent=0 // pred_fallthru
    _
  // Predicated region
  $region26: #{encoder_forward.5} parent=0 // pred_check
    _
  $region27: #{encoder_forward.5} parent=0 // pred_check_branch
    %2792 = sbr.rel (0) target = $region29
  $region28: #{encoder_forward.5} parent=0 // pred_region
    _
  $region29: #{encoder_forward.5} parent=0 // pred_fallthru
    _

// kernel: encoder_forward.6
$region0: #{encoder_forward.6}
  #allocation0 [shape = 'u32[]', space=smem, size = 0x4, offset = 0x4, fixed_abs, tag = 'smem constant byte address 0x4 - core index']
  #allocation1 [shape = 'u32[144,128]{1,0:T(1,128)}', space=vmem, size = 0x12000, scoped, tag = 'internal scratch']
  #allocation2 [shape = 'f32[32,256]{1,0:T(8,128)}', space=vmem, size = 0x8000, scoped, tag = 'scratch operand']
  %s0 = inlined_call_operand.vmem [shape: bf16[32,2048], index: 0, kind: input, shape index: {}]
  %s1 = inlined_call_operand.vmem [shape: bf16[2048,256], index: 1, kind: input, shape index: {}]
  %s2 = inlined_call_operand.vmem [shape: f32[1,256], index: 2, kind: input, shape index: {}]
  %s3 = inlined_call_operand.vmem [shape: bf16[32,256], index: 3, kind: output, shape index: {}]
  %s4 = sld [smem:[#allocation0]]
  $region30: #{encoder_forward.6} parent=0
    _
  %s6 = ssub.s32 1, %s4
  %s7 = scalar_select 0, %s6, %s4
  // Predicated region
  $region2: #{encoder_forward.6} parent=0 // pred_check
    _
  $region3: #{encoder_forward.6} parent=0 // pred_check_branch
    %9 = sbr.rel (0) target = $region5
  $region4: #{encoder_forward.6} parent=0 // pred_region
    _
  $region5: #{encoder_forward.6} parent=0 // pred_fallthru
    _
  // Predicated region
  $region6: #{encoder_forward.6} parent=0 // pred_check
    _
  $region7: #{encoder_forward.6} parent=0 // pred_check_branch
    %11 = sbr.rel (0) target = $region9
  $region8: #{encoder_forward.6} parent=0 // pred_region
    _
  $region9: #{encoder_forward.6} parent=0 // pred_fallthru
    _
  // Predicated region
  $region10: #{encoder_forward.6} parent=0 // pred_check
    _
  $region11: #{encoder_forward.6} parent=0 // pred_check_branch
    %13 = sbr.rel (0) target = $region13
  $region12: #{encoder_forward.6} parent=0 // pred_region
    _
  $region13: #{encoder_forward.6} parent=0 // pred_fallthru
    _
  %p14 = scmp.eq.s32.totalorder 0, 0
  // Predicated region
  $region14: #{encoder_forward.6} parent=0 // pred_check
    %p15 = pneg %p14
  $region15: #{encoder_forward.6} parent=0 // pred_check_branch
    %17 = sbr.rel (%p15) target = $region17
  $region16: #{encoder_forward.6} parent=0 // pred_region
    %18 = vst [vmem:[#allocation2] sm:$0xff] 0.0
    %19 = vst [vmem:[#allocation2 + $0x8] sm:$0xff] 0.0
    %20 = vst [vmem:[#allocation2 + $0x10] sm:$0xff] 0.0
    %21 = vst [vmem:[#allocation2 + $0x18] sm:$0xff] 0.0
    %22 = vst [vmem:[#allocation2 + $0x20] sm:$0xff] 0.0
    %23 = vst [vmem:[#allocation2 + $0x28] sm:$0xff] 0.0
    %24 = vst [vmem:[#allocation2 + $0x30] sm:$0xff] 0.0
    %25 = vst [vmem:[#allocation2 + $0x38] sm:$0xff] 0.0
  $region17: #{encoder_forward.6} parent=0 // pred_fallthru
    _
  %v26 = vld [vmem:[#allocation2] sm:$0xff]
  %v27 = vld [vmem:[#allocation2 + $0x8] sm:$0xff]
  %v28 = vld [vmem:[#allocation2 + $0x10] sm:$0xff]
  %v29 = vld [vmem:[#allocation2 + $0x18] sm:$0xff]
  %v30 = vld [vmem:[#allocation2 + $0x20] sm:$0xff]
  %v31 = vld [vmem:[#allocation2 + $0x28] sm:$0xff]
  %v32 = vld [vmem:[#allocation2 + $0x30] sm:$0xff]
  %v33 = vld [vmem:[#allocation2 + $0x38] sm:$0xff]
  %v34 = vld [vmem:[%s0] sm:$0xff]
  %v35 = vld [vmem:[%s0 + $0x8] sm:$0xff]
  %v36 = vld [vmem:[%s0 + $0x10] sm:$0xff]
  %v37 = vld [vmem:[%s0 + $0x18] sm:$0xff]
  %v38 = vld [vmem:[%s0 + $0x20] sm:$0xff]
  %v39 = vld [vmem:[%s0 + $0x28] sm:$0xff]
  %v40 = vld [vmem:[%s0 + $0x30] sm:$0xff]
  %v41 = vld [vmem:[%s0 + $0x38] sm:$0xff]
  %v42 = vld [vmem:[%s0 + $0x40] sm:$0xff]
  %v43 = vld [vmem:[%s0 + $0x48] sm:$0xff]
  %v44 = vld [vmem:[%s0 + $0x50] sm:$0xff]
  %v45 = vld [vmem:[%s0 + $0x58] sm:$0xff]
  %v46 = vld [vmem:[%s0 + $0x60] sm:$0xff]
  %v47 = vld [vmem:[%s0 + $0x68] sm:$0xff]
  %v48 = vld [vmem:[%s0 + $0x70] sm:$0xff]
  %v49 = vld [vmem:[%s0 + $0x78] sm:$0xff]
  %v50 = vld [vmem:[%s0 + $0x80] sm:$0xff]
  %v51 = vld [vmem:[%s0 + $0x88] sm:$0xff]
  %v52 = vld [vmem:[%s0 + $0x90] sm:$0xff]
  %v53 = vld [vmem:[%s0 + $0x98] sm:$0xff]
  %v54 = vld [vmem:[%s0 + $0xa0] sm:$0xff]
  %v55 = vld [vmem:[%s0 + $0xa8] sm:$0xff]
  %v56 = vld [vmem:[%s0 + $0xb0] sm:$0xff]
  %v57 = vld [vmem:[%s0 + $0xb8] sm:$0xff]
  %v58 = vld [vmem:[%s0 + $0xc0] sm:$0xff]
  %v59 = vld [vmem:[%s0 + $0xc8] sm:$0xff]
  %v60 = vld [vmem:[%s0 + $0xd0] sm:$0xff]
  %v61 = vld [vmem:[%s0 + $0xd8] sm:$0xff]
  %v62 = vld [vmem:[%s0 + $0xe0] sm:$0xff]
  %v63 = vld [vmem:[%s0 + $0xe8] sm:$0xff]
  %v64 = vld [vmem:[%s0 + $0xf0] sm:$0xff]
  %v65 = vld [vmem:[%s0 + $0xf8] sm:$0xff]
  %v66 = vld [vmem:[%s1] sm:$0xff]
  %v67 = vld [vmem:[%s1 + $0x8] sm:$0xff]
  %v68 = vld [vmem:[%s1 + $0x10] sm:$0xff]
  %v69 = vld [vmem:[%s1 + $0x18] sm:$0xff]
  %v70 = vld [vmem:[%s1 + $0x20] sm:$0xff]
  %v71 = vld [vmem:[%s1 + $0x28] sm:$0xff]
  %v72 = vld [vmem:[%s1 + $0x30] sm:$0xff]
  %v73 = vld [vmem:[%s1 + $0x38] sm:$0xff]
  %v74 = vld [vmem:[%s1 + $0x40] sm:$0xff]
  %v75 = vld [vmem:[%s1 + $0x48] sm:$0xff]
  %v76 = vld [vmem:[%s1 + $0x50] sm:$0xff]
  %v77 = vld [vmem:[%s1 + $0x58] sm:$0xff]
  %v78 = vld [vmem:[%s1 + $0x60] sm:$0xff]
  %v79 = vld [vmem:[%s1 + $0x68] sm:$0xff]
  %v80 = vld [vmem:[%s1 + $0x70] sm:$0xff]
  %v81 = vld [vmem:[%s1 + $0x78] sm:$0xff]
  %v82 = vld [vmem:[%s1 + $0x80] sm:$0xff]
  %v83 = vld [vmem:[%s1 + $0x88] sm:$0xff]
  %v84 = vld [vmem:[%s1 + $0x90] sm:$0xff]
  %v85 = vld [vmem:[%s1 + $0x98] sm:$0xff]
  %v86 = vld [vmem:[%s1 + $0xa0] sm:$0xff]
  %v87 = vld [vmem:[%s1 + $0xa8] sm:$0xff]
  %v88 = vld [vmem:[%s1 + $0xb0] sm:$0xff]
  %v89 = vld [vmem:[%s1 + $0xb8] sm:$0xff]
  %v90 = vld [vmem:[%s1 + $0xc0] sm:$0xff]
  %v91 = vld [vmem:[%s1 + $0xc8] sm:$0xff]
  %v92 = vld [vmem:[%s1 + $0xd0] sm:$0xff]
  %v93 = vld [vmem:[%s1 + $0xd8] sm:$0xff]
  %v94 = vld [vmem:[%s1 + $0xe0] sm:$0xff]
  %v95 = vld [vmem:[%s1 + $0xe8] sm:$0xff]
  %v96 = vld [vmem:[%s1 + $0xf0] sm:$0xff]
  %v97 = vld [vmem:[%s1 + $0xf8] sm:$0xff]
  %v98 = vld [vmem:[%s1 + $0x100] sm:$0xff]
  %v99 = vld [vmem:[%s1 + $0x108] sm:$0xff]
  %v100 = vld [vmem:[%s1 + $0x110] sm:$0xff]
  %v101 = vld [vmem:[%s1 + $0x118] sm:$0xff]
  %v102 = vld [vmem:[%s1 + $0x120] sm:$0xff]
  %v103 = vld [vmem:[%s1 + $0x128] sm:$0xff]
  %v104 = vld [vmem:[%s1 + $0x130] sm:$0xff]
  %v105 = vld [vmem:[%s1 + $0x138] sm:$0xff]
  %v106 = vld [vmem:[%s1 + $0x140] sm:$0xff]
  %v107 = vld [vmem:[%s1 + $0x148] sm:$0xff]
  %v108 = vld [vmem:[%s1 + $0x150] sm:$0xff]
  %v109 = vld [vmem:[%s1 + $0x158] sm:$0xff]
  %v110 = vld [vmem:[%s1 + $0x160] sm:$0xff]
  %v111 = vld [vmem:[%s1 + $0x168] sm:$0xff]
  %v112 = vld [vmem:[%s1 + $0x170] sm:$0xff]
  %v113 = vld [vmem:[%s1 + $0x178] sm:$0xff]
  %v114 = vld [vmem:[%s1 + $0x180] sm:$0xff]
  %v115 = vld [vmem:[%s1 + $0x188] sm:$0xff]
  %v116 = vld [vmem:[%s1 + $0x190] sm:$0xff]
  %v117 = vld [vmem:[%s1 + $0x198] sm:$0xff]
  %v118 = vld [vmem:[%s1 + $0x1a0] sm:$0xff]
  %v119 = vld [vmem:[%s1 + $0x1a8] sm:$0xff]
  %v120 = vld [vmem:[%s1 + $0x1b0] sm:$0xff]
  %v121 = vld [vmem:[%s1 + $0x1b8] sm:$0xff]
  %v122 = vld [vmem:[%s1 + $0x1c0] sm:$0xff]
  %v123 = vld [vmem:[%s1 + $0x1c8] sm:$0xff]
  %v124 = vld [vmem:[%s1 + $0x1d0] sm:$0xff]
  %v125 = vld [vmem:[%s1 + $0x1d8] sm:$0xff]
  %v126 = vld [vmem:[%s1 + $0x1e0] sm:$0xff]
  %v127 = vld [vmem:[%s1 + $0x1e8] sm:$0xff]
  %v128 = vld [vmem:[%s1 + $0x1f0] sm:$0xff]
  %v129 = vld [vmem:[%s1 + $0x1f8] sm:$0xff]
  %v130 = vld [vmem:[%s1 + $0x200] sm:$0xff]
  %v131 = vld [vmem:[%s1 + $0x208] sm:$0xff]
  %v132 = vld [vmem:[%s1 + $0x210] sm:$0xff]
  %v133 = vld [vmem:[%s1 + $0x218] sm:$0xff]
  %v134 = vld [vmem:[%s1 + $0x220] sm:$0xff]
  %v135 = vld [vmem:[%s1 + $0x228] sm:$0xff]
  %v136 = vld [vmem:[%s1 + $0x230] sm:$0xff]
  %v137 = vld [vmem:[%s1 + $0x238] sm:$0xff]
  %v138 = vld [vmem:[%s1 + $0x240] sm:$0xff]
  %v139 = vld [vmem:[%s1 + $0x248] sm:$0xff]
  %v140 = vld [vmem:[%s1 + $0x250] sm:$0xff]
  %v141 = vld [vmem:[%s1 + $0x258] sm:$0xff]
  %v142 = vld [vmem:[%s1 + $0x260] sm:$0xff]
  %v143 = vld [vmem:[%s1 + $0x268] sm:$0xff]
  %v144 = vld [vmem:[%s1 + $0x270] sm:$0xff]
  %v145 = vld [vmem:[%s1 + $0x278] sm:$0xff]
  %v146 = vld [vmem:[%s1 + $0x280] sm:$0xff]
  %v147 = vld [vmem:[%s1 + $0x288] sm:$0xff]
  %v148 = vld [vmem:[%s1 + $0x290] sm:$0xff]
  %v149 = vld [vmem:[%s1 + $0x298] sm:$0xff]
  %v150 = vld [vmem:[%s1 + $0x2a0] sm:$0xff]
  %v151 = vld [vmem:[%s1 + $0x2a8] sm:$0xff]
  %v152 = vld [vmem:[%s1 + $0x2b0] sm:$0xff]
  %v153 = vld [vmem:[%s1 + $0x2b8] sm:$0xff]
  %v154 = vld [vmem:[%s1 + $0x2c0] sm:$0xff]
  %v155 = vld [vmem:[%s1 + $0x2c8] sm:$0xff]
  %v156 = vld [vmem:[%s1 + $0x2d0] sm:$0xff]
  %v157 = vld [vmem:[%s1 + $0x2d8] sm:$0xff]
  %v158 = vld [vmem:[%s1 + $0x2e0] sm:$0xff]
  %v159 = vld [vmem:[%s1 + $0x2e8] sm:$0xff]
  %v160 = vld [vmem:[%s1 + $0x2f0] sm:$0xff]
  %v161 = vld [vmem:[%s1 + $0x2f8] sm:$0xff]
  %v162 = vld [vmem:[%s1 + $0x300] sm:$0xff]
  %v163 = vld [vmem:[%s1 + $0x308] sm:$0xff]
  %v164 = vld [vmem:[%s1 + $0x310] sm:$0xff]
  %v165 = vld [vmem:[%s1 + $0x318] sm:$0xff]
  %v166 = vld [vmem:[%s1 + $0x320] sm:$0xff]
  %v167 = vld [vmem:[%s1 + $0x328] sm:$0xff]
  %v168 = vld [vmem:[%s1 + $0x330] sm:$0xff]
  %v169 = vld [vmem:[%s1 + $0x338] sm:$0xff]
  %v170 = vld [vmem:[%s1 + $0x340] sm:$0xff]
  %v171 = vld [vmem:[%s1 + $0x348] sm:$0xff]
  %v172 = vld [vmem:[%s1 + $0x350] sm:$0xff]
  %v173 = vld [vmem:[%s1 + $0x358] sm:$0xff]
  %v174 = vld [vmem:[%s1 + $0x360] sm:$0xff]
  %v175 = vld [vmem:[%s1 + $0x368] sm:$0xff]
  %v176 = vld [vmem:[%s1 + $0x370] sm:$0xff]
  %v177 = vld [vmem:[%s1 + $0x378] sm:$0xff]
  %v178 = vld [vmem:[%s1 + $0x380] sm:$0xff]
  %v179 = vld [vmem:[%s1 + $0x388] sm:$0xff]
  %v180 = vld [vmem:[%s1 + $0x390] sm:$0xff]
  %v181 = vld [vmem:[%s1 + $0x398] sm:$0xff]
  %v182 = vld [vmem:[%s1 + $0x3a0] sm:$0xff]
  %v183 = vld [vmem:[%s1 + $0x3a8] sm:$0xff]
  %v184 = vld [vmem:[%s1 + $0x3b0] sm:$0xff]
  %v185 = vld [vmem:[%s1 + $0x3b8] sm:$0xff]
  %v186 = vld [vmem:[%s1 + $0x3c0] sm:$0xff]
  %v187 = vld [vmem:[%s1 + $0x3c8] sm:$0xff]
  %v188 = vld [vmem:[%s1 + $0x3d0] sm:$0xff]
  %v189 = vld [vmem:[%s1 + $0x3d8] sm:$0xff]
  %v190 = vld [vmem:[%s1 + $0x3e0] sm:$0xff]
  %v191 = vld [vmem:[%s1 + $0x3e8] sm:$0xff]
  %v192 = vld [vmem:[%s1 + $0x3f0] sm:$0xff]
  %v193 = vld [vmem:[%s1 + $0x3f8] sm:$0xff]
  %v194 = vld [vmem:[%s1 + $0x400] sm:$0xff]
  %v195 = vld [vmem:[%s1 + $0x408] sm:$0xff]
  %v196 = vld [vmem:[%s1 + $0x410] sm:$0xff]
  %v197 = vld [vmem:[%s1 + $0x418] sm:$0xff]
  %v198 = vld [vmem:[%s1 + $0x420] sm:$0xff]
  %v199 = vld [vmem:[%s1 + $0x428] sm:$0xff]
  %v200 = vld [vmem:[%s1 + $0x430] sm:$0xff]
  %v201 = vld [vmem:[%s1 + $0x438] sm:$0xff]
  %v202 = vld [vmem:[%s1 + $0x440] sm:$0xff]
  %v203 = vld [vmem:[%s1 + $0x448] sm:$0xff]
  %v204 = vld [vmem:[%s1 + $0x450] sm:$0xff]
  %v205 = vld [vmem:[%s1 + $0x458] sm:$0xff]
  %v206 = vld [vmem:[%s1 + $0x460] sm:$0xff]
  %v207 = vld [vmem:[%s1 + $0x468] sm:$0xff]
  %v208 = vld [vmem:[%s1 + $0x470] sm:$0xff]
  %v209 = vld [vmem:[%s1 + $0x478] sm:$0xff]
  %v210 = vld [vmem:[%s1 + $0x480] sm:$0xff]
  %v211 = vld [vmem:[%s1 + $0x488] sm:$0xff]
  %v212 = vld [vmem:[%s1 + $0x490] sm:$0xff]
  %v213 = vld [vmem:[%s1 + $0x498] sm:$0xff]
  %v214 = vld [vmem:[%s1 + $0x4a0] sm:$0xff]
  %v215 = vld [vmem:[%s1 + $0x4a8] sm:$0xff]
  %v216 = vld [vmem:[%s1 + $0x4b0] sm:$0xff]
  %v217 = vld [vmem:[%s1 + $0x4b8] sm:$0xff]
  %v218 = vld [vmem:[%s1 + $0x4c0] sm:$0xff]
  %v219 = vld [vmem:[%s1 + $0x4c8] sm:$0xff]
  %v220 = vld [vmem:[%s1 + $0x4d0] sm:$0xff]
  %v221 = vld [vmem:[%s1 + $0x4d8] sm:$0xff]
  %v222 = vld [vmem:[%s1 + $0x4e0] sm:$0xff]
  %v223 = vld [vmem:[%s1 + $0x4e8] sm:$0xff]
  %v224 = vld [vmem:[%s1 + $0x4f0] sm:$0xff]
  %v225 = vld [vmem:[%s1 + $0x4f8] sm:$0xff]
  %v226 = vld [vmem:[%s1 + $0x500] sm:$0xff]
  %v227 = vld [vmem:[%s1 + $0x508] sm:$0xff]
  %v228 = vld [vmem:[%s1 + $0x510] sm:$0xff]
  %v229 = vld [vmem:[%s1 + $0x518] sm:$0xff]
  %v230 = vld [vmem:[%s1 + $0x520] sm:$0xff]
  %v231 = vld [vmem:[%s1 + $0x528] sm:$0xff]
  %v232 = vld [vmem:[%s1 + $0x530] sm:$0xff]
  %v233 = vld [vmem:[%s1 + $0x538] sm:$0xff]
  %v234 = vld [vmem:[%s1 + $0x540] sm:$0xff]
  %v235 = vld [vmem:[%s1 + $0x548] sm:$0xff]
  %v236 = vld [vmem:[%s1 + $0x550] sm:$0xff]
  %v237 = vld [vmem:[%s1 + $0x558] sm:$0xff]
  %v238 = vld [vmem:[%s1 + $0x560] sm:$0xff]
  %v239 = vld [vmem:[%s1 + $0x568] sm:$0xff]
  %v240 = vld [vmem:[%s1 + $0x570] sm:$0xff]
  %v241 = vld [vmem:[%s1 + $0x578] sm:$0xff]
  %v242 = vld [vmem:[%s1 + $0x580] sm:$0xff]
  %v243 = vld [vmem:[%s1 + $0x588] sm:$0xff]
  %v244 = vld [vmem:[%s1 + $0x590] sm:$0xff]
  %v245 = vld [vmem:[%s1 + $0x598] sm:$0xff]
  %v246 = vld [vmem:[%s1 + $0x5a0] sm:$0xff]
  %v247 = vld [vmem:[%s1 + $0x5a8] sm:$0xff]
  %v248 = vld [vmem:[%s1 + $0x5b0] sm:$0xff]
  %v249 = vld [vmem:[%s1 + $0x5b8] sm:$0xff]
  %v250 = vld [vmem:[%s1 + $0x5c0] sm:$0xff]
  %v251 = vld [vmem:[%s1 + $0x5c8] sm:$0xff]
  %v252 = vld [vmem:[%s1 + $0x5d0] sm:$0xff]
  %v253 = vld [vmem:[%s1 + $0x5d8] sm:$0xff]
  %v254 = vld [vmem:[%s1 + $0x5e0] sm:$0xff]
  %v255 = vld [vmem:[%s1 + $0x5e8] sm:$0xff]
  %v256 = vld [vmem:[%s1 + $0x5f0] sm:$0xff]
  %v257 = vld [vmem:[%s1 + $0x5f8] sm:$0xff]
  %v258 = vld [vmem:[%s1 + $0x600] sm:$0xff]
  %v259 = vld [vmem:[%s1 + $0x608] sm:$0xff]
  %v260 = vld [vmem:[%s1 + $0x610] sm:$0xff]
  %v261 = vld [vmem:[%s1 + $0x618] sm:$0xff]
  %v262 = vld [vmem:[%s1 + $0x620] sm:$0xff]
  %v263 = vld [vmem:[%s1 + $0x628] sm:$0xff]
  %v264 = vld [vmem:[%s1 + $0x630] sm:$0xff]
  %v265 = vld [vmem:[%s1 + $0x638] sm:$0xff]
  %v266 = vld [vmem:[%s1 + $0x640] sm:$0xff]
  %v267 = vld [vmem:[%s1 + $0x648] sm:$0xff]
  %v268 = vld [vmem:[%s1 + $0x650] sm:$0xff]
  %v269 = vld [vmem:[%s1 + $0x658] sm:$0xff]
  %v270 = vld [vmem:[%s1 + $0x660] sm:$0xff]
  %v271 = vld [vmem:[%s1 + $0x668] sm:$0xff]
  %v272 = vld [vmem:[%s1 + $0x670] sm:$0xff]
  %v273 = vld [vmem:[%s1 + $0x678] sm:$0xff]
  %v274 = vld [vmem:[%s1 + $0x680] sm:$0xff]
  %v275 = vld [vmem:[%s1 + $0x688] sm:$0xff]
  %v276 = vld [vmem:[%s1 + $0x690] sm:$0xff]
  %v277 = vld [vmem:[%s1 + $0x698] sm:$0xff]
  %v278 = vld [vmem:[%s1 + $0x6a0] sm:$0xff]
  %v279 = vld [vmem:[%s1 + $0x6a8] sm:$0xff]
  %v280 = vld [vmem:[%s1 + $0x6b0] sm:$0xff]
  %v281 = vld [vmem:[%s1 + $0x6b8] sm:$0xff]
  %v282 = vld [vmem:[%s1 + $0x6c0] sm:$0xff]
  %v283 = vld [vmem:[%s1 + $0x6c8] sm:$0xff]
  %v284 = vld [vmem:[%s1 + $0x6d0] sm:$0xff]
  %v285 = vld [vmem:[%s1 + $0x6d8] sm:$0xff]
  %v286 = vld [vmem:[%s1 + $0x6e0] sm:$0xff]
  %v287 = vld [vmem:[%s1 + $0x6e8] sm:$0xff]
  %v288 = vld [vmem:[%s1 + $0x6f0] sm:$0xff]
  %v289 = vld [vmem:[%s1 + $0x6f8] sm:$0xff]
  %v290 = vld [vmem:[%s1 + $0x700] sm:$0xff]
  %v291 = vld [vmem:[%s1 + $0x708] sm:$0xff]
  %v292 = vld [vmem:[%s1 + $0x710] sm:$0xff]
  %v293 = vld [vmem:[%s1 + $0x718] sm:$0xff]
  %v294 = vld [vmem:[%s1 + $0x720] sm:$0xff]
  %v295 = vld [vmem:[%s1 + $0x728] sm:$0xff]
  %v296 = vld [vmem:[%s1 + $0x730] sm:$0xff]
  %v297 = vld [vmem:[%s1 + $0x738] sm:$0xff]
  %v298 = vld [vmem:[%s1 + $0x740] sm:$0xff]
  %v299 = vld [vmem:[%s1 + $0x748] sm:$0xff]
  %v300 = vld [vmem:[%s1 + $0x750] sm:$0xff]
  %v301 = vld [vmem:[%s1 + $0x758] sm:$0xff]
  %v302 = vld [vmem:[%s1 + $0x760] sm:$0xff]
  %v303 = vld [vmem:[%s1 + $0x768] sm:$0xff]
  %v304 = vld [vmem:[%s1 + $0x770] sm:$0xff]
  %v305 = vld [vmem:[%s1 + $0x778] sm:$0xff]
  %v306 = vld [vmem:[%s1 + $0x780] sm:$0xff]
  %v307 = vld [vmem:[%s1 + $0x788] sm:$0xff]
  %v308 = vld [vmem:[%s1 + $0x790] sm:$0xff]
  %v309 = vld [vmem:[%s1 + $0x798] sm:$0xff]
  %v310 = vld [vmem:[%s1 + $0x7a0] sm:$0xff]
  %v311 = vld [vmem:[%s1 + $0x7a8] sm:$0xff]
  %v312 = vld [vmem:[%s1 + $0x7b0] sm:$0xff]
  %v313 = vld [vmem:[%s1 + $0x7b8] sm:$0xff]
  %v314 = vld [vmem:[%s1 + $0x7c0] sm:$0xff]
  %v315 = vld [vmem:[%s1 + $0x7c8] sm:$0xff]
  %v316 = vld [vmem:[%s1 + $0x7d0] sm:$0xff]
  %v317 = vld [vmem:[%s1 + $0x7d8] sm:$0xff]
  %v318 = vld [vmem:[%s1 + $0x7e0] sm:$0xff]
  %v319 = vld [vmem:[%s1 + $0x7e8] sm:$0xff]
  %v320 = vld [vmem:[%s1 + $0x7f0] sm:$0xff]
  %v321 = vld [vmem:[%s1 + $0x7f8] sm:$0xff]
  %v354 = vunpack.c.l.b16 %v34
  %v355 = vunpack.c.h.b16 %v34
  %v356 = vunpack.c.l.b16 %v35
  %v357 = vunpack.c.h.b16 %v35
  %v358 = vunpack.c.l.b16 %v36
  %v359 = vunpack.c.h.b16 %v36
  %v360 = vunpack.c.l.b16 %v37
  %v361 = vunpack.c.h.b16 %v37
  %v362 = vunpack.c.l.b16 %v38
  %v363 = vunpack.c.h.b16 %v38
  %v364 = vunpack.c.l.b16 %v39
  %v365 = vunpack.c.h.b16 %v39
  %v366 = vunpack.c.l.b16 %v40
  %v367 = vunpack.c.h.b16 %v40
  %v368 = vunpack.c.l.b16 %v41
  %v369 = vunpack.c.h.b16 %v41
  %v370 = vunpack.c.l.b16 %v42
  %v371 = vunpack.c.h.b16 %v42
  %v372 = vunpack.c.l.b16 %v43
  %v373 = vunpack.c.h.b16 %v43
  %v374 = vunpack.c.l.b16 %v44
  %v375 = vunpack.c.h.b16 %v44
  %v376 = vunpack.c.l.b16 %v45
  %v377 = vunpack.c.h.b16 %v45
  %v378 = vunpack.c.l.b16 %v46
  %v379 = vunpack.c.h.b16 %v46
  %v380 = vunpack.c.l.b16 %v47
  %v381 = vunpack.c.h.b16 %v47
  %v382 = vunpack.c.l.b16 %v48
  %v383 = vunpack.c.h.b16 %v48
  %v384 = vunpack.c.l.b16 %v49
  %v385 = vunpack.c.h.b16 %v49
  %v386 = vunpack.c.l.b16 %v50
  %v387 = vunpack.c.h.b16 %v50
  %v388 = vunpack.c.l.b16 %v51
  %v389 = vunpack.c.h.b16 %v51
  %v390 = vunpack.c.l.b16 %v52
  %v391 = vunpack.c.h.b16 %v52
  %v392 = vunpack.c.l.b16 %v53
  %v393 = vunpack.c.h.b16 %v53
  %v394 = vunpack.c.l.b16 %v54
  %v395 = vunpack.c.h.b16 %v54
  %v396 = vunpack.c.l.b16 %v55
  %v397 = vunpack.c.h.b16 %v55
  %v398 = vunpack.c.l.b16 %v56
  %v399 = vunpack.c.h.b16 %v56
  %v400 = vunpack.c.l.b16 %v57
  %v401 = vunpack.c.h.b16 %v57
  %v402 = vunpack.c.l.b16 %v58
  %v403 = vunpack.c.h.b16 %v58
  %v404 = vunpack.c.l.b16 %v59
  %v405 = vunpack.c.h.b16 %v59
  %v406 = vunpack.c.l.b16 %v60
  %v407 = vunpack.c.h.b16 %v60
  %v408 = vunpack.c.l.b16 %v61
  %v409 = vunpack.c.h.b16 %v61
  %v410 = vunpack.c.l.b16 %v62
  %v411 = vunpack.c.h.b16 %v62
  %v412 = vunpack.c.l.b16 %v63
  %v413 = vunpack.c.h.b16 %v63
  %v414 = vunpack.c.l.b16 %v64
  %v415 = vunpack.c.h.b16 %v64
  %v416 = vunpack.c.l.b16 %v65
  %v417 = vunpack.c.h.b16 %v65
  %v418 = vpack.c.b16 %v370, %v354
  %v419 = vpack.c.b16 %v371, %v355
  %v420 = vpack.c.b16 %v372, %v356
  %v421 = vpack.c.b16 %v373, %v357
  %v422 = vpack.c.b16 %v374, %v358
  %v423 = vpack.c.b16 %v375, %v359
  %v424 = vpack.c.b16 %v376, %v360
  %v425 = vpack.c.b16 %v377, %v361
  %v426 = vpack.c.b16 %v378, %v362
  %v427 = vpack.c.b16 %v379, %v363
  %v428 = vpack.c.b16 %v380, %v364
  %v429 = vpack.c.b16 %v381, %v365
  %v430 = vpack.c.b16 %v382, %v366
  %v431 = vpack.c.b16 %v383, %v367
  %v432 = vpack.c.b16 %v384, %v368
  %v433 = vpack.c.b16 %v385, %v369
  %v434 = vpack.c.b16 %v402, %v386
  %v435 = vpack.c.b16 %v403, %v387
  %v436 = vpack.c.b16 %v404, %v388
  %v437 = vpack.c.b16 %v405, %v389
  %v438 = vpack.c.b16 %v406, %v390
  %v439 = vpack.c.b16 %v407, %v391
  %v440 = vpack.c.b16 %v408, %v392
  %v441 = vpack.c.b16 %v409, %v393
  %v442 = vpack.c.b16 %v410, %v394
  %v443 = vpack.c.b16 %v411, %v395
  %v444 = vpack.c.b16 %v412, %v396
  %v445 = vpack.c.b16 %v413, %v397
  %v446 = vpack.c.b16 %v414, %v398
  %v447 = vpack.c.b16 %v415, %v399
  %v448 = vpack.c.b16 %v416, %v400
  %v449 = vpack.c.b16 %v417, %v401
  %v738 = vunpack.c.l.b16 %v66
  %v739 = vunpack.c.h.b16 %v66
  %v740 = vunpack.c.l.b16 %v67
  %v741 = vunpack.c.h.b16 %v67
  %v742 = vunpack.c.l.b16 %v68
  %v743 = vunpack.c.h.b16 %v68
  %v744 = vunpack.c.l.b16 %v69
  %v745 = vunpack.c.h.b16 %v69
  %v746 = vunpack.c.l.b16 %v70
  %v747 = vunpack.c.h.b16 %v70
  %v748 = vunpack.c.l.b16 %v71
  %v749 = vunpack.c.h.b16 %v71
  %v750 = vunpack.c.l.b16 %v72
  %v751 = vunpack.c.h.b16 %v72
  %v752 = vunpack.c.l.b16 %v73
  %v753 = vunpack.c.h.b16 %v73
  %v754 = vunpack.c.l.b16 %v74
  %v755 = vunpack.c.h.b16 %v74
  %v756 = vunpack.c.l.b16 %v75
  %v757 = vunpack.c.h.b16 %v75
  %v758 = vunpack.c.l.b16 %v76
  %v759 = vunpack.c.h.b16 %v76
  %v760 = vunpack.c.l.b16 %v77
  %v761 = vunpack.c.h.b16 %v77
  %v762 = vunpack.c.l.b16 %v78
  %v763 = vunpack.c.h.b16 %v78
  %v764 = vunpack.c.l.b16 %v79
  %v765 = vunpack.c.h.b16 %v79
  %v766 = vunpack.c.l.b16 %v80
  %v767 = vunpack.c.h.b16 %v80
  %v768 = vunpack.c.l.b16 %v81
  %v769 = vunpack.c.h.b16 %v81
  %v770 = vunpack.c.l.b16 %v82
  %v771 = vunpack.c.h.b16 %v82
  %v772 = vunpack.c.l.b16 %v83
  %v773 = vunpack.c.h.b16 %v83
  %v774 = vunpack.c.l.b16 %v84
  %v775 = vunpack.c.h.b16 %v84
  %v776 = vunpack.c.l.b16 %v85
  %v777 = vunpack.c.h.b16 %v85
  %v778 = vunpack.c.l.b16 %v86
  %v779 = vunpack.c.h.b16 %v86
  %v780 = vunpack.c.l.b16 %v87
  %v781 = vunpack.c.h.b16 %v87
  %v782 = vunpack.c.l.b16 %v88
  %v783 = vunpack.c.h.b16 %v88
  %v784 = vunpack.c.l.b16 %v89
  %v785 = vunpack.c.h.b16 %v89
  %v786 = vunpack.c.l.b16 %v90
  %v787 = vunpack.c.h.b16 %v90
  %v788 = vunpack.c.l.b16 %v91
  %v789 = vunpack.c.h.b16 %v91
  %v790 = vunpack.c.l.b16 %v92
  %v791 = vunpack.c.h.b16 %v92
  %v792 = vunpack.c.l.b16 %v93
  %v793 = vunpack.c.h.b16 %v93
  %v794 = vunpack.c.l.b16 %v94
  %v795 = vunpack.c.h.b16 %v94
  %v796 = vunpack.c.l.b16 %v95
  %v797 = vunpack.c.h.b16 %v95
  %v798 = vunpack.c.l.b16 %v96
  %v799 = vunpack.c.h.b16 %v96
  %v800 = vunpack.c.l.b16 %v97
  %v801 = vunpack.c.h.b16 %v97
  %v802 = vunpack.c.l.b16 %v98
  %v803 = vunpack.c.h.b16 %v98
  %v804 = vunpack.c.l.b16 %v99
  %v805 = vunpack.c.h.b16 %v99
  %v806 = vunpack.c.l.b16 %v100
  %v807 = vunpack.c.h.b16 %v100
  %v808 = vunpack.c.l.b16 %v101
  %v809 = vunpack.c.h.b16 %v101
  %v810 = vunpack.c.l.b16 %v102
  %v811 = vunpack.c.h.b16 %v102
  %v812 = vunpack.c.l.b16 %v103
  %v813 = vunpack.c.h.b16 %v103
  %v814 = vunpack.c.l.b16 %v104
  %v815 = vunpack.c.h.b16 %v104
  %v816 = vunpack.c.l.b16 %v105
  %v817 = vunpack.c.h.b16 %v105
  %v818 = vunpack.c.l.b16 %v106
  %v819 = vunpack.c.h.b16 %v106
  %v820 = vunpack.c.l.b16 %v107
  %v821 = vunpack.c.h.b16 %v107
  %v822 = vunpack.c.l.b16 %v108
  %v823 = vunpack.c.h.b16 %v108
  %v824 = vunpack.c.l.b16 %v109
  %v825 = vunpack.c.h.b16 %v109
  %v826 = vunpack.c.l.b16 %v110
  %v827 = vunpack.c.h.b16 %v110
  %v828 = vunpack.c.l.b16 %v111
  %v829 = vunpack.c.h.b16 %v111
  %v830 = vunpack.c.l.b16 %v112
  %v831 = vunpack.c.h.b16 %v112
  %v832 = vunpack.c.l.b16 %v113
  %v833 = vunpack.c.h.b16 %v113
  %v834 = vunpack.c.l.b16 %v114
  %v835 = vunpack.c.h.b16 %v114
  %v836 = vunpack.c.l.b16 %v115
  %v837 = vunpack.c.h.b16 %v115
  %v838 = vunpack.c.l.b16 %v116
  %v839 = vunpack.c.h.b16 %v116
  %v840 = vunpack.c.l.b16 %v117
  %v841 = vunpack.c.h.b16 %v117
  %v842 = vunpack.c.l.b16 %v118
  %v843 = vunpack.c.h.b16 %v118
  %v844 = vunpack.c.l.b16 %v119
  %v845 = vunpack.c.h.b16 %v119
  %v846 = vunpack.c.l.b16 %v120
  %v847 = vunpack.c.h.b16 %v120
  %v848 = vunpack.c.l.b16 %v121
  %v849 = vunpack.c.h.b16 %v121
  %v850 = vunpack.c.l.b16 %v122
  %v851 = vunpack.c.h.b16 %v122
  %v852 = vunpack.c.l.b16 %v123
  %v853 = vunpack.c.h.b16 %v123
  %v854 = vunpack.c.l.b16 %v124
  %v855 = vunpack.c.h.b16 %v124
  %v856 = vunpack.c.l.b16 %v125
  %v857 = vunpack.c.h.b16 %v125
  %v858 = vunpack.c.l.b16 %v126
  %v859 = vunpack.c.h.b16 %v126
  %v860 = vunpack.c.l.b16 %v127
  %v861 = vunpack.c.h.b16 %v127
  %v862 = vunpack.c.l.b16 %v128
  %v863 = vunpack.c.h.b16 %v128
  %v864 = vunpack.c.l.b16 %v129
  %v865 = vunpack.c.h.b16 %v129
  %v866 = vunpack.c.l.b16 %v130
  %v867 = vunpack.c.h.b16 %v130
  %v868 = vunpack.c.l.b16 %v131
  %v869 = vunpack.c.h.b16 %v131
  %v870 = vunpack.c.l.b16 %v132
  %v871 = vunpack.c.h.b16 %v132
  %v872 = vunpack.c.l.b16 %v133
  %v873 = vunpack.c.h.b16 %v133
  %v874 = vunpack.c.l.b16 %v134
  %v875 = vunpack.c.h.b16 %v134
  %v876 = vunpack.c.l.b16 %v135
  %v877 = vunpack.c.h.b16 %v135
  %v878 = vunpack.c.l.b16 %v136
  %v879 = vunpack.c.h.b16 %v136
  %v880 = vunpack.c.l.b16 %v137
  %v881 = vunpack.c.h.b16 %v137
  %v882 = vunpack.c.l.b16 %v138
  %v883 = vunpack.c.h.b16 %v138
  %v884 = vunpack.c.l.b16 %v139
  %v885 = vunpack.c.h.b16 %v139
  %v886 = vunpack.c.l.b16 %v140
  %v887 = vunpack.c.h.b16 %v140
  %v888 = vunpack.c.l.b16 %v141
  %v889 = vunpack.c.h.b16 %v141
  %v890 = vunpack.c.l.b16 %v142
  %v891 = vunpack.c.h.b16 %v142
  %v892 = vunpack.c.l.b16 %v143
  %v893 = vunpack.c.h.b16 %v143
  %v894 = vunpack.c.l.b16 %v144
  %v895 = vunpack.c.h.b16 %v144
  %v896 = vunpack.c.l.b16 %v145
  %v897 = vunpack.c.h.b16 %v145
  %v898 = vunpack.c.l.b16 %v146
  %v899 = vunpack.c.h.b16 %v146
  %v900 = vunpack.c.l.b16 %v147
  %v901 = vunpack.c.h.b16 %v147
  %v902 = vunpack.c.l.b16 %v148
  %v903 = vunpack.c.h.b16 %v148
  %v904 = vunpack.c.l.b16 %v149
  %v905 = vunpack.c.h.b16 %v149
  %v906 = vunpack.c.l.b16 %v150
  %v907 = vunpack.c.h.b16 %v150
  %v908 = vunpack.c.l.b16 %v151
  %v909 = vunpack.c.h.b16 %v151
  %v910 = vunpack.c.l.b16 %v152
  %v911 = vunpack.c.h.b16 %v152
  %v912 = vunpack.c.l.b16 %v153
  %v913 = vunpack.c.h.b16 %v153
  %v914 = vunpack.c.l.b16 %v154
  %v915 = vunpack.c.h.b16 %v154
  %v916 = vunpack.c.l.b16 %v155
  %v917 = vunpack.c.h.b16 %v155
  %v918 = vunpack.c.l.b16 %v156
  %v919 = vunpack.c.h.b16 %v156
  %v920 = vunpack.c.l.b16 %v157
  %v921 = vunpack.c.h.b16 %v157
  %v922 = vunpack.c.l.b16 %v158
  %v923 = vunpack.c.h.b16 %v158
  %v924 = vunpack.c.l.b16 %v159
  %v925 = vunpack.c.h.b16 %v159
  %v926 = vunpack.c.l.b16 %v160
  %v927 = vunpack.c.h.b16 %v160
  %v928 = vunpack.c.l.b16 %v161
  %v929 = vunpack.c.h.b16 %v161
  %v930 = vunpack.c.l.b16 %v162
  %v931 = vunpack.c.h.b16 %v162
  %v932 = vunpack.c.l.b16 %v163
  %v933 = vunpack.c.h.b16 %v163
  %v934 = vunpack.c.l.b16 %v164
  %v935 = vunpack.c.h.b16 %v164
  %v936 = vunpack.c.l.b16 %v165
  %v937 = vunpack.c.h.b16 %v165
  %v938 = vunpack.c.l.b16 %v166
  %v939 = vunpack.c.h.b16 %v166
  %v940 = vunpack.c.l.b16 %v167
  %v941 = vunpack.c.h.b16 %v167
  %v942 = vunpack.c.l.b16 %v168
  %v943 = vunpack.c.h.b16 %v168
  %v944 = vunpack.c.l.b16 %v169
  %v945 = vunpack.c.h.b16 %v169
  %v946 = vunpack.c.l.b16 %v170
  %v947 = vunpack.c.h.b16 %v170
  %v948 = vunpack.c.l.b16 %v171
  %v949 = vunpack.c.h.b16 %v171
  %v950 = vunpack.c.l.b16 %v172
  %v951 = vunpack.c.h.b16 %v172
  %v952 = vunpack.c.l.b16 %v173
  %v953 = vunpack.c.h.b16 %v173
  %v954 = vunpack.c.l.b16 %v174
  %v955 = vunpack.c.h.b16 %v174
  %v956 = vunpack.c.l.b16 %v175
  %v957 = vunpack.c.h.b16 %v175
  %v958 = vunpack.c.l.b16 %v176
  %v959 = vunpack.c.h.b16 %v176
  %v960 = vunpack.c.l.b16 %v177
  %v961 = vunpack.c.h.b16 %v177
  %v962 = vunpack.c.l.b16 %v178
  %v963 = vunpack.c.h.b16 %v178
  %v964 = vunpack.c.l.b16 %v179
  %v965 = vunpack.c.h.b16 %v179
  %v966 = vunpack.c.l.b16 %v180
  %v967 = vunpack.c.h.b16 %v180
  %v968 = vunpack.c.l.b16 %v181
  %v969 = vunpack.c.h.b16 %v181
  %v970 = vunpack.c.l.b16 %v182
  %v971 = vunpack.c.h.b16 %v182
  %v972 = vunpack.c.l.b16 %v183
  %v973 = vunpack.c.h.b16 %v183
  %v974 = vunpack.c.l.b16 %v184
  %v975 = vunpack.c.h.b16 %v184
  %v976 = vunpack.c.l.b16 %v185
  %v977 = vunpack.c.h.b16 %v185
  %v978 = vunpack.c.l.b16 %v186
  %v979 = vunpack.c.h.b16 %v186
  %v980 = vunpack.c.l.b16 %v187
  %v981 = vunpack.c.h.b16 %v187
  %v982 = vunpack.c.l.b16 %v188
  %v983 = vunpack.c.h.b16 %v188
  %v984 = vunpack.c.l.b16 %v189
  %v985 = vunpack.c.h.b16 %v189
  %v986 = vunpack.c.l.b16 %v190
  %v987 = vunpack.c.h.b16 %v190
  %v988 = vunpack.c.l.b16 %v191
  %v989 = vunpack.c.h.b16 %v191
  %v990 = vunpack.c.l.b16 %v192
  %v991 = vunpack.c.h.b16 %v192
  %v992 = vunpack.c.l.b16 %v193
  %v993 = vunpack.c.h.b16 %v193
  %v994 = vunpack.c.l.b16 %v194
  %v995 = vunpack.c.h.b16 %v194
  %v996 = vunpack.c.l.b16 %v195
  %v997 = vunpack.c.h.b16 %v195
  %v998 = vunpack.c.l.b16 %v196
  %v999 = vunpack.c.h.b16 %v196
  %v1000 = vunpack.c.l.b16 %v197
  %v1001 = vunpack.c.h.b16 %v197
  %v1002 = vunpack.c.l.b16 %v198
  %v1003 = vunpack.c.h.b16 %v198
  %v1004 = vunpack.c.l.b16 %v199
  %v1005 = vunpack.c.h.b16 %v199
  %v1006 = vunpack.c.l.b16 %v200
  %v1007 = vunpack.c.h.b16 %v200
  %v1008 = vunpack.c.l.b16 %v201
  %v1009 = vunpack.c.h.b16 %v201
  %v1010 = vunpack.c.l.b16 %v202
  %v1011 = vunpack.c.h.b16 %v202
  %v1012 = vunpack.c.l.b16 %v203
  %v1013 = vunpack.c.h.b16 %v203
  %v1014 = vunpack.c.l.b16 %v204
  %v1015 = vunpack.c.h.b16 %v204
  %v1016 = vunpack.c.l.b16 %v205
  %v1017 = vunpack.c.h.b16 %v205
  %v1018 = vunpack.c.l.b16 %v206
  %v1019 = vunpack.c.h.b16 %v206
  %v1020 = vunpack.c.l.b16 %v207
  %v1021 = vunpack.c.h.b16 %v207
  %v1022 = vunpack.c.l.b16 %v208
  %v1023 = vunpack.c.h.b16 %v208
  %v1024 = vunpack.c.l.b16 %v209
  %v1025 = vunpack.c.h.b16 %v209
  %v1026 = vunpack.c.l.b16 %v210
  %v1027 = vunpack.c.h.b16 %v210
  %v1028 = vunpack.c.l.b16 %v211
  %v1029 = vunpack.c.h.b16 %v211
  %v1030 = vunpack.c.l.b16 %v212
  %v1031 = vunpack.c.h.b16 %v212
  %v1032 = vunpack.c.l.b16 %v213
  %v1033 = vunpack.c.h.b16 %v213
  %v1034 = vunpack.c.l.b16 %v214
  %v1035 = vunpack.c.h.b16 %v214
  %v1036 = vunpack.c.l.b16 %v215
  %v1037 = vunpack.c.h.b16 %v215
  %v1038 = vunpack.c.l.b16 %v216
  %v1039 = vunpack.c.h.b16 %v216
  %v1040 = vunpack.c.l.b16 %v217
  %v1041 = vunpack.c.h.b16 %v217
  %v1042 = vunpack.c.l.b16 %v218
  %v1043 = vunpack.c.h.b16 %v218
  %v1044 = vunpack.c.l.b16 %v219
  %v1045 = vunpack.c.h.b16 %v219
  %v1046 = vunpack.c.l.b16 %v220
  %v1047 = vunpack.c.h.b16 %v220
  %v1048 = vunpack.c.l.b16 %v221
  %v1049 = vunpack.c.h.b16 %v221
  %v1050 = vunpack.c.l.b16 %v222
  %v1051 = vunpack.c.h.b16 %v222
  %v1052 = vunpack.c.l.b16 %v223
  %v1053 = vunpack.c.h.b16 %v223
  %v1054 = vunpack.c.l.b16 %v224
  %v1055 = vunpack.c.h.b16 %v224
  %v1056 = vunpack.c.l.b16 %v225
  %v1057 = vunpack.c.h.b16 %v225
  %v1058 = vunpack.c.l.b16 %v226
  %v1059 = vunpack.c.h.b16 %v226
  %v1060 = vunpack.c.l.b16 %v227
  %v1061 = vunpack.c.h.b16 %v227
  %v1062 = vunpack.c.l.b16 %v228
  %v1063 = vunpack.c.h.b16 %v228
  %v1064 = vunpack.c.l.b16 %v229
  %v1065 = vunpack.c.h.b16 %v229
  %v1066 = vunpack.c.l.b16 %v230
  %v1067 = vunpack.c.h.b16 %v230
  %v1068 = vunpack.c.l.b16 %v231
  %v1069 = vunpack.c.h.b16 %v231
  %v1070 = vunpack.c.l.b16 %v232
  %v1071 = vunpack.c.h.b16 %v232
  %v1072 = vunpack.c.l.b16 %v233
  %v1073 = vunpack.c.h.b16 %v233
  %v1074 = vunpack.c.l.b16 %v234
  %v1075 = vunpack.c.h.b16 %v234
  %v1076 = vunpack.c.l.b16 %v235
  %v1077 = vunpack.c.h.b16 %v235
  %v1078 = vunpack.c.l.b16 %v236
  %v1079 = vunpack.c.h.b16 %v236
  %v1080 = vunpack.c.l.b16 %v237
  %v1081 = vunpack.c.h.b16 %v237
  %v1082 = vunpack.c.l.b16 %v238
  %v1083 = vunpack.c.h.b16 %v238
  %v1084 = vunpack.c.l.b16 %v239
  %v1085 = vunpack.c.h.b16 %v239
  %v1086 = vunpack.c.l.b16 %v240
  %v1087 = vunpack.c.h.b16 %v240
  %v1088 = vunpack.c.l.b16 %v241
  %v1089 = vunpack.c.h.b16 %v241
  %v1090 = vunpack.c.l.b16 %v242
  %v1091 = vunpack.c.h.b16 %v242
  %v1092 = vunpack.c.l.b16 %v243
  %v1093 = vunpack.c.h.b16 %v243
  %v1094 = vunpack.c.l.b16 %v244
  %v1095 = vunpack.c.h.b16 %v244
  %v1096 = vunpack.c.l.b16 %v245
  %v1097 = vunpack.c.h.b16 %v245
  %v1098 = vunpack.c.l.b16 %v246
  %v1099 = vunpack.c.h.b16 %v246
  %v1100 = vunpack.c.l.b16 %v247
  %v1101 = vunpack.c.h.b16 %v247
  %v1102 = vunpack.c.l.b16 %v248
  %v1103 = vunpack.c.h.b16 %v248
  %v1104 = vunpack.c.l.b16 %v249
  %v1105 = vunpack.c.h.b16 %v249
  %v1106 = vunpack.c.l.b16 %v250
  %v1107 = vunpack.c.h.b16 %v250
  %v1108 = vunpack.c.l.b16 %v251
  %v1109 = vunpack.c.h.b16 %v251
  %v1110 = vunpack.c.l.b16 %v252
  %v1111 = vunpack.c.h.b16 %v252
  %v1112 = vunpack.c.l.b16 %v253
  %v1113 = vunpack.c.h.b16 %v253
  %v1114 = vunpack.c.l.b16 %v254
  %v1115 = vunpack.c.h.b16 %v254
  %v1116 = vunpack.c.l.b16 %v255
  %v1117 = vunpack.c.h.b16 %v255
  %v1118 = vunpack.c.l.b16 %v256
  %v1119 = vunpack.c.h.b16 %v256
  %v1120 = vunpack.c.l.b16 %v257
  %v1121 = vunpack.c.h.b16 %v257
  %v1122 = vunpack.c.l.b16 %v258
  %v1123 = vunpack.c.h.b16 %v258
  %v1124 = vunpack.c.l.b16 %v259
  %v1125 = vunpack.c.h.b16 %v259
  %v1126 = vunpack.c.l.b16 %v260
  %v1127 = vunpack.c.h.b16 %v260
  %v1128 = vunpack.c.l.b16 %v261
  %v1129 = vunpack.c.h.b16 %v261
  %v1130 = vunpack.c.l.b16 %v262
  %v1131 = vunpack.c.h.b16 %v262
  %v1132 = vunpack.c.l.b16 %v263
  %v1133 = vunpack.c.h.b16 %v263
  %v1134 = vunpack.c.l.b16 %v264
  %v1135 = vunpack.c.h.b16 %v264
  %v1136 = vunpack.c.l.b16 %v265
  %v1137 = vunpack.c.h.b16 %v265
  %v1138 = vunpack.c.l.b16 %v266
  %v1139 = vunpack.c.h.b16 %v266
  %v1140 = vunpack.c.l.b16 %v267
  %v1141 = vunpack.c.h.b16 %v267
  %v1142 = vunpack.c.l.b16 %v268
  %v1143 = vunpack.c.h.b16 %v268
  %v1144 = vunpack.c.l.b16 %v269
  %v1145 = vunpack.c.h.b16 %v269
  %v1146 = vunpack.c.l.b16 %v270
  %v1147 = vunpack.c.h.b16 %v270
  %v1148 = vunpack.c.l.b16 %v271
  %v1149 = vunpack.c.h.b16 %v271
  %v1150 = vunpack.c.l.b16 %v272
  %v1151 = vunpack.c.h.b16 %v272
  %v1152 = vunpack.c.l.b16 %v273
  %v1153 = vunpack.c.h.b16 %v273
  %v1154 = vunpack.c.l.b16 %v274
  %v1155 = vunpack.c.h.b16 %v274
  %v1156 = vunpack.c.l.b16 %v275
  %v1157 = vunpack.c.h.b16 %v275
  %v1158 = vunpack.c.l.b16 %v276
  %v1159 = vunpack.c.h.b16 %v276
  %v1160 = vunpack.c.l.b16 %v277
  %v1161 = vunpack.c.h.b16 %v277
  %v1162 = vunpack.c.l.b16 %v278
  %v1163 = vunpack.c.h.b16 %v278
  %v1164 = vunpack.c.l.b16 %v279
  %v1165 = vunpack.c.h.b16 %v279
  %v1166 = vunpack.c.l.b16 %v280
  %v1167 = vunpack.c.h.b16 %v280
  %v1168 = vunpack.c.l.b16 %v281
  %v1169 = vunpack.c.h.b16 %v281
  %v1170 = vunpack.c.l.b16 %v282
  %v1171 = vunpack.c.h.b16 %v282
  %v1172 = vunpack.c.l.b16 %v283
  %v1173 = vunpack.c.h.b16 %v283
  %v1174 = vunpack.c.l.b16 %v284
  %v1175 = vunpack.c.h.b16 %v284
  %v1176 = vunpack.c.l.b16 %v285
  %v1177 = vunpack.c.h.b16 %v285
  %v1178 = vunpack.c.l.b16 %v286
  %v1179 = vunpack.c.h.b16 %v286
  %v1180 = vunpack.c.l.b16 %v287
  %v1181 = vunpack.c.h.b16 %v287
  %v1182 = vunpack.c.l.b16 %v288
  %v1183 = vunpack.c.h.b16 %v288
  %v1184 = vunpack.c.l.b16 %v289
  %v1185 = vunpack.c.h.b16 %v289
  %v1186 = vunpack.c.l.b16 %v290
  %v1187 = vunpack.c.h.b16 %v290
  %v1188 = vunpack.c.l.b16 %v291
  %v1189 = vunpack.c.h.b16 %v291
  %v1190 = vunpack.c.l.b16 %v292
  %v1191 = vunpack.c.h.b16 %v292
  %v1192 = vunpack.c.l.b16 %v293
  %v1193 = vunpack.c.h.b16 %v293
  %v1194 = vunpack.c.l.b16 %v294
  %v1195 = vunpack.c.h.b16 %v294
  %v1196 = vunpack.c.l.b16 %v295
  %v1197 = vunpack.c.h.b16 %v295
  %v1198 = vunpack.c.l.b16 %v296
  %v1199 = vunpack.c.h.b16 %v296
  %v1200 = vunpack.c.l.b16 %v297
  %v1201 = vunpack.c.h.b16 %v297
  %v1202 = vunpack.c.l.b16 %v298
  %v1203 = vunpack.c.h.b16 %v298
  %v1204 = vunpack.c.l.b16 %v299
  %v1205 = vunpack.c.h.b16 %v299
  %v1206 = vunpack.c.l.b16 %v300
  %v1207 = vunpack.c.h.b16 %v300
  %v1208 = vunpack.c.l.b16 %v301
  %v1209 = vunpack.c.h.b16 %v301
  %v1210 = vunpack.c.l.b16 %v302
  %v1211 = vunpack.c.h.b16 %v302
  %v1212 = vunpack.c.l.b16 %v303
  %v1213 = vunpack.c.h.b16 %v303
  %v1214 = vunpack.c.l.b16 %v304
  %v1215 = vunpack.c.h.b16 %v304
  %v1216 = vunpack.c.l.b16 %v305
  %v1217 = vunpack.c.h.b16 %v305
  %v1218 = vunpack.c.l.b16 %v306
  %v1219 = vunpack.c.h.b16 %v306
  %v1220 = vunpack.c.l.b16 %v307
  %v1221 = vunpack.c.h.b16 %v307
  %v1222 = vunpack.c.l.b16 %v308
  %v1223 = vunpack.c.h.b16 %v308
  %v1224 = vunpack.c.l.b16 %v309
  %v1225 = vunpack.c.h.b16 %v309
  %v1226 = vunpack.c.l.b16 %v310
  %v1227 = vunpack.c.h.b16 %v310
  %v1228 = vunpack.c.l.b16 %v311
  %v1229 = vunpack.c.h.b16 %v311
  %v1230 = vunpack.c.l.b16 %v312
  %v1231 = vunpack.c.h.b16 %v312
  %v1232 = vunpack.c.l.b16 %v313
  %v1233 = vunpack.c.h.b16 %v313
  %v1234 = vunpack.c.l.b16 %v314
  %v1235 = vunpack.c.h.b16 %v314
  %v1236 = vunpack.c.l.b16 %v315
  %v1237 = vunpack.c.h.b16 %v315
  %v1238 = vunpack.c.l.b16 %v316
  %v1239 = vunpack.c.h.b16 %v316
  %v1240 = vunpack.c.l.b16 %v317
  %v1241 = vunpack.c.h.b16 %v317
  %v1242 = vunpack.c.l.b16 %v318
  %v1243 = vunpack.c.h.b16 %v318
  %v1244 = vunpack.c.l.b16 %v319
  %v1245 = vunpack.c.h.b16 %v319
  %v1246 = vunpack.c.l.b16 %v320
  %v1247 = vunpack.c.h.b16 %v320
  %v1248 = vunpack.c.l.b16 %v321
  %v1249 = vunpack.c.h.b16 %v321
  %v1250 = vpack.c.b16 %v740, %v738
  %v1251 = vpack.c.b16 %v741, %v739
  %v1252 = vpack.c.b16 %v744, %v742
  %v1253 = vpack.c.b16 %v745, %v743
  %v1254 = vpack.c.b16 %v748, %v746
  %v1255 = vpack.c.b16 %v749, %v747
  %v1256 = vpack.c.b16 %v752, %v750
  %v1257 = vpack.c.b16 %v753, %v751
  %v1258 = vpack.c.b16 %v756, %v754
  %v1259 = vpack.c.b16 %v757, %v755
  %v1260 = vpack.c.b16 %v760, %v758
  %v1261 = vpack.c.b16 %v761, %v759
  %v1262 = vpack.c.b16 %v764, %v762
  %v1263 = vpack.c.b16 %v765, %v763
  %v1264 = vpack.c.b16 %v768, %v766
  %v1265 = vpack.c.b16 %v769, %v767
  %v1266 = vpack.c.b16 %v772, %v770
  %v1267 = vpack.c.b16 %v773, %v771
  %v1268 = vpack.c.b16 %v776, %v774
  %v1269 = vpack.c.b16 %v777, %v775
  %v1270 = vpack.c.b16 %v780, %v778
  %v1271 = vpack.c.b16 %v781, %v779
  %v1272 = vpack.c.b16 %v784, %v782
  %v1273 = vpack.c.b16 %v785, %v783
  %v1274 = vpack.c.b16 %v788, %v786
  %v1275 = vpack.c.b16 %v789, %v787
  %v1276 = vpack.c.b16 %v792, %v790
  %v1277 = vpack.c.b16 %v793, %v791
  %v1278 = vpack.c.b16 %v796, %v794
  %v1279 = vpack.c.b16 %v797, %v795
  %v1280 = vpack.c.b16 %v800, %v798
  %v1281 = vpack.c.b16 %v801, %v799
  %v1282 = vpack.c.b16 %v804, %v802
  %v1283 = vpack.c.b16 %v805, %v803
  %v1284 = vpack.c.b16 %v808, %v806
  %v1285 = vpack.c.b16 %v809, %v807
  %v1286 = vpack.c.b16 %v812, %v810
  %v1287 = vpack.c.b16 %v813, %v811
  %v1288 = vpack.c.b16 %v816, %v814
  %v1289 = vpack.c.b16 %v817, %v815
  %v1290 = vpack.c.b16 %v820, %v818
  %v1291 = vpack.c.b16 %v821, %v819
  %v1292 = vpack.c.b16 %v824, %v822
  %v1293 = vpack.c.b16 %v825, %v823
  %v1294 = vpack.c.b16 %v828, %v826
  %v1295 = vpack.c.b16 %v829, %v827
  %v1296 = vpack.c.b16 %v832, %v830
  %v1297 = vpack.c.b16 %v833, %v831
  %v1298 = vpack.c.b16 %v836, %v834
  %v1299 = vpack.c.b16 %v837, %v835
  %v1300 = vpack.c.b16 %v840, %v838
  %v1301 = vpack.c.b16 %v841, %v839
  %v1302 = vpack.c.b16 %v844, %v842
  %v1303 = vpack.c.b16 %v845, %v843
  %v1304 = vpack.c.b16 %v848, %v846
  %v1305 = vpack.c.b16 %v849, %v847
  %v1306 = vpack.c.b16 %v852, %v850
  %v1307 = vpack.c.b16 %v853, %v851
  %v1308 = vpack.c.b16 %v856, %v854
  %v1309 = vpack.c.b16 %v857, %v855
  %v1310 = vpack.c.b16 %v860, %v858
  %v1311 = vpack.c.b16 %v861, %v859
  %v1312 = vpack.c.b16 %v864, %v862
  %v1313 = vpack.c.b16 %v865, %v863
  %v1314 = vpack.c.b16 %v868, %v866
  %v1315 = vpack.c.b16 %v869, %v867
  %v1316 = vpack.c.b16 %v872, %v870
  %v1317 = vpack.c.b16 %v873, %v871
  %v1318 = vpack.c.b16 %v876, %v874
  %v1319 = vpack.c.b16 %v877, %v875
  %v1320 = vpack.c.b16 %v880, %v878
  %v1321 = vpack.c.b16 %v881, %v879
  %v1322 = vpack.c.b16 %v884, %v882
  %v1323 = vpack.c.b16 %v885, %v883
  %v1324 = vpack.c.b16 %v888, %v886
  %v1325 = vpack.c.b16 %v889, %v887
  %v1326 = vpack.c.b16 %v892, %v890
  %v1327 = vpack.c.b16 %v893, %v891
  %v1328 = vpack.c.b16 %v896, %v894
  %v1329 = vpack.c.b16 %v897, %v895
  %v1330 = vpack.c.b16 %v900, %v898
  %v1331 = vpack.c.b16 %v901, %v899
  %v1332 = vpack.c.b16 %v904, %v902
  %v1333 = vpack.c.b16 %v905, %v903
  %v1334 = vpack.c.b16 %v908, %v906
  %v1335 = vpack.c.b16 %v909, %v907
  %v1336 = vpack.c.b16 %v912, %v910
  %v1337 = vpack.c.b16 %v913, %v911
  %v1338 = vpack.c.b16 %v916, %v914
  %v1339 = vpack.c.b16 %v917, %v915
  %v1340 = vpack.c.b16 %v920, %v918
  %v1341 = vpack.c.b16 %v921, %v919
  %v1342 = vpack.c.b16 %v924, %v922
  %v1343 = vpack.c.b16 %v925, %v923
  %v1344 = vpack.c.b16 %v928, %v926
  %v1345 = vpack.c.b16 %v929, %v927
  %v1346 = vpack.c.b16 %v932, %v930
  %v1347 = vpack.c.b16 %v933, %v931
  %v1348 = vpack.c.b16 %v936, %v934
  %v1349 = vpack.c.b16 %v937, %v935
  %v1350 = vpack.c.b16 %v940, %v938
  %v1351 = vpack.c.b16 %v941, %v939
  %v1352 = vpack.c.b16 %v944, %v942
  %v1353 = vpack.c.b16 %v945, %v943
  %v1354 = vpack.c.b16 %v948, %v946
  %v1355 = vpack.c.b16 %v949, %v947
  %v1356 = vpack.c.b16 %v952, %v950
  %v1357 = vpack.c.b16 %v953, %v951
  %v1358 = vpack.c.b16 %v956, %v954
  %v1359 = vpack.c.b16 %v957, %v955
  %v1360 = vpack.c.b16 %v960, %v958
  %v1361 = vpack.c.b16 %v961, %v959
  %v1362 = vpack.c.b16 %v964, %v962
  %v1363 = vpack.c.b16 %v965, %v963
  %v1364 = vpack.c.b16 %v968, %v966
  %v1365 = vpack.c.b16 %v969, %v967
  %v1366 = vpack.c.b16 %v972, %v970
  %v1367 = vpack.c.b16 %v973, %v971
  %v1368 = vpack.c.b16 %v976, %v974
  %v1369 = vpack.c.b16 %v977, %v975
  %v1370 = vpack.c.b16 %v980, %v978
  %v1371 = vpack.c.b16 %v981, %v979
  %v1372 = vpack.c.b16 %v984, %v982
  %v1373 = vpack.c.b16 %v985, %v983
  %v1374 = vpack.c.b16 %v988, %v986
  %v1375 = vpack.c.b16 %v989, %v987
  %v1376 = vpack.c.b16 %v992, %v990
  %v1377 = vpack.c.b16 %v993, %v991
  %v1378 = vpack.c.b16 %v996, %v994
  %v1379 = vpack.c.b16 %v997, %v995
  %v1380 = vpack.c.b16 %v1000, %v998
  %v1381 = vpack.c.b16 %v1001, %v999
  %v1382 = vpack.c.b16 %v1004, %v1002
  %v1383 = vpack.c.b16 %v1005, %v1003
  %v1384 = vpack.c.b16 %v1008, %v1006
  %v1385 = vpack.c.b16 %v1009, %v1007
  %v1386 = vpack.c.b16 %v1012, %v1010
  %v1387 = vpack.c.b16 %v1013, %v1011
  %v1388 = vpack.c.b16 %v1016, %v1014
  %v1389 = vpack.c.b16 %v1017, %v1015
  %v1390 = vpack.c.b16 %v1020, %v1018
  %v1391 = vpack.c.b16 %v1021, %v1019
  %v1392 = vpack.c.b16 %v1024, %v1022
  %v1393 = vpack.c.b16 %v1025, %v1023
  %v1394 = vpack.c.b16 %v1028, %v1026
  %v1395 = vpack.c.b16 %v1029, %v1027
  %v1396 = vpack.c.b16 %v1032, %v1030
  %v1397 = vpack.c.b16 %v1033, %v1031
  %v1398 = vpack.c.b16 %v1036, %v1034
  %v1399 = vpack.c.b16 %v1037, %v1035
  %v1400 = vpack.c.b16 %v1040, %v1038
  %v1401 = vpack.c.b16 %v1041, %v1039
  %v1402 = vpack.c.b16 %v1044, %v1042
  %v1403 = vpack.c.b16 %v1045, %v1043
  %v1404 = vpack.c.b16 %v1048, %v1046
  %v1405 = vpack.c.b16 %v1049, %v1047
  %v1406 = vpack.c.b16 %v1052, %v1050
  %v1407 = vpack.c.b16 %v1053, %v1051
  %v1408 = vpack.c.b16 %v1056, %v1054
  %v1409 = vpack.c.b16 %v1057, %v1055
  %v1410 = vpack.c.b16 %v1060, %v1058
  %v1411 = vpack.c.b16 %v1061, %v1059
  %v1412 = vpack.c.b16 %v1064, %v1062
  %v1413 = vpack.c.b16 %v1065, %v1063
  %v1414 = vpack.c.b16 %v1068, %v1066
  %v1415 = vpack.c.b16 %v1069, %v1067
  %v1416 = vpack.c.b16 %v1072, %v1070
  %v1417 = vpack.c.b16 %v1073, %v1071
  %v1418 = vpack.c.b16 %v1076, %v1074
  %v1419 = vpack.c.b16 %v1077, %v1075
  %v1420 = vpack.c.b16 %v1080, %v1078
  %v1421 = vpack.c.b16 %v1081, %v1079
  %v1422 = vpack.c.b16 %v1084, %v1082
  %v1423 = vpack.c.b16 %v1085, %v1083
  %v1424 = vpack.c.b16 %v1088, %v1086
  %v1425 = vpack.c.b16 %v1089, %v1087
  %v1426 = vpack.c.b16 %v1092, %v1090
  %v1427 = vpack.c.b16 %v1093, %v1091
  %v1428 = vpack.c.b16 %v1096, %v1094
  %v1429 = vpack.c.b16 %v1097, %v1095
  %v1430 = vpack.c.b16 %v1100, %v1098
  %v1431 = vpack.c.b16 %v1101, %v1099
  %v1432 = vpack.c.b16 %v1104, %v1102
  %v1433 = vpack.c.b16 %v1105, %v1103
  %v1434 = vpack.c.b16 %v1108, %v1106
  %v1435 = vpack.c.b16 %v1109, %v1107
  %v1436 = vpack.c.b16 %v1112, %v1110
  %v1437 = vpack.c.b16 %v1113, %v1111
  %v1438 = vpack.c.b16 %v1116, %v1114
  %v1439 = vpack.c.b16 %v1117, %v1115
  %v1440 = vpack.c.b16 %v1120, %v1118
  %v1441 = vpack.c.b16 %v1121, %v1119
  %v1442 = vpack.c.b16 %v1124, %v1122
  %v1443 = vpack.c.b16 %v1125, %v1123
  %v1444 = vpack.c.b16 %v1128, %v1126
  %v1445 = vpack.c.b16 %v1129, %v1127
  %v1446 = vpack.c.b16 %v1132, %v1130
  %v1447 = vpack.c.b16 %v1133, %v1131
  %v1448 = vpack.c.b16 %v1136, %v1134
  %v1449 = vpack.c.b16 %v1137, %v1135
  %v1450 = vpack.c.b16 %v1140, %v1138
  %v1451 = vpack.c.b16 %v1141, %v1139
  %v1452 = vpack.c.b16 %v1144, %v1142
  %v1453 = vpack.c.b16 %v1145, %v1143
  %v1454 = vpack.c.b16 %v1148, %v1146
  %v1455 = vpack.c.b16 %v1149, %v1147
  %v1456 = vpack.c.b16 %v1152, %v1150
  %v1457 = vpack.c.b16 %v1153, %v1151
  %v1458 = vpack.c.b16 %v1156, %v1154
  %v1459 = vpack.c.b16 %v1157, %v1155
  %v1460 = vpack.c.b16 %v1160, %v1158
  %v1461 = vpack.c.b16 %v1161, %v1159
  %v1462 = vpack.c.b16 %v1164, %v1162
  %v1463 = vpack.c.b16 %v1165, %v1163
  %v1464 = vpack.c.b16 %v1168, %v1166
  %v1465 = vpack.c.b16 %v1169, %v1167
  %v1466 = vpack.c.b16 %v1172, %v1170
  %v1467 = vpack.c.b16 %v1173, %v1171
  %v1468 = vpack.c.b16 %v1176, %v1174
  %v1469 = vpack.c.b16 %v1177, %v1175
  %v1470 = vpack.c.b16 %v1180, %v1178
  %v1471 = vpack.c.b16 %v1181, %v1179
  %v1472 = vpack.c.b16 %v1184, %v1182
  %v1473 = vpack.c.b16 %v1185, %v1183
  %v1474 = vpack.c.b16 %v1188, %v1186
  %v1475 = vpack.c.b16 %v1189, %v1187
  %v1476 = vpack.c.b16 %v1192, %v1190
  %v1477 = vpack.c.b16 %v1193, %v1191
  %v1478 = vpack.c.b16 %v1196, %v1194
  %v1479 = vpack.c.b16 %v1197, %v1195
  %v1480 = vpack.c.b16 %v1200, %v1198
  %v1481 = vpack.c.b16 %v1201, %v1199
  %v1482 = vpack.c.b16 %v1204, %v1202
  %v1483 = vpack.c.b16 %v1205, %v1203
  %v1484 = vpack.c.b16 %v1208, %v1206
  %v1485 = vpack.c.b16 %v1209, %v1207
  %v1486 = vpack.c.b16 %v1212, %v1210
  %v1487 = vpack.c.b16 %v1213, %v1211
  %v1488 = vpack.c.b16 %v1216, %v1214
  %v1489 = vpack.c.b16 %v1217, %v1215
  %v1490 = vpack.c.b16 %v1220, %v1218
  %v1491 = vpack.c.b16 %v1221, %v1219
  %v1492 = vpack.c.b16 %v1224, %v1222
  %v1493 = vpack.c.b16 %v1225, %v1223
  %v1494 = vpack.c.b16 %v1228, %v1226
  %v1495 = vpack.c.b16 %v1229, %v1227
  %v1496 = vpack.c.b16 %v1232, %v1230
  %v1497 = vpack.c.b16 %v1233, %v1231
  %v1498 = vpack.c.b16 %v1236, %v1234
  %v1499 = vpack.c.b16 %v1237, %v1235
  %v1500 = vpack.c.b16 %v1240, %v1238
  %v1501 = vpack.c.b16 %v1241, %v1239
  %v1502 = vpack.c.b16 %v1244, %v1242
  %v1503 = vpack.c.b16 %v1245, %v1243
  %v1504 = vpack.c.b16 %v1248, %v1246
  %v1505 = vpack.c.b16 %v1249, %v1247
  %1762 = vmatprep.subr.bf16.mxu0 %v1251
  %1763 = vmatpush1.bf16.msra.mxu0 %v1250
  %1764 = vmatprep.subr.bf16.mxu0 %v1253
  %1765 = vmatpush1.bf16.msra.mxu0 %v1252
  %1766 = vmatprep.subr.bf16.mxu0 %v1255
  %1767 = vmatpush1.bf16.msra.mxu0 %v1254
  %1768 = vmatprep.subr.bf16.mxu0 %v1257
  %1769 = vmatpush1.bf16.msra.mxu0 %v1256
  %1770 = vmatprep.subr.bf16.mxu0 %v1259
  %1771 = vmatpush1.bf16.msra.mxu0 %v1258
  %1772 = vmatprep.subr.bf16.mxu0 %v1261
  %1773 = vmatpush1.bf16.msra.mxu0 %v1260
  %1774 = vmatprep.subr.bf16.mxu0 %v1263
  %1775 = vmatpush1.bf16.msra.mxu0 %v1262
  %1776 = vmatprep.subr.bf16.mxu0 %v1265
  %1777 = vmatpush1.bf16.msra.mxu0 %v1264
  %1778 = vmatprep.subr.bf16.mxu0 %v1267
  %1779 = vmatpush1.bf16.msra.mxu0 %v1266
  %1780 = vmatprep.subr.bf16.mxu0 %v1269
  %1781 = vmatpush1.bf16.msra.mxu0 %v1268
  %1782 = vmatprep.subr.bf16.mxu0 %v1271
  %1783 = vmatpush1.bf16.msra.mxu0 %v1270
  %1784 = vmatprep.subr.bf16.mxu0 %v1273
  %1785 = vmatpush1.bf16.msra.mxu0 %v1272
  %1786 = vmatprep.subr.bf16.mxu0 %v1275
  %1787 = vmatpush1.bf16.msra.mxu0 %v1274
  %1788 = vmatprep.subr.bf16.mxu0 %v1277
  %1789 = vmatpush1.bf16.msra.mxu0 %v1276
  %1790 = vmatprep.subr.bf16.mxu0 %v1279
  %1791 = vmatpush1.bf16.msra.mxu0 %v1278
  %1792 = vmatprep.subr.bf16.mxu0 %v1281
  %1793 = vmatpush1.bf16.msra.mxu0 %v1280
  %1794 = vmatprep.mubr.bf16.mxu0 %v419
  %1795 = vmatmul.mubr.bf16.gmra.mrb[0].mxu0 %v418
  %v1796 = vpop.f32.mrb[0].mxu0
  %v1797 = vadd.f32 0.0, %v1796
  %v1798 = vpop.f32.mrb[0].mxu0
  %v1799 = vadd.f32 0.0, %v1798
  %v1800 = vpop.f32.mrb[0].mxu0
  %v1801 = vadd.f32 0.0, %v1800
  %v1802 = vpop.f32.mrb[0].mxu0
  %v1803 = vadd.f32 0.0, %v1802
  %1804 = vmatprep.mubr.bf16.mxu0 %v435
  %1805 = vmatmul.mubr.bf16.gmra.mrb[0].mxu0 %v434
  %v1806 = vpop.f32.mrb[0].mxu0
  %v1807 = vadd.f32 0.0, %v1806
  %v1808 = vpop.f32.mrb[0].mxu0
  %v1809 = vadd.f32 0.0, %v1808
  %v1810 = vpop.f32.mrb[0].mxu0
  %v1811 = vadd.f32 0.0, %v1810
  %v1812 = vpop.f32.mrb[0].mxu0
  %v1813 = vadd.f32 0.0, %v1812
  %1814 = vdwg.mxu0
  %1815 = vmatprep.subr.bf16.mxu0 %v1283
  %1816 = vmatpush1.bf16.msra.mxu0 %v1282
  %1817 = vmatprep.subr.bf16.mxu0 %v1285
  %1818 = vmatpush1.bf16.msra.mxu0 %v1284
  %1819 = vmatprep.subr.bf16.mxu0 %v1287
  %1820 = vmatpush1.bf16.msra.mxu0 %v1286
  %1821 = vmatprep.subr.bf16.mxu0 %v1289
  %1822 = vmatpush1.bf16.msra.mxu0 %v1288
  %1823 = vmatprep.subr.bf16.mxu0 %v1291
  %1824 = vmatpush1.bf16.msra.mxu0 %v1290
  %1825 = vmatprep.subr.bf16.mxu0 %v1293
  %1826 = vmatpush1.bf16.msra.mxu0 %v1292
  %1827 = vmatprep.subr.bf16.mxu0 %v1295
  %1828 = vmatpush1.bf16.msra.mxu0 %v1294
  %1829 = vmatprep.subr.bf16.mxu0 %v1297
  %1830 = vmatpush1.bf16.msra.mxu0 %v1296
  %1831 = vmatprep.subr.bf16.mxu0 %v1299
  %1832 = vmatpush1.bf16.msra.mxu0 %v1298
  %1833 = vmatprep.subr.bf16.mxu0 %v1301
  %1834 = vmatpush1.bf16.msra.mxu0 %v1300
  %1835 = vmatprep.subr.bf16.mxu0 %v1303
  %1836 = vmatpush1.bf16.msra.mxu0 %v1302
  %1837 = vmatprep.subr.bf16.mxu0 %v1305
  %1838 = vmatpush1.bf16.msra.mxu0 %v1304
  %1839 = vmatprep.subr.bf16.mxu0 %v1307
  %1840 = vmatpush1.bf16.msra.mxu0 %v1306
  %1841 = vmatprep.subr.bf16.mxu0 %v1309
  %1842 = vmatpush1.bf16.msra.mxu0 %v1308
  %1843 = vmatprep.subr.bf16.mxu0 %v1311
  %1844 = vmatpush1.bf16.msra.mxu0 %v1310
  %1845 = vmatprep.subr.bf16.mxu0 %v1313
  %1846 = vmatpush1.bf16.msra.mxu0 %v1312
  %1847 = vmatprep.mubr.bf16.mxu0 %v421
  %1848 = vmatmul.mubr.bf16.gmra.mrb[0].mxu0 %v420
  %v1849 = vpop.f32.mrb[0].mxu0
  %v1850 = vadd.f32 %v1797, %v1849
  %v1851 = vpop.f32.mrb[0].mxu0
  %v1852 = vadd.f32 %v1799, %v1851
  %v1853 = vpop.f32.mrb[0].mxu0
  %v1854 = vadd.f32 %v1801, %v1853
  %v1855 = vpop.f32.mrb[0].mxu0
  %v1856 = vadd.f32 %v1803, %v1855
  %1857 = vmatprep.mubr.bf16.mxu0 %v437
  %1858 = vmatmul.mubr.bf16.gmra.mrb[0].mxu0 %v436
  %v1859 = vpop.f32.mrb[0].mxu0
  %v1860 = vadd.f32 %v1807, %v1859
  %v1861 = vpop.f32.mrb[0].mxu0
  %v1862 = vadd.f32 %v1809, %v1861
  %v1863 = vpop.f32.mrb[0].mxu0
  %v1864 = vadd.f32 %v1811, %v1863
  %v1865 = vpop.f32.mrb[0].mxu0
  %v1866 = vadd.f32 %v1813, %v1865
  %1867 = vdwg.mxu0
  %1868 = vmatprep.subr.bf16.mxu0 %v1315
  %1869 = vmatpush1.bf16.msra.mxu0 %v1314
  %1870 = vmatprep.subr.bf16.mxu0 %v1317
  %1871 = vmatpush1.bf16.msra.mxu0 %v1316
  %1872 = vmatprep.subr.bf16.mxu0 %v1319
  %1873 = vmatpush1.bf16.msra.mxu0 %v1318
  %1874 = vmatprep.subr.bf16.mxu0 %v1321
  %1875 = vmatpush1.bf16.msra.mxu0 %v1320
  %1876 = vmatprep.subr.bf16.mxu0 %v1323
  %1877 = vmatpush1.bf16.msra.mxu0 %v1322
  %1878 = vmatprep.subr.bf16.mxu0 %v1325
  %1879 = vmatpush1.bf16.msra.mxu0 %v1324
  %1880 = vmatprep.subr.bf16.mxu0 %v1327
  %1881 = vmatpush1.bf16.msra.mxu0 %v1326
  %1882 = vmatprep.subr.bf16.mxu0 %v1329
  %1883 = vmatpush1.bf16.msra.mxu0 %v1328
  %1884 = vmatprep.subr.bf16.mxu0 %v1331
  %1885 = vmatpush1.bf16.msra.mxu0 %v1330
  %1886 = vmatprep.subr.bf16.mxu0 %v1333
  %1887 = vmatpush1.bf16.msra.mxu0 %v1332
  %1888 = vmatprep.subr.bf16.mxu0 %v1335
  %1889 = vmatpush1.bf16.msra.mxu0 %v1334
  %1890 = vmatprep.subr.bf16.mxu0 %v1337
  %1891 = vmatpush1.bf16.msra.mxu0 %v1336
  %1892 = vmatprep.subr.bf16.mxu0 %v1339
  %1893 = vmatpush1.bf16.msra.mxu0 %v1338
  %1894 = vmatprep.subr.bf16.mxu0 %v1341
  %1895 = vmatpush1.bf16.msra.mxu0 %v1340
  %1896 = vmatprep.subr.bf16.mxu0 %v1343
  %1897 = vmatpush1.bf16.msra.mxu0 %v1342
  %1898 = vmatprep.subr.bf16.mxu0 %v1345
  %1899 = vmatpush1.bf16.msra.mxu0 %v1344
  %1900 = vmatprep.mubr.bf16.mxu0 %v423
  %1901 = vmatmul.mubr.bf16.gmra.mrb[0].mxu0 %v422
  %v1902 = vpop.f32.mrb[0].mxu0
  %v1903 = vadd.f32 %v1850, %v1902
  %v1904 = vpop.f32.mrb[0].mxu0
  %v1905 = vadd.f32 %v1852, %v1904
  %v1906 = vpop.f32.mrb[0].mxu0
  %v1907 = vadd.f32 %v1854, %v1906
  %v1908 = vpop.f32.mrb[0].mxu0
  %v1909 = vadd.f32 %v1856, %v1908
  %1910 = vmatprep.mubr.bf16.mxu0 %v439
  %1911 = vmatmul.mubr.bf16.gmra.mrb[0].mxu0 %v438
  %v1912 = vpop.f32.mrb[0].mxu0
  %v1913 = vadd.f32 %v1860, %v1912
  %v1914 = vpop.f32.mrb[0].mxu0
  %v1915 = vadd.f32 %v1862, %v1914
  %v1916 = vpop.f32.mrb[0].mxu0
  %v1917 = vadd.f32 %v1864, %v1916
  %v1918 = vpop.f32.mrb[0].mxu0
  %v1919 = vadd.f32 %v1866, %v1918
  %1920 = vdwg.mxu0
  %1921 = vmatprep.subr.bf16.mxu0 %v1347
  %1922 = vmatpush1.bf16.msra.mxu0 %v1346
  %1923 = vmatprep.subr.bf16.mxu0 %v1349
  %1924 = vmatpush1.bf16.msra.mxu0 %v1348
  %1925 = vmatprep.subr.bf16.mxu0 %v1351
  %1926 = vmatpush1.bf16.msra.mxu0 %v1350
  %1927 = vmatprep.subr.bf16.mxu0 %v1353
  %1928 = vmatpush1.bf16.msra.mxu0 %v1352
  %1929 = vmatprep.subr.bf16.mxu0 %v1355
  %1930 = vmatpush1.bf16.msra.mxu0 %v1354
  %1931 = vmatprep.subr.bf16.mxu0 %v1357
  %1932 = vmatpush1.bf16.msra.mxu0 %v1356
  %1933 = vmatprep.subr.bf16.mxu0 %v1359
  %1934 = vmatpush1.bf16.msra.mxu0 %v1358
  %1935 = vmatprep.subr.bf16.mxu0 %v1361
  %1936 = vmatpush1.bf16.msra.mxu0 %v1360
  %1937 = vmatprep.subr.bf16.mxu0 %v1363
  %1938 = vmatpush1.bf16.msra.mxu0 %v1362
  %1939 = vmatprep.subr.bf16.mxu0 %v1365
  %1940 = vmatpush1.bf16.msra.mxu0 %v1364
  %1941 = vmatprep.subr.bf16.mxu0 %v1367
  %1942 = vmatpush1.bf16.msra.mxu0 %v1366
  %1943 = vmatprep.subr.bf16.mxu0 %v1369
  %1944 = vmatpush1.bf16.msra.mxu0 %v1368
  %1945 = vmatprep.subr.bf16.mxu0 %v1371
  %1946 = vmatpush1.bf16.msra.mxu0 %v1370
  %1947 = vmatprep.subr.bf16.mxu0 %v1373
  %1948 = vmatpush1.bf16.msra.mxu0 %v1372
  %1949 = vmatprep.subr.bf16.mxu0 %v1375
  %1950 = vmatpush1.bf16.msra.mxu0 %v1374
  %1951 = vmatprep.subr.bf16.mxu0 %v1377
  %1952 = vmatpush1.bf16.msra.mxu0 %v1376
  %1953 = vmatprep.mubr.bf16.mxu0 %v425
  %1954 = vmatmul.mubr.bf16.gmra.mrb[0].mxu0 %v424
  %v1955 = vpop.f32.mrb[0].mxu0
  %v1956 = vadd.f32 %v1903, %v1955
  %v1957 = vpop.f32.mrb[0].mxu0
  %v1958 = vadd.f32 %v1905, %v1957
  %v1959 = vpop.f32.mrb[0].mxu0
  %v1960 = vadd.f32 %v1907, %v1959
  %v1961 = vpop.f32.mrb[0].mxu0
  %v1962 = vadd.f32 %v1909, %v1961
  %1963 = vmatprep.mubr.bf16.mxu0 %v441
  %1964 = vmatmul.mubr.bf16.gmra.mrb[0].mxu0 %v440
  %v1965 = vpop.f32.mrb[0].mxu0
  %v1966 = vadd.f32 %v1913, %v1965
  %v1967 = vpop.f32.mrb[0].mxu0
  %v1968 = vadd.f32 %v1915, %v1967
  %v1969 = vpop.f32.mrb[0].mxu0
  %v1970 = vadd.f32 %v1917, %v1969
  %v1971 = vpop.f32.mrb[0].mxu0
  %v1972 = vadd.f32 %v1919, %v1971
  %1973 = vdwg.mxu0
  %1974 = vmatprep.subr.bf16.mxu0 %v1379
  %1975 = vmatpush1.bf16.msra.mxu0 %v1378
  %1976 = vmatprep.subr.bf16.mxu0 %v1381
  %1977 = vmatpush1.bf16.msra.mxu0 %v1380
  %1978 = vmatprep.subr.bf16.mxu0 %v1383
  %1979 = vmatpush1.bf16.msra.mxu0 %v1382
  %1980 = vmatprep.subr.bf16.mxu0 %v1385
  %1981 = vmatpush1.bf16.msra.mxu0 %v1384
  %1982 = vmatprep.subr.bf16.mxu0 %v1387
  %1983 = vmatpush1.bf16.msra.mxu0 %v1386
  %1984 = vmatprep.subr.bf16.mxu0 %v1389
  %1985 = vmatpush1.bf16.msra.mxu0 %v1388
  %1986 = vmatprep.subr.bf16.mxu0 %v1391
  %1987 = vmatpush1.bf16.msra.mxu0 %v1390
  %1988 = vmatprep.subr.bf16.mxu0 %v1393
  %1989 = vmatpush1.bf16.msra.mxu0 %v1392
  %1990 = vmatprep.subr.bf16.mxu0 %v1395
  %1991 = vmatpush1.bf16.msra.mxu0 %v1394
  %1992 = vmatprep.subr.bf16.mxu0 %v1397
  %1993 = vmatpush1.bf16.msra.mxu0 %v1396
  %1994 = vmatprep.subr.bf16.mxu0 %v1399
  %1995 = vmatpush1.bf16.msra.mxu0 %v1398
  %1996 = vmatprep.subr.bf16.mxu0 %v1401
  %1997 = vmatpush1.bf16.msra.mxu0 %v1400
  %1998 = vmatprep.subr.bf16.mxu0 %v1403
  %1999 = vmatpush1.bf16.msra.mxu0 %v1402
  %2000 = vmatprep.subr.bf16.mxu0 %v1405
  %2001 = vmatpush1.bf16.msra.mxu0 %v1404
  %2002 = vmatprep.subr.bf16.mxu0 %v1407
  %2003 = vmatpush1.bf16.msra.mxu0 %v1406
  %2004 = vmatprep.subr.bf16.mxu0 %v1409
  %2005 = vmatpush1.bf16.msra.mxu0 %v1408
  %2006 = vmatprep.mubr.bf16.mxu0 %v427
  %2007 = vmatmul.mubr.bf16.gmra.mrb[0].mxu0 %v426
  %v2008 = vpop.f32.mrb[0].mxu0
  %v2009 = vadd.f32 %v1956, %v2008
  %v2010 = vpop.f32.mrb[0].mxu0
  %v2011 = vadd.f32 %v1958, %v2010
  %v2012 = vpop.f32.mrb[0].mxu0
  %v2013 = vadd.f32 %v1960, %v2012
  %v2014 = vpop.f32.mrb[0].mxu0
  %v2015 = vadd.f32 %v1962, %v2014
  %2016 = vmatprep.mubr.bf16.mxu0 %v443
  %2017 = vmatmul.mubr.bf16.gmra.mrb[0].mxu0 %v442
  %v2018 = vpop.f32.mrb[0].mxu0
  %v2019 = vadd.f32 %v1966, %v2018
  %v2020 = vpop.f32.mrb[0].mxu0
  %v2021 = vadd.f32 %v1968, %v2020
  %v2022 = vpop.f32.mrb[0].mxu0
  %v2023 = vadd.f32 %v1970, %v2022
  %v2024 = vpop.f32.mrb[0].mxu0
  %v2025 = vadd.f32 %v1972, %v2024
  %2026 = vdwg.mxu0
  %2027 = vmatprep.subr.bf16.mxu0 %v1411
  %2028 = vmatpush1.bf16.msra.mxu0 %v1410
  %2029 = vmatprep.subr.bf16.mxu0 %v1413
  %2030 = vmatpush1.bf16.msra.mxu0 %v1412
  %2031 = vmatprep.subr.bf16.mxu0 %v1415
  %2032 = vmatpush1.bf16.msra.mxu0 %v1414
  %2033 = vmatprep.subr.bf16.mxu0 %v1417
  %2034 = vmatpush1.bf16.msra.mxu0 %v1416
  %2035 = vmatprep.subr.bf16.mxu0 %v1419
  %2036 = vmatpush1.bf16.msra.mxu0 %v1418
  %2037 = vmatprep.subr.bf16.mxu0 %v1421
  %2038 = vmatpush1.bf16.msra.mxu0 %v1420
  %2039 = vmatprep.subr.bf16.mxu0 %v1423
  %2040 = vmatpush1.bf16.msra.mxu0 %v1422
  %2041 = vmatprep.subr.bf16.mxu0 %v1425
  %2042 = vmatpush1.bf16.msra.mxu0 %v1424
  %2043 = vmatprep.subr.bf16.mxu0 %v1427
  %2044 = vmatpush1.bf16.msra.mxu0 %v1426
  %2045 = vmatprep.subr.bf16.mxu0 %v1429
  %2046 = vmatpush1.bf16.msra.mxu0 %v1428
  %2047 = vmatprep.subr.bf16.mxu0 %v1431
  %2048 = vmatpush1.bf16.msra.mxu0 %v1430
  %2049 = vmatprep.subr.bf16.mxu0 %v1433
  %2050 = vmatpush1.bf16.msra.mxu0 %v1432
  %2051 = vmatprep.subr.bf16.mxu0 %v1435
  %2052 = vmatpush1.bf16.msra.mxu0 %v1434
  %2053 = vmatprep.subr.bf16.mxu0 %v1437
  %2054 = vmatpush1.bf16.msra.mxu0 %v1436
  %2055 = vmatprep.subr.bf16.mxu0 %v1439
  %2056 = vmatpush1.bf16.msra.mxu0 %v1438
  %2057 = vmatprep.subr.bf16.mxu0 %v1441
  %2058 = vmatpush1.bf16.msra.mxu0 %v1440
  %2059 = vmatprep.mubr.bf16.mxu0 %v429
  %2060 = vmatmul.mubr.bf16.gmra.mrb[0].mxu0 %v428
  %v2061 = vpop.f32.mrb[0].mxu0
  %v2062 = vadd.f32 %v2009, %v2061
  %v2063 = vpop.f32.mrb[0].mxu0
  %v2064 = vadd.f32 %v2011, %v2063
  %v2065 = vpop.f32.mrb[0].mxu0
  %v2066 = vadd.f32 %v2013, %v2065
  %v2067 = vpop.f32.mrb[0].mxu0
  %v2068 = vadd.f32 %v2015, %v2067
  %2069 = vmatprep.mubr.bf16.mxu0 %v445
  %2070 = vmatmul.mubr.bf16.gmra.mrb[0].mxu0 %v444
  %v2071 = vpop.f32.mrb[0].mxu0
  %v2072 = vadd.f32 %v2019, %v2071
  %v2073 = vpop.f32.mrb[0].mxu0
  %v2074 = vadd.f32 %v2021, %v2073
  %v2075 = vpop.f32.mrb[0].mxu0
  %v2076 = vadd.f32 %v2023, %v2075
  %v2077 = vpop.f32.mrb[0].mxu0
  %v2078 = vadd.f32 %v2025, %v2077
  %2079 = vdwg.mxu0
  %2080 = vmatprep.subr.bf16.mxu0 %v1443
  %2081 = vmatpush1.bf16.msra.mxu0 %v1442
  %2082 = vmatprep.subr.bf16.mxu0 %v1445
  %2083 = vmatpush1.bf16.msra.mxu0 %v1444
  %2084 = vmatprep.subr.bf16.mxu0 %v1447
  %2085 = vmatpush1.bf16.msra.mxu0 %v1446
  %2086 = vmatprep.subr.bf16.mxu0 %v1449
  %2087 = vmatpush1.bf16.msra.mxu0 %v1448
  %2088 = vmatprep.subr.bf16.mxu0 %v1451
  %2089 = vmatpush1.bf16.msra.mxu0 %v1450
  %2090 = vmatprep.subr.bf16.mxu0 %v1453
  %2091 = vmatpush1.bf16.msra.mxu0 %v1452
  %2092 = vmatprep.subr.bf16.mxu0 %v1455
  %2093 = vmatpush1.bf16.msra.mxu0 %v1454
  %2094 = vmatprep.subr.bf16.mxu0 %v1457
  %2095 = vmatpush1.bf16.msra.mxu0 %v1456
  %2096 = vmatprep.subr.bf16.mxu0 %v1459
  %2097 = vmatpush1.bf16.msra.mxu0 %v1458
  %2098 = vmatprep.subr.bf16.mxu0 %v1461
  %2099 = vmatpush1.bf16.msra.mxu0 %v1460
  %2100 = vmatprep.subr.bf16.mxu0 %v1463
  %2101 = vmatpush1.bf16.msra.mxu0 %v1462
  %2102 = vmatprep.subr.bf16.mxu0 %v1465
  %2103 = vmatpush1.bf16.msra.mxu0 %v1464
  %2104 = vmatprep.subr.bf16.mxu0 %v1467
  %2105 = vmatpush1.bf16.msra.mxu0 %v1466
  %2106 = vmatprep.subr.bf16.mxu0 %v1469
  %2107 = vmatpush1.bf16.msra.mxu0 %v1468
  %2108 = vmatprep.subr.bf16.mxu0 %v1471
  %2109 = vmatpush1.bf16.msra.mxu0 %v1470
  %2110 = vmatprep.subr.bf16.mxu0 %v1473
  %2111 = vmatpush1.bf16.msra.mxu0 %v1472
  %2112 = vmatprep.mubr.bf16.mxu0 %v431
  %2113 = vmatmul.mubr.bf16.gmra.mrb[0].mxu0 %v430
  %v2114 = vpop.f32.mrb[0].mxu0
  %v2115 = vadd.f32 %v2062, %v2114
  %v2116 = vpop.f32.mrb[0].mxu0
  %v2117 = vadd.f32 %v2064, %v2116
  %v2118 = vpop.f32.mrb[0].mxu0
  %v2119 = vadd.f32 %v2066, %v2118
  %v2120 = vpop.f32.mrb[0].mxu0
  %v2121 = vadd.f32 %v2068, %v2120
  %2122 = vmatprep.mubr.bf16.mxu0 %v447
  %2123 = vmatmul.mubr.bf16.gmra.mrb[0].mxu0 %v446
  %v2124 = vpop.f32.mrb[0].mxu0
  %v2125 = vadd.f32 %v2072, %v2124
  %v2126 = vpop.f32.mrb[0].mxu0
  %v2127 = vadd.f32 %v2074, %v2126
  %v2128 = vpop.f32.mrb[0].mxu0
  %v2129 = vadd.f32 %v2076, %v2128
  %v2130 = vpop.f32.mrb[0].mxu0
  %v2131 = vadd.f32 %v2078, %v2130
  %2132 = vdwg.mxu0
  %2133 = vmatprep.subr.bf16.mxu0 %v1475
  %2134 = vmatpush1.bf16.msra.mxu0 %v1474
  %2135 = vmatprep.subr.bf16.mxu0 %v1477
  %2136 = vmatpush1.bf16.msra.mxu0 %v1476
  %2137 = vmatprep.subr.bf16.mxu0 %v1479
  %2138 = vmatpush1.bf16.msra.mxu0 %v1478
  %2139 = vmatprep.subr.bf16.mxu0 %v1481
  %2140 = vmatpush1.bf16.msra.mxu0 %v1480
  %2141 = vmatprep.subr.bf16.mxu0 %v1483
  %2142 = vmatpush1.bf16.msra.mxu0 %v1482
  %2143 = vmatprep.subr.bf16.mxu0 %v1485
  %2144 = vmatpush1.bf16.msra.mxu0 %v1484
  %2145 = vmatprep.subr.bf16.mxu0 %v1487
  %2146 = vmatpush1.bf16.msra.mxu0 %v1486
  %2147 = vmatprep.subr.bf16.mxu0 %v1489
  %2148 = vmatpush1.bf16.msra.mxu0 %v1488
  %2149 = vmatprep.subr.bf16.mxu0 %v1491
  %2150 = vmatpush1.bf16.msra.mxu0 %v1490
  %2151 = vmatprep.subr.bf16.mxu0 %v1493
  %2152 = vmatpush1.bf16.msra.mxu0 %v1492
  %2153 = vmatprep.subr.bf16.mxu0 %v1495
  %2154 = vmatpush1.bf16.msra.mxu0 %v1494
  %2155 = vmatprep.subr.bf16.mxu0 %v1497
  %2156 = vmatpush1.bf16.msra.mxu0 %v1496
  %2157 = vmatprep.subr.bf16.mxu0 %v1499
  %2158 = vmatpush1.bf16.msra.mxu0 %v1498
  %2159 = vmatprep.subr.bf16.mxu0 %v1501
  %2160 = vmatpush1.bf16.msra.mxu0 %v1500
  %2161 = vmatprep.subr.bf16.mxu0 %v1503
  %2162 = vmatpush1.bf16.msra.mxu0 %v1502
  %2163 = vmatprep.subr.bf16.mxu0 %v1505
  %2164 = vmatpush1.bf16.msra.mxu0 %v1504
  %2165 = vmatprep.mubr.bf16.mxu0 %v433
  %2166 = vmatmul.mubr.bf16.gmra.mrb[0].mxu0 %v432
  %v2167 = vpop.f32.mrb[0].mxu0
  %v2168 = vadd.f32 %v2115, %v2167
  %v2169 = vpop.f32.mrb[0].mxu0
  %v2170 = vadd.f32 %v2117, %v2169
  %v2171 = vpop.f32.mrb[0].mxu0
  %v2172 = vadd.f32 %v2119, %v2171
  %v2173 = vpop.f32.mrb[0].mxu0
  %v2174 = vadd.f32 %v2121, %v2173
  %2175 = vmatprep.mubr.bf16.mxu0 %v449
  %2176 = vmatmul.mubr.bf16.gmra.mrb[0].mxu0 %v448
  %v2177 = vpop.f32.mrb[0].mxu0
  %v2178 = vadd.f32 %v2125, %v2177
  %v2179 = vpop.f32.mrb[0].mxu0
  %v2180 = vadd.f32 %v2127, %v2179
  %v2181 = vpop.f32.mrb[0].mxu0
  %v2182 = vadd.f32 %v2129, %v2181
  %v2183 = vpop.f32.mrb[0].mxu0
  %v2184 = vadd.f32 %v2131, %v2183
  %2185 = vdwg.mxu0
  %v2186 = vadd.f32 %v26, %v2168
  %v2187 = vadd.f32 %v27, %v2170
  %v2188 = vadd.f32 %v28, %v2172
  %v2189 = vadd.f32 %v29, %v2174
  %v2190 = vadd.f32 %v30, %v2178
  %v2191 = vadd.f32 %v31, %v2180
  %v2192 = vadd.f32 %v32, %v2182
  %v2193 = vadd.f32 %v33, %v2184
  %2194 = vst [vmem:[#allocation2] sm:$0xff] %v2186
  %2195 = vst [vmem:[#allocation2 + $0x8] sm:$0xff] %v2187
  %2196 = vst [vmem:[#allocation2 + $0x10] sm:$0xff] %v2188
  %2197 = vst [vmem:[#allocation2 + $0x18] sm:$0xff] %v2189
  %2198 = vst [vmem:[#allocation2 + $0x20] sm:$0xff] %v2190
  %2199 = vst [vmem:[#allocation2 + $0x28] sm:$0xff] %v2191
  %2200 = vst [vmem:[#allocation2 + $0x30] sm:$0xff] %v2192
  %2201 = vst [vmem:[#allocation2 + $0x38] sm:$0xff] %v2193
  // Predicated region
  $region18: #{encoder_forward.6} parent=0 // pred_check
    %p2202 = pneg %p14
  $region19: #{encoder_forward.6} parent=0 // pred_check_branch
    %2204 = sbr.rel (%p2202) target = $region21
  $region20: #{encoder_forward.6} parent=0 // pred_region
    %v2205 = vld [vmem:[#allocation2] sm:$0xff]
    %v2206 = vld [vmem:[#allocation2 + $0x8] sm:$0xff]
    %v2207 = vld [vmem:[#allocation2 + $0x10] sm:$0xff]
    %v2208 = vld [vmem:[#allocation2 + $0x18] sm:$0xff]
    %v2209 = vld [vmem:[#allocation2 + $0x20] sm:$0xff]
    %v2210 = vld [vmem:[#allocation2 + $0x28] sm:$0xff]
    %v2211 = vld [vmem:[#allocation2 + $0x30] sm:$0xff]
    %v2212 = vld [vmem:[#allocation2 + $0x38] sm:$0xff]
    %v2213 = vld [vmem:[%s2] sm:$0x3]
    %v2215 = vlaneseq
    %v2216 = vshrl.u32 %v2215, 7
    %v2217 = vsub.s32 0, %v2216
    %v2218 = vrot.slane %v2213, %v2217
    %v2219 = vlaneseq
    %v2220 = vshrl.u32 %v2219, 7
    %v2221 = vsub.s32 1, %v2220
    %v2222 = vrot.slane %v2213, %v2221
    %v2225 = vadd.f32 %v2205, %v2218
    %v2226 = vadd.f32 %v2206, %v2222
    %v2227 = vadd.f32 %v2207, %v2218
    %v2228 = vadd.f32 %v2208, %v2222
    %v2229 = vadd.f32 %v2209, %v2218
    %v2230 = vadd.f32 %v2210, %v2222
    %v2231 = vadd.f32 %v2211, %v2218
    %v2232 = vadd.f32 %v2212, %v2222
    %v2233 = vmax.f32 %v2225, 0.0
    %v2234 = vmax.f32 %v2226, 0.0
    %v2235 = vmax.f32 %v2227, 0.0
    %v2236 = vmax.f32 %v2228, 0.0
    %v2237 = vmax.f32 %v2229, 0.0
    %v2238 = vmax.f32 %v2230, 0.0
    %v2239 = vmax.f32 %v2231, 0.0
    %v2240 = vmax.f32 %v2232, 0.0
    %v2241 = vpack.c.bf16 %v2235, %v2233
    %v2242 = vpack.c.bf16 %v2236, %v2234
    %v2243 = vpack.c.bf16 %v2239, %v2237
    %v2244 = vpack.c.bf16 %v2240, %v2238
    %v2249 = vunpack.c.l.b16 %v2241
    %v2250 = vunpack.c.l.b16 %v2242
    %v2251 = vunpack.c.h.b16 %v2241
    %v2252 = vunpack.c.h.b16 %v2242
    %v2253 = vunpack.c.l.b16 %v2243
    %v2254 = vunpack.c.l.b16 %v2244
    %v2255 = vunpack.c.h.b16 %v2243
    %v2256 = vunpack.c.h.b16 %v2244
    %v2257 = vpack.c.b16 %v2250, %v2249
    %v2258 = vpack.c.b16 %v2252, %v2251
    %v2259 = vpack.c.b16 %v2254, %v2253
    %v2260 = vpack.c.b16 %v2256, %v2255
    %2265 = vst [vmem:[%s3] sm:$0xff] %v2257
    %2266 = vst [vmem:[%s3 + $0x8] sm:$0xff] %v2258
    %2267 = vst [vmem:[%s3 + $0x10] sm:$0xff] %v2259
    %2268 = vst [vmem:[%s3 + $0x18] sm:$0xff] %v2260
  $region21: #{encoder_forward.6} parent=0 // pred_fallthru
    _
  // Predicated region
  $region22: #{encoder_forward.6} parent=0 // pred_check
    _
  $region23: #{encoder_forward.6} parent=0 // pred_check_branch
    %2270 = sbr.rel (0) target = $region25
  $region24: #{encoder_forward.6} parent=0 // pred_region
    _
  $region25: #{encoder_forward.6} parent=0 // pred_fallthru
    _
  // Predicated region
  $region26: #{encoder_forward.6} parent=0 // pred_check
    _
  $region27: #{encoder_forward.6} parent=0 // pred_check_branch
    %2272 = sbr.rel (0) target = $region29
  $region28: #{encoder_forward.6} parent=0 // pred_region
    _
  $region29: #{encoder_forward.6} parent=0 // pred_fallthru
    _

// kernel: encoder_forward.7
$region0: #{encoder_forward.7}
  #allocation0 [shape = 'u32[]', space=smem, size = 0x4, offset = 0x4, fixed_abs, tag = 'smem constant byte address 0x4 - core index']
  #allocation1 [shape = 'u32[144,128]{1,0:T(1,128)}', space=vmem, size = 0x12000, scoped, tag = 'internal scratch']
  #allocation2 [shape = 'f32[8,512]{1,0:T(8,128)}', space=vmem, size = 0x4000, scoped, tag = 'scratch operand']
  %s0 = inlined_call_operand.vmem [shape: bf16[8,4096], index: 0, kind: input, shape index: {}]
  %s1 = inlined_call_operand.vmem [shape: bf16[4096,512], index: 1, kind: input, shape index: {}]
  %s2 = inlined_call_operand.vmem [shape: f32[1,512], index: 2, kind: input, shape index: {}]
  %s3 = inlined_call_operand.vmem [shape: f32[1,512], index: 3, kind: input, shape index: {}]
  %s4 = inlined_call_operand.vmem [shape: f32[8,512], index: 4, kind: output, shape index: {}]
  %s5 = sld [smem:[#allocation0]]
  $region34: #{encoder_forward.7} parent=0
    _
  %s7 = ssub.s32 1, %s5
  %s8 = scalar_select 0, %s7, %s5
  // Predicated region
  $region2: #{encoder_forward.7} parent=0 // pred_check
    _
  $region3: #{encoder_forward.7} parent=0 // pred_check_branch
    %10 = sbr.rel (0) target = $region5
  $region4: #{encoder_forward.7} parent=0 // pred_region
    _
  $region5: #{encoder_forward.7} parent=0 // pred_fallthru
    _
  // Predicated region
  $region6: #{encoder_forward.7} parent=0 // pred_check
    _
  $region7: #{encoder_forward.7} parent=0 // pred_check_branch
    %12 = sbr.rel (0) target = $region9
  $region8: #{encoder_forward.7} parent=0 // pred_region
    _
  $region9: #{encoder_forward.7} parent=0 // pred_fallthru
    _
  // Predicated region
  $region10: #{encoder_forward.7} parent=0 // pred_check
    _
  $region11: #{encoder_forward.7} parent=0 // pred_check_branch
    %14 = sbr.rel (0) target = $region13
  $region12: #{encoder_forward.7} parent=0 // pred_region
    _
  $region13: #{encoder_forward.7} parent=0 // pred_fallthru
    _
  // Predicated region
  $region14: #{encoder_forward.7} parent=0 // pred_check
    _
  $region15: #{encoder_forward.7} parent=0 // pred_check_branch
    %16 = sbr.rel (0) target = $region17
  $region16: #{encoder_forward.7} parent=0 // pred_region
    _
  $region17: #{encoder_forward.7} parent=0 // pred_fallthru
    _
  %p17 = scmp.eq.s32.totalorder 0, 0
  // Predicated region
  $region18: #{encoder_forward.7} parent=0 // pred_check
    %p18 = pneg %p17
  $region19: #{encoder_forward.7} parent=0 // pred_check_branch
    %20 = sbr.rel (%p18) target = $region21
  $region20: #{encoder_forward.7} parent=0 // pred_region
    %21 = vst [vmem:[#allocation2] sm:$0xff] 0.0
    %22 = vst [vmem:[#allocation2 + $0x8] sm:$0xff] 0.0
    %23 = vst [vmem:[#allocation2 + $0x10] sm:$0xff] 0.0
    %24 = vst [vmem:[#allocation2 + $0x18] sm:$0xff] 0.0
  $region21: #{encoder_forward.7} parent=0 // pred_fallthru
    _
  %v25 = vld [vmem:[#allocation2] sm:$0xff]
  %v26 = vld [vmem:[#allocation2 + $0x8] sm:$0xff]
  %v27 = vld [vmem:[#allocation2 + $0x10] sm:$0xff]
  %v28 = vld [vmem:[#allocation2 + $0x18] sm:$0xff]
  %v29 = vld [vmem:[%s0] sm:$0xff]
  %v30 = vld [vmem:[%s0 + $0x8] sm:$0xff]
  %v31 = vld [vmem:[%s0 + $0x10] sm:$0xff]
  %v32 = vld [vmem:[%s0 + $0x18] sm:$0xff]
  %v33 = vld [vmem:[%s0 + $0x20] sm:$0xff]
  %v34 = vld [vmem:[%s0 + $0x28] sm:$0xff]
  %v35 = vld [vmem:[%s0 + $0x30] sm:$0xff]
  %v36 = vld [vmem:[%s0 + $0x38] sm:$0xff]
  %v37 = vld [vmem:[%s0 + $0x40] sm:$0xff]
  %v38 = vld [vmem:[%s0 + $0x48] sm:$0xff]
  %v39 = vld [vmem:[%s0 + $0x50] sm:$0xff]
  %v40 = vld [vmem:[%s0 + $0x58] sm:$0xff]
  %v41 = vld [vmem:[%s0 + $0x60] sm:$0xff]
  %v42 = vld [vmem:[%s0 + $0x68] sm:$0xff]
  %v43 = vld [vmem:[%s0 + $0x70] sm:$0xff]
  %v44 = vld [vmem:[%s0 + $0x78] sm:$0xff]
  %v45 = vld [vmem:[%s1] sm:$0xff]
  %v46 = vld [vmem:[%s1 + $0x8] sm:$0xff]
  %v47 = vld [vmem:[%s1 + $0x10] sm:$0xff]
  %v48 = vld [vmem:[%s1 + $0x18] sm:$0xff]
  %v49 = vld [vmem:[%s1 + $0x20] sm:$0xff]
  %v50 = vld [vmem:[%s1 + $0x28] sm:$0xff]
  %v51 = vld [vmem:[%s1 + $0x30] sm:$0xff]
  %v52 = vld [vmem:[%s1 + $0x38] sm:$0xff]
  %v53 = vld [vmem:[%s1 + $0x40] sm:$0xff]
  %v54 = vld [vmem:[%s1 + $0x48] sm:$0xff]
  %v55 = vld [vmem:[%s1 + $0x50] sm:$0xff]
  %v56 = vld [vmem:[%s1 + $0x58] sm:$0xff]
  %v57 = vld [vmem:[%s1 + $0x60] sm:$0xff]
  %v58 = vld [vmem:[%s1 + $0x68] sm:$0xff]
  %v59 = vld [vmem:[%s1 + $0x70] sm:$0xff]
  %v60 = vld [vmem:[%s1 + $0x78] sm:$0xff]
  %v61 = vld [vmem:[%s1 + $0x80] sm:$0xff]
  %v62 = vld [vmem:[%s1 + $0x88] sm:$0xff]
  %v63 = vld [vmem:[%s1 + $0x90] sm:$0xff]
  %v64 = vld [vmem:[%s1 + $0x98] sm:$0xff]
  %v65 = vld [vmem:[%s1 + $0xa0] sm:$0xff]
  %v66 = vld [vmem:[%s1 + $0xa8] sm:$0xff]
  %v67 = vld [vmem:[%s1 + $0xb0] sm:$0xff]
  %v68 = vld [vmem:[%s1 + $0xb8] sm:$0xff]
  %v69 = vld [vmem:[%s1 + $0xc0] sm:$0xff]
  %v70 = vld [vmem:[%s1 + $0xc8] sm:$0xff]
  %v71 = vld [vmem:[%s1 + $0xd0] sm:$0xff]
  %v72 = vld [vmem:[%s1 + $0xd8] sm:$0xff]
  %v73 = vld [vmem:[%s1 + $0xe0] sm:$0xff]
  %v74 = vld [vmem:[%s1 + $0xe8] sm:$0xff]
  %v75 = vld [vmem:[%s1 + $0xf0] sm:$0xff]
  %v76 = vld [vmem:[%s1 + $0xf8] sm:$0xff]
  %v77 = vld [vmem:[%s1 + $0x100] sm:$0xff]
  %v78 = vld [vmem:[%s1 + $0x108] sm:$0xff]
  %v79 = vld [vmem:[%s1 + $0x110] sm:$0xff]
  %v80 = vld [vmem:[%s1 + $0x118] sm:$0xff]
  %v81 = vld [vmem:[%s1 + $0x120] sm:$0xff]
  %v82 = vld [vmem:[%s1 + $0x128] sm:$0xff]
  %v83 = vld [vmem:[%s1 + $0x130] sm:$0xff]
  %v84 = vld [vmem:[%s1 + $0x138] sm:$0xff]
  %v85 = vld [vmem:[%s1 + $0x140] sm:$0xff]
  %v86 = vld [vmem:[%s1 + $0x148] sm:$0xff]
  %v87 = vld [vmem:[%s1 + $0x150] sm:$0xff]
  %v88 = vld [vmem:[%s1 + $0x158] sm:$0xff]
  %v89 = vld [vmem:[%s1 + $0x160] sm:$0xff]
  %v90 = vld [vmem:[%s1 + $0x168] sm:$0xff]
  %v91 = vld [vmem:[%s1 + $0x170] sm:$0xff]
  %v92 = vld [vmem:[%s1 + $0x178] sm:$0xff]
  %v93 = vld [vmem:[%s1 + $0x180] sm:$0xff]
  %v94 = vld [vmem:[%s1 + $0x188] sm:$0xff]
  %v95 = vld [vmem:[%s1 + $0x190] sm:$0xff]
  %v96 = vld [vmem:[%s1 + $0x198] sm:$0xff]
  %v97 = vld [vmem:[%s1 + $0x1a0] sm:$0xff]
  %v98 = vld [vmem:[%s1 + $0x1a8] sm:$0xff]
  %v99 = vld [vmem:[%s1 + $0x1b0] sm:$0xff]
  %v100 = vld [vmem:[%s1 + $0x1b8] sm:$0xff]
  %v101 = vld [vmem:[%s1 + $0x1c0] sm:$0xff]
  %v102 = vld [vmem:[%s1 + $0x1c8] sm:$0xff]
  %v103 = vld [vmem:[%s1 + $0x1d0] sm:$0xff]
  %v104 = vld [vmem:[%s1 + $0x1d8] sm:$0xff]
  %v105 = vld [vmem:[%s1 + $0x1e0] sm:$0xff]
  %v106 = vld [vmem:[%s1 + $0x1e8] sm:$0xff]
  %v107 = vld [vmem:[%s1 + $0x1f0] sm:$0xff]
  %v108 = vld [vmem:[%s1 + $0x1f8] sm:$0xff]
  %v109 = vld [vmem:[%s1 + $0x200] sm:$0xff]
  %v110 = vld [vmem:[%s1 + $0x208] sm:$0xff]
  %v111 = vld [vmem:[%s1 + $0x210] sm:$0xff]
  %v112 = vld [vmem:[%s1 + $0x218] sm:$0xff]
  %v113 = vld [vmem:[%s1 + $0x220] sm:$0xff]
  %v114 = vld [vmem:[%s1 + $0x228] sm:$0xff]
  %v115 = vld [vmem:[%s1 + $0x230] sm:$0xff]
  %v116 = vld [vmem:[%s1 + $0x238] sm:$0xff]
  %v117 = vld [vmem:[%s1 + $0x240] sm:$0xff]
  %v118 = vld [vmem:[%s1 + $0x248] sm:$0xff]
  %v119 = vld [vmem:[%s1 + $0x250] sm:$0xff]
  %v120 = vld [vmem:[%s1 + $0x258] sm:$0xff]
  %v121 = vld [vmem:[%s1 + $0x260] sm:$0xff]
  %v122 = vld [vmem:[%s1 + $0x268] sm:$0xff]
  %v123 = vld [vmem:[%s1 + $0x270] sm:$0xff]
  %v124 = vld [vmem:[%s1 + $0x278] sm:$0xff]
  %v125 = vld [vmem:[%s1 + $0x280] sm:$0xff]
  %v126 = vld [vmem:[%s1 + $0x288] sm:$0xff]
  %v127 = vld [vmem:[%s1 + $0x290] sm:$0xff]
  %v128 = vld [vmem:[%s1 + $0x298] sm:$0xff]
  %v129 = vld [vmem:[%s1 + $0x2a0] sm:$0xff]
  %v130 = vld [vmem:[%s1 + $0x2a8] sm:$0xff]
  %v131 = vld [vmem:[%s1 + $0x2b0] sm:$0xff]
  %v132 = vld [vmem:[%s1 + $0x2b8] sm:$0xff]
  %v133 = vld [vmem:[%s1 + $0x2c0] sm:$0xff]
  %v134 = vld [vmem:[%s1 + $0x2c8] sm:$0xff]
  %v135 = vld [vmem:[%s1 + $0x2d0] sm:$0xff]
  %v136 = vld [vmem:[%s1 + $0x2d8] sm:$0xff]
  %v137 = vld [vmem:[%s1 + $0x2e0] sm:$0xff]
  %v138 = vld [vmem:[%s1 + $0x2e8] sm:$0xff]
  %v139 = vld [vmem:[%s1 + $0x2f0] sm:$0xff]
  %v140 = vld [vmem:[%s1 + $0x2f8] sm:$0xff]
  %v141 = vld [vmem:[%s1 + $0x300] sm:$0xff]
  %v142 = vld [vmem:[%s1 + $0x308] sm:$0xff]
  %v143 = vld [vmem:[%s1 + $0x310] sm:$0xff]
  %v144 = vld [vmem:[%s1 + $0x318] sm:$0xff]
  %v145 = vld [vmem:[%s1 + $0x320] sm:$0xff]
  %v146 = vld [vmem:[%s1 + $0x328] sm:$0xff]
  %v147 = vld [vmem:[%s1 + $0x330] sm:$0xff]
  %v148 = vld [vmem:[%s1 + $0x338] sm:$0xff]
  %v149 = vld [vmem:[%s1 + $0x340] sm:$0xff]
  %v150 = vld [vmem:[%s1 + $0x348] sm:$0xff]
  %v151 = vld [vmem:[%s1 + $0x350] sm:$0xff]
  %v152 = vld [vmem:[%s1 + $0x358] sm:$0xff]
  %v153 = vld [vmem:[%s1 + $0x360] sm:$0xff]
  %v154 = vld [vmem:[%s1 + $0x368] sm:$0xff]
  %v155 = vld [vmem:[%s1 + $0x370] sm:$0xff]
  %v156 = vld [vmem:[%s1 + $0x378] sm:$0xff]
  %v157 = vld [vmem:[%s1 + $0x380] sm:$0xff]
  %v158 = vld [vmem:[%s1 + $0x388] sm:$0xff]
  %v159 = vld [vmem:[%s1 + $0x390] sm:$0xff]
  %v160 = vld [vmem:[%s1 + $0x398] sm:$0xff]
  %v161 = vld [vmem:[%s1 + $0x3a0] sm:$0xff]
  %v162 = vld [vmem:[%s1 + $0x3a8] sm:$0xff]
  %v163 = vld [vmem:[%s1 + $0x3b0] sm:$0xff]
  %v164 = vld [vmem:[%s1 + $0x3b8] sm:$0xff]
  %v165 = vld [vmem:[%s1 + $0x3c0] sm:$0xff]
  %v166 = vld [vmem:[%s1 + $0x3c8] sm:$0xff]
  %v167 = vld [vmem:[%s1 + $0x3d0] sm:$0xff]
  %v168 = vld [vmem:[%s1 + $0x3d8] sm:$0xff]
  %v169 = vld [vmem:[%s1 + $0x3e0] sm:$0xff]
  %v170 = vld [vmem:[%s1 + $0x3e8] sm:$0xff]
  %v171 = vld [vmem:[%s1 + $0x3f0] sm:$0xff]
  %v172 = vld [vmem:[%s1 + $0x3f8] sm:$0xff]
  %v173 = vld [vmem:[%s1 + $0x400] sm:$0xff]
  %v174 = vld [vmem:[%s1 + $0x408] sm:$0xff]
  %v175 = vld [vmem:[%s1 + $0x410] sm:$0xff]
  %v176 = vld [vmem:[%s1 + $0x418] sm:$0xff]
  %v177 = vld [vmem:[%s1 + $0x420] sm:$0xff]
  %v178 = vld [vmem:[%s1 + $0x428] sm:$0xff]
  %v179 = vld [vmem:[%s1 + $0x430] sm:$0xff]
  %v180 = vld [vmem:[%s1 + $0x438] sm:$0xff]
  %v181 = vld [vmem:[%s1 + $0x440] sm:$0xff]
  %v182 = vld [vmem:[%s1 + $0x448] sm:$0xff]
  %v183 = vld [vmem:[%s1 + $0x450] sm:$0xff]
  %v184 = vld [vmem:[%s1 + $0x458] sm:$0xff]
  %v185 = vld [vmem:[%s1 + $0x460] sm:$0xff]
  %v186 = vld [vmem:[%s1 + $0x468] sm:$0xff]
  %v187 = vld [vmem:[%s1 + $0x470] sm:$0xff]
  %v188 = vld [vmem:[%s1 + $0x478] sm:$0xff]
  %v189 = vld [vmem:[%s1 + $0x480] sm:$0xff]
  %v190 = vld [vmem:[%s1 + $0x488] sm:$0xff]
  %v191 = vld [vmem:[%s1 + $0x490] sm:$0xff]
  %v192 = vld [vmem:[%s1 + $0x498] sm:$0xff]
  %v193 = vld [vmem:[%s1 + $0x4a0] sm:$0xff]
  %v194 = vld [vmem:[%s1 + $0x4a8] sm:$0xff]
  %v195 = vld [vmem:[%s1 + $0x4b0] sm:$0xff]
  %v196 = vld [vmem:[%s1 + $0x4b8] sm:$0xff]
  %v197 = vld [vmem:[%s1 + $0x4c0] sm:$0xff]
  %v198 = vld [vmem:[%s1 + $0x4c8] sm:$0xff]
  %v199 = vld [vmem:[%s1 + $0x4d0] sm:$0xff]
  %v200 = vld [vmem:[%s1 + $0x4d8] sm:$0xff]
  %v201 = vld [vmem:[%s1 + $0x4e0] sm:$0xff]
  %v202 = vld [vmem:[%s1 + $0x4e8] sm:$0xff]
  %v203 = vld [vmem:[%s1 + $0x4f0] sm:$0xff]
  %v204 = vld [vmem:[%s1 + $0x4f8] sm:$0xff]
  %v205 = vld [vmem:[%s1 + $0x500] sm:$0xff]
  %v206 = vld [vmem:[%s1 + $0x508] sm:$0xff]
  %v207 = vld [vmem:[%s1 + $0x510] sm:$0xff]
  %v208 = vld [vmem:[%s1 + $0x518] sm:$0xff]
  %v209 = vld [vmem:[%s1 + $0x520] sm:$0xff]
  %v210 = vld [vmem:[%s1 + $0x528] sm:$0xff]
  %v211 = vld [vmem:[%s1 + $0x530] sm:$0xff]
  %v212 = vld [vmem:[%s1 + $0x538] sm:$0xff]
  %v213 = vld [vmem:[%s1 + $0x540] sm:$0xff]
  %v214 = vld [vmem:[%s1 + $0x548] sm:$0xff]
  %v215 = vld [vmem:[%s1 + $0x550] sm:$0xff]
  %v216 = vld [vmem:[%s1 + $0x558] sm:$0xff]
  %v217 = vld [vmem:[%s1 + $0x560] sm:$0xff]
  %v218 = vld [vmem:[%s1 + $0x568] sm:$0xff]
  %v219 = vld [vmem:[%s1 + $0x570] sm:$0xff]
  %v220 = vld [vmem:[%s1 + $0x578] sm:$0xff]
  %v221 = vld [vmem:[%s1 + $0x580] sm:$0xff]
  %v222 = vld [vmem:[%s1 + $0x588] sm:$0xff]
  %v223 = vld [vmem:[%s1 + $0x590] sm:$0xff]
  %v224 = vld [vmem:[%s1 + $0x598] sm:$0xff]
  %v225 = vld [vmem:[%s1 + $0x5a0] sm:$0xff]
  %v226 = vld [vmem:[%s1 + $0x5a8] sm:$0xff]
  %v227 = vld [vmem:[%s1 + $0x5b0] sm:$0xff]
  %v228 = vld [vmem:[%s1 + $0x5b8] sm:$0xff]
  %v229 = vld [vmem:[%s1 + $0x5c0] sm:$0xff]
  %v230 = vld [vmem:[%s1 + $0x5c8] sm:$0xff]
  %v231 = vld [vmem:[%s1 + $0x5d0] sm:$0xff]
  %v232 = vld [vmem:[%s1 + $0x5d8] sm:$0xff]
  %v233 = vld [vmem:[%s1 + $0x5e0] sm:$0xff]
  %v234 = vld [vmem:[%s1 + $0x5e8] sm:$0xff]
  %v235 = vld [vmem:[%s1 + $0x5f0] sm:$0xff]
  %v236 = vld [vmem:[%s1 + $0x5f8] sm:$0xff]
  %v237 = vld [vmem:[%s1 + $0x600] sm:$0xff]
  %v238 = vld [vmem:[%s1 + $0x608] sm:$0xff]
  %v239 = vld [vmem:[%s1 + $0x610] sm:$0xff]
  %v240 = vld [vmem:[%s1 + $0x618] sm:$0xff]
  %v241 = vld [vmem:[%s1 + $0x620] sm:$0xff]
  %v242 = vld [vmem:[%s1 + $0x628] sm:$0xff]
  %v243 = vld [vmem:[%s1 + $0x630] sm:$0xff]
  %v244 = vld [vmem:[%s1 + $0x638] sm:$0xff]
  %v245 = vld [vmem:[%s1 + $0x640] sm:$0xff]
  %v246 = vld [vmem:[%s1 + $0x648] sm:$0xff]
  %v247 = vld [vmem:[%s1 + $0x650] sm:$0xff]
  %v248 = vld [vmem:[%s1 + $0x658] sm:$0xff]
  %v249 = vld [vmem:[%s1 + $0x660] sm:$0xff]
  %v250 = vld [vmem:[%s1 + $0x668] sm:$0xff]
  %v251 = vld [vmem:[%s1 + $0x670] sm:$0xff]
  %v252 = vld [vmem:[%s1 + $0x678] sm:$0xff]
  %v253 = vld [vmem:[%s1 + $0x680] sm:$0xff]
  %v254 = vld [vmem:[%s1 + $0x688] sm:$0xff]
  %v255 = vld [vmem:[%s1 + $0x690] sm:$0xff]
  %v256 = vld [vmem:[%s1 + $0x698] sm:$0xff]
  %v257 = vld [vmem:[%s1 + $0x6a0] sm:$0xff]
  %v258 = vld [vmem:[%s1 + $0x6a8] sm:$0xff]
  %v259 = vld [vmem:[%s1 + $0x6b0] sm:$0xff]
  %v260 = vld [vmem:[%s1 + $0x6b8] sm:$0xff]
  %v261 = vld [vmem:[%s1 + $0x6c0] sm:$0xff]
  %v262 = vld [vmem:[%s1 + $0x6c8] sm:$0xff]
  %v263 = vld [vmem:[%s1 + $0x6d0] sm:$0xff]
  %v264 = vld [vmem:[%s1 + $0x6d8] sm:$0xff]
  %v265 = vld [vmem:[%s1 + $0x6e0] sm:$0xff]
  %v266 = vld [vmem:[%s1 + $0x6e8] sm:$0xff]
  %v267 = vld [vmem:[%s1 + $0x6f0] sm:$0xff]
  %v268 = vld [vmem:[%s1 + $0x6f8] sm:$0xff]
  %v269 = vld [vmem:[%s1 + $0x700] sm:$0xff]
  %v270 = vld [vmem:[%s1 + $0x708] sm:$0xff]
  %v271 = vld [vmem:[%s1 + $0x710] sm:$0xff]
  %v272 = vld [vmem:[%s1 + $0x718] sm:$0xff]
  %v273 = vld [vmem:[%s1 + $0x720] sm:$0xff]
  %v274 = vld [vmem:[%s1 + $0x728] sm:$0xff]
  %v275 = vld [vmem:[%s1 + $0x730] sm:$0xff]
  %v276 = vld [vmem:[%s1 + $0x738] sm:$0xff]
  %v277 = vld [vmem:[%s1 + $0x740] sm:$0xff]
  %v278 = vld [vmem:[%s1 + $0x748] sm:$0xff]
  %v279 = vld [vmem:[%s1 + $0x750] sm:$0xff]
  %v280 = vld [vmem:[%s1 + $0x758] sm:$0xff]
  %v281 = vld [vmem:[%s1 + $0x760] sm:$0xff]
  %v282 = vld [vmem:[%s1 + $0x768] sm:$0xff]
  %v283 = vld [vmem:[%s1 + $0x770] sm:$0xff]
  %v284 = vld [vmem:[%s1 + $0x778] sm:$0xff]
  %v285 = vld [vmem:[%s1 + $0x780] sm:$0xff]
  %v286 = vld [vmem:[%s1 + $0x788] sm:$0xff]
  %v287 = vld [vmem:[%s1 + $0x790] sm:$0xff]
  %v288 = vld [vmem:[%s1 + $0x798] sm:$0xff]
  %v289 = vld [vmem:[%s1 + $0x7a0] sm:$0xff]
  %v290 = vld [vmem:[%s1 + $0x7a8] sm:$0xff]
  %v291 = vld [vmem:[%s1 + $0x7b0] sm:$0xff]
  %v292 = vld [vmem:[%s1 + $0x7b8] sm:$0xff]
  %v293 = vld [vmem:[%s1 + $0x7c0] sm:$0xff]
  %v294 = vld [vmem:[%s1 + $0x7c8] sm:$0xff]
  %v295 = vld [vmem:[%s1 + $0x7d0] sm:$0xff]
  %v296 = vld [vmem:[%s1 + $0x7d8] sm:$0xff]
  %v297 = vld [vmem:[%s1 + $0x7e0] sm:$0xff]
  %v298 = vld [vmem:[%s1 + $0x7e8] sm:$0xff]
  %v299 = vld [vmem:[%s1 + $0x7f0] sm:$0xff]
  %v300 = vld [vmem:[%s1 + $0x7f8] sm:$0xff]
  %v301 = vld [vmem:[%s1 + $0x800] sm:$0xff]
  %v302 = vld [vmem:[%s1 + $0x808] sm:$0xff]
  %v303 = vld [vmem:[%s1 + $0x810] sm:$0xff]
  %v304 = vld [vmem:[%s1 + $0x818] sm:$0xff]
  %v305 = vld [vmem:[%s1 + $0x820] sm:$0xff]
  %v306 = vld [vmem:[%s1 + $0x828] sm:$0xff]
  %v307 = vld [vmem:[%s1 + $0x830] sm:$0xff]
  %v308 = vld [vmem:[%s1 + $0x838] sm:$0xff]
  %v309 = vld [vmem:[%s1 + $0x840] sm:$0xff]
  %v310 = vld [vmem:[%s1 + $0x848] sm:$0xff]
  %v311 = vld [vmem:[%s1 + $0x850] sm:$0xff]
  %v312 = vld [vmem:[%s1 + $0x858] sm:$0xff]
  %v313 = vld [vmem:[%s1 + $0x860] sm:$0xff]
  %v314 = vld [vmem:[%s1 + $0x868] sm:$0xff]
  %v315 = vld [vmem:[%s1 + $0x870] sm:$0xff]
  %v316 = vld [vmem:[%s1 + $0x878] sm:$0xff]
  %v317 = vld [vmem:[%s1 + $0x880] sm:$0xff]
  %v318 = vld [vmem:[%s1 + $0x888] sm:$0xff]
  %v319 = vld [vmem:[%s1 + $0x890] sm:$0xff]
  %v320 = vld [vmem:[%s1 + $0x898] sm:$0xff]
  %v321 = vld [vmem:[%s1 + $0x8a0] sm:$0xff]
  %v322 = vld [vmem:[%s1 + $0x8a8] sm:$0xff]
  %v323 = vld [vmem:[%s1 + $0x8b0] sm:$0xff]
  %v324 = vld [vmem:[%s1 + $0x8b8] sm:$0xff]
  %v325 = vld [vmem:[%s1 + $0x8c0] sm:$0xff]
  %v326 = vld [vmem:[%s1 + $0x8c8] sm:$0xff]
  %v327 = vld [vmem:[%s1 + $0x8d0] sm:$0xff]
  %v328 = vld [vmem:[%s1 + $0x8d8] sm:$0xff]
  %v329 = vld [vmem:[%s1 + $0x8e0] sm:$0xff]
  %v330 = vld [vmem:[%s1 + $0x8e8] sm:$0xff]
  %v331 = vld [vmem:[%s1 + $0x8f0] sm:$0xff]
  %v332 = vld [vmem:[%s1 + $0x8f8] sm:$0xff]
  %v333 = vld [vmem:[%s1 + $0x900] sm:$0xff]
  %v334 = vld [vmem:[%s1 + $0x908] sm:$0xff]
  %v335 = vld [vmem:[%s1 + $0x910] sm:$0xff]
  %v336 = vld [vmem:[%s1 + $0x918] sm:$0xff]
  %v337 = vld [vmem:[%s1 + $0x920] sm:$0xff]
  %v338 = vld [vmem:[%s1 + $0x928] sm:$0xff]
  %v339 = vld [vmem:[%s1 + $0x930] sm:$0xff]
  %v340 = vld [vmem:[%s1 + $0x938] sm:$0xff]
  %v341 = vld [vmem:[%s1 + $0x940] sm:$0xff]
  %v342 = vld [vmem:[%s1 + $0x948] sm:$0xff]
  %v343 = vld [vmem:[%s1 + $0x950] sm:$0xff]
  %v344 = vld [vmem:[%s1 + $0x958] sm:$0xff]
  %v345 = vld [vmem:[%s1 + $0x960] sm:$0xff]
  %v346 = vld [vmem:[%s1 + $0x968] sm:$0xff]
  %v347 = vld [vmem:[%s1 + $0x970] sm:$0xff]
  %v348 = vld [vmem:[%s1 + $0x978] sm:$0xff]
  %v349 = vld [vmem:[%s1 + $0x980] sm:$0xff]
  %v350 = vld [vmem:[%s1 + $0x988] sm:$0xff]
  %v351 = vld [vmem:[%s1 + $0x990] sm:$0xff]
  %v352 = vld [vmem:[%s1 + $0x998] sm:$0xff]
  %v353 = vld [vmem:[%s1 + $0x9a0] sm:$0xff]
  %v354 = vld [vmem:[%s1 + $0x9a8] sm:$0xff]
  %v355 = vld [vmem:[%s1 + $0x9b0] sm:$0xff]
  %v356 = vld [vmem:[%s1 + $0x9b8] sm:$0xff]
  %v357 = vld [vmem:[%s1 + $0x9c0] sm:$0xff]
  %v358 = vld [vmem:[%s1 + $0x9c8] sm:$0xff]
  %v359 = vld [vmem:[%s1 + $0x9d0] sm:$0xff]
  %v360 = vld [vmem:[%s1 + $0x9d8] sm:$0xff]
  %v361 = vld [vmem:[%s1 + $0x9e0] sm:$0xff]
  %v362 = vld [vmem:[%s1 + $0x9e8] sm:$0xff]
  %v363 = vld [vmem:[%s1 + $0x9f0] sm:$0xff]
  %v364 = vld [vmem:[%s1 + $0x9f8] sm:$0xff]
  %v365 = vld [vmem:[%s1 + $0xa00] sm:$0xff]
  %v366 = vld [vmem:[%s1 + $0xa08] sm:$0xff]
  %v367 = vld [vmem:[%s1 + $0xa10] sm:$0xff]
  %v368 = vld [vmem:[%s1 + $0xa18] sm:$0xff]
  %v369 = vld [vmem:[%s1 + $0xa20] sm:$0xff]
  %v370 = vld [vmem:[%s1 + $0xa28] sm:$0xff]
  %v371 = vld [vmem:[%s1 + $0xa30] sm:$0xff]
  %v372 = vld [vmem:[%s1 + $0xa38] sm:$0xff]
  %v373 = vld [vmem:[%s1 + $0xa40] sm:$0xff]
  %v374 = vld [vmem:[%s1 + $0xa48] sm:$0xff]
  %v375 = vld [vmem:[%s1 + $0xa50] sm:$0xff]
  %v376 = vld [vmem:[%s1 + $0xa58] sm:$0xff]
  %v377 = vld [vmem:[%s1 + $0xa60] sm:$0xff]
  %v378 = vld [vmem:[%s1 + $0xa68] sm:$0xff]
  %v379 = vld [vmem:[%s1 + $0xa70] sm:$0xff]
  %v380 = vld [vmem:[%s1 + $0xa78] sm:$0xff]
  %v381 = vld [vmem:[%s1 + $0xa80] sm:$0xff]
  %v382 = vld [vmem:[%s1 + $0xa88] sm:$0xff]
  %v383 = vld [vmem:[%s1 + $0xa90] sm:$0xff]
  %v384 = vld [vmem:[%s1 + $0xa98] sm:$0xff]
  %v385 = vld [vmem:[%s1 + $0xaa0] sm:$0xff]
  %v386 = vld [vmem:[%s1 + $0xaa8] sm:$0xff]
  %v387 = vld [vmem:[%s1 + $0xab0] sm:$0xff]
  %v388 = vld [vmem:[%s1 + $0xab8] sm:$0xff]
  %v389 = vld [vmem:[%s1 + $0xac0] sm:$0xff]
  %v390 = vld [vmem:[%s1 + $0xac8] sm:$0xff]
  %v391 = vld [vmem:[%s1 + $0xad0] sm:$0xff]
  %v392 = vld [vmem:[%s1 + $0xad8] sm:$0xff]
  %v393 = vld [vmem:[%s1 + $0xae0] sm:$0xff]
  %v394 = vld [vmem:[%s1 + $0xae8] sm:$0xff]
  %v395 = vld [vmem:[%s1 + $0xaf0] sm:$0xff]
  %v396 = vld [vmem:[%s1 + $0xaf8] sm:$0xff]
  %v397 = vld [vmem:[%s1 + $0xb00] sm:$0xff]
  %v398 = vld [vmem:[%s1 + $0xb08] sm:$0xff]
  %v399 = vld [vmem:[%s1 + $0xb10] sm:$0xff]
  %v400 = vld [vmem:[%s1 + $0xb18] sm:$0xff]
  %v401 = vld [vmem:[%s1 + $0xb20] sm:$0xff]
  %v402 = vld [vmem:[%s1 + $0xb28] sm:$0xff]
  %v403 = vld [vmem:[%s1 + $0xb30] sm:$0xff]
  %v404 = vld [vmem:[%s1 + $0xb38] sm:$0xff]
  %v405 = vld [vmem:[%s1 + $0xb40] sm:$0xff]
  %v406 = vld [vmem:[%s1 + $0xb48] sm:$0xff]
  %v407 = vld [vmem:[%s1 + $0xb50] sm:$0xff]
  %v408 = vld [vmem:[%s1 + $0xb58] sm:$0xff]
  %v409 = vld [vmem:[%s1 + $0xb60] sm:$0xff]
  %v410 = vld [vmem:[%s1 + $0xb68] sm:$0xff]
  %v411 = vld [vmem:[%s1 + $0xb70] sm:$0xff]
  %v412 = vld [vmem:[%s1 + $0xb78] sm:$0xff]
  %v413 = vld [vmem:[%s1 + $0xb80] sm:$0xff]
  %v414 = vld [vmem:[%s1 + $0xb88] sm:$0xff]
  %v415 = vld [vmem:[%s1 + $0xb90] sm:$0xff]
  %v416 = vld [vmem:[%s1 + $0xb98] sm:$0xff]
  %v417 = vld [vmem:[%s1 + $0xba0] sm:$0xff]
  %v418 = vld [vmem:[%s1 + $0xba8] sm:$0xff]
  %v419 = vld [vmem:[%s1 + $0xbb0] sm:$0xff]
  %v420 = vld [vmem:[%s1 + $0xbb8] sm:$0xff]
  %v421 = vld [vmem:[%s1 + $0xbc0] sm:$0xff]
  %v422 = vld [vmem:[%s1 + $0xbc8] sm:$0xff]
  %v423 = vld [vmem:[%s1 + $0xbd0] sm:$0xff]
  %v424 = vld [vmem:[%s1 + $0xbd8] sm:$0xff]
  %v425 = vld [vmem:[%s1 + $0xbe0] sm:$0xff]
  %v426 = vld [vmem:[%s1 + $0xbe8] sm:$0xff]
  %v427 = vld [vmem:[%s1 + $0xbf0] sm:$0xff]
  %v428 = vld [vmem:[%s1 + $0xbf8] sm:$0xff]
  %v429 = vld [vmem:[%s1 + $0xc00] sm:$0xff]
  %v430 = vld [vmem:[%s1 + $0xc08] sm:$0xff]
  %v431 = vld [vmem:[%s1 + $0xc10] sm:$0xff]
  %v432 = vld [vmem:[%s1 + $0xc18] sm:$0xff]
  %v433 = vld [vmem:[%s1 + $0xc20] sm:$0xff]
  %v434 = vld [vmem:[%s1 + $0xc28] sm:$0xff]
  %v435 = vld [vmem:[%s1 + $0xc30] sm:$0xff]
  %v436 = vld [vmem:[%s1 + $0xc38] sm:$0xff]
  %v437 = vld [vmem:[%s1 + $0xc40] sm:$0xff]
  %v438 = vld [vmem:[%s1 + $0xc48] sm:$0xff]
  %v439 = vld [vmem:[%s1 + $0xc50] sm:$0xff]
  %v440 = vld [vmem:[%s1 + $0xc58] sm:$0xff]
  %v441 = vld [vmem:[%s1 + $0xc60] sm:$0xff]
  %v442 = vld [vmem:[%s1 + $0xc68] sm:$0xff]
  %v443 = vld [vmem:[%s1 + $0xc70] sm:$0xff]
  %v444 = vld [vmem:[%s1 + $0xc78] sm:$0xff]
  %v445 = vld [vmem:[%s1 + $0xc80] sm:$0xff]
  %v446 = vld [vmem:[%s1 + $0xc88] sm:$0xff]
  %v447 = vld [vmem:[%s1 + $0xc90] sm:$0xff]
  %v448 = vld [vmem:[%s1 + $0xc98] sm:$0xff]
  %v449 = vld [vmem:[%s1 + $0xca0] sm:$0xff]
  %v450 = vld [vmem:[%s1 + $0xca8] sm:$0xff]
  %v451 = vld [vmem:[%s1 + $0xcb0] sm:$0xff]
  %v452 = vld [vmem:[%s1 + $0xcb8] sm:$0xff]
  %v453 = vld [vmem:[%s1 + $0xcc0] sm:$0xff]
  %v454 = vld [vmem:[%s1 + $0xcc8] sm:$0xff]
  %v455 = vld [vmem:[%s1 + $0xcd0] sm:$0xff]
  %v456 = vld [vmem:[%s1 + $0xcd8] sm:$0xff]
  %v457 = vld [vmem:[%s1 + $0xce0] sm:$0xff]
  %v458 = vld [vmem:[%s1 + $0xce8] sm:$0xff]
  %v459 = vld [vmem:[%s1 + $0xcf0] sm:$0xff]
  %v460 = vld [vmem:[%s1 + $0xcf8] sm:$0xff]
  %v461 = vld [vmem:[%s1 + $0xd00] sm:$0xff]
  %v462 = vld [vmem:[%s1 + $0xd08] sm:$0xff]
  %v463 = vld [vmem:[%s1 + $0xd10] sm:$0xff]
  %v464 = vld [vmem:[%s1 + $0xd18] sm:$0xff]
  %v465 = vld [vmem:[%s1 + $0xd20] sm:$0xff]
  %v466 = vld [vmem:[%s1 + $0xd28] sm:$0xff]
  %v467 = vld [vmem:[%s1 + $0xd30] sm:$0xff]
  %v468 = vld [vmem:[%s1 + $0xd38] sm:$0xff]
  %v469 = vld [vmem:[%s1 + $0xd40] sm:$0xff]
  %v470 = vld [vmem:[%s1 + $0xd48] sm:$0xff]
  %v471 = vld [vmem:[%s1 + $0xd50] sm:$0xff]
  %v472 = vld [vmem:[%s1 + $0xd58] sm:$0xff]
  %v473 = vld [vmem:[%s1 + $0xd60] sm:$0xff]
  %v474 = vld [vmem:[%s1 + $0xd68] sm:$0xff]
  %v475 = vld [vmem:[%s1 + $0xd70] sm:$0xff]
  %v476 = vld [vmem:[%s1 + $0xd78] sm:$0xff]
  %v477 = vld [vmem:[%s1 + $0xd80] sm:$0xff]
  %v478 = vld [vmem:[%s1 + $0xd88] sm:$0xff]
  %v479 = vld [vmem:[%s1 + $0xd90] sm:$0xff]
  %v480 = vld [vmem:[%s1 + $0xd98] sm:$0xff]
  %v481 = vld [vmem:[%s1 + $0xda0] sm:$0xff]
  %v482 = vld [vmem:[%s1 + $0xda8] sm:$0xff]
  %v483 = vld [vmem:[%s1 + $0xdb0] sm:$0xff]
  %v484 = vld [vmem:[%s1 + $0xdb8] sm:$0xff]
  %v485 = vld [vmem:[%s1 + $0xdc0] sm:$0xff]
  %v486 = vld [vmem:[%s1 + $0xdc8] sm:$0xff]
  %v487 = vld [vmem:[%s1 + $0xdd0] sm:$0xff]
  %v488 = vld [vmem:[%s1 + $0xdd8] sm:$0xff]
  %v489 = vld [vmem:[%s1 + $0xde0] sm:$0xff]
  %v490 = vld [vmem:[%s1 + $0xde8] sm:$0xff]
  %v491 = vld [vmem:[%s1 + $0xdf0] sm:$0xff]
  %v492 = vld [vmem:[%s1 + $0xdf8] sm:$0xff]
  %v493 = vld [vmem:[%s1 + $0xe00] sm:$0xff]
  %v494 = vld [vmem:[%s1 + $0xe08] sm:$0xff]
  %v495 = vld [vmem:[%s1 + $0xe10] sm:$0xff]
  %v496 = vld [vmem:[%s1 + $0xe18] sm:$0xff]
  %v497 = vld [vmem:[%s1 + $0xe20] sm:$0xff]
  %v498 = vld [vmem:[%s1 + $0xe28] sm:$0xff]
  %v499 = vld [vmem:[%s1 + $0xe30] sm:$0xff]
  %v500 = vld [vmem:[%s1 + $0xe38] sm:$0xff]
  %v501 = vld [vmem:[%s1 + $0xe40] sm:$0xff]
  %v502 = vld [vmem:[%s1 + $0xe48] sm:$0xff]
  %v503 = vld [vmem:[%s1 + $0xe50] sm:$0xff]
  %v504 = vld [vmem:[%s1 + $0xe58] sm:$0xff]
  %v505 = vld [vmem:[%s1 + $0xe60] sm:$0xff]
  %v506 = vld [vmem:[%s1 + $0xe68] sm:$0xff]
  %v507 = vld [vmem:[%s1 + $0xe70] sm:$0xff]
  %v508 = vld [vmem:[%s1 + $0xe78] sm:$0xff]
  %v509 = vld [vmem:[%s1 + $0xe80] sm:$0xff]
  %v510 = vld [vmem:[%s1 + $0xe88] sm:$0xff]
  %v511 = vld [vmem:[%s1 + $0xe90] sm:$0xff]
  %v512 = vld [vmem:[%s1 + $0xe98] sm:$0xff]
  %v513 = vld [vmem:[%s1 + $0xea0] sm:$0xff]
  %v514 = vld [vmem:[%s1 + $0xea8] sm:$0xff]
  %v515 = vld [vmem:[%s1 + $0xeb0] sm:$0xff]
  %v516 = vld [vmem:[%s1 + $0xeb8] sm:$0xff]
  %v517 = vld [vmem:[%s1 + $0xec0] sm:$0xff]
  %v518 = vld [vmem:[%s1 + $0xec8] sm:$0xff]
  %v519 = vld [vmem:[%s1 + $0xed0] sm:$0xff]
  %v520 = vld [vmem:[%s1 + $0xed8] sm:$0xff]
  %v521 = vld [vmem:[%s1 + $0xee0] sm:$0xff]
  %v522 = vld [vmem:[%s1 + $0xee8] sm:$0xff]
  %v523 = vld [vmem:[%s1 + $0xef0] sm:$0xff]
  %v524 = vld [vmem:[%s1 + $0xef8] sm:$0xff]
  %v525 = vld [vmem:[%s1 + $0xf00] sm:$0xff]
  %v526 = vld [vmem:[%s1 + $0xf08] sm:$0xff]
  %v527 = vld [vmem:[%s1 + $0xf10] sm:$0xff]
  %v528 = vld [vmem:[%s1 + $0xf18] sm:$0xff]
  %v529 = vld [vmem:[%s1 + $0xf20] sm:$0xff]
  %v530 = vld [vmem:[%s1 + $0xf28] sm:$0xff]
  %v531 = vld [vmem:[%s1 + $0xf30] sm:$0xff]
  %v532 = vld [vmem:[%s1 + $0xf38] sm:$0xff]
  %v533 = vld [vmem:[%s1 + $0xf40] sm:$0xff]
  %v534 = vld [vmem:[%s1 + $0xf48] sm:$0xff]
  %v535 = vld [vmem:[%s1 + $0xf50] sm:$0xff]
  %v536 = vld [vmem:[%s1 + $0xf58] sm:$0xff]
  %v537 = vld [vmem:[%s1 + $0xf60] sm:$0xff]
  %v538 = vld [vmem:[%s1 + $0xf68] sm:$0xff]
  %v539 = vld [vmem:[%s1 + $0xf70] sm:$0xff]
  %v540 = vld [vmem:[%s1 + $0xf78] sm:$0xff]
  %v541 = vld [vmem:[%s1 + $0xf80] sm:$0xff]
  %v542 = vld [vmem:[%s1 + $0xf88] sm:$0xff]
  %v543 = vld [vmem:[%s1 + $0xf90] sm:$0xff]
  %v544 = vld [vmem:[%s1 + $0xf98] sm:$0xff]
  %v545 = vld [vmem:[%s1 + $0xfa0] sm:$0xff]
  %v546 = vld [vmem:[%s1 + $0xfa8] sm:$0xff]
  %v547 = vld [vmem:[%s1 + $0xfb0] sm:$0xff]
  %v548 = vld [vmem:[%s1 + $0xfb8] sm:$0xff]
  %v549 = vld [vmem:[%s1 + $0xfc0] sm:$0xff]
  %v550 = vld [vmem:[%s1 + $0xfc8] sm:$0xff]
  %v551 = vld [vmem:[%s1 + $0xfd0] sm:$0xff]
  %v552 = vld [vmem:[%s1 + $0xfd8] sm:$0xff]
  %v553 = vld [vmem:[%s1 + $0xfe0] sm:$0xff]
  %v554 = vld [vmem:[%s1 + $0xfe8] sm:$0xff]
  %v555 = vld [vmem:[%s1 + $0xff0] sm:$0xff]
  %v556 = vld [vmem:[%s1 + $0xff8] sm:$0xff]
  %v557 = vld [vmem:[%s1 + $0x1000] sm:$0xff]
  %v558 = vld [vmem:[%s1 + $0x1008] sm:$0xff]
  %v559 = vld [vmem:[%s1 + $0x1010] sm:$0xff]
  %v560 = vld [vmem:[%s1 + $0x1018] sm:$0xff]
  %v561 = vld [vmem:[%s1 + $0x1020] sm:$0xff]
  %v562 = vld [vmem:[%s1 + $0x1028] sm:$0xff]
  %v563 = vld [vmem:[%s1 + $0x1030] sm:$0xff]
  %v564 = vld [vmem:[%s1 + $0x1038] sm:$0xff]
  %v565 = vld [vmem:[%s1 + $0x1040] sm:$0xff]
  %v566 = vld [vmem:[%s1 + $0x1048] sm:$0xff]
  %v567 = vld [vmem:[%s1 + $0x1050] sm:$0xff]
  %v568 = vld [vmem:[%s1 + $0x1058] sm:$0xff]
  %v569 = vld [vmem:[%s1 + $0x1060] sm:$0xff]
  %v570 = vld [vmem:[%s1 + $0x1068] sm:$0xff]
  %v571 = vld [vmem:[%s1 + $0x1070] sm:$0xff]
  %v572 = vld [vmem:[%s1 + $0x1078] sm:$0xff]
  %v573 = vld [vmem:[%s1 + $0x1080] sm:$0xff]
  %v574 = vld [vmem:[%s1 + $0x1088] sm:$0xff]
  %v575 = vld [vmem:[%s1 + $0x1090] sm:$0xff]
  %v576 = vld [vmem:[%s1 + $0x1098] sm:$0xff]
  %v577 = vld [vmem:[%s1 + $0x10a0] sm:$0xff]
  %v578 = vld [vmem:[%s1 + $0x10a8] sm:$0xff]
  %v579 = vld [vmem:[%s1 + $0x10b0] sm:$0xff]
  %v580 = vld [vmem:[%s1 + $0x10b8] sm:$0xff]
  %v581 = vld [vmem:[%s1 + $0x10c0] sm:$0xff]
  %v582 = vld [vmem:[%s1 + $0x10c8] sm:$0xff]
  %v583 = vld [vmem:[%s1 + $0x10d0] sm:$0xff]
  %v584 = vld [vmem:[%s1 + $0x10d8] sm:$0xff]
  %v585 = vld [vmem:[%s1 + $0x10e0] sm:$0xff]
  %v586 = vld [vmem:[%s1 + $0x10e8] sm:$0xff]
  %v587 = vld [vmem:[%s1 + $0x10f0] sm:$0xff]
  %v588 = vld [vmem:[%s1 + $0x10f8] sm:$0xff]
  %v589 = vld [vmem:[%s1 + $0x1100] sm:$0xff]
  %v590 = vld [vmem:[%s1 + $0x1108] sm:$0xff]
  %v591 = vld [vmem:[%s1 + $0x1110] sm:$0xff]
  %v592 = vld [vmem:[%s1 + $0x1118] sm:$0xff]
  %v593 = vld [vmem:[%s1 + $0x1120] sm:$0xff]
  %v594 = vld [vmem:[%s1 + $0x1128] sm:$0xff]
  %v595 = vld [vmem:[%s1 + $0x1130] sm:$0xff]
  %v596 = vld [vmem:[%s1 + $0x1138] sm:$0xff]
  %v597 = vld [vmem:[%s1 + $0x1140] sm:$0xff]
  %v598 = vld [vmem:[%s1 + $0x1148] sm:$0xff]
  %v599 = vld [vmem:[%s1 + $0x1150] sm:$0xff]
  %v600 = vld [vmem:[%s1 + $0x1158] sm:$0xff]
  %v601 = vld [vmem:[%s1 + $0x1160] sm:$0xff]
  %v602 = vld [vmem:[%s1 + $0x1168] sm:$0xff]
  %v603 = vld [vmem:[%s1 + $0x1170] sm:$0xff]
  %v604 = vld [vmem:[%s1 + $0x1178] sm:$0xff]
  %v605 = vld [vmem:[%s1 + $0x1180] sm:$0xff]
  %v606 = vld [vmem:[%s1 + $0x1188] sm:$0xff]
  %v607 = vld [vmem:[%s1 + $0x1190] sm:$0xff]
  %v608 = vld [vmem:[%s1 + $0x1198] sm:$0xff]
  %v609 = vld [vmem:[%s1 + $0x11a0] sm:$0xff]
  %v610 = vld [vmem:[%s1 + $0x11a8] sm:$0xff]
  %v611 = vld [vmem:[%s1 + $0x11b0] sm:$0xff]
  %v612 = vld [vmem:[%s1 + $0x11b8] sm:$0xff]
  %v613 = vld [vmem:[%s1 + $0x11c0] sm:$0xff]
  %v614 = vld [vmem:[%s1 + $0x11c8] sm:$0xff]
  %v615 = vld [vmem:[%s1 + $0x11d0] sm:$0xff]
  %v616 = vld [vmem:[%s1 + $0x11d8] sm:$0xff]
  %v617 = vld [vmem:[%s1 + $0x11e0] sm:$0xff]
  %v618 = vld [vmem:[%s1 + $0x11e8] sm:$0xff]
  %v619 = vld [vmem:[%s1 + $0x11f0] sm:$0xff]
  %v620 = vld [vmem:[%s1 + $0x11f8] sm:$0xff]
  %v621 = vld [vmem:[%s1 + $0x1200] sm:$0xff]
  %v622 = vld [vmem:[%s1 + $0x1208] sm:$0xff]
  %v623 = vld [vmem:[%s1 + $0x1210] sm:$0xff]
  %v624 = vld [vmem:[%s1 + $0x1218] sm:$0xff]
  %v625 = vld [vmem:[%s1 + $0x1220] sm:$0xff]
  %v626 = vld [vmem:[%s1 + $0x1228] sm:$0xff]
  %v627 = vld [vmem:[%s1 + $0x1230] sm:$0xff]
  %v628 = vld [vmem:[%s1 + $0x1238] sm:$0xff]
  %v629 = vld [vmem:[%s1 + $0x1240] sm:$0xff]
  %v630 = vld [vmem:[%s1 + $0x1248] sm:$0xff]
  %v631 = vld [vmem:[%s1 + $0x1250] sm:$0xff]
  %v632 = vld [vmem:[%s1 + $0x1258] sm:$0xff]
  %v633 = vld [vmem:[%s1 + $0x1260] sm:$0xff]
  %v634 = vld [vmem:[%s1 + $0x1268] sm:$0xff]
  %v635 = vld [vmem:[%s1 + $0x1270] sm:$0xff]
  %v636 = vld [vmem:[%s1 + $0x1278] sm:$0xff]
  %v637 = vld [vmem:[%s1 + $0x1280] sm:$0xff]
  %v638 = vld [vmem:[%s1 + $0x1288] sm:$0xff]
  %v639 = vld [vmem:[%s1 + $0x1290] sm:$0xff]
  %v640 = vld [vmem:[%s1 + $0x1298] sm:$0xff]
  %v641 = vld [vmem:[%s1 + $0x12a0] sm:$0xff]
  %v642 = vld [vmem:[%s1 + $0x12a8] sm:$0xff]
  %v643 = vld [vmem:[%s1 + $0x12b0] sm:$0xff]
  %v644 = vld [vmem:[%s1 + $0x12b8] sm:$0xff]
  %v645 = vld [vmem:[%s1 + $0x12c0] sm:$0xff]
  %v646 = vld [vmem:[%s1 + $0x12c8] sm:$0xff]
  %v647 = vld [vmem:[%s1 + $0x12d0] sm:$0xff]
  %v648 = vld [vmem:[%s1 + $0x12d8] sm:$0xff]
  %v649 = vld [vmem:[%s1 + $0x12e0] sm:$0xff]
  %v650 = vld [vmem:[%s1 + $0x12e8] sm:$0xff]
  %v651 = vld [vmem:[%s1 + $0x12f0] sm:$0xff]
  %v652 = vld [vmem:[%s1 + $0x12f8] sm:$0xff]
  %v653 = vld [vmem:[%s1 + $0x1300] sm:$0xff]
  %v654 = vld [vmem:[%s1 + $0x1308] sm:$0xff]
  %v655 = vld [vmem:[%s1 + $0x1310] sm:$0xff]
  %v656 = vld [vmem:[%s1 + $0x1318] sm:$0xff]
  %v657 = vld [vmem:[%s1 + $0x1320] sm:$0xff]
  %v658 = vld [vmem:[%s1 + $0x1328] sm:$0xff]
  %v659 = vld [vmem:[%s1 + $0x1330] sm:$0xff]
  %v660 = vld [vmem:[%s1 + $0x1338] sm:$0xff]
  %v661 = vld [vmem:[%s1 + $0x1340] sm:$0xff]
  %v662 = vld [vmem:[%s1 + $0x1348] sm:$0xff]
  %v663 = vld [vmem:[%s1 + $0x1350] sm:$0xff]
  %v664 = vld [vmem:[%s1 + $0x1358] sm:$0xff]
  %v665 = vld [vmem:[%s1 + $0x1360] sm:$0xff]
  %v666 = vld [vmem:[%s1 + $0x1368] sm:$0xff]
  %v667 = vld [vmem:[%s1 + $0x1370] sm:$0xff]
  %v668 = vld [vmem:[%s1 + $0x1378] sm:$0xff]
  %v669 = vld [vmem:[%s1 + $0x1380] sm:$0xff]
  %v670 = vld [vmem:[%s1 + $0x1388] sm:$0xff]
  %v671 = vld [vmem:[%s1 + $0x1390] sm:$0xff]
  %v672 = vld [vmem:[%s1 + $0x1398] sm:$0xff]
  %v673 = vld [vmem:[%s1 + $0x13a0] sm:$0xff]
  %v674 = vld [vmem:[%s1 + $0x13a8] sm:$0xff]
  %v675 = vld [vmem:[%s1 + $0x13b0] sm:$0xff]
  %v676 = vld [vmem:[%s1 + $0x13b8] sm:$0xff]
  %v677 = vld [vmem:[%s1 + $0x13c0] sm:$0xff]
  %v678 = vld [vmem:[%s1 + $0x13c8] sm:$0xff]
  %v679 = vld [vmem:[%s1 + $0x13d0] sm:$0xff]
  %v680 = vld [vmem:[%s1 + $0x13d8] sm:$0xff]
  %v681 = vld [vmem:[%s1 + $0x13e0] sm:$0xff]
  %v682 = vld [vmem:[%s1 + $0x13e8] sm:$0xff]
  %v683 = vld [vmem:[%s1 + $0x13f0] sm:$0xff]
  %v684 = vld [vmem:[%s1 + $0x13f8] sm:$0xff]
  %v685 = vld [vmem:[%s1 + $0x1400] sm:$0xff]
  %v686 = vld [vmem:[%s1 + $0x1408] sm:$0xff]
  %v687 = vld [vmem:[%s1 + $0x1410] sm:$0xff]
  %v688 = vld [vmem:[%s1 + $0x1418] sm:$0xff]
  %v689 = vld [vmem:[%s1 + $0x1420] sm:$0xff]
  %v690 = vld [vmem:[%s1 + $0x1428] sm:$0xff]
  %v691 = vld [vmem:[%s1 + $0x1430] sm:$0xff]
  %v692 = vld [vmem:[%s1 + $0x1438] sm:$0xff]
  %v693 = vld [vmem:[%s1 + $0x1440] sm:$0xff]
  %v694 = vld [vmem:[%s1 + $0x1448] sm:$0xff]
  %v695 = vld [vmem:[%s1 + $0x1450] sm:$0xff]
  %v696 = vld [vmem:[%s1 + $0x1458] sm:$0xff]
  %v697 = vld [vmem:[%s1 + $0x1460] sm:$0xff]
  %v698 = vld [vmem:[%s1 + $0x1468] sm:$0xff]
  %v699 = vld [vmem:[%s1 + $0x1470] sm:$0xff]
  %v700 = vld [vmem:[%s1 + $0x1478] sm:$0xff]
  %v701 = vld [vmem:[%s1 + $0x1480] sm:$0xff]
  %v702 = vld [vmem:[%s1 + $0x1488] sm:$0xff]
  %v703 = vld [vmem:[%s1 + $0x1490] sm:$0xff]
  %v704 = vld [vmem:[%s1 + $0x1498] sm:$0xff]
  %v705 = vld [vmem:[%s1 + $0x14a0] sm:$0xff]
  %v706 = vld [vmem:[%s1 + $0x14a8] sm:$0xff]
  %v707 = vld [vmem:[%s1 + $0x14b0] sm:$0xff]
  %v708 = vld [vmem:[%s1 + $0x14b8] sm:$0xff]
  %v709 = vld [vmem:[%s1 + $0x14c0] sm:$0xff]
  %v710 = vld [vmem:[%s1 + $0x14c8] sm:$0xff]
  %v711 = vld [vmem:[%s1 + $0x14d0] sm:$0xff]
  %v712 = vld [vmem:[%s1 + $0x14d8] sm:$0xff]
  %v713 = vld [vmem:[%s1 + $0x14e0] sm:$0xff]
  %v714 = vld [vmem:[%s1 + $0x14e8] sm:$0xff]
  %v715 = vld [vmem:[%s1 + $0x14f0] sm:$0xff]
  %v716 = vld [vmem:[%s1 + $0x14f8] sm:$0xff]
  %v717 = vld [vmem:[%s1 + $0x1500] sm:$0xff]
  %v718 = vld [vmem:[%s1 + $0x1508] sm:$0xff]
  %v719 = vld [vmem:[%s1 + $0x1510] sm:$0xff]
  %v720 = vld [vmem:[%s1 + $0x1518] sm:$0xff]
  %v721 = vld [vmem:[%s1 + $0x1520] sm:$0xff]
  %v722 = vld [vmem:[%s1 + $0x1528] sm:$0xff]
  %v723 = vld [vmem:[%s1 + $0x1530] sm:$0xff]
  %v724 = vld [vmem:[%s1 + $0x1538] sm:$0xff]
  %v725 = vld [vmem:[%s1 + $0x1540] sm:$0xff]
  %v726 = vld [vmem:[%s1 + $0x1548] sm:$0xff]
  %v727 = vld [vmem:[%s1 + $0x1550] sm:$0xff]
  %v728 = vld [vmem:[%s1 + $0x1558] sm:$0xff]
  %v729 = vld [vmem:[%s1 + $0x1560] sm:$0xff]
  %v730 = vld [vmem:[%s1 + $0x1568] sm:$0xff]
  %v731 = vld [vmem:[%s1 + $0x1570] sm:$0xff]
  %v732 = vld [vmem:[%s1 + $0x1578] sm:$0xff]
  %v733 = vld [vmem:[%s1 + $0x1580] sm:$0xff]
  %v734 = vld [vmem:[%s1 + $0x1588] sm:$0xff]
  %v735 = vld [vmem:[%s1 + $0x1590] sm:$0xff]
  %v736 = vld [vmem:[%s1 + $0x1598] sm:$0xff]
  %v737 = vld [vmem:[%s1 + $0x15a0] sm:$0xff]
  %v738 = vld [vmem:[%s1 + $0x15a8] sm:$0xff]
  %v739 = vld [vmem:[%s1 + $0x15b0] sm:$0xff]
  %v740 = vld [vmem:[%s1 + $0x15b8] sm:$0xff]
  %v741 = vld [vmem:[%s1 + $0x15c0] sm:$0xff]
  %v742 = vld [vmem:[%s1 + $0x15c8] sm:$0xff]
  %v743 = vld [vmem:[%s1 + $0x15d0] sm:$0xff]
  %v744 = vld [vmem:[%s1 + $0x15d8] sm:$0xff]
  %v745 = vld [vmem:[%s1 + $0x15e0] sm:$0xff]
  %v746 = vld [vmem:[%s1 + $0x15e8] sm:$0xff]
  %v747 = vld [vmem:[%s1 + $0x15f0] sm:$0xff]
  %v748 = vld [vmem:[%s1 + $0x15f8] sm:$0xff]
  %v749 = vld [vmem:[%s1 + $0x1600] sm:$0xff]
  %v750 = vld [vmem:[%s1 + $0x1608] sm:$0xff]
  %v751 = vld [vmem:[%s1 + $0x1610] sm:$0xff]
  %v752 = vld [vmem:[%s1 + $0x1618] sm:$0xff]
  %v753 = vld [vmem:[%s1 + $0x1620] sm:$0xff]
  %v754 = vld [vmem:[%s1 + $0x1628] sm:$0xff]
  %v755 = vld [vmem:[%s1 + $0x1630] sm:$0xff]
  %v756 = vld [vmem:[%s1 + $0x1638] sm:$0xff]
  %v757 = vld [vmem:[%s1 + $0x1640] sm:$0xff]
  %v758 = vld [vmem:[%s1 + $0x1648] sm:$0xff]
  %v759 = vld [vmem:[%s1 + $0x1650] sm:$0xff]
  %v760 = vld [vmem:[%s1 + $0x1658] sm:$0xff]
  %v761 = vld [vmem:[%s1 + $0x1660] sm:$0xff]
  %v762 = vld [vmem:[%s1 + $0x1668] sm:$0xff]
  %v763 = vld [vmem:[%s1 + $0x1670] sm:$0xff]
  %v764 = vld [vmem:[%s1 + $0x1678] sm:$0xff]
  %v765 = vld [vmem:[%s1 + $0x1680] sm:$0xff]
  %v766 = vld [vmem:[%s1 + $0x1688] sm:$0xff]
  %v767 = vld [vmem:[%s1 + $0x1690] sm:$0xff]
  %v768 = vld [vmem:[%s1 + $0x1698] sm:$0xff]
  %v769 = vld [vmem:[%s1 + $0x16a0] sm:$0xff]
  %v770 = vld [vmem:[%s1 + $0x16a8] sm:$0xff]
  %v771 = vld [vmem:[%s1 + $0x16b0] sm:$0xff]
  %v772 = vld [vmem:[%s1 + $0x16b8] sm:$0xff]
  %v773 = vld [vmem:[%s1 + $0x16c0] sm:$0xff]
  %v774 = vld [vmem:[%s1 + $0x16c8] sm:$0xff]
  %v775 = vld [vmem:[%s1 + $0x16d0] sm:$0xff]
  %v776 = vld [vmem:[%s1 + $0x16d8] sm:$0xff]
  %v777 = vld [vmem:[%s1 + $0x16e0] sm:$0xff]
  %v778 = vld [vmem:[%s1 + $0x16e8] sm:$0xff]
  %v779 = vld [vmem:[%s1 + $0x16f0] sm:$0xff]
  %v780 = vld [vmem:[%s1 + $0x16f8] sm:$0xff]
  %v781 = vld [vmem:[%s1 + $0x1700] sm:$0xff]
  %v782 = vld [vmem:[%s1 + $0x1708] sm:$0xff]
  %v783 = vld [vmem:[%s1 + $0x1710] sm:$0xff]
  %v784 = vld [vmem:[%s1 + $0x1718] sm:$0xff]
  %v785 = vld [vmem:[%s1 + $0x1720] sm:$0xff]
  %v786 = vld [vmem:[%s1 + $0x1728] sm:$0xff]
  %v787 = vld [vmem:[%s1 + $0x1730] sm:$0xff]
  %v788 = vld [vmem:[%s1 + $0x1738] sm:$0xff]
  %v789 = vld [vmem:[%s1 + $0x1740] sm:$0xff]
  %v790 = vld [vmem:[%s1 + $0x1748] sm:$0xff]
  %v791 = vld [vmem:[%s1 + $0x1750] sm:$0xff]
  %v792 = vld [vmem:[%s1 + $0x1758] sm:$0xff]
  %v793 = vld [vmem:[%s1 + $0x1760] sm:$0xff]
  %v794 = vld [vmem:[%s1 + $0x1768] sm:$0xff]
  %v795 = vld [vmem:[%s1 + $0x1770] sm:$0xff]
  %v796 = vld [vmem:[%s1 + $0x1778] sm:$0xff]
  %v797 = vld [vmem:[%s1 + $0x1780] sm:$0xff]
  %v798 = vld [vmem:[%s1 + $0x1788] sm:$0xff]
  %v799 = vld [vmem:[%s1 + $0x1790] sm:$0xff]
  %v800 = vld [vmem:[%s1 + $0x1798] sm:$0xff]
  %v801 = vld [vmem:[%s1 + $0x17a0] sm:$0xff]
  %v802 = vld [vmem:[%s1 + $0x17a8] sm:$0xff]
  %v803 = vld [vmem:[%s1 + $0x17b0] sm:$0xff]
  %v804 = vld [vmem:[%s1 + $0x17b8] sm:$0xff]
  %v805 = vld [vmem:[%s1 + $0x17c0] sm:$0xff]
  %v806 = vld [vmem:[%s1 + $0x17c8] sm:$0xff]
  %v807 = vld [vmem:[%s1 + $0x17d0] sm:$0xff]
  %v808 = vld [vmem:[%s1 + $0x17d8] sm:$0xff]
  %v809 = vld [vmem:[%s1 + $0x17e0] sm:$0xff]
  %v810 = vld [vmem:[%s1 + $0x17e8] sm:$0xff]
  %v811 = vld [vmem:[%s1 + $0x17f0] sm:$0xff]
  %v812 = vld [vmem:[%s1 + $0x17f8] sm:$0xff]
  %v813 = vld [vmem:[%s1 + $0x1800] sm:$0xff]
  %v814 = vld [vmem:[%s1 + $0x1808] sm:$0xff]
  %v815 = vld [vmem:[%s1 + $0x1810] sm:$0xff]
  %v816 = vld [vmem:[%s1 + $0x1818] sm:$0xff]
  %v817 = vld [vmem:[%s1 + $0x1820] sm:$0xff]
  %v818 = vld [vmem:[%s1 + $0x1828] sm:$0xff]
  %v819 = vld [vmem:[%s1 + $0x1830] sm:$0xff]
  %v820 = vld [vmem:[%s1 + $0x1838] sm:$0xff]
  %v821 = vld [vmem:[%s1 + $0x1840] sm:$0xff]
  %v822 = vld [vmem:[%s1 + $0x1848] sm:$0xff]
  %v823 = vld [vmem:[%s1 + $0x1850] sm:$0xff]
  %v824 = vld [vmem:[%s1 + $0x1858] sm:$0xff]
  %v825 = vld [vmem:[%s1 + $0x1860] sm:$0xff]
  %v826 = vld [vmem:[%s1 + $0x1868] sm:$0xff]
  %v827 = vld [vmem:[%s1 + $0x1870] sm:$0xff]
  %v828 = vld [vmem:[%s1 + $0x1878] sm:$0xff]
  %v829 = vld [vmem:[%s1 + $0x1880] sm:$0xff]
  %v830 = vld [vmem:[%s1 + $0x1888] sm:$0xff]
  %v831 = vld [vmem:[%s1 + $0x1890] sm:$0xff]
  %v832 = vld [vmem:[%s1 + $0x1898] sm:$0xff]
  %v833 = vld [vmem:[%s1 + $0x18a0] sm:$0xff]
  %v834 = vld [vmem:[%s1 + $0x18a8] sm:$0xff]
  %v835 = vld [vmem:[%s1 + $0x18b0] sm:$0xff]
  %v836 = vld [vmem:[%s1 + $0x18b8] sm:$0xff]
  %v837 = vld [vmem:[%s1 + $0x18c0] sm:$0xff]
  %v838 = vld [vmem:[%s1 + $0x18c8] sm:$0xff]
  %v839 = vld [vmem:[%s1 + $0x18d0] sm:$0xff]
  %v840 = vld [vmem:[%s1 + $0x18d8] sm:$0xff]
  %v841 = vld [vmem:[%s1 + $0x18e0] sm:$0xff]
  %v842 = vld [vmem:[%s1 + $0x18e8] sm:$0xff]
  %v843 = vld [vmem:[%s1 + $0x18f0] sm:$0xff]
  %v844 = vld [vmem:[%s1 + $0x18f8] sm:$0xff]
  %v845 = vld [vmem:[%s1 + $0x1900] sm:$0xff]
  %v846 = vld [vmem:[%s1 + $0x1908] sm:$0xff]
  %v847 = vld [vmem:[%s1 + $0x1910] sm:$0xff]
  %v848 = vld [vmem:[%s1 + $0x1918] sm:$0xff]
  %v849 = vld [vmem:[%s1 + $0x1920] sm:$0xff]
  %v850 = vld [vmem:[%s1 + $0x1928] sm:$0xff]
  %v851 = vld [vmem:[%s1 + $0x1930] sm:$0xff]
  %v852 = vld [vmem:[%s1 + $0x1938] sm:$0xff]
  %v853 = vld [vmem:[%s1 + $0x1940] sm:$0xff]
  %v854 = vld [vmem:[%s1 + $0x1948] sm:$0xff]
  %v855 = vld [vmem:[%s1 + $0x1950] sm:$0xff]
  %v856 = vld [vmem:[%s1 + $0x1958] sm:$0xff]
  %v857 = vld [vmem:[%s1 + $0x1960] sm:$0xff]
  %v858 = vld [vmem:[%s1 + $0x1968] sm:$0xff]
  %v859 = vld [vmem:[%s1 + $0x1970] sm:$0xff]
  %v860 = vld [vmem:[%s1 + $0x1978] sm:$0xff]
  %v861 = vld [vmem:[%s1 + $0x1980] sm:$0xff]
  %v862 = vld [vmem:[%s1 + $0x1988] sm:$0xff]
  %v863 = vld [vmem:[%s1 + $0x1990] sm:$0xff]
  %v864 = vld [vmem:[%s1 + $0x1998] sm:$0xff]
  %v865 = vld [vmem:[%s1 + $0x19a0] sm:$0xff]
  %v866 = vld [vmem:[%s1 + $0x19a8] sm:$0xff]
  %v867 = vld [vmem:[%s1 + $0x19b0] sm:$0xff]
  %v868 = vld [vmem:[%s1 + $0x19b8] sm:$0xff]
  %v869 = vld [vmem:[%s1 + $0x19c0] sm:$0xff]
  %v870 = vld [vmem:[%s1 + $0x19c8] sm:$0xff]
  %v871 = vld [vmem:[%s1 + $0x19d0] sm:$0xff]
  %v872 = vld [vmem:[%s1 + $0x19d8] sm:$0xff]
  %v873 = vld [vmem:[%s1 + $0x19e0] sm:$0xff]
  %v874 = vld [vmem:[%s1 + $0x19e8] sm:$0xff]
  %v875 = vld [vmem:[%s1 + $0x19f0] sm:$0xff]
  %v876 = vld [vmem:[%s1 + $0x19f8] sm:$0xff]
  %v877 = vld [vmem:[%s1 + $0x1a00] sm:$0xff]
  %v878 = vld [vmem:[%s1 + $0x1a08] sm:$0xff]
  %v879 = vld [vmem:[%s1 + $0x1a10] sm:$0xff]
  %v880 = vld [vmem:[%s1 + $0x1a18] sm:$0xff]
  %v881 = vld [vmem:[%s1 + $0x1a20] sm:$0xff]
  %v882 = vld [vmem:[%s1 + $0x1a28] sm:$0xff]
  %v883 = vld [vmem:[%s1 + $0x1a30] sm:$0xff]
  %v884 = vld [vmem:[%s1 + $0x1a38] sm:$0xff]
  %v885 = vld [vmem:[%s1 + $0x1a40] sm:$0xff]
  %v886 = vld [vmem:[%s1 + $0x1a48] sm:$0xff]
  %v887 = vld [vmem:[%s1 + $0x1a50] sm:$0xff]
  %v888 = vld [vmem:[%s1 + $0x1a58] sm:$0xff]
  %v889 = vld [vmem:[%s1 + $0x1a60] sm:$0xff]
  %v890 = vld [vmem:[%s1 + $0x1a68] sm:$0xff]
  %v891 = vld [vmem:[%s1 + $0x1a70] sm:$0xff]
  %v892 = vld [vmem:[%s1 + $0x1a78] sm:$0xff]
  %v893 = vld [vmem:[%s1 + $0x1a80] sm:$0xff]
  %v894 = vld [vmem:[%s1 + $0x1a88] sm:$0xff]
  %v895 = vld [vmem:[%s1 + $0x1a90] sm:$0xff]
  %v896 = vld [vmem:[%s1 + $0x1a98] sm:$0xff]
  %v897 = vld [vmem:[%s1 + $0x1aa0] sm:$0xff]
  %v898 = vld [vmem:[%s1 + $0x1aa8] sm:$0xff]
  %v899 = vld [vmem:[%s1 + $0x1ab0] sm:$0xff]
  %v900 = vld [vmem:[%s1 + $0x1ab8] sm:$0xff]
  %v901 = vld [vmem:[%s1 + $0x1ac0] sm:$0xff]
  %v902 = vld [vmem:[%s1 + $0x1ac8] sm:$0xff]
  %v903 = vld [vmem:[%s1 + $0x1ad0] sm:$0xff]
  %v904 = vld [vmem:[%s1 + $0x1ad8] sm:$0xff]
  %v905 = vld [vmem:[%s1 + $0x1ae0] sm:$0xff]
  %v906 = vld [vmem:[%s1 + $0x1ae8] sm:$0xff]
  %v907 = vld [vmem:[%s1 + $0x1af0] sm:$0xff]
  %v908 = vld [vmem:[%s1 + $0x1af8] sm:$0xff]
  %v909 = vld [vmem:[%s1 + $0x1b00] sm:$0xff]
  %v910 = vld [vmem:[%s1 + $0x1b08] sm:$0xff]
  %v911 = vld [vmem:[%s1 + $0x1b10] sm:$0xff]
  %v912 = vld [vmem:[%s1 + $0x1b18] sm:$0xff]
  %v913 = vld [vmem:[%s1 + $0x1b20] sm:$0xff]
  %v914 = vld [vmem:[%s1 + $0x1b28] sm:$0xff]
  %v915 = vld [vmem:[%s1 + $0x1b30] sm:$0xff]
  %v916 = vld [vmem:[%s1 + $0x1b38] sm:$0xff]
  %v917 = vld [vmem:[%s1 + $0x1b40] sm:$0xff]
  %v918 = vld [vmem:[%s1 + $0x1b48] sm:$0xff]
  %v919 = vld [vmem:[%s1 + $0x1b50] sm:$0xff]
  %v920 = vld [vmem:[%s1 + $0x1b58] sm:$0xff]
  %v921 = vld [vmem:[%s1 + $0x1b60] sm:$0xff]
  %v922 = vld [vmem:[%s1 + $0x1b68] sm:$0xff]
  %v923 = vld [vmem:[%s1 + $0x1b70] sm:$0xff]
  %v924 = vld [vmem:[%s1 + $0x1b78] sm:$0xff]
  %v925 = vld [vmem:[%s1 + $0x1b80] sm:$0xff]
  %v926 = vld [vmem:[%s1 + $0x1b88] sm:$0xff]
  %v927 = vld [vmem:[%s1 + $0x1b90] sm:$0xff]
  %v928 = vld [vmem:[%s1 + $0x1b98] sm:$0xff]
  %v929 = vld [vmem:[%s1 + $0x1ba0] sm:$0xff]
  %v930 = vld [vmem:[%s1 + $0x1ba8] sm:$0xff]
  %v931 = vld [vmem:[%s1 + $0x1bb0] sm:$0xff]
  %v932 = vld [vmem:[%s1 + $0x1bb8] sm:$0xff]
  %v933 = vld [vmem:[%s1 + $0x1bc0] sm:$0xff]
  %v934 = vld [vmem:[%s1 + $0x1bc8] sm:$0xff]
  %v935 = vld [vmem:[%s1 + $0x1bd0] sm:$0xff]
  %v936 = vld [vmem:[%s1 + $0x1bd8] sm:$0xff]
  %v937 = vld [vmem:[%s1 + $0x1be0] sm:$0xff]
  %v938 = vld [vmem:[%s1 + $0x1be8] sm:$0xff]
  %v939 = vld [vmem:[%s1 + $0x1bf0] sm:$0xff]
  %v940 = vld [vmem:[%s1 + $0x1bf8] sm:$0xff]
  %v941 = vld [vmem:[%s1 + $0x1c00] sm:$0xff]
  %v942 = vld [vmem:[%s1 + $0x1c08] sm:$0xff]
  %v943 = vld [vmem:[%s1 + $0x1c10] sm:$0xff]
  %v944 = vld [vmem:[%s1 + $0x1c18] sm:$0xff]
  %v945 = vld [vmem:[%s1 + $0x1c20] sm:$0xff]
  %v946 = vld [vmem:[%s1 + $0x1c28] sm:$0xff]
  %v947 = vld [vmem:[%s1 + $0x1c30] sm:$0xff]
  %v948 = vld [vmem:[%s1 + $0x1c38] sm:$0xff]
  %v949 = vld [vmem:[%s1 + $0x1c40] sm:$0xff]
  %v950 = vld [vmem:[%s1 + $0x1c48] sm:$0xff]
  %v951 = vld [vmem:[%s1 + $0x1c50] sm:$0xff]
  %v952 = vld [vmem:[%s1 + $0x1c58] sm:$0xff]
  %v953 = vld [vmem:[%s1 + $0x1c60] sm:$0xff]
  %v954 = vld [vmem:[%s1 + $0x1c68] sm:$0xff]
  %v955 = vld [vmem:[%s1 + $0x1c70] sm:$0xff]
  %v956 = vld [vmem:[%s1 + $0x1c78] sm:$0xff]
  %v957 = vld [vmem:[%s1 + $0x1c80] sm:$0xff]
  %v958 = vld [vmem:[%s1 + $0x1c88] sm:$0xff]
  %v959 = vld [vmem:[%s1 + $0x1c90] sm:$0xff]
  %v960 = vld [vmem:[%s1 + $0x1c98] sm:$0xff]
  %v961 = vld [vmem:[%s1 + $0x1ca0] sm:$0xff]
  %v962 = vld [vmem:[%s1 + $0x1ca8] sm:$0xff]
  %v963 = vld [vmem:[%s1 + $0x1cb0] sm:$0xff]
  %v964 = vld [vmem:[%s1 + $0x1cb8] sm:$0xff]
  %v965 = vld [vmem:[%s1 + $0x1cc0] sm:$0xff]
  %v966 = vld [vmem:[%s1 + $0x1cc8] sm:$0xff]
  %v967 = vld [vmem:[%s1 + $0x1cd0] sm:$0xff]
  %v968 = vld [vmem:[%s1 + $0x1cd8] sm:$0xff]
  %v969 = vld [vmem:[%s1 + $0x1ce0] sm:$0xff]
  %v970 = vld [vmem:[%s1 + $0x1ce8] sm:$0xff]
  %v971 = vld [vmem:[%s1 + $0x1cf0] sm:$0xff]
  %v972 = vld [vmem:[%s1 + $0x1cf8] sm:$0xff]
  %v973 = vld [vmem:[%s1 + $0x1d00] sm:$0xff]
  %v974 = vld [vmem:[%s1 + $0x1d08] sm:$0xff]
  %v975 = vld [vmem:[%s1 + $0x1d10] sm:$0xff]
  %v976 = vld [vmem:[%s1 + $0x1d18] sm:$0xff]
  %v977 = vld [vmem:[%s1 + $0x1d20] sm:$0xff]
  %v978 = vld [vmem:[%s1 + $0x1d28] sm:$0xff]
  %v979 = vld [vmem:[%s1 + $0x1d30] sm:$0xff]
  %v980 = vld [vmem:[%s1 + $0x1d38] sm:$0xff]
  %v981 = vld [vmem:[%s1 + $0x1d40] sm:$0xff]
  %v982 = vld [vmem:[%s1 + $0x1d48] sm:$0xff]
  %v983 = vld [vmem:[%s1 + $0x1d50] sm:$0xff]
  %v984 = vld [vmem:[%s1 + $0x1d58] sm:$0xff]
  %v985 = vld [vmem:[%s1 + $0x1d60] sm:$0xff]
  %v986 = vld [vmem:[%s1 + $0x1d68] sm:$0xff]
  %v987 = vld [vmem:[%s1 + $0x1d70] sm:$0xff]
  %v988 = vld [vmem:[%s1 + $0x1d78] sm:$0xff]
  %v989 = vld [vmem:[%s1 + $0x1d80] sm:$0xff]
  %v990 = vld [vmem:[%s1 + $0x1d88] sm:$0xff]
  %v991 = vld [vmem:[%s1 + $0x1d90] sm:$0xff]
  %v992 = vld [vmem:[%s1 + $0x1d98] sm:$0xff]
  %v993 = vld [vmem:[%s1 + $0x1da0] sm:$0xff]
  %v994 = vld [vmem:[%s1 + $0x1da8] sm:$0xff]
  %v995 = vld [vmem:[%s1 + $0x1db0] sm:$0xff]
  %v996 = vld [vmem:[%s1 + $0x1db8] sm:$0xff]
  %v997 = vld [vmem:[%s1 + $0x1dc0] sm:$0xff]
  %v998 = vld [vmem:[%s1 + $0x1dc8] sm:$0xff]
  %v999 = vld [vmem:[%s1 + $0x1dd0] sm:$0xff]
  %v1000 = vld [vmem:[%s1 + $0x1dd8] sm:$0xff]
  %v1001 = vld [vmem:[%s1 + $0x1de0] sm:$0xff]
  %v1002 = vld [vmem:[%s1 + $0x1de8] sm:$0xff]
  %v1003 = vld [vmem:[%s1 + $0x1df0] sm:$0xff]
  %v1004 = vld [vmem:[%s1 + $0x1df8] sm:$0xff]
  %v1005 = vld [vmem:[%s1 + $0x1e00] sm:$0xff]
  %v1006 = vld [vmem:[%s1 + $0x1e08] sm:$0xff]
  %v1007 = vld [vmem:[%s1 + $0x1e10] sm:$0xff]
  %v1008 = vld [vmem:[%s1 + $0x1e18] sm:$0xff]
  %v1009 = vld [vmem:[%s1 + $0x1e20] sm:$0xff]
  %v1010 = vld [vmem:[%s1 + $0x1e28] sm:$0xff]
  %v1011 = vld [vmem:[%s1 + $0x1e30] sm:$0xff]
  %v1012 = vld [vmem:[%s1 + $0x1e38] sm:$0xff]
  %v1013 = vld [vmem:[%s1 + $0x1e40] sm:$0xff]
  %v1014 = vld [vmem:[%s1 + $0x1e48] sm:$0xff]
  %v1015 = vld [vmem:[%s1 + $0x1e50] sm:$0xff]
  %v1016 = vld [vmem:[%s1 + $0x1e58] sm:$0xff]
  %v1017 = vld [vmem:[%s1 + $0x1e60] sm:$0xff]
  %v1018 = vld [vmem:[%s1 + $0x1e68] sm:$0xff]
  %v1019 = vld [vmem:[%s1 + $0x1e70] sm:$0xff]
  %v1020 = vld [vmem:[%s1 + $0x1e78] sm:$0xff]
  %v1021 = vld [vmem:[%s1 + $0x1e80] sm:$0xff]
  %v1022 = vld [vmem:[%s1 + $0x1e88] sm:$0xff]
  %v1023 = vld [vmem:[%s1 + $0x1e90] sm:$0xff]
  %v1024 = vld [vmem:[%s1 + $0x1e98] sm:$0xff]
  %v1025 = vld [vmem:[%s1 + $0x1ea0] sm:$0xff]
  %v1026 = vld [vmem:[%s1 + $0x1ea8] sm:$0xff]
  %v1027 = vld [vmem:[%s1 + $0x1eb0] sm:$0xff]
  %v1028 = vld [vmem:[%s1 + $0x1eb8] sm:$0xff]
  %v1029 = vld [vmem:[%s1 + $0x1ec0] sm:$0xff]
  %v1030 = vld [vmem:[%s1 + $0x1ec8] sm:$0xff]
  %v1031 = vld [vmem:[%s1 + $0x1ed0] sm:$0xff]
  %v1032 = vld [vmem:[%s1 + $0x1ed8] sm:$0xff]
  %v1033 = vld [vmem:[%s1 + $0x1ee0] sm:$0xff]
  %v1034 = vld [vmem:[%s1 + $0x1ee8] sm:$0xff]
  %v1035 = vld [vmem:[%s1 + $0x1ef0] sm:$0xff]
  %v1036 = vld [vmem:[%s1 + $0x1ef8] sm:$0xff]
  %v1037 = vld [vmem:[%s1 + $0x1f00] sm:$0xff]
  %v1038 = vld [vmem:[%s1 + $0x1f08] sm:$0xff]
  %v1039 = vld [vmem:[%s1 + $0x1f10] sm:$0xff]
  %v1040 = vld [vmem:[%s1 + $0x1f18] sm:$0xff]
  %v1041 = vld [vmem:[%s1 + $0x1f20] sm:$0xff]
  %v1042 = vld [vmem:[%s1 + $0x1f28] sm:$0xff]
  %v1043 = vld [vmem:[%s1 + $0x1f30] sm:$0xff]
  %v1044 = vld [vmem:[%s1 + $0x1f38] sm:$0xff]
  %v1045 = vld [vmem:[%s1 + $0x1f40] sm:$0xff]
  %v1046 = vld [vmem:[%s1 + $0x1f48] sm:$0xff]
  %v1047 = vld [vmem:[%s1 + $0x1f50] sm:$0xff]
  %v1048 = vld [vmem:[%s1 + $0x1f58] sm:$0xff]
  %v1049 = vld [vmem:[%s1 + $0x1f60] sm:$0xff]
  %v1050 = vld [vmem:[%s1 + $0x1f68] sm:$0xff]
  %v1051 = vld [vmem:[%s1 + $0x1f70] sm:$0xff]
  %v1052 = vld [vmem:[%s1 + $0x1f78] sm:$0xff]
  %v1053 = vld [vmem:[%s1 + $0x1f80] sm:$0xff]
  %v1054 = vld [vmem:[%s1 + $0x1f88] sm:$0xff]
  %v1055 = vld [vmem:[%s1 + $0x1f90] sm:$0xff]
  %v1056 = vld [vmem:[%s1 + $0x1f98] sm:$0xff]
  %v1057 = vld [vmem:[%s1 + $0x1fa0] sm:$0xff]
  %v1058 = vld [vmem:[%s1 + $0x1fa8] sm:$0xff]
  %v1059 = vld [vmem:[%s1 + $0x1fb0] sm:$0xff]
  %v1060 = vld [vmem:[%s1 + $0x1fb8] sm:$0xff]
  %v1061 = vld [vmem:[%s1 + $0x1fc0] sm:$0xff]
  %v1062 = vld [vmem:[%s1 + $0x1fc8] sm:$0xff]
  %v1063 = vld [vmem:[%s1 + $0x1fd0] sm:$0xff]
  %v1064 = vld [vmem:[%s1 + $0x1fd8] sm:$0xff]
  %v1065 = vld [vmem:[%s1 + $0x1fe0] sm:$0xff]
  %v1066 = vld [vmem:[%s1 + $0x1fe8] sm:$0xff]
  %v1067 = vld [vmem:[%s1 + $0x1ff0] sm:$0xff]
  %v1068 = vld [vmem:[%s1 + $0x1ff8] sm:$0xff]
  %v1085 = vunpack.c.l.b16 %v29
  %v1086 = vunpack.c.h.b16 %v29
  %v1087 = vunpack.c.l.b16 %v30
  %v1088 = vunpack.c.h.b16 %v30
  %v1089 = vunpack.c.l.b16 %v31
  %v1090 = vunpack.c.h.b16 %v31
  %v1091 = vunpack.c.l.b16 %v32
  %v1092 = vunpack.c.h.b16 %v32
  %v1093 = vunpack.c.l.b16 %v33
  %v1094 = vunpack.c.h.b16 %v33
  %v1095 = vunpack.c.l.b16 %v34
  %v1096 = vunpack.c.h.b16 %v34
  %v1097 = vunpack.c.l.b16 %v35
  %v1098 = vunpack.c.h.b16 %v35
  %v1099 = vunpack.c.l.b16 %v36
  %v1100 = vunpack.c.h.b16 %v36
  %v1101 = vunpack.c.l.b16 %v37
  %v1102 = vunpack.c.h.b16 %v37
  %v1103 = vunpack.c.l.b16 %v38
  %v1104 = vunpack.c.h.b16 %v38
  %v1105 = vunpack.c.l.b16 %v39
  %v1106 = vunpack.c.h.b16 %v39
  %v1107 = vunpack.c.l.b16 %v40
  %v1108 = vunpack.c.h.b16 %v40
  %v1109 = vunpack.c.l.b16 %v41
  %v1110 = vunpack.c.h.b16 %v41
  %v1111 = vunpack.c.l.b16 %v42
  %v1112 = vunpack.c.h.b16 %v42
  %v1113 = vunpack.c.l.b16 %v43
  %v1114 = vunpack.c.h.b16 %v43
  %v1115 = vunpack.c.l.b16 %v44
  %v1116 = vunpack.c.h.b16 %v44
  %v1117 = vpack.c.b16 %v1085, %v1085
  %v1118 = vpack.c.b16 %v1086, %v1086
  %v1119 = vpack.c.b16 %v1087, %v1087
  %v1120 = vpack.c.b16 %v1088, %v1088
  %v1121 = vpack.c.b16 %v1089, %v1089
  %v1122 = vpack.c.b16 %v1090, %v1090
  %v1123 = vpack.c.b16 %v1091, %v1091
  %v1124 = vpack.c.b16 %v1092, %v1092
  %v1125 = vpack.c.b16 %v1093, %v1093
  %v1126 = vpack.c.b16 %v1094, %v1094
  %v1127 = vpack.c.b16 %v1095, %v1095
  %v1128 = vpack.c.b16 %v1096, %v1096
  %v1129 = vpack.c.b16 %v1097, %v1097
  %v1130 = vpack.c.b16 %v1098, %v1098
  %v1131 = vpack.c.b16 %v1099, %v1099
  %v1132 = vpack.c.b16 %v1100, %v1100
  %v1133 = vpack.c.b16 %v1101, %v1101
  %v1134 = vpack.c.b16 %v1102, %v1102
  %v1135 = vpack.c.b16 %v1103, %v1103
  %v1136 = vpack.c.b16 %v1104, %v1104
  %v1137 = vpack.c.b16 %v1105, %v1105
  %v1138 = vpack.c.b16 %v1106, %v1106
  %v1139 = vpack.c.b16 %v1107, %v1107
  %v1140 = vpack.c.b16 %v1108, %v1108
  %v1141 = vpack.c.b16 %v1109, %v1109
  %v1142 = vpack.c.b16 %v1110, %v1110
  %v1143 = vpack.c.b16 %v1111, %v1111
  %v1144 = vpack.c.b16 %v1112, %v1112
  %v1145 = vpack.c.b16 %v1113, %v1113
  %v1146 = vpack.c.b16 %v1114, %v1114
  %v1147 = vpack.c.b16 %v1115, %v1115
  %v1148 = vpack.c.b16 %v1116, %v1116
  %v2205 = vunpack.c.l.b16 %v45
  %v2206 = vunpack.c.h.b16 %v45
  %v2207 = vunpack.c.l.b16 %v46
  %v2208 = vunpack.c.h.b16 %v46
  %v2209 = vunpack.c.l.b16 %v47
  %v2210 = vunpack.c.h.b16 %v47
  %v2211 = vunpack.c.l.b16 %v48
  %v2212 = vunpack.c.h.b16 %v48
  %v2213 = vunpack.c.l.b16 %v49
  %v2214 = vunpack.c.h.b16 %v49
  %v2215 = vunpack.c.l.b16 %v50
  %v2216 = vunpack.c.h.b16 %v50
  %v2217 = vunpack.c.l.b16 %v51
  %v2218 = vunpack.c.h.b16 %v51
  %v2219 = vunpack.c.l.b16 %v52
  %v2220 = vunpack.c.h.b16 %v52
  %v2221 = vunpack.c.l.b16 %v53
  %v2222 = vunpack.c.h.b16 %v53
  %v2223 = vunpack.c.l.b16 %v54
  %v2224 = vunpack.c.h.b16 %v54
  %v2225 = vunpack.c.l.b16 %v55
  %v2226 = vunpack.c.h.b16 %v55
  %v2227 = vunpack.c.l.b16 %v56
  %v2228 = vunpack.c.h.b16 %v56
  %v2229 = vunpack.c.l.b16 %v57
  %v2230 = vunpack.c.h.b16 %v57
  %v2231 = vunpack.c.l.b16 %v58
  %v2232 = vunpack.c.h.b16 %v58
  %v2233 = vunpack.c.l.b16 %v59
  %v2234 = vunpack.c.h.b16 %v59
  %v2235 = vunpack.c.l.b16 %v60
  %v2236 = vunpack.c.h.b16 %v60
  %v2237 = vunpack.c.l.b16 %v61
  %v2238 = vunpack.c.h.b16 %v61
  %v2239 = vunpack.c.l.b16 %v62
  %v2240 = vunpack.c.h.b16 %v62
  %v2241 = vunpack.c.l.b16 %v63
  %v2242 = vunpack.c.h.b16 %v63
  %v2243 = vunpack.c.l.b16 %v64
  %v2244 = vunpack.c.h.b16 %v64
  %v2245 = vunpack.c.l.b16 %v65
  %v2246 = vunpack.c.h.b16 %v65
  %v2247 = vunpack.c.l.b16 %v66
  %v2248 = vunpack.c.h.b16 %v66
  %v2249 = vunpack.c.l.b16 %v67
  %v2250 = vunpack.c.h.b16 %v67
  %v2251 = vunpack.c.l.b16 %v68
  %v2252 = vunpack.c.h.b16 %v68
  %v2253 = vunpack.c.l.b16 %v69
  %v2254 = vunpack.c.h.b16 %v69
  %v2255 = vunpack.c.l.b16 %v70
  %v2256 = vunpack.c.h.b16 %v70
  %v2257 = vunpack.c.l.b16 %v71
  %v2258 = vunpack.c.h.b16 %v71
  %v2259 = vunpack.c.l.b16 %v72
  %v2260 = vunpack.c.h.b16 %v72
  %v2261 = vunpack.c.l.b16 %v73
  %v2262 = vunpack.c.h.b16 %v73
  %v2263 = vunpack.c.l.b16 %v74
  %v2264 = vunpack.c.h.b16 %v74
  %v2265 = vunpack.c.l.b16 %v75
  %v2266 = vunpack.c.h.b16 %v75
  %v2267 = vunpack.c.l.b16 %v76
  %v2268 = vunpack.c.h.b16 %v76
  %v2269 = vunpack.c.l.b16 %v77
  %v2270 = vunpack.c.h.b16 %v77
  %v2271 = vunpack.c.l.b16 %v78
  %v2272 = vunpack.c.h.b16 %v78
  %v2273 = vunpack.c.l.b16 %v79
  %v2274 = vunpack.c.h.b16 %v79
  %v2275 = vunpack.c.l.b16 %v80
  %v2276 = vunpack.c.h.b16 %v80
  %v2277 = vunpack.c.l.b16 %v81
  %v2278 = vunpack.c.h.b16 %v81
  %v2279 = vunpack.c.l.b16 %v82
  %v2280 = vunpack.c.h.b16 %v82
  %v2281 = vunpack.c.l.b16 %v83
  %v2282 = vunpack.c.h.b16 %v83
  %v2283 = vunpack.c.l.b16 %v84
  %v2284 = vunpack.c.h.b16 %v84
  %v2285 = vunpack.c.l.b16 %v85
  %v2286 = vunpack.c.h.b16 %v85
  %v2287 = vunpack.c.l.b16 %v86
  %v2288 = vunpack.c.h.b16 %v86
  %v2289 = vunpack.c.l.b16 %v87
  %v2290 = vunpack.c.h.b16 %v87
  %v2291 = vunpack.c.l.b16 %v88
  %v2292 = vunpack.c.h.b16 %v88
  %v2293 = vunpack.c.l.b16 %v89
  %v2294 = vunpack.c.h.b16 %v89
  %v2295 = vunpack.c.l.b16 %v90
  %v2296 = vunpack.c.h.b16 %v90
  %v2297 = vunpack.c.l.b16 %v91
  %v2298 = vunpack.c.h.b16 %v91
  %v2299 = vunpack.c.l.b16 %v92
  %v2300 = vunpack.c.h.b16 %v92
  %v2301 = vunpack.c.l.b16 %v93
  %v2302 = vunpack.c.h.b16 %v93
  %v2303 = vunpack.c.l.b16 %v94
  %v2304 = vunpack.c.h.b16 %v94
  %v2305 = vunpack.c.l.b16 %v95
  %v2306 = vunpack.c.h.b16 %v95
  %v2307 = vunpack.c.l.b16 %v96
  %v2308 = vunpack.c.h.b16 %v96
  %v2309 = vunpack.c.l.b16 %v97
  %v2310 = vunpack.c.h.b16 %v97
  %v2311 = vunpack.c.l.b16 %v98
  %v2312 = vunpack.c.h.b16 %v98
  %v2313 = vunpack.c.l.b16 %v99
  %v2314 = vunpack.c.h.b16 %v99
  %v2315 = vunpack.c.l.b16 %v100
  %v2316 = vunpack.c.h.b16 %v100
  %v2317 = vunpack.c.l.b16 %v101
  %v2318 = vunpack.c.h.b16 %v101
  %v2319 = vunpack.c.l.b16 %v102
  %v2320 = vunpack.c.h.b16 %v102
  %v2321 = vunpack.c.l.b16 %v103
  %v2322 = vunpack.c.h.b16 %v103
  %v2323 = vunpack.c.l.b16 %v104
  %v2324 = vunpack.c.h.b16 %v104
  %v2325 = vunpack.c.l.b16 %v105
  %v2326 = vunpack.c.h.b16 %v105
  %v2327 = vunpack.c.l.b16 %v106
  %v2328 = vunpack.c.h.b16 %v106
  %v2329 = vunpack.c.l.b16 %v107
  %v2330 = vunpack.c.h.b16 %v107
  %v2331 = vunpack.c.l.b16 %v108
  %v2332 = vunpack.c.h.b16 %v108
  %v2333 = vunpack.c.l.b16 %v109
  %v2334 = vunpack.c.h.b16 %v109
  %v2335 = vunpack.c.l.b16 %v110
  %v2336 = vunpack.c.h.b16 %v110
  %v2337 = vunpack.c.l.b16 %v111
  %v2338 = vunpack.c.h.b16 %v111
  %v2339 = vunpack.c.l.b16 %v112
  %v2340 = vunpack.c.h.b16 %v112
  %v2341 = vunpack.c.l.b16 %v113
  %v2342 = vunpack.c.h.b16 %v113
  %v2343 = vunpack.c.l.b16 %v114
  %v2344 = vunpack.c.h.b16 %v114
  %v2345 = vunpack.c.l.b16 %v115
  %v2346 = vunpack.c.h.b16 %v115
  %v2347 = vunpack.c.l.b16 %v116
  %v2348 = vunpack.c.h.b16 %v116
  %v2349 = vunpack.c.l.b16 %v117
  %v2350 = vunpack.c.h.b16 %v117
  %v2351 = vunpack.c.l.b16 %v118
  %v2352 = vunpack.c.h.b16 %v118
  %v2353 = vunpack.c.l.b16 %v119
  %v2354 = vunpack.c.h.b16 %v119
  %v2355 = vunpack.c.l.b16 %v120
  %v2356 = vunpack.c.h.b16 %v120
  %v2357 = vunpack.c.l.b16 %v121
  %v2358 = vunpack.c.h.b16 %v121
  %v2359 = vunpack.c.l.b16 %v122
  %v2360 = vunpack.c.h.b16 %v122
  %v2361 = vunpack.c.l.b16 %v123
  %v2362 = vunpack.c.h.b16 %v123
  %v2363 = vunpack.c.l.b16 %v124
  %v2364 = vunpack.c.h.b16 %v124
  %v2365 = vunpack.c.l.b16 %v125
  %v2366 = vunpack.c.h.b16 %v125
  %v2367 = vunpack.c.l.b16 %v126
  %v2368 = vunpack.c.h.b16 %v126
  %v2369 = vunpack.c.l.b16 %v127
  %v2370 = vunpack.c.h.b16 %v127
  %v2371 = vunpack.c.l.b16 %v128
  %v2372 = vunpack.c.h.b16 %v128
  %v2373 = vunpack.c.l.b16 %v129
  %v2374 = vunpack.c.h.b16 %v129
  %v2375 = vunpack.c.l.b16 %v130
  %v2376 = vunpack.c.h.b16 %v130
  %v2377 = vunpack.c.l.b16 %v131
  %v2378 = vunpack.c.h.b16 %v131
  %v2379 = vunpack.c.l.b16 %v132
  %v2380 = vunpack.c.h.b16 %v132
  %v2381 = vunpack.c.l.b16 %v133
  %v2382 = vunpack.c.h.b16 %v133
  %v2383 = vunpack.c.l.b16 %v134
  %v2384 = vunpack.c.h.b16 %v134
  %v2385 = vunpack.c.l.b16 %v135
  %v2386 = vunpack.c.h.b16 %v135
  %v2387 = vunpack.c.l.b16 %v136
  %v2388 = vunpack.c.h.b16 %v136
  %v2389 = vunpack.c.l.b16 %v137
  %v2390 = vunpack.c.h.b16 %v137
  %v2391 = vunpack.c.l.b16 %v138
  %v2392 = vunpack.c.h.b16 %v138
  %v2393 = vunpack.c.l.b16 %v139
  %v2394 = vunpack.c.h.b16 %v139
  %v2395 = vunpack.c.l.b16 %v140
  %v2396 = vunpack.c.h.b16 %v140
  %v2397 = vunpack.c.l.b16 %v141
  %v2398 = vunpack.c.h.b16 %v141
  %v2399 = vunpack.c.l.b16 %v142
  %v2400 = vunpack.c.h.b16 %v142
  %v2401 = vunpack.c.l.b16 %v143
  %v2402 = vunpack.c.h.b16 %v143
  %v2403 = vunpack.c.l.b16 %v144
  %v2404 = vunpack.c.h.b16 %v144
  %v2405 = vunpack.c.l.b16 %v145
  %v2406 = vunpack.c.h.b16 %v145
  %v2407 = vunpack.c.l.b16 %v146
  %v2408 = vunpack.c.h.b16 %v146
  %v2409 = vunpack.c.l.b16 %v147
  %v2410 = vunpack.c.h.b16 %v147
  %v2411 = vunpack.c.l.b16 %v148
  %v2412 = vunpack.c.h.b16 %v148
  %v2413 = vunpack.c.l.b16 %v149
  %v2414 = vunpack.c.h.b16 %v149
  %v2415 = vunpack.c.l.b16 %v150
  %v2416 = vunpack.c.h.b16 %v150
  %v2417 = vunpack.c.l.b16 %v151
  %v2418 = vunpack.c.h.b16 %v151
  %v2419 = vunpack.c.l.b16 %v152
  %v2420 = vunpack.c.h.b16 %v152
  %v2421 = vunpack.c.l.b16 %v153
  %v2422 = vunpack.c.h.b16 %v153
  %v2423 = vunpack.c.l.b16 %v154
  %v2424 = vunpack.c.h.b16 %v154
  %v2425 = vunpack.c.l.b16 %v155
  %v2426 = vunpack.c.h.b16 %v155
  %v2427 = vunpack.c.l.b16 %v156
  %v2428 = vunpack.c.h.b16 %v156
  %v2429 = vunpack.c.l.b16 %v157
  %v2430 = vunpack.c.h.b16 %v157
  %v2431 = vunpack.c.l.b16 %v158
  %v2432 = vunpack.c.h.b16 %v158
  %v2433 = vunpack.c.l.b16 %v159
  %v2434 = vunpack.c.h.b16 %v159
  %v2435 = vunpack.c.l.b16 %v160
  %v2436 = vunpack.c.h.b16 %v160
  %v2437 = vunpack.c.l.b16 %v161
  %v2438 = vunpack.c.h.b16 %v161
  %v2439 = vunpack.c.l.b16 %v162
  %v2440 = vunpack.c.h.b16 %v162
  %v2441 = vunpack.c.l.b16 %v163
  %v2442 = vunpack.c.h.b16 %v163
  %v2443 = vunpack.c.l.b16 %v164
  %v2444 = vunpack.c.h.b16 %v164
  %v2445 = vunpack.c.l.b16 %v165
  %v2446 = vunpack.c.h.b16 %v165
  %v2447 = vunpack.c.l.b16 %v166
  %v2448 = vunpack.c.h.b16 %v166
  %v2449 = vunpack.c.l.b16 %v167
  %v2450 = vunpack.c.h.b16 %v167
  %v2451 = vunpack.c.l.b16 %v168
  %v2452 = vunpack.c.h.b16 %v168
  %v2453 = vunpack.c.l.b16 %v169
  %v2454 = vunpack.c.h.b16 %v169
  %v2455 = vunpack.c.l.b16 %v170
  %v2456 = vunpack.c.h.b16 %v170
  %v2457 = vunpack.c.l.b16 %v171
  %v2458 = vunpack.c.h.b16 %v171
  %v2459 = vunpack.c.l.b16 %v172
  %v2460 = vunpack.c.h.b16 %v172
  %v2461 = vunpack.c.l.b16 %v173
  %v2462 = vunpack.c.h.b16 %v173
  %v2463 = vunpack.c.l.b16 %v174
  %v2464 = vunpack.c.h.b16 %v174
  %v2465 = vunpack.c.l.b16 %v175
  %v2466 = vunpack.c.h.b16 %v175
  %v2467 = vunpack.c.l.b16 %v176
  %v2468 = vunpack.c.h.b16 %v176
  %v2469 = vunpack.c.l.b16 %v177
  %v2470 = vunpack.c.h.b16 %v177
  %v2471 = vunpack.c.l.b16 %v178
  %v2472 = vunpack.c.h.b16 %v178
  %v2473 = vunpack.c.l.b16 %v179
  %v2474 = vunpack.c.h.b16 %v179
  %v2475 = vunpack.c.l.b16 %v180
  %v2476 = vunpack.c.h.b16 %v180
  %v2477 = vunpack.c.l.b16 %v181
  %v2478 = vunpack.c.h.b16 %v181
  %v2479 = vunpack.c.l.b16 %v182
  %v2480 = vunpack.c.h.b16 %v182
  %v2481 = vunpack.c.l.b16 %v183
  %v2482 = vunpack.c.h.b16 %v183
  %v2483 = vunpack.c.l.b16 %v184
  %v2484 = vunpack.c.h.b16 %v184
  %v2485 = vunpack.c.l.b16 %v185
  %v2486 = vunpack.c.h.b16 %v185
  %v2487 = vunpack.c.l.b16 %v186
  %v2488 = vunpack.c.h.b16 %v186
  %v2489 = vunpack.c.l.b16 %v187
  %v2490 = vunpack.c.h.b16 %v187
  %v2491 = vunpack.c.l.b16 %v188
  %v2492 = vunpack.c.h.b16 %v188
  %v2493 = vunpack.c.l.b16 %v189
  %v2494 = vunpack.c.h.b16 %v189
  %v2495 = vunpack.c.l.b16 %v190
  %v2496 = vunpack.c.h.b16 %v190
  %v2497 = vunpack.c.l.b16 %v191
  %v2498 = vunpack.c.h.b16 %v191
  %v2499 = vunpack.c.l.b16 %v192
  %v2500 = vunpack.c.h.b16 %v192
  %v2501 = vunpack.c.l.b16 %v193
  %v2502 = vunpack.c.h.b16 %v193
  %v2503 = vunpack.c.l.b16 %v194
  %v2504 = vunpack.c.h.b16 %v194
  %v2505 = vunpack.c.l.b16 %v195
  %v2506 = vunpack.c.h.b16 %v195
  %v2507 = vunpack.c.l.b16 %v196
  %v2508 = vunpack.c.h.b16 %v196
  %v2509 = vunpack.c.l.b16 %v197
  %v2510 = vunpack.c.h.b16 %v197
  %v2511 = vunpack.c.l.b16 %v198
  %v2512 = vunpack.c.h.b16 %v198
  %v2513 = vunpack.c.l.b16 %v199
  %v2514 = vunpack.c.h.b16 %v199
  %v2515 = vunpack.c.l.b16 %v200
  %v2516 = vunpack.c.h.b16 %v200
  %v2517 = vunpack.c.l.b16 %v201
  %v2518 = vunpack.c.h.b16 %v201
  %v2519 = vunpack.c.l.b16 %v202
  %v2520 = vunpack.c.h.b16 %v202
  %v2521 = vunpack.c.l.b16 %v203
  %v2522 = vunpack.c.h.b16 %v203
  %v2523 = vunpack.c.l.b16 %v204
  %v2524 = vunpack.c.h.b16 %v204
  %v2525 = vunpack.c.l.b16 %v205
  %v2526 = vunpack.c.h.b16 %v205
  %v2527 = vunpack.c.l.b16 %v206
  %v2528 = vunpack.c.h.b16 %v206
  %v2529 = vunpack.c.l.b16 %v207
  %v2530 = vunpack.c.h.b16 %v207
  %v2531 = vunpack.c.l.b16 %v208
  %v2532 = vunpack.c.h.b16 %v208
  %v2533 = vunpack.c.l.b16 %v209
  %v2534 = vunpack.c.h.b16 %v209
  %v2535 = vunpack.c.l.b16 %v210
  %v2536 = vunpack.c.h.b16 %v210
  %v2537 = vunpack.c.l.b16 %v211
  %v2538 = vunpack.c.h.b16 %v211
  %v2539 = vunpack.c.l.b16 %v212
  %v2540 = vunpack.c.h.b16 %v212
  %v2541 = vunpack.c.l.b16 %v213
  %v2542 = vunpack.c.h.b16 %v213
  %v2543 = vunpack.c.l.b16 %v214
  %v2544 = vunpack.c.h.b16 %v214
  %v2545 = vunpack.c.l.b16 %v215
  %v2546 = vunpack.c.h.b16 %v215
  %v2547 = vunpack.c.l.b16 %v216
  %v2548 = vunpack.c.h.b16 %v216
  %v2549 = vunpack.c.l.b16 %v217
  %v2550 = vunpack.c.h.b16 %v217
  %v2551 = vunpack.c.l.b16 %v218
  %v2552 = vunpack.c.h.b16 %v218
  %v2553 = vunpack.c.l.b16 %v219
  %v2554 = vunpack.c.h.b16 %v219
  %v2555 = vunpack.c.l.b16 %v220
  %v2556 = vunpack.c.h.b16 %v220
  %v2557 = vunpack.c.l.b16 %v221
  %v2558 = vunpack.c.h.b16 %v221
  %v2559 = vunpack.c.l.b16 %v222
  %v2560 = vunpack.c.h.b16 %v222
  %v2561 = vunpack.c.l.b16 %v223
  %v2562 = vunpack.c.h.b16 %v223
  %v2563 = vunpack.c.l.b16 %v224
  %v2564 = vunpack.c.h.b16 %v224
  %v2565 = vunpack.c.l.b16 %v225
  %v2566 = vunpack.c.h.b16 %v225
  %v2567 = vunpack.c.l.b16 %v226
  %v2568 = vunpack.c.h.b16 %v226
  %v2569 = vunpack.c.l.b16 %v227
  %v2570 = vunpack.c.h.b16 %v227
  %v2571 = vunpack.c.l.b16 %v228
  %v2572 = vunpack.c.h.b16 %v228
  %v2573 = vunpack.c.l.b16 %v229
  %v2574 = vunpack.c.h.b16 %v229
  %v2575 = vunpack.c.l.b16 %v230
  %v2576 = vunpack.c.h.b16 %v230
  %v2577 = vunpack.c.l.b16 %v231
  %v2578 = vunpack.c.h.b16 %v231
  %v2579 = vunpack.c.l.b16 %v232
  %v2580 = vunpack.c.h.b16 %v232
  %v2581 = vunpack.c.l.b16 %v233
  %v2582 = vunpack.c.h.b16 %v233
  %v2583 = vunpack.c.l.b16 %v234
  %v2584 = vunpack.c.h.b16 %v234
  %v2585 = vunpack.c.l.b16 %v235
  %v2586 = vunpack.c.h.b16 %v235
  %v2587 = vunpack.c.l.b16 %v236
  %v2588 = vunpack.c.h.b16 %v236
  %v2589 = vunpack.c.l.b16 %v237
  %v2590 = vunpack.c.h.b16 %v237
  %v2591 = vunpack.c.l.b16 %v238
  %v2592 = vunpack.c.h.b16 %v238
  %v2593 = vunpack.c.l.b16 %v239
  %v2594 = vunpack.c.h.b16 %v239
  %v2595 = vunpack.c.l.b16 %v240
  %v2596 = vunpack.c.h.b16 %v240
  %v2597 = vunpack.c.l.b16 %v241
  %v2598 = vunpack.c.h.b16 %v241
  %v2599 = vunpack.c.l.b16 %v242
  %v2600 = vunpack.c.h.b16 %v242
  %v2601 = vunpack.c.l.b16 %v243
  %v2602 = vunpack.c.h.b16 %v243
  %v2603 = vunpack.c.l.b16 %v244
  %v2604 = vunpack.c.h.b16 %v244
  %v2605 = vunpack.c.l.b16 %v245
  %v2606 = vunpack.c.h.b16 %v245
  %v2607 = vunpack.c.l.b16 %v246
  %v2608 = vunpack.c.h.b16 %v246
  %v2609 = vunpack.c.l.b16 %v247
  %v2610 = vunpack.c.h.b16 %v247
  %v2611 = vunpack.c.l.b16 %v248
  %v2612 = vunpack.c.h.b16 %v248
  %v2613 = vunpack.c.l.b16 %v249
  %v2614 = vunpack.c.h.b16 %v249
  %v2615 = vunpack.c.l.b16 %v250
  %v2616 = vunpack.c.h.b16 %v250
  %v2617 = vunpack.c.l.b16 %v251
  %v2618 = vunpack.c.h.b16 %v251
  %v2619 = vunpack.c.l.b16 %v252
  %v2620 = vunpack.c.h.b16 %v252
  %v2621 = vunpack.c.l.b16 %v253
  %v2622 = vunpack.c.h.b16 %v253
  %v2623 = vunpack.c.l.b16 %v254
  %v2624 = vunpack.c.h.b16 %v254
  %v2625 = vunpack.c.l.b16 %v255
  %v2626 = vunpack.c.h.b16 %v255
  %v2627 = vunpack.c.l.b16 %v256
  %v2628 = vunpack.c.h.b16 %v256
  %v2629 = vunpack.c.l.b16 %v257
  %v2630 = vunpack.c.h.b16 %v257
  %v2631 = vunpack.c.l.b16 %v258
  %v2632 = vunpack.c.h.b16 %v258
  %v2633 = vunpack.c.l.b16 %v259
  %v2634 = vunpack.c.h.b16 %v259
  %v2635 = vunpack.c.l.b16 %v260
  %v2636 = vunpack.c.h.b16 %v260
  %v2637 = vunpack.c.l.b16 %v261
  %v2638 = vunpack.c.h.b16 %v261
  %v2639 = vunpack.c.l.b16 %v262
  %v2640 = vunpack.c.h.b16 %v262
  %v2641 = vunpack.c.l.b16 %v263
  %v2642 = vunpack.c.h.b16 %v263
  %v2643 = vunpack.c.l.b16 %v264
  %v2644 = vunpack.c.h.b16 %v264
  %v2645 = vunpack.c.l.b16 %v265
  %v2646 = vunpack.c.h.b16 %v265
  %v2647 = vunpack.c.l.b16 %v266
  %v2648 = vunpack.c.h.b16 %v266
  %v2649 = vunpack.c.l.b16 %v267
  %v2650 = vunpack.c.h.b16 %v267
  %v2651 = vunpack.c.l.b16 %v268
  %v2652 = vunpack.c.h.b16 %v268
  %v2653 = vunpack.c.l.b16 %v269
  %v2654 = vunpack.c.h.b16 %v269
  %v2655 = vunpack.c.l.b16 %v270
  %v2656 = vunpack.c.h.b16 %v270
  %v2657 = vunpack.c.l.b16 %v271
  %v2658 = vunpack.c.h.b16 %v271
  %v2659 = vunpack.c.l.b16 %v272
  %v2660 = vunpack.c.h.b16 %v272
  %v2661 = vunpack.c.l.b16 %v273
  %v2662 = vunpack.c.h.b16 %v273
  %v2663 = vunpack.c.l.b16 %v274
  %v2664 = vunpack.c.h.b16 %v274
  %v2665 = vunpack.c.l.b16 %v275
  %v2666 = vunpack.c.h.b16 %v275
  %v2667 = vunpack.c.l.b16 %v276
  %v2668 = vunpack.c.h.b16 %v276
  %v2669 = vunpack.c.l.b16 %v277
  %v2670 = vunpack.c.h.b16 %v277
  %v2671 = vunpack.c.l.b16 %v278
  %v2672 = vunpack.c.h.b16 %v278
  %v2673 = vunpack.c.l.b16 %v279
  %v2674 = vunpack.c.h.b16 %v279
  %v2675 = vunpack.c.l.b16 %v280
  %v2676 = vunpack.c.h.b16 %v280
  %v2677 = vunpack.c.l.b16 %v281
  %v2678 = vunpack.c.h.b16 %v281
  %v2679 = vunpack.c.l.b16 %v282
  %v2680 = vunpack.c.h.b16 %v282
  %v2681 = vunpack.c.l.b16 %v283
  %v2682 = vunpack.c.h.b16 %v283
  %v2683 = vunpack.c.l.b16 %v284
  %v2684 = vunpack.c.h.b16 %v284
  %v2685 = vunpack.c.l.b16 %v285
  %v2686 = vunpack.c.h.b16 %v285
  %v2687 = vunpack.c.l.b16 %v286
  %v2688 = vunpack.c.h.b16 %v286
  %v2689 = vunpack.c.l.b16 %v287
  %v2690 = vunpack.c.h.b16 %v287
  %v2691 = vunpack.c.l.b16 %v288
  %v2692 = vunpack.c.h.b16 %v288
  %v2693 = vunpack.c.l.b16 %v289
  %v2694 = vunpack.c.h.b16 %v289
  %v2695 = vunpack.c.l.b16 %v290
  %v2696 = vunpack.c.h.b16 %v290
  %v2697 = vunpack.c.l.b16 %v291
  %v2698 = vunpack.c.h.b16 %v291
  %v2699 = vunpack.c.l.b16 %v292
  %v2700 = vunpack.c.h.b16 %v292
  %v2701 = vunpack.c.l.b16 %v293
  %v2702 = vunpack.c.h.b16 %v293
  %v2703 = vunpack.c.l.b16 %v294
  %v2704 = vunpack.c.h.b16 %v294
  %v2705 = vunpack.c.l.b16 %v295
  %v2706 = vunpack.c.h.b16 %v295
  %v2707 = vunpack.c.l.b16 %v296
  %v2708 = vunpack.c.h.b16 %v296
  %v2709 = vunpack.c.l.b16 %v297
  %v2710 = vunpack.c.h.b16 %v297
  %v2711 = vunpack.c.l.b16 %v298
  %v2712 = vunpack.c.h.b16 %v298
  %v2713 = vunpack.c.l.b16 %v299
  %v2714 = vunpack.c.h.b16 %v299
  %v2715 = vunpack.c.l.b16 %v300
  %v2716 = vunpack.c.h.b16 %v300
  %v2717 = vunpack.c.l.b16 %v301
  %v2718 = vunpack.c.h.b16 %v301
  %v2719 = vunpack.c.l.b16 %v302
  %v2720 = vunpack.c.h.b16 %v302
  %v2721 = vunpack.c.l.b16 %v303
  %v2722 = vunpack.c.h.b16 %v303
  %v2723 = vunpack.c.l.b16 %v304
  %v2724 = vunpack.c.h.b16 %v304
  %v2725 = vunpack.c.l.b16 %v305
  %v2726 = vunpack.c.h.b16 %v305
  %v2727 = vunpack.c.l.b16 %v306
  %v2728 = vunpack.c.h.b16 %v306
  %v2729 = vunpack.c.l.b16 %v307
  %v2730 = vunpack.c.h.b16 %v307
  %v2731 = vunpack.c.l.b16 %v308
  %v2732 = vunpack.c.h.b16 %v308
  %v2733 = vunpack.c.l.b16 %v309
  %v2734 = vunpack.c.h.b16 %v309
  %v2735 = vunpack.c.l.b16 %v310
  %v2736 = vunpack.c.h.b16 %v310
  %v2737 = vunpack.c.l.b16 %v311
  %v2738 = vunpack.c.h.b16 %v311
  %v2739 = vunpack.c.l.b16 %v312
  %v2740 = vunpack.c.h.b16 %v312
  %v2741 = vunpack.c.l.b16 %v313
  %v2742 = vunpack.c.h.b16 %v313
  %v2743 = vunpack.c.l.b16 %v314
  %v2744 = vunpack.c.h.b16 %v314
  %v2745 = vunpack.c.l.b16 %v315
  %v2746 = vunpack.c.h.b16 %v315
  %v2747 = vunpack.c.l.b16 %v316
  %v2748 = vunpack.c.h.b16 %v316
  %v2749 = vunpack.c.l.b16 %v317
  %v2750 = vunpack.c.h.b16 %v317
  %v2751 = vunpack.c.l.b16 %v318
  %v2752 = vunpack.c.h.b16 %v318
  %v2753 = vunpack.c.l.b16 %v319
  %v2754 = vunpack.c.h.b16 %v319
  %v2755 = vunpack.c.l.b16 %v320
  %v2756 = vunpack.c.h.b16 %v320
  %v2757 = vunpack.c.l.b16 %v321
  %v2758 = vunpack.c.h.b16 %v321
  %v2759 = vunpack.c.l.b16 %v322
  %v2760 = vunpack.c.h.b16 %v322
  %v2761 = vunpack.c.l.b16 %v323
  %v2762 = vunpack.c.h.b16 %v323
  %v2763 = vunpack.c.l.b16 %v324
  %v2764 = vunpack.c.h.b16 %v324
  %v2765 = vunpack.c.l.b16 %v325
  %v2766 = vunpack.c.h.b16 %v325
  %v2767 = vunpack.c.l.b16 %v326
  %v2768 = vunpack.c.h.b16 %v326
  %v2769 = vunpack.c.l.b16 %v327
  %v2770 = vunpack.c.h.b16 %v327
  %v2771 = vunpack.c.l.b16 %v328
  %v2772 = vunpack.c.h.b16 %v328
  %v2773 = vunpack.c.l.b16 %v329
  %v2774 = vunpack.c.h.b16 %v329
  %v2775 = vunpack.c.l.b16 %v330
  %v2776 = vunpack.c.h.b16 %v330
  %v2777 = vunpack.c.l.b16 %v331
  %v2778 = vunpack.c.h.b16 %v331
  %v2779 = vunpack.c.l.b16 %v332
  %v2780 = vunpack.c.h.b16 %v332
  %v2781 = vunpack.c.l.b16 %v333
  %v2782 = vunpack.c.h.b16 %v333
  %v2783 = vunpack.c.l.b16 %v334
  %v2784 = vunpack.c.h.b16 %v334
  %v2785 = vunpack.c.l.b16 %v335
  %v2786 = vunpack.c.h.b16 %v335
  %v2787 = vunpack.c.l.b16 %v336
  %v2788 = vunpack.c.h.b16 %v336
  %v2789 = vunpack.c.l.b16 %v337
  %v2790 = vunpack.c.h.b16 %v337
  %v2791 = vunpack.c.l.b16 %v338
  %v2792 = vunpack.c.h.b16 %v338
  %v2793 = vunpack.c.l.b16 %v339
  %v2794 = vunpack.c.h.b16 %v339
  %v2795 = vunpack.c.l.b16 %v340
  %v2796 = vunpack.c.h.b16 %v340
  %v2797 = vunpack.c.l.b16 %v341
  %v2798 = vunpack.c.h.b16 %v341
  %v2799 = vunpack.c.l.b16 %v342
  %v2800 = vunpack.c.h.b16 %v342
  %v2801 = vunpack.c.l.b16 %v343
  %v2802 = vunpack.c.h.b16 %v343
  %v2803 = vunpack.c.l.b16 %v344
  %v2804 = vunpack.c.h.b16 %v344
  %v2805 = vunpack.c.l.b16 %v345
  %v2806 = vunpack.c.h.b16 %v345
  %v2807 = vunpack.c.l.b16 %v346
  %v2808 = vunpack.c.h.b16 %v346
  %v2809 = vunpack.c.l.b16 %v347
  %v2810 = vunpack.c.h.b16 %v347
  %v2811 = vunpack.c.l.b16 %v348
  %v2812 = vunpack.c.h.b16 %v348
  %v2813 = vunpack.c.l.b16 %v349
  %v2814 = vunpack.c.h.b16 %v349
  %v2815 = vunpack.c.l.b16 %v350
  %v2816 = vunpack.c.h.b16 %v350
  %v2817 = vunpack.c.l.b16 %v351
  %v2818 = vunpack.c.h.b16 %v351
  %v2819 = vunpack.c.l.b16 %v352
  %v2820 = vunpack.c.h.b16 %v352
  %v2821 = vunpack.c.l.b16 %v353
  %v2822 = vunpack.c.h.b16 %v353
  %v2823 = vunpack.c.l.b16 %v354
  %v2824 = vunpack.c.h.b16 %v354
  %v2825 = vunpack.c.l.b16 %v355
  %v2826 = vunpack.c.h.b16 %v355
  %v2827 = vunpack.c.l.b16 %v356
  %v2828 = vunpack.c.h.b16 %v356
  %v2829 = vunpack.c.l.b16 %v357
  %v2830 = vunpack.c.h.b16 %v357
  %v2831 = vunpack.c.l.b16 %v358
  %v2832 = vunpack.c.h.b16 %v358
  %v2833 = vunpack.c.l.b16 %v359
  %v2834 = vunpack.c.h.b16 %v359
  %v2835 = vunpack.c.l.b16 %v360
  %v2836 = vunpack.c.h.b16 %v360
  %v2837 = vunpack.c.l.b16 %v361
  %v2838 = vunpack.c.h.b16 %v361
  %v2839 = vunpack.c.l.b16 %v362
  %v2840 = vunpack.c.h.b16 %v362
  %v2841 = vunpack.c.l.b16 %v363
  %v2842 = vunpack.c.h.b16 %v363
  %v2843 = vunpack.c.l.b16 %v364
  %v2844 = vunpack.c.h.b16 %v364
  %v2845 = vunpack.c.l.b16 %v365
  %v2846 = vunpack.c.h.b16 %v365
  %v2847 = vunpack.c.l.b16 %v366
  %v2848 = vunpack.c.h.b16 %v366
  %v2849 = vunpack.c.l.b16 %v367
  %v2850 = vunpack.c.h.b16 %v367
  %v2851 = vunpack.c.l.b16 %v368
  %v2852 = vunpack.c.h.b16 %v368
  %v2853 = vunpack.c.l.b16 %v369
  %v2854 = vunpack.c.h.b16 %v369
  %v2855 = vunpack.c.l.b16 %v370
  %v2856 = vunpack.c.h.b16 %v370
  %v2857 = vunpack.c.l.b16 %v371
  %v2858 = vunpack.c.h.b16 %v371
  %v2859 = vunpack.c.l.b16 %v372
  %v2860 = vunpack.c.h.b16 %v372
  %v2861 = vunpack.c.l.b16 %v373
  %v2862 = vunpack.c.h.b16 %v373
  %v2863 = vunpack.c.l.b16 %v374
  %v2864 = vunpack.c.h.b16 %v374
  %v2865 = vunpack.c.l.b16 %v375
  %v2866 = vunpack.c.h.b16 %v375
  %v2867 = vunpack.c.l.b16 %v376
  %v2868 = vunpack.c.h.b16 %v376
  %v2869 = vunpack.c.l.b16 %v377
  %v2870 = vunpack.c.h.b16 %v377
  %v2871 = vunpack.c.l.b16 %v378
  %v2872 = vunpack.c.h.b16 %v378
  %v2873 = vunpack.c.l.b16 %v379
  %v2874 = vunpack.c.h.b16 %v379
  %v2875 = vunpack.c.l.b16 %v380
  %v2876 = vunpack.c.h.b16 %v380
  %v2877 = vunpack.c.l.b16 %v381
  %v2878 = vunpack.c.h.b16 %v381
  %v2879 = vunpack.c.l.b16 %v382
  %v2880 = vunpack.c.h.b16 %v382
  %v2881 = vunpack.c.l.b16 %v383
  %v2882 = vunpack.c.h.b16 %v383
  %v2883 = vunpack.c.l.b16 %v384
  %v2884 = vunpack.c.h.b16 %v384
  %v2885 = vunpack.c.l.b16 %v385
  %v2886 = vunpack.c.h.b16 %v385
  %v2887 = vunpack.c.l.b16 %v386
  %v2888 = vunpack.c.h.b16 %v386
  %v2889 = vunpack.c.l.b16 %v387
  %v2890 = vunpack.c.h.b16 %v387
  %v2891 = vunpack.c.l.b16 %v388
  %v2892 = vunpack.c.h.b16 %v388
  %v2893 = vunpack.c.l.b16 %v389
  %v2894 = vunpack.c.h.b16 %v389
  %v2895 = vunpack.c.l.b16 %v390
  %v2896 = vunpack.c.h.b16 %v390
  %v2897 = vunpack.c.l.b16 %v391
  %v2898 = vunpack.c.h.b16 %v391
  %v2899 = vunpack.c.l.b16 %v392
  %v2900 = vunpack.c.h.b16 %v392
  %v2901 = vunpack.c.l.b16 %v393
  %v2902 = vunpack.c.h.b16 %v393
  %v2903 = vunpack.c.l.b16 %v394
  %v2904 = vunpack.c.h.b16 %v394
  %v2905 = vunpack.c.l.b16 %v395
  %v2906 = vunpack.c.h.b16 %v395
  %v2907 = vunpack.c.l.b16 %v396
  %v2908 = vunpack.c.h.b16 %v396
  %v2909 = vunpack.c.l.b16 %v397
  %v2910 = vunpack.c.h.b16 %v397
  %v2911 = vunpack.c.l.b16 %v398
  %v2912 = vunpack.c.h.b16 %v398
  %v2913 = vunpack.c.l.b16 %v399
  %v2914 = vunpack.c.h.b16 %v399
  %v2915 = vunpack.c.l.b16 %v400
  %v2916 = vunpack.c.h.b16 %v400
  %v2917 = vunpack.c.l.b16 %v401
  %v2918 = vunpack.c.h.b16 %v401
  %v2919 = vunpack.c.l.b16 %v402
  %v2920 = vunpack.c.h.b16 %v402
  %v2921 = vunpack.c.l.b16 %v403
  %v2922 = vunpack.c.h.b16 %v403
  %v2923 = vunpack.c.l.b16 %v404
  %v2924 = vunpack.c.h.b16 %v404
  %v2925 = vunpack.c.l.b16 %v405
  %v2926 = vunpack.c.h.b16 %v405
  %v2927 = vunpack.c.l.b16 %v406
  %v2928 = vunpack.c.h.b16 %v406
  %v2929 = vunpack.c.l.b16 %v407
  %v2930 = vunpack.c.h.b16 %v407
  %v2931 = vunpack.c.l.b16 %v408
  %v2932 = vunpack.c.h.b16 %v408
  %v2933 = vunpack.c.l.b16 %v409
  %v2934 = vunpack.c.h.b16 %v409
  %v2935 = vunpack.c.l.b16 %v410
  %v2936 = vunpack.c.h.b16 %v410
  %v2937 = vunpack.c.l.b16 %v411
  %v2938 = vunpack.c.h.b16 %v411
  %v2939 = vunpack.c.l.b16 %v412
  %v2940 = vunpack.c.h.b16 %v412
  %v2941 = vunpack.c.l.b16 %v413
  %v2942 = vunpack.c.h.b16 %v413
  %v2943 = vunpack.c.l.b16 %v414
  %v2944 = vunpack.c.h.b16 %v414
  %v2945 = vunpack.c.l.b16 %v415
  %v2946 = vunpack.c.h.b16 %v415
  %v2947 = vunpack.c.l.b16 %v416
  %v2948 = vunpack.c.h.b16 %v416
  %v2949 = vunpack.c.l.b16 %v417
  %v2950 = vunpack.c.h.b16 %v417
  %v2951 = vunpack.c.l.b16 %v418
  %v2952 = vunpack.c.h.b16 %v418
  %v2953 = vunpack.c.l.b16 %v419
  %v2954 = vunpack.c.h.b16 %v419
  %v2955 = vunpack.c.l.b16 %v420
  %v2956 = vunpack.c.h.b16 %v420
  %v2957 = vunpack.c.l.b16 %v421
  %v2958 = vunpack.c.h.b16 %v421
  %v2959 = vunpack.c.l.b16 %v422
  %v2960 = vunpack.c.h.b16 %v422
  %v2961 = vunpack.c.l.b16 %v423
  %v2962 = vunpack.c.h.b16 %v423
  %v2963 = vunpack.c.l.b16 %v424
  %v2964 = vunpack.c.h.b16 %v424
  %v2965 = vunpack.c.l.b16 %v425
  %v2966 = vunpack.c.h.b16 %v425
  %v2967 = vunpack.c.l.b16 %v426
  %v2968 = vunpack.c.h.b16 %v426
  %v2969 = vunpack.c.l.b16 %v427
  %v2970 = vunpack.c.h.b16 %v427
  %v2971 = vunpack.c.l.b16 %v428
  %v2972 = vunpack.c.h.b16 %v428
  %v2973 = vunpack.c.l.b16 %v429
  %v2974 = vunpack.c.h.b16 %v429
  %v2975 = vunpack.c.l.b16 %v430
  %v2976 = vunpack.c.h.b16 %v430
  %v2977 = vunpack.c.l.b16 %v431
  %v2978 = vunpack.c.h.b16 %v431
  %v2979 = vunpack.c.l.b16 %v432
  %v2980 = vunpack.c.h.b16 %v432
  %v2981 = vunpack.c.l.b16 %v433
  %v2982 = vunpack.c.h.b16 %v433
  %v2983 = vunpack.c.l.b16 %v434
  %v2984 = vunpack.c.h.b16 %v434
  %v2985 = vunpack.c.l.b16 %v435
  %v2986 = vunpack.c.h.b16 %v435
  %v2987 = vunpack.c.l.b16 %v436
  %v2988 = vunpack.c.h.b16 %v436
  %v2989 = vunpack.c.l.b16 %v437
  %v2990 = vunpack.c.h.b16 %v437
  %v2991 = vunpack.c.l.b16 %v438
  %v2992 = vunpack.c.h.b16 %v438
  %v2993 = vunpack.c.l.b16 %v439
  %v2994 = vunpack.c.h.b16 %v439
  %v2995 = vunpack.c.l.b16 %v440
  %v2996 = vunpack.c.h.b16 %v440
  %v2997 = vunpack.c.l.b16 %v441
  %v2998 = vunpack.c.h.b16 %v441
  %v2999 = vunpack.c.l.b16 %v442
  %v3000 = vunpack.c.h.b16 %v442
  %v3001 = vunpack.c.l.b16 %v443
  %v3002 = vunpack.c.h.b16 %v443
  %v3003 = vunpack.c.l.b16 %v444
  %v3004 = vunpack.c.h.b16 %v444
  %v3005 = vunpack.c.l.b16 %v445
  %v3006 = vunpack.c.h.b16 %v445
  %v3007 = vunpack.c.l.b16 %v446
  %v3008 = vunpack.c.h.b16 %v446
  %v3009 = vunpack.c.l.b16 %v447
  %v3010 = vunpack.c.h.b16 %v447
  %v3011 = vunpack.c.l.b16 %v448
  %v3012 = vunpack.c.h.b16 %v448
  %v3013 = vunpack.c.l.b16 %v449
  %v3014 = vunpack.c.h.b16 %v449
  %v3015 = vunpack.c.l.b16 %v450
  %v3016 = vunpack.c.h.b16 %v450
  %v3017 = vunpack.c.l.b16 %v451
  %v3018 = vunpack.c.h.b16 %v451
  %v3019 = vunpack.c.l.b16 %v452
  %v3020 = vunpack.c.h.b16 %v452
  %v3021 = vunpack.c.l.b16 %v453
  %v3022 = vunpack.c.h.b16 %v453
  %v3023 = vunpack.c.l.b16 %v454
  %v3024 = vunpack.c.h.b16 %v454
  %v3025 = vunpack.c.l.b16 %v455
  %v3026 = vunpack.c.h.b16 %v455
  %v3027 = vunpack.c.l.b16 %v456
  %v3028 = vunpack.c.h.b16 %v456
  %v3029 = vunpack.c.l.b16 %v457
  %v3030 = vunpack.c.h.b16 %v457
  %v3031 = vunpack.c.l.b16 %v458
  %v3032 = vunpack.c.h.b16 %v458
  %v3033 = vunpack.c.l.b16 %v459
  %v3034 = vunpack.c.h.b16 %v459
  %v3035 = vunpack.c.l.b16 %v460
  %v3036 = vunpack.c.h.b16 %v460
  %v3037 = vunpack.c.l.b16 %v461
  %v3038 = vunpack.c.h.b16 %v461
  %v3039 = vunpack.c.l.b16 %v462
  %v3040 = vunpack.c.h.b16 %v462
  %v3041 = vunpack.c.l.b16 %v463
  %v3042 = vunpack.c.h.b16 %v463
  %v3043 = vunpack.c.l.b16 %v464
  %v3044 = vunpack.c.h.b16 %v464
  %v3045 = vunpack.c.l.b16 %v465
  %v3046 = vunpack.c.h.b16 %v465
  %v3047 = vunpack.c.l.b16 %v466
  %v3048 = vunpack.c.h.b16 %v466
  %v3049 = vunpack.c.l.b16 %v467
  %v3050 = vunpack.c.h.b16 %v467
  %v3051 = vunpack.c.l.b16 %v468
  %v3052 = vunpack.c.h.b16 %v468
  %v3053 = vunpack.c.l.b16 %v469
  %v3054 = vunpack.c.h.b16 %v469
  %v3055 = vunpack.c.l.b16 %v470
  %v3056 = vunpack.c.h.b16 %v470
  %v3057 = vunpack.c.l.b16 %v471
  %v3058 = vunpack.c.h.b16 %v471
  %v3059 = vunpack.c.l.b16 %v472
  %v3060 = vunpack.c.h.b16 %v472
  %v3061 = vunpack.c.l.b16 %v473
  %v3062 = vunpack.c.h.b16 %v473
  %v3063 = vunpack.c.l.b16 %v474
  %v3064 = vunpack.c.h.b16 %v474
  %v3065 = vunpack.c.l.b16 %v475
  %v3066 = vunpack.c.h.b16 %v475
  %v3067 = vunpack.c.l.b16 %v476
  %v3068 = vunpack.c.h.b16 %v476
  %v3069 = vunpack.c.l.b16 %v477
  %v3070 = vunpack.c.h.b16 %v477
  %v3071 = vunpack.c.l.b16 %v478
  %v3072 = vunpack.c.h.b16 %v478
  %v3073 = vunpack.c.l.b16 %v479
  %v3074 = vunpack.c.h.b16 %v479
  %v3075 = vunpack.c.l.b16 %v480
  %v3076 = vunpack.c.h.b16 %v480
  %v3077 = vunpack.c.l.b16 %v481
  %v3078 = vunpack.c.h.b16 %v481
  %v3079 = vunpack.c.l.b16 %v482
  %v3080 = vunpack.c.h.b16 %v482
  %v3081 = vunpack.c.l.b16 %v483
  %v3082 = vunpack.c.h.b16 %v483
  %v3083 = vunpack.c.l.b16 %v484
  %v3084 = vunpack.c.h.b16 %v484
  %v3085 = vunpack.c.l.b16 %v485
  %v3086 = vunpack.c.h.b16 %v485
  %v3087 = vunpack.c.l.b16 %v486
  %v3088 = vunpack.c.h.b16 %v486
  %v3089 = vunpack.c.l.b16 %v487
  %v3090 = vunpack.c.h.b16 %v487
  %v3091 = vunpack.c.l.b16 %v488
  %v3092 = vunpack.c.h.b16 %v488
  %v3093 = vunpack.c.l.b16 %v489
  %v3094 = vunpack.c.h.b16 %v489
  %v3095 = vunpack.c.l.b16 %v490
  %v3096 = vunpack.c.h.b16 %v490
  %v3097 = vunpack.c.l.b16 %v491
  %v3098 = vunpack.c.h.b16 %v491
  %v3099 = vunpack.c.l.b16 %v492
  %v3100 = vunpack.c.h.b16 %v492
  %v3101 = vunpack.c.l.b16 %v493
  %v3102 = vunpack.c.h.b16 %v493
  %v3103 = vunpack.c.l.b16 %v494
  %v3104 = vunpack.c.h.b16 %v494
  %v3105 = vunpack.c.l.b16 %v495
  %v3106 = vunpack.c.h.b16 %v495
  %v3107 = vunpack.c.l.b16 %v496
  %v3108 = vunpack.c.h.b16 %v496
  %v3109 = vunpack.c.l.b16 %v497
  %v3110 = vunpack.c.h.b16 %v497
  %v3111 = vunpack.c.l.b16 %v498
  %v3112 = vunpack.c.h.b16 %v498
  %v3113 = vunpack.c.l.b16 %v499
  %v3114 = vunpack.c.h.b16 %v499
  %v3115 = vunpack.c.l.b16 %v500
  %v3116 = vunpack.c.h.b16 %v500
  %v3117 = vunpack.c.l.b16 %v501
  %v3118 = vunpack.c.h.b16 %v501
  %v3119 = vunpack.c.l.b16 %v502
  %v3120 = vunpack.c.h.b16 %v502
  %v3121 = vunpack.c.l.b16 %v503
  %v3122 = vunpack.c.h.b16 %v503
  %v3123 = vunpack.c.l.b16 %v504
  %v3124 = vunpack.c.h.b16 %v504
  %v3125 = vunpack.c.l.b16 %v505
  %v3126 = vunpack.c.h.b16 %v505
  %v3127 = vunpack.c.l.b16 %v506
  %v3128 = vunpack.c.h.b16 %v506
  %v3129 = vunpack.c.l.b16 %v507
  %v3130 = vunpack.c.h.b16 %v507
  %v3131 = vunpack.c.l.b16 %v508
  %v3132 = vunpack.c.h.b16 %v508
  %v3133 = vunpack.c.l.b16 %v509
  %v3134 = vunpack.c.h.b16 %v509
  %v3135 = vunpack.c.l.b16 %v510
  %v3136 = vunpack.c.h.b16 %v510
  %v3137 = vunpack.c.l.b16 %v511
  %v3138 = vunpack.c.h.b16 %v511
  %v3139 = vunpack.c.l.b16 %v512
  %v3140 = vunpack.c.h.b16 %v512
  %v3141 = vunpack.c.l.b16 %v513
  %v3142 = vunpack.c.h.b16 %v513
  %v3143 = vunpack.c.l.b16 %v514
  %v3144 = vunpack.c.h.b16 %v514
  %v3145 = vunpack.c.l.b16 %v515
  %v3146 = vunpack.c.h.b16 %v515
  %v3147 = vunpack.c.l.b16 %v516
  %v3148 = vunpack.c.h.b16 %v516
  %v3149 = vunpack.c.l.b16 %v517
  %v3150 = vunpack.c.h.b16 %v517
  %v3151 = vunpack.c.l.b16 %v518
  %v3152 = vunpack.c.h.b16 %v518
  %v3153 = vunpack.c.l.b16 %v519
  %v3154 = vunpack.c.h.b16 %v519
  %v3155 = vunpack.c.l.b16 %v520
  %v3156 = vunpack.c.h.b16 %v520
  %v3157 = vunpack.c.l.b16 %v521
  %v3158 = vunpack.c.h.b16 %v521
  %v3159 = vunpack.c.l.b16 %v522
  %v3160 = vunpack.c.h.b16 %v522
  %v3161 = vunpack.c.l.b16 %v523
  %v3162 = vunpack.c.h.b16 %v523
  %v3163 = vunpack.c.l.b16 %v524
  %v3164 = vunpack.c.h.b16 %v524
  %v3165 = vunpack.c.l.b16 %v525
  %v3166 = vunpack.c.h.b16 %v525
  %v3167 = vunpack.c.l.b16 %v526
  %v3168 = vunpack.c.h.b16 %v526
  %v3169 = vunpack.c.l.b16 %v527
  %v3170 = vunpack.c.h.b16 %v527
  %v3171 = vunpack.c.l.b16 %v528
  %v3172 = vunpack.c.h.b16 %v528
  %v3173 = vunpack.c.l.b16 %v529
  %v3174 = vunpack.c.h.b16 %v529
  %v3175 = vunpack.c.l.b16 %v530
  %v3176 = vunpack.c.h.b16 %v530
  %v3177 = vunpack.c.l.b16 %v531
  %v3178 = vunpack.c.h.b16 %v531
  %v3179 = vunpack.c.l.b16 %v532
  %v3180 = vunpack.c.h.b16 %v532
  %v3181 = vunpack.c.l.b16 %v533
  %v3182 = vunpack.c.h.b16 %v533
  %v3183 = vunpack.c.l.b16 %v534
  %v3184 = vunpack.c.h.b16 %v534
  %v3185 = vunpack.c.l.b16 %v535
  %v3186 = vunpack.c.h.b16 %v535
  %v3187 = vunpack.c.l.b16 %v536
  %v3188 = vunpack.c.h.b16 %v536
  %v3189 = vunpack.c.l.b16 %v537
  %v3190 = vunpack.c.h.b16 %v537
  %v3191 = vunpack.c.l.b16 %v538
  %v3192 = vunpack.c.h.b16 %v538
  %v3193 = vunpack.c.l.b16 %v539
  %v3194 = vunpack.c.h.b16 %v539
  %v3195 = vunpack.c.l.b16 %v540
  %v3196 = vunpack.c.h.b16 %v540
  %v3197 = vunpack.c.l.b16 %v541
  %v3198 = vunpack.c.h.b16 %v541
  %v3199 = vunpack.c.l.b16 %v542
  %v3200 = vunpack.c.h.b16 %v542
  %v3201 = vunpack.c.l.b16 %v543
  %v3202 = vunpack.c.h.b16 %v543
  %v3203 = vunpack.c.l.b16 %v544
  %v3204 = vunpack.c.h.b16 %v544
  %v3205 = vunpack.c.l.b16 %v545
  %v3206 = vunpack.c.h.b16 %v545
  %v3207 = vunpack.c.l.b16 %v546
  %v3208 = vunpack.c.h.b16 %v546
  %v3209 = vunpack.c.l.b16 %v547
  %v3210 = vunpack.c.h.b16 %v547
  %v3211 = vunpack.c.l.b16 %v548
  %v3212 = vunpack.c.h.b16 %v548
  %v3213 = vunpack.c.l.b16 %v549
  %v3214 = vunpack.c.h.b16 %v549
  %v3215 = vunpack.c.l.b16 %v550
  %v3216 = vunpack.c.h.b16 %v550
  %v3217 = vunpack.c.l.b16 %v551
  %v3218 = vunpack.c.h.b16 %v551
  %v3219 = vunpack.c.l.b16 %v552
  %v3220 = vunpack.c.h.b16 %v552
  %v3221 = vunpack.c.l.b16 %v553
  %v3222 = vunpack.c.h.b16 %v553
  %v3223 = vunpack.c.l.b16 %v554
  %v3224 = vunpack.c.h.b16 %v554
  %v3225 = vunpack.c.l.b16 %v555
  %v3226 = vunpack.c.h.b16 %v555
  %v3227 = vunpack.c.l.b16 %v556
  %v3228 = vunpack.c.h.b16 %v556
  %v3229 = vunpack.c.l.b16 %v557
  %v3230 = vunpack.c.h.b16 %v557
  %v3231 = vunpack.c.l.b16 %v558
  %v3232 = vunpack.c.h.b16 %v558
  %v3233 = vunpack.c.l.b16 %v559
  %v3234 = vunpack.c.h.b16 %v559
  %v3235 = vunpack.c.l.b16 %v560
  %v3236 = vunpack.c.h.b16 %v560
  %v3237 = vunpack.c.l.b16 %v561
  %v3238 = vunpack.c.h.b16 %v561
  %v3239 = vunpack.c.l.b16 %v562
  %v3240 = vunpack.c.h.b16 %v562
  %v3241 = vunpack.c.l.b16 %v563
  %v3242 = vunpack.c.h.b16 %v563
  %v3243 = vunpack.c.l.b16 %v564
  %v3244 = vunpack.c.h.b16 %v564
  %v3245 = vunpack.c.l.b16 %v565
  %v3246 = vunpack.c.h.b16 %v565
  %v3247 = vunpack.c.l.b16 %v566
  %v3248 = vunpack.c.h.b16 %v566
  %v3249 = vunpack.c.l.b16 %v567
  %v3250 = vunpack.c.h.b16 %v567
  %v3251 = vunpack.c.l.b16 %v568
  %v3252 = vunpack.c.h.b16 %v568
  %v3253 = vunpack.c.l.b16 %v569
  %v3254 = vunpack.c.h.b16 %v569
  %v3255 = vunpack.c.l.b16 %v570
  %v3256 = vunpack.c.h.b16 %v570
  %v3257 = vunpack.c.l.b16 %v571
  %v3258 = vunpack.c.h.b16 %v571
  %v3259 = vunpack.c.l.b16 %v572
  %v3260 = vunpack.c.h.b16 %v572
  %v3261 = vunpack.c.l.b16 %v573
  %v3262 = vunpack.c.h.b16 %v573
  %v3263 = vunpack.c.l.b16 %v574
  %v3264 = vunpack.c.h.b16 %v574
  %v3265 = vunpack.c.l.b16 %v575
  %v3266 = vunpack.c.h.b16 %v575
  %v3267 = vunpack.c.l.b16 %v576
  %v3268 = vunpack.c.h.b16 %v576
  %v3269 = vunpack.c.l.b16 %v577
  %v3270 = vunpack.c.h.b16 %v577
  %v3271 = vunpack.c.l.b16 %v578
  %v3272 = vunpack.c.h.b16 %v578
  %v3273 = vunpack.c.l.b16 %v579
  %v3274 = vunpack.c.h.b16 %v579
  %v3275 = vunpack.c.l.b16 %v580
  %v3276 = vunpack.c.h.b16 %v580
  %v3277 = vunpack.c.l.b16 %v581
  %v3278 = vunpack.c.h.b16 %v581
  %v3279 = vunpack.c.l.b16 %v582
  %v3280 = vunpack.c.h.b16 %v582
  %v3281 = vunpack.c.l.b16 %v583
  %v3282 = vunpack.c.h.b16 %v583
  %v3283 = vunpack.c.l.b16 %v584
  %v3284 = vunpack.c.h.b16 %v584
  %v3285 = vunpack.c.l.b16 %v585
  %v3286 = vunpack.c.h.b16 %v585
  %v3287 = vunpack.c.l.b16 %v586
  %v3288 = vunpack.c.h.b16 %v586
  %v3289 = vunpack.c.l.b16 %v587
  %v3290 = vunpack.c.h.b16 %v587
  %v3291 = vunpack.c.l.b16 %v588
  %v3292 = vunpack.c.h.b16 %v588
  %v3293 = vunpack.c.l.b16 %v589
  %v3294 = vunpack.c.h.b16 %v589
  %v3295 = vunpack.c.l.b16 %v590
  %v3296 = vunpack.c.h.b16 %v590
  %v3297 = vunpack.c.l.b16 %v591
  %v3298 = vunpack.c.h.b16 %v591
  %v3299 = vunpack.c.l.b16 %v592
  %v3300 = vunpack.c.h.b16 %v592
  %v3301 = vunpack.c.l.b16 %v593
  %v3302 = vunpack.c.h.b16 %v593
  %v3303 = vunpack.c.l.b16 %v594
  %v3304 = vunpack.c.h.b16 %v594
  %v3305 = vunpack.c.l.b16 %v595
  %v3306 = vunpack.c.h.b16 %v595
  %v3307 = vunpack.c.l.b16 %v596
  %v3308 = vunpack.c.h.b16 %v596
  %v3309 = vunpack.c.l.b16 %v597
  %v3310 = vunpack.c.h.b16 %v597
  %v3311 = vunpack.c.l.b16 %v598
  %v3312 = vunpack.c.h.b16 %v598
  %v3313 = vunpack.c.l.b16 %v599
  %v3314 = vunpack.c.h.b16 %v599
  %v3315 = vunpack.c.l.b16 %v600
  %v3316 = vunpack.c.h.b16 %v600
  %v3317 = vunpack.c.l.b16 %v601
  %v3318 = vunpack.c.h.b16 %v601
  %v3319 = vunpack.c.l.b16 %v602
  %v3320 = vunpack.c.h.b16 %v602
  %v3321 = vunpack.c.l.b16 %v603
  %v3322 = vunpack.c.h.b16 %v603
  %v3323 = vunpack.c.l.b16 %v604
  %v3324 = vunpack.c.h.b16 %v604
  %v3325 = vunpack.c.l.b16 %v605
  %v3326 = vunpack.c.h.b16 %v605
  %v3327 = vunpack.c.l.b16 %v606
  %v3328 = vunpack.c.h.b16 %v606
  %v3329 = vunpack.c.l.b16 %v607
  %v3330 = vunpack.c.h.b16 %v607
  %v3331 = vunpack.c.l.b16 %v608
  %v3332 = vunpack.c.h.b16 %v608
  %v3333 = vunpack.c.l.b16 %v609
  %v3334 = vunpack.c.h.b16 %v609
  %v3335 = vunpack.c.l.b16 %v610
  %v3336 = vunpack.c.h.b16 %v610
  %v3337 = vunpack.c.l.b16 %v611
  %v3338 = vunpack.c.h.b16 %v611
  %v3339 = vunpack.c.l.b16 %v612
  %v3340 = vunpack.c.h.b16 %v612
  %v3341 = vunpack.c.l.b16 %v613
  %v3342 = vunpack.c.h.b16 %v613
  %v3343 = vunpack.c.l.b16 %v614
  %v3344 = vunpack.c.h.b16 %v614
  %v3345 = vunpack.c.l.b16 %v615
  %v3346 = vunpack.c.h.b16 %v615
  %v3347 = vunpack.c.l.b16 %v616
  %v3348 = vunpack.c.h.b16 %v616
  %v3349 = vunpack.c.l.b16 %v617
  %v3350 = vunpack.c.h.b16 %v617
  %v3351 = vunpack.c.l.b16 %v618
  %v3352 = vunpack.c.h.b16 %v618
  %v3353 = vunpack.c.l.b16 %v619
  %v3354 = vunpack.c.h.b16 %v619
  %v3355 = vunpack.c.l.b16 %v620
  %v3356 = vunpack.c.h.b16 %v620
  %v3357 = vunpack.c.l.b16 %v621
  %v3358 = vunpack.c.h.b16 %v621
  %v3359 = vunpack.c.l.b16 %v622
  %v3360 = vunpack.c.h.b16 %v622
  %v3361 = vunpack.c.l.b16 %v623
  %v3362 = vunpack.c.h.b16 %v623
  %v3363 = vunpack.c.l.b16 %v624
  %v3364 = vunpack.c.h.b16 %v624
  %v3365 = vunpack.c.l.b16 %v625
  %v3366 = vunpack.c.h.b16 %v625
  %v3367 = vunpack.c.l.b16 %v626
  %v3368 = vunpack.c.h.b16 %v626
  %v3369 = vunpack.c.l.b16 %v627
  %v3370 = vunpack.c.h.b16 %v627
  %v3371 = vunpack.c.l.b16 %v628
  %v3372 = vunpack.c.h.b16 %v628
  %v3373 = vunpack.c.l.b16 %v629
  %v3374 = vunpack.c.h.b16 %v629
  %v3375 = vunpack.c.l.b16 %v630
  %v3376 = vunpack.c.h.b16 %v630
  %v3377 = vunpack.c.l.b16 %v631
  %v3378 = vunpack.c.h.b16 %v631
  %v3379 = vunpack.c.l.b16 %v632
  %v3380 = vunpack.c.h.b16 %v632
  %v3381 = vunpack.c.l.b16 %v633
  %v3382 = vunpack.c.h.b16 %v633
  %v3383 = vunpack.c.l.b16 %v634
  %v3384 = vunpack.c.h.b16 %v634
  %v3385 = vunpack.c.l.b16 %v635
  %v3386 = vunpack.c.h.b16 %v635
  %v3387 = vunpack.c.l.b16 %v636
  %v3388 = vunpack.c.h.b16 %v636
  %v3389 = vunpack.c.l.b16 %v637
  %v3390 = vunpack.c.h.b16 %v637
  %v3391 = vunpack.c.l.b16 %v638
  %v3392 = vunpack.c.h.b16 %v638
  %v3393 = vunpack.c.l.b16 %v639
  %v3394 = vunpack.c.h.b16 %v639
  %v3395 = vunpack.c.l.b16 %v640
  %v3396 = vunpack.c.h.b16 %v640
  %v3397 = vunpack.c.l.b16 %v641
  %v3398 = vunpack.c.h.b16 %v641
  %v3399 = vunpack.c.l.b16 %v642
  %v3400 = vunpack.c.h.b16 %v642
  %v3401 = vunpack.c.l.b16 %v643
  %v3402 = vunpack.c.h.b16 %v643
  %v3403 = vunpack.c.l.b16 %v644
  %v3404 = vunpack.c.h.b16 %v644
  %v3405 = vunpack.c.l.b16 %v645
  %v3406 = vunpack.c.h.b16 %v645
  %v3407 = vunpack.c.l.b16 %v646
  %v3408 = vunpack.c.h.b16 %v646
  %v3409 = vunpack.c.l.b16 %v647
  %v3410 = vunpack.c.h.b16 %v647
  %v3411 = vunpack.c.l.b16 %v648
  %v3412 = vunpack.c.h.b16 %v648
  %v3413 = vunpack.c.l.b16 %v649
  %v3414 = vunpack.c.h.b16 %v649
  %v3415 = vunpack.c.l.b16 %v650
  %v3416 = vunpack.c.h.b16 %v650
  %v3417 = vunpack.c.l.b16 %v651
  %v3418 = vunpack.c.h.b16 %v651
  %v3419 = vunpack.c.l.b16 %v652
  %v3420 = vunpack.c.h.b16 %v652
  %v3421 = vunpack.c.l.b16 %v653
  %v3422 = vunpack.c.h.b16 %v653
  %v3423 = vunpack.c.l.b16 %v654
  %v3424 = vunpack.c.h.b16 %v654
  %v3425 = vunpack.c.l.b16 %v655
  %v3426 = vunpack.c.h.b16 %v655
  %v3427 = vunpack.c.l.b16 %v656
  %v3428 = vunpack.c.h.b16 %v656
  %v3429 = vunpack.c.l.b16 %v657
  %v3430 = vunpack.c.h.b16 %v657
  %v3431 = vunpack.c.l.b16 %v658
  %v3432 = vunpack.c.h.b16 %v658
  %v3433 = vunpack.c.l.b16 %v659
  %v3434 = vunpack.c.h.b16 %v659
  %v3435 = vunpack.c.l.b16 %v660
  %v3436 = vunpack.c.h.b16 %v660
  %v3437 = vunpack.c.l.b16 %v661
  %v3438 = vunpack.c.h.b16 %v661
  %v3439 = vunpack.c.l.b16 %v662
  %v3440 = vunpack.c.h.b16 %v662
  %v3441 = vunpack.c.l.b16 %v663
  %v3442 = vunpack.c.h.b16 %v663
  %v3443 = vunpack.c.l.b16 %v664
  %v3444 = vunpack.c.h.b16 %v664
  %v3445 = vunpack.c.l.b16 %v665
  %v3446 = vunpack.c.h.b16 %v665
  %v3447 = vunpack.c.l.b16 %v666
  %v3448 = vunpack.c.h.b16 %v666
  %v3449 = vunpack.c.l.b16 %v667
  %v3450 = vunpack.c.h.b16 %v667
  %v3451 = vunpack.c.l.b16 %v668
  %v3452 = vunpack.c.h.b16 %v668
  %v3453 = vunpack.c.l.b16 %v669
  %v3454 = vunpack.c.h.b16 %v669
  %v3455 = vunpack.c.l.b16 %v670
  %v3456 = vunpack.c.h.b16 %v670
  %v3457 = vunpack.c.l.b16 %v671
  %v3458 = vunpack.c.h.b16 %v671
  %v3459 = vunpack.c.l.b16 %v672
  %v3460 = vunpack.c.h.b16 %v672
  %v3461 = vunpack.c.l.b16 %v673
  %v3462 = vunpack.c.h.b16 %v673
  %v3463 = vunpack.c.l.b16 %v674
  %v3464 = vunpack.c.h.b16 %v674
  %v3465 = vunpack.c.l.b16 %v675
  %v3466 = vunpack.c.h.b16 %v675
  %v3467 = vunpack.c.l.b16 %v676
  %v3468 = vunpack.c.h.b16 %v676
  %v3469 = vunpack.c.l.b16 %v677
  %v3470 = vunpack.c.h.b16 %v677
  %v3471 = vunpack.c.l.b16 %v678
  %v3472 = vunpack.c.h.b16 %v678
  %v3473 = vunpack.c.l.b16 %v679
  %v3474 = vunpack.c.h.b16 %v679
  %v3475 = vunpack.c.l.b16 %v680
  %v3476 = vunpack.c.h.b16 %v680
  %v3477 = vunpack.c.l.b16 %v681
  %v3478 = vunpack.c.h.b16 %v681
  %v3479 = vunpack.c.l.b16 %v682
  %v3480 = vunpack.c.h.b16 %v682
  %v3481 = vunpack.c.l.b16 %v683
  %v3482 = vunpack.c.h.b16 %v683
  %v3483 = vunpack.c.l.b16 %v684
  %v3484 = vunpack.c.h.b16 %v684
  %v3485 = vunpack.c.l.b16 %v685
  %v3486 = vunpack.c.h.b16 %v685
  %v3487 = vunpack.c.l.b16 %v686
  %v3488 = vunpack.c.h.b16 %v686
  %v3489 = vunpack.c.l.b16 %v687
  %v3490 = vunpack.c.h.b16 %v687
  %v3491 = vunpack.c.l.b16 %v688
  %v3492 = vunpack.c.h.b16 %v688
  %v3493 = vunpack.c.l.b16 %v689
  %v3494 = vunpack.c.h.b16 %v689
  %v3495 = vunpack.c.l.b16 %v690
  %v3496 = vunpack.c.h.b16 %v690
  %v3497 = vunpack.c.l.b16 %v691
  %v3498 = vunpack.c.h.b16 %v691
  %v3499 = vunpack.c.l.b16 %v692
  %v3500 = vunpack.c.h.b16 %v692
  %v3501 = vunpack.c.l.b16 %v693
  %v3502 = vunpack.c.h.b16 %v693
  %v3503 = vunpack.c.l.b16 %v694
  %v3504 = vunpack.c.h.b16 %v694
  %v3505 = vunpack.c.l.b16 %v695
  %v3506 = vunpack.c.h.b16 %v695
  %v3507 = vunpack.c.l.b16 %v696
  %v3508 = vunpack.c.h.b16 %v696
  %v3509 = vunpack.c.l.b16 %v697
  %v3510 = vunpack.c.h.b16 %v697
  %v3511 = vunpack.c.l.b16 %v698
  %v3512 = vunpack.c.h.b16 %v698
  %v3513 = vunpack.c.l.b16 %v699
  %v3514 = vunpack.c.h.b16 %v699
  %v3515 = vunpack.c.l.b16 %v700
  %v3516 = vunpack.c.h.b16 %v700
  %v3517 = vunpack.c.l.b16 %v701
  %v3518 = vunpack.c.h.b16 %v701
  %v3519 = vunpack.c.l.b16 %v702
  %v3520 = vunpack.c.h.b16 %v702
  %v3521 = vunpack.c.l.b16 %v703
  %v3522 = vunpack.c.h.b16 %v703
  %v3523 = vunpack.c.l.b16 %v704
  %v3524 = vunpack.c.h.b16 %v704
  %v3525 = vunpack.c.l.b16 %v705
  %v3526 = vunpack.c.h.b16 %v705
  %v3527 = vunpack.c.l.b16 %v706
  %v3528 = vunpack.c.h.b16 %v706
  %v3529 = vunpack.c.l.b16 %v707
  %v3530 = vunpack.c.h.b16 %v707
  %v3531 = vunpack.c.l.b16 %v708
  %v3532 = vunpack.c.h.b16 %v708
  %v3533 = vunpack.c.l.b16 %v709
  %v3534 = vunpack.c.h.b16 %v709
  %v3535 = vunpack.c.l.b16 %v710
  %v3536 = vunpack.c.h.b16 %v710
  %v3537 = vunpack.c.l.b16 %v711
  %v3538 = vunpack.c.h.b16 %v711
  %v3539 = vunpack.c.l.b16 %v712
  %v3540 = vunpack.c.h.b16 %v712
  %v3541 = vunpack.c.l.b16 %v713
  %v3542 = vunpack.c.h.b16 %v713
  %v3543 = vunpack.c.l.b16 %v714
  %v3544 = vunpack.c.h.b16 %v714
  %v3545 = vunpack.c.l.b16 %v715
  %v3546 = vunpack.c.h.b16 %v715
  %v3547 = vunpack.c.l.b16 %v716
  %v3548 = vunpack.c.h.b16 %v716
  %v3549 = vunpack.c.l.b16 %v717
  %v3550 = vunpack.c.h.b16 %v717
  %v3551 = vunpack.c.l.b16 %v718
  %v3552 = vunpack.c.h.b16 %v718
  %v3553 = vunpack.c.l.b16 %v719
  %v3554 = vunpack.c.h.b16 %v719
  %v3555 = vunpack.c.l.b16 %v720
  %v3556 = vunpack.c.h.b16 %v720
  %v3557 = vunpack.c.l.b16 %v721
  %v3558 = vunpack.c.h.b16 %v721
  %v3559 = vunpack.c.l.b16 %v722
  %v3560 = vunpack.c.h.b16 %v722
  %v3561 = vunpack.c.l.b16 %v723
  %v3562 = vunpack.c.h.b16 %v723
  %v3563 = vunpack.c.l.b16 %v724
  %v3564 = vunpack.c.h.b16 %v724
  %v3565 = vunpack.c.l.b16 %v725
  %v3566 = vunpack.c.h.b16 %v725
  %v3567 = vunpack.c.l.b16 %v726
  %v3568 = vunpack.c.h.b16 %v726
  %v3569 = vunpack.c.l.b16 %v727
  %v3570 = vunpack.c.h.b16 %v727
  %v3571 = vunpack.c.l.b16 %v728
  %v3572 = vunpack.c.h.b16 %v728
  %v3573 = vunpack.c.l.b16 %v729
  %v3574 = vunpack.c.h.b16 %v729
  %v3575 = vunpack.c.l.b16 %v730
  %v3576 = vunpack.c.h.b16 %v730
  %v3577 = vunpack.c.l.b16 %v731
  %v3578 = vunpack.c.h.b16 %v731
  %v3579 = vunpack.c.l.b16 %v732
  %v3580 = vunpack.c.h.b16 %v732
  %v3581 = vunpack.c.l.b16 %v733
  %v3582 = vunpack.c.h.b16 %v733
  %v3583 = vunpack.c.l.b16 %v734
  %v3584 = vunpack.c.h.b16 %v734
  %v3585 = vunpack.c.l.b16 %v735
  %v3586 = vunpack.c.h.b16 %v735
  %v3587 = vunpack.c.l.b16 %v736
  %v3588 = vunpack.c.h.b16 %v736
  %v3589 = vunpack.c.l.b16 %v737
  %v3590 = vunpack.c.h.b16 %v737
  %v3591 = vunpack.c.l.b16 %v738
  %v3592 = vunpack.c.h.b16 %v738
  %v3593 = vunpack.c.l.b16 %v739
  %v3594 = vunpack.c.h.b16 %v739
  %v3595 = vunpack.c.l.b16 %v740
  %v3596 = vunpack.c.h.b16 %v740
  %v3597 = vunpack.c.l.b16 %v741
  %v3598 = vunpack.c.h.b16 %v741
  %v3599 = vunpack.c.l.b16 %v742
  %v3600 = vunpack.c.h.b16 %v742
  %v3601 = vunpack.c.l.b16 %v743
  %v3602 = vunpack.c.h.b16 %v743
  %v3603 = vunpack.c.l.b16 %v744
  %v3604 = vunpack.c.h.b16 %v744
  %v3605 = vunpack.c.l.b16 %v745
  %v3606 = vunpack.c.h.b16 %v745
  %v3607 = vunpack.c.l.b16 %v746
  %v3608 = vunpack.c.h.b16 %v746
  %v3609 = vunpack.c.l.b16 %v747
  %v3610 = vunpack.c.h.b16 %v747
  %v3611 = vunpack.c.l.b16 %v748
  %v3612 = vunpack.c.h.b16 %v748
  %v3613 = vunpack.c.l.b16 %v749
  %v3614 = vunpack.c.h.b16 %v749
  %v3615 = vunpack.c.l.b16 %v750
  %v3616 = vunpack.c.h.b16 %v750
  %v3617 = vunpack.c.l.b16 %v751
  %v3618 = vunpack.c.h.b16 %v751
  %v3619 = vunpack.c.l.b16 %v752
  %v3620 = vunpack.c.h.b16 %v752
  %v3621 = vunpack.c.l.b16 %v753
  %v3622 = vunpack.c.h.b16 %v753
  %v3623 = vunpack.c.l.b16 %v754
  %v3624 = vunpack.c.h.b16 %v754
  %v3625 = vunpack.c.l.b16 %v755
  %v3626 = vunpack.c.h.b16 %v755
  %v3627 = vunpack.c.l.b16 %v756
  %v3628 = vunpack.c.h.b16 %v756
  %v3629 = vunpack.c.l.b16 %v757
  %v3630 = vunpack.c.h.b16 %v757
  %v3631 = vunpack.c.l.b16 %v758
  %v3632 = vunpack.c.h.b16 %v758
  %v3633 = vunpack.c.l.b16 %v759
  %v3634 = vunpack.c.h.b16 %v759
  %v3635 = vunpack.c.l.b16 %v760
  %v3636 = vunpack.c.h.b16 %v760
  %v3637 = vunpack.c.l.b16 %v761
  %v3638 = vunpack.c.h.b16 %v761
  %v3639 = vunpack.c.l.b16 %v762
  %v3640 = vunpack.c.h.b16 %v762
  %v3641 = vunpack.c.l.b16 %v763
  %v3642 = vunpack.c.h.b16 %v763
  %v3643 = vunpack.c.l.b16 %v764
  %v3644 = vunpack.c.h.b16 %v764
  %v3645 = vunpack.c.l.b16 %v765
  %v3646 = vunpack.c.h.b16 %v765
  %v3647 = vunpack.c.l.b16 %v766
  %v3648 = vunpack.c.h.b16 %v766
  %v3649 = vunpack.c.l.b16 %v767
  %v3650 = vunpack.c.h.b16 %v767
  %v3651 = vunpack.c.l.b16 %v768
  %v3652 = vunpack.c.h.b16 %v768
  %v3653 = vunpack.c.l.b16 %v769
  %v3654 = vunpack.c.h.b16 %v769
  %v3655 = vunpack.c.l.b16 %v770
  %v3656 = vunpack.c.h.b16 %v770
  %v3657 = vunpack.c.l.b16 %v771
  %v3658 = vunpack.c.h.b16 %v771
  %v3659 = vunpack.c.l.b16 %v772
  %v3660 = vunpack.c.h.b16 %v772
  %v3661 = vunpack.c.l.b16 %v773
  %v3662 = vunpack.c.h.b16 %v773
  %v3663 = vunpack.c.l.b16 %v774
  %v3664 = vunpack.c.h.b16 %v774
  %v3665 = vunpack.c.l.b16 %v775
  %v3666 = vunpack.c.h.b16 %v775
  %v3667 = vunpack.c.l.b16 %v776
  %v3668 = vunpack.c.h.b16 %v776
  %v3669 = vunpack.c.l.b16 %v777
  %v3670 = vunpack.c.h.b16 %v777
  %v3671 = vunpack.c.l.b16 %v778
  %v3672 = vunpack.c.h.b16 %v778
  %v3673 = vunpack.c.l.b16 %v779
  %v3674 = vunpack.c.h.b16 %v779
  %v3675 = vunpack.c.l.b16 %v780
  %v3676 = vunpack.c.h.b16 %v780
  %v3677 = vunpack.c.l.b16 %v781
  %v3678 = vunpack.c.h.b16 %v781
  %v3679 = vunpack.c.l.b16 %v782
  %v3680 = vunpack.c.h.b16 %v782
  %v3681 = vunpack.c.l.b16 %v783
  %v3682 = vunpack.c.h.b16 %v783
  %v3683 = vunpack.c.l.b16 %v784
  %v3684 = vunpack.c.h.b16 %v784
  %v3685 = vunpack.c.l.b16 %v785
  %v3686 = vunpack.c.h.b16 %v785
  %v3687 = vunpack.c.l.b16 %v786
  %v3688 = vunpack.c.h.b16 %v786
  %v3689 = vunpack.c.l.b16 %v787
  %v3690 = vunpack.c.h.b16 %v787
  %v3691 = vunpack.c.l.b16 %v788
  %v3692 = vunpack.c.h.b16 %v788
  %v3693 = vunpack.c.l.b16 %v789
  %v3694 = vunpack.c.h.b16 %v789
  %v3695 = vunpack.c.l.b16 %v790
  %v3696 = vunpack.c.h.b16 %v790
  %v3697 = vunpack.c.l.b16 %v791
  %v3698 = vunpack.c.h.b16 %v791
  %v3699 = vunpack.c.l.b16 %v792
  %v3700 = vunpack.c.h.b16 %v792
  %v3701 = vunpack.c.l.b16 %v793
  %v3702 = vunpack.c.h.b16 %v793
  %v3703 = vunpack.c.l.b16 %v794
  %v3704 = vunpack.c.h.b16 %v794
  %v3705 = vunpack.c.l.b16 %v795
  %v3706 = vunpack.c.h.b16 %v795
  %v3707 = vunpack.c.l.b16 %v796
  %v3708 = vunpack.c.h.b16 %v796
  %v3709 = vunpack.c.l.b16 %v797
  %v3710 = vunpack.c.h.b16 %v797
  %v3711 = vunpack.c.l.b16 %v798
  %v3712 = vunpack.c.h.b16 %v798
  %v3713 = vunpack.c.l.b16 %v799
  %v3714 = vunpack.c.h.b16 %v799
  %v3715 = vunpack.c.l.b16 %v800
  %v3716 = vunpack.c.h.b16 %v800
  %v3717 = vunpack.c.l.b16 %v801
  %v3718 = vunpack.c.h.b16 %v801
  %v3719 = vunpack.c.l.b16 %v802
  %v3720 = vunpack.c.h.b16 %v802
  %v3721 = vunpack.c.l.b16 %v803
  %v3722 = vunpack.c.h.b16 %v803
  %v3723 = vunpack.c.l.b16 %v804
  %v3724 = vunpack.c.h.b16 %v804
  %v3725 = vunpack.c.l.b16 %v805
  %v3726 = vunpack.c.h.b16 %v805
  %v3727 = vunpack.c.l.b16 %v806
  %v3728 = vunpack.c.h.b16 %v806
  %v3729 = vunpack.c.l.b16 %v807
  %v3730 = vunpack.c.h.b16 %v807
  %v3731 = vunpack.c.l.b16 %v808
  %v3732 = vunpack.c.h.b16 %v808
  %v3733 = vunpack.c.l.b16 %v809
  %v3734 = vunpack.c.h.b16 %v809
  %v3735 = vunpack.c.l.b16 %v810
  %v3736 = vunpack.c.h.b16 %v810
  %v3737 = vunpack.c.l.b16 %v811
  %v3738 = vunpack.c.h.b16 %v811
  %v3739 = vunpack.c.l.b16 %v812
  %v3740 = vunpack.c.h.b16 %v812
  %v3741 = vunpack.c.l.b16 %v813
  %v3742 = vunpack.c.h.b16 %v813
  %v3743 = vunpack.c.l.b16 %v814
  %v3744 = vunpack.c.h.b16 %v814
  %v3745 = vunpack.c.l.b16 %v815
  %v3746 = vunpack.c.h.b16 %v815
  %v3747 = vunpack.c.l.b16 %v816
  %v3748 = vunpack.c.h.b16 %v816
  %v3749 = vunpack.c.l.b16 %v817
  %v3750 = vunpack.c.h.b16 %v817
  %v3751 = vunpack.c.l.b16 %v818
  %v3752 = vunpack.c.h.b16 %v818
  %v3753 = vunpack.c.l.b16 %v819
  %v3754 = vunpack.c.h.b16 %v819
  %v3755 = vunpack.c.l.b16 %v820
  %v3756 = vunpack.c.h.b16 %v820
  %v3757 = vunpack.c.l.b16 %v821
  %v3758 = vunpack.c.h.b16 %v821
  %v3759 = vunpack.c.l.b16 %v822
  %v3760 = vunpack.c.h.b16 %v822
  %v3761 = vunpack.c.l.b16 %v823
  %v3762 = vunpack.c.h.b16 %v823
  %v3763 = vunpack.c.l.b16 %v824
  %v3764 = vunpack.c.h.b16 %v824
  %v3765 = vunpack.c.l.b16 %v825
  %v3766 = vunpack.c.h.b16 %v825
  %v3767 = vunpack.c.l.b16 %v826
  %v3768 = vunpack.c.h.b16 %v826
  %v3769 = vunpack.c.l.b16 %v827
  %v3770 = vunpack.c.h.b16 %v827
  %v3771 = vunpack.c.l.b16 %v828
  %v3772 = vunpack.c.h.b16 %v828
  %v3773 = vunpack.c.l.b16 %v829
  %v3774 = vunpack.c.h.b16 %v829
  %v3775 = vunpack.c.l.b16 %v830
  %v3776 = vunpack.c.h.b16 %v830
  %v3777 = vunpack.c.l.b16 %v831
  %v3778 = vunpack.c.h.b16 %v831
  %v3779 = vunpack.c.l.b16 %v832
  %v3780 = vunpack.c.h.b16 %v832
  %v3781 = vunpack.c.l.b16 %v833
  %v3782 = vunpack.c.h.b16 %v833
  %v3783 = vunpack.c.l.b16 %v834
  %v3784 = vunpack.c.h.b16 %v834
  %v3785 = vunpack.c.l.b16 %v835
  %v3786 = vunpack.c.h.b16 %v835
  %v3787 = vunpack.c.l.b16 %v836
  %v3788 = vunpack.c.h.b16 %v836
  %v3789 = vunpack.c.l.b16 %v837
  %v3790 = vunpack.c.h.b16 %v837
  %v3791 = vunpack.c.l.b16 %v838
  %v3792 = vunpack.c.h.b16 %v838
  %v3793 = vunpack.c.l.b16 %v839
  %v3794 = vunpack.c.h.b16 %v839
  %v3795 = vunpack.c.l.b16 %v840
  %v3796 = vunpack.c.h.b16 %v840
  %v3797 = vunpack.c.l.b16 %v841
  %v3798 = vunpack.c.h.b16 %v841
  %v3799 = vunpack.c.l.b16 %v842
  %v3800 = vunpack.c.h.b16 %v842
  %v3801 = vunpack.c.l.b16 %v843
  %v3802 = vunpack.c.h.b16 %v843
  %v3803 = vunpack.c.l.b16 %v844
  %v3804 = vunpack.c.h.b16 %v844
  %v3805 = vunpack.c.l.b16 %v845
  %v3806 = vunpack.c.h.b16 %v845
  %v3807 = vunpack.c.l.b16 %v846
  %v3808 = vunpack.c.h.b16 %v846
  %v3809 = vunpack.c.l.b16 %v847
  %v3810 = vunpack.c.h.b16 %v847
  %v3811 = vunpack.c.l.b16 %v848
  %v3812 = vunpack.c.h.b16 %v848
  %v3813 = vunpack.c.l.b16 %v849
  %v3814 = vunpack.c.h.b16 %v849
  %v3815 = vunpack.c.l.b16 %v850
  %v3816 = vunpack.c.h.b16 %v850
  %v3817 = vunpack.c.l.b16 %v851
  %v3818 = vunpack.c.h.b16 %v851
  %v3819 = vunpack.c.l.b16 %v852
  %v3820 = vunpack.c.h.b16 %v852
  %v3821 = vunpack.c.l.b16 %v853
  %v3822 = vunpack.c.h.b16 %v853
  %v3823 = vunpack.c.l.b16 %v854
  %v3824 = vunpack.c.h.b16 %v854
  %v3825 = vunpack.c.l.b16 %v855
  %v3826 = vunpack.c.h.b16 %v855
  %v3827 = vunpack.c.l.b16 %v856
  %v3828 = vunpack.c.h.b16 %v856
  %v3829 = vunpack.c.l.b16 %v857
  %v3830 = vunpack.c.h.b16 %v857
  %v3831 = vunpack.c.l.b16 %v858
  %v3832 = vunpack.c.h.b16 %v858
  %v3833 = vunpack.c.l.b16 %v859
  %v3834 = vunpack.c.h.b16 %v859
  %v3835 = vunpack.c.l.b16 %v860
  %v3836 = vunpack.c.h.b16 %v860
  %v3837 = vunpack.c.l.b16 %v861
  %v3838 = vunpack.c.h.b16 %v861
  %v3839 = vunpack.c.l.b16 %v862
  %v3840 = vunpack.c.h.b16 %v862
  %v3841 = vunpack.c.l.b16 %v863
  %v3842 = vunpack.c.h.b16 %v863
  %v3843 = vunpack.c.l.b16 %v864
  %v3844 = vunpack.c.h.b16 %v864
  %v3845 = vunpack.c.l.b16 %v865
  %v3846 = vunpack.c.h.b16 %v865
  %v3847 = vunpack.c.l.b16 %v866
  %v3848 = vunpack.c.h.b16 %v866
  %v3849 = vunpack.c.l.b16 %v867
  %v3850 = vunpack.c.h.b16 %v867
  %v3851 = vunpack.c.l.b16 %v868
  %v3852 = vunpack.c.h.b16 %v868
  %v3853 = vunpack.c.l.b16 %v869
  %v3854 = vunpack.c.h.b16 %v869
  %v3855 = vunpack.c.l.b16 %v870
  %v3856 = vunpack.c.h.b16 %v870
  %v3857 = vunpack.c.l.b16 %v871
  %v3858 = vunpack.c.h.b16 %v871
  %v3859 = vunpack.c.l.b16 %v872
  %v3860 = vunpack.c.h.b16 %v872
  %v3861 = vunpack.c.l.b16 %v873
  %v3862 = vunpack.c.h.b16 %v873
  %v3863 = vunpack.c.l.b16 %v874
  %v3864 = vunpack.c.h.b16 %v874
  %v3865 = vunpack.c.l.b16 %v875
  %v3866 = vunpack.c.h.b16 %v875
  %v3867 = vunpack.c.l.b16 %v876
  %v3868 = vunpack.c.h.b16 %v876
  %v3869 = vunpack.c.l.b16 %v877
  %v3870 = vunpack.c.h.b16 %v877
  %v3871 = vunpack.c.l.b16 %v878
  %v3872 = vunpack.c.h.b16 %v878
  %v3873 = vunpack.c.l.b16 %v879
  %v3874 = vunpack.c.h.b16 %v879
  %v3875 = vunpack.c.l.b16 %v880
  %v3876 = vunpack.c.h.b16 %v880
  %v3877 = vunpack.c.l.b16 %v881
  %v3878 = vunpack.c.h.b16 %v881
  %v3879 = vunpack.c.l.b16 %v882
  %v3880 = vunpack.c.h.b16 %v882
  %v3881 = vunpack.c.l.b16 %v883
  %v3882 = vunpack.c.h.b16 %v883
  %v3883 = vunpack.c.l.b16 %v884
  %v3884 = vunpack.c.h.b16 %v884
  %v3885 = vunpack.c.l.b16 %v885
  %v3886 = vunpack.c.h.b16 %v885
  %v3887 = vunpack.c.l.b16 %v886
  %v3888 = vunpack.c.h.b16 %v886
  %v3889 = vunpack.c.l.b16 %v887
  %v3890 = vunpack.c.h.b16 %v887
  %v3891 = vunpack.c.l.b16 %v888
  %v3892 = vunpack.c.h.b16 %v888
  %v3893 = vunpack.c.l.b16 %v889
  %v3894 = vunpack.c.h.b16 %v889
  %v3895 = vunpack.c.l.b16 %v890
  %v3896 = vunpack.c.h.b16 %v890
  %v3897 = vunpack.c.l.b16 %v891
  %v3898 = vunpack.c.h.b16 %v891
  %v3899 = vunpack.c.l.b16 %v892
  %v3900 = vunpack.c.h.b16 %v892
  %v3901 = vunpack.c.l.b16 %v893
  %v3902 = vunpack.c.h.b16 %v893
  %v3903 = vunpack.c.l.b16 %v894
  %v3904 = vunpack.c.h.b16 %v894
  %v3905 = vunpack.c.l.b16 %v895
  %v3906 = vunpack.c.h.b16 %v895
  %v3907 = vunpack.c.l.b16 %v896
  %v3908 = vunpack.c.h.b16 %v896
  %v3909 = vunpack.c.l.b16 %v897
  %v3910 = vunpack.c.h.b16 %v897
  %v3911 = vunpack.c.l.b16 %v898
  %v3912 = vunpack.c.h.b16 %v898
  %v3913 = vunpack.c.l.b16 %v899
  %v3914 = vunpack.c.h.b16 %v899
  %v3915 = vunpack.c.l.b16 %v900
  %v3916 = vunpack.c.h.b16 %v900
  %v3917 = vunpack.c.l.b16 %v901
  %v3918 = vunpack.c.h.b16 %v901
  %v3919 = vunpack.c.l.b16 %v902
  %v3920 = vunpack.c.h.b16 %v902
  %v3921 = vunpack.c.l.b16 %v903
  %v3922 = vunpack.c.h.b16 %v903
  %v3923 = vunpack.c.l.b16 %v904
  %v3924 = vunpack.c.h.b16 %v904
  %v3925 = vunpack.c.l.b16 %v905
  %v3926 = vunpack.c.h.b16 %v905
  %v3927 = vunpack.c.l.b16 %v906
  %v3928 = vunpack.c.h.b16 %v906
  %v3929 = vunpack.c.l.b16 %v907
  %v3930 = vunpack.c.h.b16 %v907
  %v3931 = vunpack.c.l.b16 %v908
  %v3932 = vunpack.c.h.b16 %v908
  %v3933 = vunpack.c.l.b16 %v909
  %v3934 = vunpack.c.h.b16 %v909
  %v3935 = vunpack.c.l.b16 %v910
  %v3936 = vunpack.c.h.b16 %v910
  %v3937 = vunpack.c.l.b16 %v911
  %v3938 = vunpack.c.h.b16 %v911
  %v3939 = vunpack.c.l.b16 %v912
  %v3940 = vunpack.c.h.b16 %v912
  %v3941 = vunpack.c.l.b16 %v913
  %v3942 = vunpack.c.h.b16 %v913
  %v3943 = vunpack.c.l.b16 %v914
  %v3944 = vunpack.c.h.b16 %v914
  %v3945 = vunpack.c.l.b16 %v915
  %v3946 = vunpack.c.h.b16 %v915
  %v3947 = vunpack.c.l.b16 %v916
  %v3948 = vunpack.c.h.b16 %v916
  %v3949 = vunpack.c.l.b16 %v917
  %v3950 = vunpack.c.h.b16 %v917
  %v3951 = vunpack.c.l.b16 %v918
  %v3952 = vunpack.c.h.b16 %v918
  %v3953 = vunpack.c.l.b16 %v919
  %v3954 = vunpack.c.h.b16 %v919
  %v3955 = vunpack.c.l.b16 %v920
  %v3956 = vunpack.c.h.b16 %v920
  %v3957 = vunpack.c.l.b16 %v921
  %v3958 = vunpack.c.h.b16 %v921
  %v3959 = vunpack.c.l.b16 %v922
  %v3960 = vunpack.c.h.b16 %v922
  %v3961 = vunpack.c.l.b16 %v923
  %v3962 = vunpack.c.h.b16 %v923
  %v3963 = vunpack.c.l.b16 %v924
  %v3964 = vunpack.c.h.b16 %v924
  %v3965 = vunpack.c.l.b16 %v925
  %v3966 = vunpack.c.h.b16 %v925
  %v3967 = vunpack.c.l.b16 %v926
  %v3968 = vunpack.c.h.b16 %v926
  %v3969 = vunpack.c.l.b16 %v927
  %v3970 = vunpack.c.h.b16 %v927
  %v3971 = vunpack.c.l.b16 %v928
  %v3972 = vunpack.c.h.b16 %v928
  %v3973 = vunpack.c.l.b16 %v929
  %v3974 = vunpack.c.h.b16 %v929
  %v3975 = vunpack.c.l.b16 %v930
  %v3976 = vunpack.c.h.b16 %v930
  %v3977 = vunpack.c.l.b16 %v931
  %v3978 = vunpack.c.h.b16 %v931
  %v3979 = vunpack.c.l.b16 %v932
  %v3980 = vunpack.c.h.b16 %v932
  %v3981 = vunpack.c.l.b16 %v933
  %v3982 = vunpack.c.h.b16 %v933
  %v3983 = vunpack.c.l.b16 %v934
  %v3984 = vunpack.c.h.b16 %v934
  %v3985 = vunpack.c.l.b16 %v935
  %v3986 = vunpack.c.h.b16 %v935
  %v3987 = vunpack.c.l.b16 %v936
  %v3988 = vunpack.c.h.b16 %v936
  %v3989 = vunpack.c.l.b16 %v937
  %v3990 = vunpack.c.h.b16 %v937
  %v3991 = vunpack.c.l.b16 %v938
  %v3992 = vunpack.c.h.b16 %v938
  %v3993 = vunpack.c.l.b16 %v939
  %v3994 = vunpack.c.h.b16 %v939
  %v3995 = vunpack.c.l.b16 %v940
  %v3996 = vunpack.c.h.b16 %v940
  %v3997 = vunpack.c.l.b16 %v941
  %v3998 = vunpack.c.h.b16 %v941
  %v3999 = vunpack.c.l.b16 %v942
  %v4000 = vunpack.c.h.b16 %v942
  %v4001 = vunpack.c.l.b16 %v943
  %v4002 = vunpack.c.h.b16 %v943
  %v4003 = vunpack.c.l.b16 %v944
  %v4004 = vunpack.c.h.b16 %v944
  %v4005 = vunpack.c.l.b16 %v945
  %v4006 = vunpack.c.h.b16 %v945
  %v4007 = vunpack.c.l.b16 %v946
  %v4008 = vunpack.c.h.b16 %v946
  %v4009 = vunpack.c.l.b16 %v947
  %v4010 = vunpack.c.h.b16 %v947
  %v4011 = vunpack.c.l.b16 %v948
  %v4012 = vunpack.c.h.b16 %v948
  %v4013 = vunpack.c.l.b16 %v949
  %v4014 = vunpack.c.h.b16 %v949
  %v4015 = vunpack.c.l.b16 %v950
  %v4016 = vunpack.c.h.b16 %v950
  %v4017 = vunpack.c.l.b16 %v951
  %v4018 = vunpack.c.h.b16 %v951
  %v4019 = vunpack.c.l.b16 %v952
  %v4020 = vunpack.c.h.b16 %v952
  %v4021 = vunpack.c.l.b16 %v953
  %v4022 = vunpack.c.h.b16 %v953
  %v4023 = vunpack.c.l.b16 %v954
  %v4024 = vunpack.c.h.b16 %v954
  %v4025 = vunpack.c.l.b16 %v955
  %v4026 = vunpack.c.h.b16 %v955
  %v4027 = vunpack.c.l.b16 %v956
  %v4028 = vunpack.c.h.b16 %v956
  %v4029 = vunpack.c.l.b16 %v957
  %v4030 = vunpack.c.h.b16 %v957
  %v4031 = vunpack.c.l.b16 %v958
  %v4032 = vunpack.c.h.b16 %v958
  %v4033 = vunpack.c.l.b16 %v959
  %v4034 = vunpack.c.h.b16 %v959
  %v4035 = vunpack.c.l.b16 %v960
  %v4036 = vunpack.c.h.b16 %v960
  %v4037 = vunpack.c.l.b16 %v961
  %v4038 = vunpack.c.h.b16 %v961
  %v4039 = vunpack.c.l.b16 %v962
  %v4040 = vunpack.c.h.b16 %v962
  %v4041 = vunpack.c.l.b16 %v963
  %v4042 = vunpack.c.h.b16 %v963
  %v4043 = vunpack.c.l.b16 %v964
  %v4044 = vunpack.c.h.b16 %v964
  %v4045 = vunpack.c.l.b16 %v965
  %v4046 = vunpack.c.h.b16 %v965
  %v4047 = vunpack.c.l.b16 %v966
  %v4048 = vunpack.c.h.b16 %v966
  %v4049 = vunpack.c.l.b16 %v967
  %v4050 = vunpack.c.h.b16 %v967
  %v4051 = vunpack.c.l.b16 %v968
  %v4052 = vunpack.c.h.b16 %v968
  %v4053 = vunpack.c.l.b16 %v969
  %v4054 = vunpack.c.h.b16 %v969
  %v4055 = vunpack.c.l.b16 %v970
  %v4056 = vunpack.c.h.b16 %v970
  %v4057 = vunpack.c.l.b16 %v971
  %v4058 = vunpack.c.h.b16 %v971
  %v4059 = vunpack.c.l.b16 %v972
  %v4060 = vunpack.c.h.b16 %v972
  %v4061 = vunpack.c.l.b16 %v973
  %v4062 = vunpack.c.h.b16 %v973
  %v4063 = vunpack.c.l.b16 %v974
  %v4064 = vunpack.c.h.b16 %v974
  %v4065 = vunpack.c.l.b16 %v975
  %v4066 = vunpack.c.h.b16 %v975
  %v4067 = vunpack.c.l.b16 %v976
  %v4068 = vunpack.c.h.b16 %v976
  %v4069 = vunpack.c.l.b16 %v977
  %v4070 = vunpack.c.h.b16 %v977
  %v4071 = vunpack.c.l.b16 %v978
  %v4072 = vunpack.c.h.b16 %v978
  %v4073 = vunpack.c.l.b16 %v979
  %v4074 = vunpack.c.h.b16 %v979
  %v4075 = vunpack.c.l.b16 %v980
  %v4076 = vunpack.c.h.b16 %v980
  %v4077 = vunpack.c.l.b16 %v981
  %v4078 = vunpack.c.h.b16 %v981
  %v4079 = vunpack.c.l.b16 %v982
  %v4080 = vunpack.c.h.b16 %v982
  %v4081 = vunpack.c.l.b16 %v983
  %v4082 = vunpack.c.h.b16 %v983
  %v4083 = vunpack.c.l.b16 %v984
  %v4084 = vunpack.c.h.b16 %v984
  %v4085 = vunpack.c.l.b16 %v985
  %v4086 = vunpack.c.h.b16 %v985
  %v4087 = vunpack.c.l.b16 %v986
  %v4088 = vunpack.c.h.b16 %v986
  %v4089 = vunpack.c.l.b16 %v987
  %v4090 = vunpack.c.h.b16 %v987
  %v4091 = vunpack.c.l.b16 %v988
  %v4092 = vunpack.c.h.b16 %v988
  %v4093 = vunpack.c.l.b16 %v989
  %v4094 = vunpack.c.h.b16 %v989
  %v4095 = vunpack.c.l.b16 %v990
  %v4096 = vunpack.c.h.b16 %v990
  %v4097 = vunpack.c.l.b16 %v991
  %v4098 = vunpack.c.h.b16 %v991
  %v4099 = vunpack.c.l.b16 %v992
  %v4100 = vunpack.c.h.b16 %v992
  %v4101 = vunpack.c.l.b16 %v993
  %v4102 = vunpack.c.h.b16 %v993
  %v4103 = vunpack.c.l.b16 %v994
  %v4104 = vunpack.c.h.b16 %v994
  %v4105 = vunpack.c.l.b16 %v995
  %v4106 = vunpack.c.h.b16 %v995
  %v4107 = vunpack.c.l.b16 %v996
  %v4108 = vunpack.c.h.b16 %v996
  %v4109 = vunpack.c.l.b16 %v997
  %v4110 = vunpack.c.h.b16 %v997
  %v4111 = vunpack.c.l.b16 %v998
  %v4112 = vunpack.c.h.b16 %v998
  %v4113 = vunpack.c.l.b16 %v999
  %v4114 = vunpack.c.h.b16 %v999
  %v4115 = vunpack.c.l.b16 %v1000
  %v4116 = vunpack.c.h.b16 %v1000
  %v4117 = vunpack.c.l.b16 %v1001
  %v4118 = vunpack.c.h.b16 %v1001
  %v4119 = vunpack.c.l.b16 %v1002
  %v4120 = vunpack.c.h.b16 %v1002
  %v4121 = vunpack.c.l.b16 %v1003
  %v4122 = vunpack.c.h.b16 %v1003
  %v4123 = vunpack.c.l.b16 %v1004
  %v4124 = vunpack.c.h.b16 %v1004
  %v4125 = vunpack.c.l.b16 %v1005
  %v4126 = vunpack.c.h.b16 %v1005
  %v4127 = vunpack.c.l.b16 %v1006
  %v4128 = vunpack.c.h.b16 %v1006
  %v4129 = vunpack.c.l.b16 %v1007
  %v4130 = vunpack.c.h.b16 %v1007
  %v4131 = vunpack.c.l.b16 %v1008
  %v4132 = vunpack.c.h.b16 %v1008
  %v4133 = vunpack.c.l.b16 %v1009
  %v4134 = vunpack.c.h.b16 %v1009
  %v4135 = vunpack.c.l.b16 %v1010
  %v4136 = vunpack.c.h.b16 %v1010
  %v4137 = vunpack.c.l.b16 %v1011
  %v4138 = vunpack.c.h.b16 %v1011
  %v4139 = vunpack.c.l.b16 %v1012
  %v4140 = vunpack.c.h.b16 %v1012
  %v4141 = vunpack.c.l.b16 %v1013
  %v4142 = vunpack.c.h.b16 %v1013
  %v4143 = vunpack.c.l.b16 %v1014
  %v4144 = vunpack.c.h.b16 %v1014
  %v4145 = vunpack.c.l.b16 %v1015
  %v4146 = vunpack.c.h.b16 %v1015
  %v4147 = vunpack.c.l.b16 %v1016
  %v4148 = vunpack.c.h.b16 %v1016
  %v4149 = vunpack.c.l.b16 %v1017
  %v4150 = vunpack.c.h.b16 %v1017
  %v4151 = vunpack.c.l.b16 %v1018
  %v4152 = vunpack.c.h.b16 %v1018
  %v4153 = vunpack.c.l.b16 %v1019
  %v4154 = vunpack.c.h.b16 %v1019
  %v4155 = vunpack.c.l.b16 %v1020
  %v4156 = vunpack.c.h.b16 %v1020
  %v4157 = vunpack.c.l.b16 %v1021
  %v4158 = vunpack.c.h.b16 %v1021
  %v4159 = vunpack.c.l.b16 %v1022
  %v4160 = vunpack.c.h.b16 %v1022
  %v4161 = vunpack.c.l.b16 %v1023
  %v4162 = vunpack.c.h.b16 %v1023
  %v4163 = vunpack.c.l.b16 %v1024
  %v4164 = vunpack.c.h.b16 %v1024
  %v4165 = vunpack.c.l.b16 %v1025
  %v4166 = vunpack.c.h.b16 %v1025
  %v4167 = vunpack.c.l.b16 %v1026
  %v4168 = vunpack.c.h.b16 %v1026
  %v4169 = vunpack.c.l.b16 %v1027
  %v4170 = vunpack.c.h.b16 %v1027
  %v4171 = vunpack.c.l.b16 %v1028
  %v4172 = vunpack.c.h.b16 %v1028
  %v4173 = vunpack.c.l.b16 %v1029
  %v4174 = vunpack.c.h.b16 %v1029
  %v4175 = vunpack.c.l.b16 %v1030
  %v4176 = vunpack.c.h.b16 %v1030
  %v4177 = vunpack.c.l.b16 %v1031
  %v4178 = vunpack.c.h.b16 %v1031
  %v4179 = vunpack.c.l.b16 %v1032
  %v4180 = vunpack.c.h.b16 %v1032
  %v4181 = vunpack.c.l.b16 %v1033
  %v4182 = vunpack.c.h.b16 %v1033
  %v4183 = vunpack.c.l.b16 %v1034
  %v4184 = vunpack.c.h.b16 %v1034
  %v4185 = vunpack.c.l.b16 %v1035
  %v4186 = vunpack.c.h.b16 %v1035
  %v4187 = vunpack.c.l.b16 %v1036
  %v4188 = vunpack.c.h.b16 %v1036
  %v4189 = vunpack.c.l.b16 %v1037
  %v4190 = vunpack.c.h.b16 %v1037
  %v4191 = vunpack.c.l.b16 %v1038
  %v4192 = vunpack.c.h.b16 %v1038
  %v4193 = vunpack.c.l.b16 %v1039
  %v4194 = vunpack.c.h.b16 %v1039
  %v4195 = vunpack.c.l.b16 %v1040
  %v4196 = vunpack.c.h.b16 %v1040
  %v4197 = vunpack.c.l.b16 %v1041
  %v4198 = vunpack.c.h.b16 %v1041
  %v4199 = vunpack.c.l.b16 %v1042
  %v4200 = vunpack.c.h.b16 %v1042
  %v4201 = vunpack.c.l.b16 %v1043
  %v4202 = vunpack.c.h.b16 %v1043
  %v4203 = vunpack.c.l.b16 %v1044
  %v4204 = vunpack.c.h.b16 %v1044
  %v4205 = vunpack.c.l.b16 %v1045
  %v4206 = vunpack.c.h.b16 %v1045
  %v4207 = vunpack.c.l.b16 %v1046
  %v4208 = vunpack.c.h.b16 %v1046
  %v4209 = vunpack.c.l.b16 %v1047
  %v4210 = vunpack.c.h.b16 %v1047
  %v4211 = vunpack.c.l.b16 %v1048
  %v4212 = vunpack.c.h.b16 %v1048
  %v4213 = vunpack.c.l.b16 %v1049
  %v4214 = vunpack.c.h.b16 %v1049
  %v4215 = vunpack.c.l.b16 %v1050
  %v4216 = vunpack.c.h.b16 %v1050
  %v4217 = vunpack.c.l.b16 %v1051
  %v4218 = vunpack.c.h.b16 %v1051
  %v4219 = vunpack.c.l.b16 %v1052
  %v4220 = vunpack.c.h.b16 %v1052
  %v4221 = vunpack.c.l.b16 %v1053
  %v4222 = vunpack.c.h.b16 %v1053
  %v4223 = vunpack.c.l.b16 %v1054
  %v4224 = vunpack.c.h.b16 %v1054
  %v4225 = vunpack.c.l.b16 %v1055
  %v4226 = vunpack.c.h.b16 %v1055
  %v4227 = vunpack.c.l.b16 %v1056
  %v4228 = vunpack.c.h.b16 %v1056
  %v4229 = vunpack.c.l.b16 %v1057
  %v4230 = vunpack.c.h.b16 %v1057
  %v4231 = vunpack.c.l.b16 %v1058
  %v4232 = vunpack.c.h.b16 %v1058
  %v4233 = vunpack.c.l.b16 %v1059
  %v4234 = vunpack.c.h.b16 %v1059
  %v4235 = vunpack.c.l.b16 %v1060
  %v4236 = vunpack.c.h.b16 %v1060
  %v4237 = vunpack.c.l.b16 %v1061
  %v4238 = vunpack.c.h.b16 %v1061
  %v4239 = vunpack.c.l.b16 %v1062
  %v4240 = vunpack.c.h.b16 %v1062
  %v4241 = vunpack.c.l.b16 %v1063
  %v4242 = vunpack.c.h.b16 %v1063
  %v4243 = vunpack.c.l.b16 %v1064
  %v4244 = vunpack.c.h.b16 %v1064
  %v4245 = vunpack.c.l.b16 %v1065
  %v4246 = vunpack.c.h.b16 %v1065
  %v4247 = vunpack.c.l.b16 %v1066
  %v4248 = vunpack.c.h.b16 %v1066
  %v4249 = vunpack.c.l.b16 %v1067
  %v4250 = vunpack.c.h.b16 %v1067
  %v4251 = vunpack.c.l.b16 %v1068
  %v4252 = vunpack.c.h.b16 %v1068
  %v4253 = vpack.c.b16 %v2209, %v2205
  %v4254 = vpack.c.b16 %v2210, %v2206
  %v4255 = vpack.c.b16 %v2211, %v2207
  %v4256 = vpack.c.b16 %v2212, %v2208
  %v4257 = vpack.c.b16 %v2217, %v2213
  %v4258 = vpack.c.b16 %v2218, %v2214
  %v4259 = vpack.c.b16 %v2219, %v2215
  %v4260 = vpack.c.b16 %v2220, %v2216
  %v4261 = vpack.c.b16 %v2225, %v2221
  %v4262 = vpack.c.b16 %v2226, %v2222
  %v4263 = vpack.c.b16 %v2227, %v2223
  %v4264 = vpack.c.b16 %v2228, %v2224
  %v4265 = vpack.c.b16 %v2233, %v2229
  %v4266 = vpack.c.b16 %v2234, %v2230
  %v4267 = vpack.c.b16 %v2235, %v2231
  %v4268 = vpack.c.b16 %v2236, %v2232
  %v4269 = vpack.c.b16 %v2241, %v2237
  %v4270 = vpack.c.b16 %v2242, %v2238
  %v4271 = vpack.c.b16 %v2243, %v2239
  %v4272 = vpack.c.b16 %v2244, %v2240
  %v4273 = vpack.c.b16 %v2249, %v2245
  %v4274 = vpack.c.b16 %v2250, %v2246
  %v4275 = vpack.c.b16 %v2251, %v2247
  %v4276 = vpack.c.b16 %v2252, %v2248
  %v4277 = vpack.c.b16 %v2257, %v2253
  %v4278 = vpack.c.b16 %v2258, %v2254
  %v4279 = vpack.c.b16 %v2259, %v2255
  %v4280 = vpack.c.b16 %v2260, %v2256
  %v4281 = vpack.c.b16 %v2265, %v2261
  %v4282 = vpack.c.b16 %v2266, %v2262
  %v4283 = vpack.c.b16 %v2267, %v2263
  %v4284 = vpack.c.b16 %v2268, %v2264
  %v4285 = vpack.c.b16 %v2273, %v2269
  %v4286 = vpack.c.b16 %v2274, %v2270
  %v4287 = vpack.c.b16 %v2275, %v2271
  %v4288 = vpack.c.b16 %v2276, %v2272
  %v4289 = vpack.c.b16 %v2281, %v2277
  %v4290 = vpack.c.b16 %v2282, %v2278
  %v4291 = vpack.c.b16 %v2283, %v2279
  %v4292 = vpack.c.b16 %v2284, %v2280
  %v4293 = vpack.c.b16 %v2289, %v2285
  %v4294 = vpack.c.b16 %v2290, %v2286
  %v4295 = vpack.c.b16 %v2291, %v2287
  %v4296 = vpack.c.b16 %v2292, %v2288
  %v4297 = vpack.c.b16 %v2297, %v2293
  %v4298 = vpack.c.b16 %v2298, %v2294
  %v4299 = vpack.c.b16 %v2299, %v2295
  %v4300 = vpack.c.b16 %v2300, %v2296
  %v4301 = vpack.c.b16 %v2305, %v2301
  %v4302 = vpack.c.b16 %v2306, %v2302
  %v4303 = vpack.c.b16 %v2307, %v2303
  %v4304 = vpack.c.b16 %v2308, %v2304
  %v4305 = vpack.c.b16 %v2313, %v2309
  %v4306 = vpack.c.b16 %v2314, %v2310
  %v4307 = vpack.c.b16 %v2315, %v2311
  %v4308 = vpack.c.b16 %v2316, %v2312
  %v4309 = vpack.c.b16 %v2321, %v2317
  %v4310 = vpack.c.b16 %v2322, %v2318
  %v4311 = vpack.c.b16 %v2323, %v2319
  %v4312 = vpack.c.b16 %v2324, %v2320
  %v4313 = vpack.c.b16 %v2329, %v2325
  %v4314 = vpack.c.b16 %v2330, %v2326
  %v4315 = vpack.c.b16 %v2331, %v2327
  %v4316 = vpack.c.b16 %v2332, %v2328
  %v4317 = vpack.c.b16 %v2337, %v2333
  %v4318 = vpack.c.b16 %v2338, %v2334
  %v4319 = vpack.c.b16 %v2339, %v2335
  %v4320 = vpack.c.b16 %v2340, %v2336
  %v4321 = vpack.c.b16 %v2345, %v2341
  %v4322 = vpack.c.b16 %v2346, %v2342
  %v4323 = vpack.c.b16 %v2347, %v2343
  %v4324 = vpack.c.b16 %v2348, %v2344
  %v4325 = vpack.c.b16 %v2353, %v2349
  %v4326 = vpack.c.b16 %v2354, %v2350
  %v4327 = vpack.c.b16 %v2355, %v2351
  %v4328 = vpack.c.b16 %v2356, %v2352
  %v4329 = vpack.c.b16 %v2361, %v2357
  %v4330 = vpack.c.b16 %v2362, %v2358
  %v4331 = vpack.c.b16 %v2363, %v2359
  %v4332 = vpack.c.b16 %v2364, %v2360
  %v4333 = vpack.c.b16 %v2369, %v2365
  %v4334 = vpack.c.b16 %v2370, %v2366
  %v4335 = vpack.c.b16 %v2371, %v2367
  %v4336 = vpack.c.b16 %v2372, %v2368
  %v4337 = vpack.c.b16 %v2377, %v2373
  %v4338 = vpack.c.b16 %v2378, %v2374
  %v4339 = vpack.c.b16 %v2379, %v2375
  %v4340 = vpack.c.b16 %v2380, %v2376
  %v4341 = vpack.c.b16 %v2385, %v2381
  %v4342 = vpack.c.b16 %v2386, %v2382
  %v4343 = vpack.c.b16 %v2387, %v2383
  %v4344 = vpack.c.b16 %v2388, %v2384
  %v4345 = vpack.c.b16 %v2393, %v2389
  %v4346 = vpack.c.b16 %v2394, %v2390
  %v4347 = vpack.c.b16 %v2395, %v2391
  %v4348 = vpack.c.b16 %v2396, %v2392
  %v4349 = vpack.c.b16 %v2401, %v2397
  %v4350 = vpack.c.b16 %v2402, %v2398
  %v4351 = vpack.c.b16 %v2403, %v2399
  %v4352 = vpack.c.b16 %v2404, %v2400
  %v4353 = vpack.c.b16 %v2409, %v2405
  %v4354 = vpack.c.b16 %v2410, %v2406
  %v4355 = vpack.c.b16 %v2411, %v2407
  %v4356 = vpack.c.b16 %v2412, %v2408
  %v4357 = vpack.c.b16 %v2417, %v2413
  %v4358 = vpack.c.b16 %v2418, %v2414
  %v4359 = vpack.c.b16 %v2419, %v2415
  %v4360 = vpack.c.b16 %v2420, %v2416
  %v4361 = vpack.c.b16 %v2425, %v2421
  %v4362 = vpack.c.b16 %v2426, %v2422
  %v4363 = vpack.c.b16 %v2427, %v2423
  %v4364 = vpack.c.b16 %v2428, %v2424
  %v4365 = vpack.c.b16 %v2433, %v2429
  %v4366 = vpack.c.b16 %v2434, %v2430
  %v4367 = vpack.c.b16 %v2435, %v2431
  %v4368 = vpack.c.b16 %v2436, %v2432
  %v4369 = vpack.c.b16 %v2441, %v2437
  %v4370 = vpack.c.b16 %v2442, %v2438
  %v4371 = vpack.c.b16 %v2443, %v2439
  %v4372 = vpack.c.b16 %v2444, %v2440
  %v4373 = vpack.c.b16 %v2449, %v2445
  %v4374 = vpack.c.b16 %v2450, %v2446
  %v4375 = vpack.c.b16 %v2451, %v2447
  %v4376 = vpack.c.b16 %v2452, %v2448
  %v4377 = vpack.c.b16 %v2457, %v2453
  %v4378 = vpack.c.b16 %v2458, %v2454
  %v4379 = vpack.c.b16 %v2459, %v2455
  %v4380 = vpack.c.b16 %v2460, %v2456
  %v4381 = vpack.c.b16 %v2465, %v2461
  %v4382 = vpack.c.b16 %v2466, %v2462
  %v4383 = vpack.c.b16 %v2467, %v2463
  %v4384 = vpack.c.b16 %v2468, %v2464
  %v4385 = vpack.c.b16 %v2473, %v2469
  %v4386 = vpack.c.b16 %v2474, %v2470
  %v4387 = vpack.c.b16 %v2475, %v2471
  %v4388 = vpack.c.b16 %v2476, %v2472
  %v4389 = vpack.c.b16 %v2481, %v2477
  %v4390 = vpack.c.b16 %v2482, %v2478
  %v4391 = vpack.c.b16 %v2483, %v2479
  %v4392 = vpack.c.b16 %v2484, %v2480
  %v4393 = vpack.c.b16 %v2489, %v2485
  %v4394 = vpack.c.b16 %v2490, %v2486
  %v4395 = vpack.c.b16 %v2491, %v2487
  %v4396 = vpack.c.b16 %v2492, %v2488
  %v4397 = vpack.c.b16 %v2497, %v2493
  %v4398 = vpack.c.b16 %v2498, %v2494
  %v4399 = vpack.c.b16 %v2499, %v2495
  %v4400 = vpack.c.b16 %v2500, %v2496
  %v4401 = vpack.c.b16 %v2505, %v2501
  %v4402 = vpack.c.b16 %v2506, %v2502
  %v4403 = vpack.c.b16 %v2507, %v2503
  %v4404 = vpack.c.b16 %v2508, %v2504
  %v4405 = vpack.c.b16 %v2513, %v2509
  %v4406 = vpack.c.b16 %v2514, %v2510
  %v4407 = vpack.c.b16 %v2515, %v2511
  %v4408 = vpack.c.b16 %v2516, %v2512
  %v4409 = vpack.c.b16 %v2521, %v2517
  %v4410 = vpack.c.b16 %v2522, %v2518
  %v4411 = vpack.c.b16 %v2523, %v2519
  %v4412 = vpack.c.b16 %v2524, %v2520
  %v4413 = vpack.c.b16 %v2529, %v2525
  %v4414 = vpack.c.b16 %v2530, %v2526
  %v4415 = vpack.c.b16 %v2531, %v2527
  %v4416 = vpack.c.b16 %v2532, %v2528
  %v4417 = vpack.c.b16 %v2537, %v2533
  %v4418 = vpack.c.b16 %v2538, %v2534
  %v4419 = vpack.c.b16 %v2539, %v2535
  %v4420 = vpack.c.b16 %v2540, %v2536
  %v4421 = vpack.c.b16 %v2545, %v2541
  %v4422 = vpack.c.b16 %v2546, %v2542
  %v4423 = vpack.c.b16 %v2547, %v2543
  %v4424 = vpack.c.b16 %v2548, %v2544
  %v4425 = vpack.c.b16 %v2553, %v2549
  %v4426 = vpack.c.b16 %v2554, %v2550
  %v4427 = vpack.c.b16 %v2555, %v2551
  %v4428 = vpack.c.b16 %v2556, %v2552
  %v4429 = vpack.c.b16 %v2561, %v2557
  %v4430 = vpack.c.b16 %v2562, %v2558
  %v4431 = vpack.c.b16 %v2563, %v2559
  %v4432 = vpack.c.b16 %v2564, %v2560
  %v4433 = vpack.c.b16 %v2569, %v2565
  %v4434 = vpack.c.b16 %v2570, %v2566
  %v4435 = vpack.c.b16 %v2571, %v2567
  %v4436 = vpack.c.b16 %v2572, %v2568
  %v4437 = vpack.c.b16 %v2577, %v2573
  %v4438 = vpack.c.b16 %v2578, %v2574
  %v4439 = vpack.c.b16 %v2579, %v2575
  %v4440 = vpack.c.b16 %v2580, %v2576
  %v4441 = vpack.c.b16 %v2585, %v2581
  %v4442 = vpack.c.b16 %v2586, %v2582
  %v4443 = vpack.c.b16 %v2587, %v2583
  %v4444 = vpack.c.b16 %v2588, %v2584
  %v4445 = vpack.c.b16 %v2593, %v2589
  %v4446 = vpack.c.b16 %v2594, %v2590
  %v4447 = vpack.c.b16 %v2595, %v2591
  %v4448 = vpack.c.b16 %v2596, %v2592
  %v4449 = vpack.c.b16 %v2601, %v2597
  %v4450 = vpack.c.b16 %v2602, %v2598
  %v4451 = vpack.c.b16 %v2603, %v2599
  %v4452 = vpack.c.b16 %v2604, %v2600
  %v4453 = vpack.c.b16 %v2609, %v2605
  %v4454 = vpack.c.b16 %v2610, %v2606
  %v4455 = vpack.c.b16 %v2611, %v2607
  %v4456 = vpack.c.b16 %v2612, %v2608
  %v4457 = vpack.c.b16 %v2617, %v2613
  %v4458 = vpack.c.b16 %v2618, %v2614
  %v4459 = vpack.c.b16 %v2619, %v2615
  %v4460 = vpack.c.b16 %v2620, %v2616
  %v4461 = vpack.c.b16 %v2625, %v2621
  %v4462 = vpack.c.b16 %v2626, %v2622
  %v4463 = vpack.c.b16 %v2627, %v2623
  %v4464 = vpack.c.b16 %v2628, %v2624
  %v4465 = vpack.c.b16 %v2633, %v2629
  %v4466 = vpack.c.b16 %v2634, %v2630
  %v4467 = vpack.c.b16 %v2635, %v2631
  %v4468 = vpack.c.b16 %v2636, %v2632
  %v4469 = vpack.c.b16 %v2641, %v2637
  %v4470 = vpack.c.b16 %v2642, %v2638
  %v4471 = vpack.c.b16 %v2643, %v2639
  %v4472 = vpack.c.b16 %v2644, %v2640
  %v4473 = vpack.c.b16 %v2649, %v2645
  %v4474 = vpack.c.b16 %v2650, %v2646
  %v4475 = vpack.c.b16 %v2651, %v2647
  %v4476 = vpack.c.b16 %v2652, %v2648
  %v4477 = vpack.c.b16 %v2657, %v2653
  %v4478 = vpack.c.b16 %v2658, %v2654
  %v4479 = vpack.c.b16 %v2659, %v2655
  %v4480 = vpack.c.b16 %v2660, %v2656
  %v4481 = vpack.c.b16 %v2665, %v2661
  %v4482 = vpack.c.b16 %v2666, %v2662
  %v4483 = vpack.c.b16 %v2667, %v2663
  %v4484 = vpack.c.b16 %v2668, %v2664
  %v4485 = vpack.c.b16 %v2673, %v2669
  %v4486 = vpack.c.b16 %v2674, %v2670
  %v4487 = vpack.c.b16 %v2675, %v2671
  %v4488 = vpack.c.b16 %v2676, %v2672
  %v4489 = vpack.c.b16 %v2681, %v2677
  %v4490 = vpack.c.b16 %v2682, %v2678
  %v4491 = vpack.c.b16 %v2683, %v2679
  %v4492 = vpack.c.b16 %v2684, %v2680
  %v4493 = vpack.c.b16 %v2689, %v2685
  %v4494 = vpack.c.b16 %v2690, %v2686
  %v4495 = vpack.c.b16 %v2691, %v2687
  %v4496 = vpack.c.b16 %v2692, %v2688
  %v4497 = vpack.c.b16 %v2697, %v2693
  %v4498 = vpack.c.b16 %v2698, %v2694
  %v4499 = vpack.c.b16 %v2699, %v2695
  %v4500 = vpack.c.b16 %v2700, %v2696
  %v4501 = vpack.c.b16 %v2705, %v2701
  %v4502 = vpack.c.b16 %v2706, %v2702
  %v4503 = vpack.c.b16 %v2707, %v2703
  %v4504 = vpack.c.b16 %v2708, %v2704
  %v4505 = vpack.c.b16 %v2713, %v2709
  %v4506 = vpack.c.b16 %v2714, %v2710
  %v4507 = vpack.c.b16 %v2715, %v2711
  %v4508 = vpack.c.b16 %v2716, %v2712
  %v4509 = vpack.c.b16 %v2721, %v2717
  %v4510 = vpack.c.b16 %v2722, %v2718
  %v4511 = vpack.c.b16 %v2723, %v2719
  %v4512 = vpack.c.b16 %v2724, %v2720
  %v4513 = vpack.c.b16 %v2729, %v2725
  %v4514 = vpack.c.b16 %v2730, %v2726
  %v4515 = vpack.c.b16 %v2731, %v2727
  %v4516 = vpack.c.b16 %v2732, %v2728
  %v4517 = vpack.c.b16 %v2737, %v2733
  %v4518 = vpack.c.b16 %v2738, %v2734
  %v4519 = vpack.c.b16 %v2739, %v2735
  %v4520 = vpack.c.b16 %v2740, %v2736
  %v4521 = vpack.c.b16 %v2745, %v2741
  %v4522 = vpack.c.b16 %v2746, %v2742
  %v4523 = vpack.c.b16 %v2747, %v2743
  %v4524 = vpack.c.b16 %v2748, %v2744
  %v4525 = vpack.c.b16 %v2753, %v2749
  %v4526 = vpack.c.b16 %v2754, %v2750
  %v4527 = vpack.c.b16 %v2755, %v2751
  %v4528 = vpack.c.b16 %v2756, %v2752
  %v4529 = vpack.c.b16 %v2761, %v2757
  %v4530 = vpack.c.b16 %v2762, %v2758
  %v4531 = vpack.c.b16 %v2763, %v2759
  %v4532 = vpack.c.b16 %v2764, %v2760
  %v4533 = vpack.c.b16 %v2769, %v2765
  %v4534 = vpack.c.b16 %v2770, %v2766
  %v4535 = vpack.c.b16 %v2771, %v2767
  %v4536 = vpack.c.b16 %v2772, %v2768
  %v4537 = vpack.c.b16 %v2777, %v2773
  %v4538 = vpack.c.b16 %v2778, %v2774
  %v4539 = vpack.c.b16 %v2779, %v2775
  %v4540 = vpack.c.b16 %v2780, %v2776
  %v4541 = vpack.c.b16 %v2785, %v2781
  %v4542 = vpack.c.b16 %v2786, %v2782
  %v4543 = vpack.c.b16 %v2787, %v2783
  %v4544 = vpack.c.b16 %v2788, %v2784
  %v4545 = vpack.c.b16 %v2793, %v2789
  %v4546 = vpack.c.b16 %v2794, %v2790
  %v4547 = vpack.c.b16 %v2795, %v2791
  %v4548 = vpack.c.b16 %v2796, %v2792
  %v4549 = vpack.c.b16 %v2801, %v2797
  %v4550 = vpack.c.b16 %v2802, %v2798
  %v4551 = vpack.c.b16 %v2803, %v2799
  %v4552 = vpack.c.b16 %v2804, %v2800
  %v4553 = vpack.c.b16 %v2809, %v2805
  %v4554 = vpack.c.b16 %v2810, %v2806
  %v4555 = vpack.c.b16 %v2811, %v2807
  %v4556 = vpack.c.b16 %v2812, %v2808
  %v4557 = vpack.c.b16 %v2817, %v2813
  %v4558 = vpack.c.b16 %v2818, %v2814
  %v4559 = vpack.c.b16 %v2819, %v2815
  %v4560 = vpack.c.b16 %v2820, %v2816
  %v4561 = vpack.c.b16 %v2825, %v2821
  %v4562 = vpack.c.b16 %v2826, %v2822
  %v4563 = vpack.c.b16 %v2827, %v2823
  %v4564 = vpack.c.b16 %v2828, %v2824
  %v4565 = vpack.c.b16 %v2833, %v2829
  %v4566 = vpack.c.b16 %v2834, %v2830
  %v4567 = vpack.c.b16 %v2835, %v2831
  %v4568 = vpack.c.b16 %v2836, %v2832
  %v4569 = vpack.c.b16 %v2841, %v2837
  %v4570 = vpack.c.b16 %v2842, %v2838
  %v4571 = vpack.c.b16 %v2843, %v2839
  %v4572 = vpack.c.b16 %v2844, %v2840
  %v4573 = vpack.c.b16 %v2849, %v2845
  %v4574 = vpack.c.b16 %v2850, %v2846
  %v4575 = vpack.c.b16 %v2851, %v2847
  %v4576 = vpack.c.b16 %v2852, %v2848
  %v4577 = vpack.c.b16 %v2857, %v2853
  %v4578 = vpack.c.b16 %v2858, %v2854
  %v4579 = vpack.c.b16 %v2859, %v2855
  %v4580 = vpack.c.b16 %v2860, %v2856
  %v4581 = vpack.c.b16 %v2865, %v2861
  %v4582 = vpack.c.b16 %v2866, %v2862
  %v4583 = vpack.c.b16 %v2867, %v2863
  %v4584 = vpack.c.b16 %v2868, %v2864
  %v4585 = vpack.c.b16 %v2873, %v2869
  %v4586 = vpack.c.b16 %v2874, %v2870
  %v4587 = vpack.c.b16 %v2875, %v2871
  %v4588 = vpack.c.b16 %v2876, %v2872
  %v4589 = vpack.c.b16 %v2881, %v2877
  %v4590 = vpack.c.b16 %v2882, %v2878
  %v4591 = vpack.c.b16 %v2883, %v2879
  %v4592 = vpack.c.b16 %v2884, %v2880
  %v4593 = vpack.c.b16 %v2889, %v2885
  %v4594 = vpack.c.b16 %v2890, %v2886
  %v4595 = vpack.c.b16 %v2891, %v2887
  %v4596 = vpack.c.b16 %v2892, %v2888
  %v4597 = vpack.c.b16 %v2897, %v2893
  %v4598 = vpack.c.b16 %v2898, %v2894
  %v4599 = vpack.c.b16 %v2899, %v2895
  %v4600 = vpack.c.b16 %v2900, %v2896
  %v4601 = vpack.c.b16 %v2905, %v2901
  %v4602 = vpack.c.b16 %v2906, %v2902
  %v4603 = vpack.c.b16 %v2907, %v2903
  %v4604 = vpack.c.b16 %v2908, %v2904
  %v4605 = vpack.c.b16 %v2913, %v2909
  %v4606 = vpack.c.b16 %v2914, %v2910
  %v4607 = vpack.c.b16 %v2915, %v2911
  %v4608 = vpack.c.b16 %v2916, %v2912
  %v4609 = vpack.c.b16 %v2921, %v2917
  %v4610 = vpack.c.b16 %v2922, %v2918
  %v4611 = vpack.c.b16 %v2923, %v2919
  %v4612 = vpack.c.b16 %v2924, %v2920
  %v4613 = vpack.c.b16 %v2929, %v2925
  %v4614 = vpack.c.b16 %v2930, %v2926
  %v4615 = vpack.c.b16 %v2931, %v2927
  %v4616 = vpack.c.b16 %v2932, %v2928
  %v4617 = vpack.c.b16 %v2937, %v2933
  %v4618 = vpack.c.b16 %v2938, %v2934
  %v4619 = vpack.c.b16 %v2939, %v2935
  %v4620 = vpack.c.b16 %v2940, %v2936
  %v4621 = vpack.c.b16 %v2945, %v2941
  %v4622 = vpack.c.b16 %v2946, %v2942
  %v4623 = vpack.c.b16 %v2947, %v2943
  %v4624 = vpack.c.b16 %v2948, %v2944
  %v4625 = vpack.c.b16 %v2953, %v2949
  %v4626 = vpack.c.b16 %v2954, %v2950
  %v4627 = vpack.c.b16 %v2955, %v2951
  %v4628 = vpack.c.b16 %v2956, %v2952
  %v4629 = vpack.c.b16 %v2961, %v2957
  %v4630 = vpack.c.b16 %v2962, %v2958
  %v4631 = vpack.c.b16 %v2963, %v2959
  %v4632 = vpack.c.b16 %v2964, %v2960
  %v4633 = vpack.c.b16 %v2969, %v2965
  %v4634 = vpack.c.b16 %v2970, %v2966
  %v4635 = vpack.c.b16 %v2971, %v2967
  %v4636 = vpack.c.b16 %v2972, %v2968
  %v4637 = vpack.c.b16 %v2977, %v2973
  %v4638 = vpack.c.b16 %v2978, %v2974
  %v4639 = vpack.c.b16 %v2979, %v2975
  %v4640 = vpack.c.b16 %v2980, %v2976
  %v4641 = vpack.c.b16 %v2985, %v2981
  %v4642 = vpack.c.b16 %v2986, %v2982
  %v4643 = vpack.c.b16 %v2987, %v2983
  %v4644 = vpack.c.b16 %v2988, %v2984
  %v4645 = vpack.c.b16 %v2993, %v2989
  %v4646 = vpack.c.b16 %v2994, %v2990
  %v4647 = vpack.c.b16 %v2995, %v2991
  %v4648 = vpack.c.b16 %v2996, %v2992
  %v4649 = vpack.c.b16 %v3001, %v2997
  %v4650 = vpack.c.b16 %v3002, %v2998
  %v4651 = vpack.c.b16 %v3003, %v2999
  %v4652 = vpack.c.b16 %v3004, %v3000
  %v4653 = vpack.c.b16 %v3009, %v3005
  %v4654 = vpack.c.b16 %v3010, %v3006
  %v4655 = vpack.c.b16 %v3011, %v3007
  %v4656 = vpack.c.b16 %v3012, %v3008
  %v4657 = vpack.c.b16 %v3017, %v3013
  %v4658 = vpack.c.b16 %v3018, %v3014
  %v4659 = vpack.c.b16 %v3019, %v3015
  %v4660 = vpack.c.b16 %v3020, %v3016
  %v4661 = vpack.c.b16 %v3025, %v3021
  %v4662 = vpack.c.b16 %v3026, %v3022
  %v4663 = vpack.c.b16 %v3027, %v3023
  %v4664 = vpack.c.b16 %v3028, %v3024
  %v4665 = vpack.c.b16 %v3033, %v3029
  %v4666 = vpack.c.b16 %v3034, %v3030
  %v4667 = vpack.c.b16 %v3035, %v3031
  %v4668 = vpack.c.b16 %v3036, %v3032
  %v4669 = vpack.c.b16 %v3041, %v3037
  %v4670 = vpack.c.b16 %v3042, %v3038
  %v4671 = vpack.c.b16 %v3043, %v3039
  %v4672 = vpack.c.b16 %v3044, %v3040
  %v4673 = vpack.c.b16 %v3049, %v3045
  %v4674 = vpack.c.b16 %v3050, %v3046
  %v4675 = vpack.c.b16 %v3051, %v3047
  %v4676 = vpack.c.b16 %v3052, %v3048
  %v4677 = vpack.c.b16 %v3057, %v3053
  %v4678 = vpack.c.b16 %v3058, %v3054
  %v4679 = vpack.c.b16 %v3059, %v3055
  %v4680 = vpack.c.b16 %v3060, %v3056
  %v4681 = vpack.c.b16 %v3065, %v3061
  %v4682 = vpack.c.b16 %v3066, %v3062
  %v4683 = vpack.c.b16 %v3067, %v3063
  %v4684 = vpack.c.b16 %v3068, %v3064
  %v4685 = vpack.c.b16 %v3073, %v3069
  %v4686 = vpack.c.b16 %v3074, %v3070
  %v4687 = vpack.c.b16 %v3075, %v3071
  %v4688 = vpack.c.b16 %v3076, %v3072
  %v4689 = vpack.c.b16 %v3081, %v3077
  %v4690 = vpack.c.b16 %v3082, %v3078
  %v4691 = vpack.c.b16 %v3083, %v3079
  %v4692 = vpack.c.b16 %v3084, %v3080
  %v4693 = vpack.c.b16 %v3089, %v3085
  %v4694 = vpack.c.b16 %v3090, %v3086
  %v4695 = vpack.c.b16 %v3091, %v3087
  %v4696 = vpack.c.b16 %v3092, %v3088
  %v4697 = vpack.c.b16 %v3097, %v3093
  %v4698 = vpack.c.b16 %v3098, %v3094
  %v4699 = vpack.c.b16 %v3099, %v3095
  %v4700 = vpack.c.b16 %v3100, %v3096
  %v4701 = vpack.c.b16 %v3105, %v3101
  %v4702 = vpack.c.b16 %v3106, %v3102
  %v4703 = vpack.c.b16 %v3107, %v3103
  %v4704 = vpack.c.b16 %v3108, %v3104
  %v4705 = vpack.c.b16 %v3113, %v3109
  %v4706 = vpack.c.b16 %v3114, %v3110
  %v4707 = vpack.c.b16 %v3115, %v3111
  %v4708 = vpack.c.b16 %v3116, %v3112
  %v4709 = vpack.c.b16 %v3121, %v3117
  %v4710 = vpack.c.b16 %v3122, %v3118
  %v4711 = vpack.c.b16 %v3123, %v3119
  %v4712 = vpack.c.b16 %v3124, %v3120
  %v4713 = vpack.c.b16 %v3129, %v3125
  %v4714 = vpack.c.b16 %v3130, %v3126
  %v4715 = vpack.c.b16 %v3131, %v3127
  %v4716 = vpack.c.b16 %v3132, %v3128
  %v4717 = vpack.c.b16 %v3137, %v3133
  %v4718 = vpack.c.b16 %v3138, %v3134
  %v4719 = vpack.c.b16 %v3139, %v3135
  %v4720 = vpack.c.b16 %v3140, %v3136
  %v4721 = vpack.c.b16 %v3145, %v3141
  %v4722 = vpack.c.b16 %v3146, %v3142
  %v4723 = vpack.c.b16 %v3147, %v3143
  %v4724 = vpack.c.b16 %v3148, %v3144
  %v4725 = vpack.c.b16 %v3153, %v3149
  %v4726 = vpack.c.b16 %v3154, %v3150
  %v4727 = vpack.c.b16 %v3155, %v3151
  %v4728 = vpack.c.b16 %v3156, %v3152
  %v4729 = vpack.c.b16 %v3161, %v3157
  %v4730 = vpack.c.b16 %v3162, %v3158
  %v4731 = vpack.c.b16 %v3163, %v3159
  %v4732 = vpack.c.b16 %v3164, %v3160
  %v4733 = vpack.c.b16 %v3169, %v3165
  %v4734 = vpack.c.b16 %v3170, %v3166
  %v4735 = vpack.c.b16 %v3171, %v3167
  %v4736 = vpack.c.b16 %v3172, %v3168
  %v4737 = vpack.c.b16 %v3177, %v3173
  %v4738 = vpack.c.b16 %v3178, %v3174
  %v4739 = vpack.c.b16 %v3179, %v3175
  %v4740 = vpack.c.b16 %v3180, %v3176
  %v4741 = vpack.c.b16 %v3185, %v3181
  %v4742 = vpack.c.b16 %v3186, %v3182
  %v4743 = vpack.c.b16 %v3187, %v3183
  %v4744 = vpack.c.b16 %v3188, %v3184
  %v4745 = vpack.c.b16 %v3193, %v3189
  %v4746 = vpack.c.b16 %v3194, %v3190
  %v4747 = vpack.c.b16 %v3195, %v3191
  %v4748 = vpack.c.b16 %v3196, %v3192
  %v4749 = vpack.c.b16 %v3201, %v3197
  %v4750 = vpack.c.b16 %v3202, %v3198
  %v4751 = vpack.c.b16 %v3203, %v3199
  %v4752 = vpack.c.b16 %v3204, %v3200
  %v4753 = vpack.c.b16 %v3209, %v3205
  %v4754 = vpack.c.b16 %v3210, %v3206
  %v4755 = vpack.c.b16 %v3211, %v3207
  %v4756 = vpack.c.b16 %v3212, %v3208
  %v4757 = vpack.c.b16 %v3217, %v3213
  %v4758 = vpack.c.b16 %v3218, %v3214
  %v4759 = vpack.c.b16 %v3219, %v3215
  %v4760 = vpack.c.b16 %v3220, %v3216
  %v4761 = vpack.c.b16 %v3225, %v3221
  %v4762 = vpack.c.b16 %v3226, %v3222
  %v4763 = vpack.c.b16 %v3227, %v3223
  %v4764 = vpack.c.b16 %v3228, %v3224
  %v4765 = vpack.c.b16 %v3233, %v3229
  %v4766 = vpack.c.b16 %v3234, %v3230
  %v4767 = vpack.c.b16 %v3235, %v3231
  %v4768 = vpack.c.b16 %v3236, %v3232
  %v4769 = vpack.c.b16 %v3241, %v3237
  %v4770 = vpack.c.b16 %v3242, %v3238
  %v4771 = vpack.c.b16 %v3243, %v3239
  %v4772 = vpack.c.b16 %v3244, %v3240
  %v4773 = vpack.c.b16 %v3249, %v3245
  %v4774 = vpack.c.b16 %v3250, %v3246
  %v4775 = vpack.c.b16 %v3251, %v3247
  %v4776 = vpack.c.b16 %v3252, %v3248
  %v4777 = vpack.c.b16 %v3257, %v3253
  %v4778 = vpack.c.b16 %v3258, %v3254
  %v4779 = vpack.c.b16 %v3259, %v3255
  %v4780 = vpack.c.b16 %v3260, %v3256
  %v4781 = vpack.c.b16 %v3265, %v3261
  %v4782 = vpack.c.b16 %v3266, %v3262
  %v4783 = vpack.c.b16 %v3267, %v3263
  %v4784 = vpack.c.b16 %v3268, %v3264
  %v4785 = vpack.c.b16 %v3273, %v3269
  %v4786 = vpack.c.b16 %v3274, %v3270
  %v4787 = vpack.c.b16 %v3275, %v3271
  %v4788 = vpack.c.b16 %v3276, %v3272
  %v4789 = vpack.c.b16 %v3281, %v3277
  %v4790 = vpack.c.b16 %v3282, %v3278
  %v4791 = vpack.c.b16 %v3283, %v3279
  %v4792 = vpack.c.b16 %v3284, %v3280
  %v4793 = vpack.c.b16 %v3289, %v3285
  %v4794 = vpack.c.b16 %v3290, %v3286
  %v4795 = vpack.c.b16 %v3291, %v3287
  %v4796 = vpack.c.b16 %v3292, %v3288
  %v4797 = vpack.c.b16 %v3297, %v3293
  %v4798 = vpack.c.b16 %v3298, %v3294
  %v4799 = vpack.c.b16 %v3299, %v3295
  %v4800 = vpack.c.b16 %v3300, %v3296
  %v4801 = vpack.c.b16 %v3305, %v3301
  %v4802 = vpack.c.b16 %v3306, %v3302
  %v4803 = vpack.c.b16 %v3307, %v3303
  %v4804 = vpack.c.b16 %v3308, %v3304
  %v4805 = vpack.c.b16 %v3313, %v3309
  %v4806 = vpack.c.b16 %v3314, %v3310
  %v4807 = vpack.c.b16 %v3315, %v3311
  %v4808 = vpack.c.b16 %v3316, %v3312
  %v4809 = vpack.c.b16 %v3321, %v3317
  %v4810 = vpack.c.b16 %v3322, %v3318
  %v4811 = vpack.c.b16 %v3323, %v3319
  %v4812 = vpack.c.b16 %v3324, %v3320
  %v4813 = vpack.c.b16 %v3329, %v3325
  %v4814 = vpack.c.b16 %v3330, %v3326
  %v4815 = vpack.c.b16 %v3331, %v3327
  %v4816 = vpack.c.b16 %v3332, %v3328
  %v4817 = vpack.c.b16 %v3337, %v3333
  %v4818 = vpack.c.b16 %v3338, %v3334
  %v4819 = vpack.c.b16 %v3339, %v3335
  %v4820 = vpack.c.b16 %v3340, %v3336
  %v4821 = vpack.c.b16 %v3345, %v3341
  %v4822 = vpack.c.b16 %v3346, %v3342
  %v4823 = vpack.c.b16 %v3347, %v3343
  %v4824 = vpack.c.b16 %v3348, %v3344
  %v4825 = vpack.c.b16 %v3353, %v3349
  %v4826 = vpack.c.b16 %v3354, %v3350
  %v4827 = vpack.c.b16 %v3355, %v3351
  %v4828 = vpack.c.b16 %v3356, %v3352
  %v4829 = vpack.c.b16 %v3361, %v3357
  %v4830 = vpack.c.b16 %v3362, %v3358
  %v4831 = vpack.c.b16 %v3363, %v3359
  %v4832 = vpack.c.b16 %v3364, %v3360
  %v4833 = vpack.c.b16 %v3369, %v3365
  %v4834 = vpack.c.b16 %v3370, %v3366
  %v4835 = vpack.c.b16 %v3371, %v3367
  %v4836 = vpack.c.b16 %v3372, %v3368
  %v4837 = vpack.c.b16 %v3377, %v3373
  %v4838 = vpack.c.b16 %v3378, %v3374
  %v4839 = vpack.c.b16 %v3379, %v3375
  %v4840 = vpack.c.b16 %v3380, %v3376
  %v4841 = vpack.c.b16 %v3385, %v3381
  %v4842 = vpack.c.b16 %v3386, %v3382
  %v4843 = vpack.c.b16 %v3387, %v3383
  %v4844 = vpack.c.b16 %v3388, %v3384
  %v4845 = vpack.c.b16 %v3393, %v3389
  %v4846 = vpack.c.b16 %v3394, %v3390
  %v4847 = vpack.c.b16 %v3395, %v3391
  %v4848 = vpack.c.b16 %v3396, %v3392
  %v4849 = vpack.c.b16 %v3401, %v3397
  %v4850 = vpack.c.b16 %v3402, %v3398
  %v4851 = vpack.c.b16 %v3403, %v3399
  %v4852 = vpack.c.b16 %v3404, %v3400
  %v4853 = vpack.c.b16 %v3409, %v3405
  %v4854 = vpack.c.b16 %v3410, %v3406
  %v4855 = vpack.c.b16 %v3411, %v3407
  %v4856 = vpack.c.b16 %v3412, %v3408
  %v4857 = vpack.c.b16 %v3417, %v3413
  %v4858 = vpack.c.b16 %v3418, %v3414
  %v4859 = vpack.c.b16 %v3419, %v3415
  %v4860 = vpack.c.b16 %v3420, %v3416
  %v4861 = vpack.c.b16 %v3425, %v3421
  %v4862 = vpack.c.b16 %v3426, %v3422
  %v4863 = vpack.c.b16 %v3427, %v3423
  %v4864 = vpack.c.b16 %v3428, %v3424
  %v4865 = vpack.c.b16 %v3433, %v3429
  %v4866 = vpack.c.b16 %v3434, %v3430
  %v4867 = vpack.c.b16 %v3435, %v3431
  %v4868 = vpack.c.b16 %v3436, %v3432
  %v4869 = vpack.c.b16 %v3441, %v3437
  %v4870 = vpack.c.b16 %v3442, %v3438
  %v4871 = vpack.c.b16 %v3443, %v3439
  %v4872 = vpack.c.b16 %v3444, %v3440
  %v4873 = vpack.c.b16 %v3449, %v3445
  %v4874 = vpack.c.b16 %v3450, %v3446
  %v4875 = vpack.c.b16 %v3451, %v3447
  %v4876 = vpack.c.b16 %v3452, %v3448
  %v4877 = vpack.c.b16 %v3457, %v3453
  %v4878 = vpack.c.b16 %v3458, %v3454
  %v4879 = vpack.c.b16 %v3459, %v3455
  %v4880 = vpack.c.b16 %v3460, %v3456
  %v4881 = vpack.c.b16 %v3465, %v3461
  %v4882 = vpack.c.b16 %v3466, %v3462
  %v4883 = vpack.c.b16 %v3467, %v3463
  %v4884 = vpack.c.b16 %v3468, %v3464
  %v4885 = vpack.c.b16 %v3473, %v3469
  %v4886 = vpack.c.b16 %v3474, %v3470
  %v4887 = vpack.c.b16 %v3475, %v3471
  %v4888 = vpack.c.b16 %v3476, %v3472
  %v4889 = vpack.c.b16 %v3481, %v3477
  %v4890 = vpack.c.b16 %v3482, %v3478
  %v4891 = vpack.c.b16 %v3483, %v3479
  %v4892 = vpack.c.b16 %v3484, %v3480
  %v4893 = vpack.c.b16 %v3489, %v3485
  %v4894 = vpack.c.b16 %v3490, %v3486
  %v4895 = vpack.c.b16 %v3491, %v3487
  %v4896 = vpack.c.b16 %v3492, %v3488
  %v4897 = vpack.c.b16 %v3497, %v3493
  %v4898 = vpack.c.b16 %v3498, %v3494
  %v4899 = vpack.c.b16 %v3499, %v3495
  %v4900 = vpack.c.b16 %v3500, %v3496
  %v4901 = vpack.c.b16 %v3505, %v3501
  %v4902 = vpack.c.b16 %v3506, %v3502
  %v4903 = vpack.c.b16 %v3507, %v3503
  %v4904 = vpack.c.b16 %v3508, %v3504
  %v4905 = vpack.c.b16 %v3513, %v3509
  %v4906 = vpack.c.b16 %v3514, %v3510
  %v4907 = vpack.c.b16 %v3515, %v3511
  %v4908 = vpack.c.b16 %v3516, %v3512
  %v4909 = vpack.c.b16 %v3521, %v3517
  %v4910 = vpack.c.b16 %v3522, %v3518
  %v4911 = vpack.c.b16 %v3523, %v3519
  %v4912 = vpack.c.b16 %v3524, %v3520
  %v4913 = vpack.c.b16 %v3529, %v3525
  %v4914 = vpack.c.b16 %v3530, %v3526
  %v4915 = vpack.c.b16 %v3531, %v3527
  %v4916 = vpack.c.b16 %v3532, %v3528
  %v4917 = vpack.c.b16 %v3537, %v3533
  %v4918 = vpack.c.b16 %v3538, %v3534
  %v4919 = vpack.c.b16 %v3539, %v3535
  %v4920 = vpack.c.b16 %v3540, %v3536
  %v4921 = vpack.c.b16 %v3545, %v3541
  %v4922 = vpack.c.b16 %v3546, %v3542
  %v4923 = vpack.c.b16 %v3547, %v3543
  %v4924 = vpack.c.b16 %v3548, %v3544
  %v4925 = vpack.c.b16 %v3553, %v3549
  %v4926 = vpack.c.b16 %v3554, %v3550
  %v4927 = vpack.c.b16 %v3555, %v3551
  %v4928 = vpack.c.b16 %v3556, %v3552
  %v4929 = vpack.c.b16 %v3561, %v3557
  %v4930 = vpack.c.b16 %v3562, %v3558
  %v4931 = vpack.c.b16 %v3563, %v3559
  %v4932 = vpack.c.b16 %v3564, %v3560
  %v4933 = vpack.c.b16 %v3569, %v3565
  %v4934 = vpack.c.b16 %v3570, %v3566
  %v4935 = vpack.c.b16 %v3571, %v3567
  %v4936 = vpack.c.b16 %v3572, %v3568
  %v4937 = vpack.c.b16 %v3577, %v3573
  %v4938 = vpack.c.b16 %v3578, %v3574
  %v4939 = vpack.c.b16 %v3579, %v3575
  %v4940 = vpack.c.b16 %v3580, %v3576
  %v4941 = vpack.c.b16 %v3585, %v3581
  %v4942 = vpack.c.b16 %v3586, %v3582
  %v4943 = vpack.c.b16 %v3587, %v3583
  %v4944 = vpack.c.b16 %v3588, %v3584
  %v4945 = vpack.c.b16 %v3593, %v3589
  %v4946 = vpack.c.b16 %v3594, %v3590
  %v4947 = vpack.c.b16 %v3595, %v3591
  %v4948 = vpack.c.b16 %v3596, %v3592
  %v4949 = vpack.c.b16 %v3601, %v3597
  %v4950 = vpack.c.b16 %v3602, %v3598
  %v4951 = vpack.c.b16 %v3603, %v3599
  %v4952 = vpack.c.b16 %v3604, %v3600
  %v4953 = vpack.c.b16 %v3609, %v3605
  %v4954 = vpack.c.b16 %v3610, %v3606
  %v4955 = vpack.c.b16 %v3611, %v3607
  %v4956 = vpack.c.b16 %v3612, %v3608
  %v4957 = vpack.c.b16 %v3617, %v3613
  %v4958 = vpack.c.b16 %v3618, %v3614
  %v4959 = vpack.c.b16 %v3619, %v3615
  %v4960 = vpack.c.b16 %v3620, %v3616
  %v4961 = vpack.c.b16 %v3625, %v3621
  %v4962 = vpack.c.b16 %v3626, %v3622
  %v4963 = vpack.c.b16 %v3627, %v3623
  %v4964 = vpack.c.b16 %v3628, %v3624
  %v4965 = vpack.c.b16 %v3633, %v3629
  %v4966 = vpack.c.b16 %v3634, %v3630
  %v4967 = vpack.c.b16 %v3635, %v3631
  %v4968 = vpack.c.b16 %v3636, %v3632
  %v4969 = vpack.c.b16 %v3641, %v3637
  %v4970 = vpack.c.b16 %v3642, %v3638
  %v4971 = vpack.c.b16 %v3643, %v3639
  %v4972 = vpack.c.b16 %v3644, %v3640
  %v4973 = vpack.c.b16 %v3649, %v3645
  %v4974 = vpack.c.b16 %v3650, %v3646
  %v4975 = vpack.c.b16 %v3651, %v3647
  %v4976 = vpack.c.b16 %v3652, %v3648
  %v4977 = vpack.c.b16 %v3657, %v3653
  %v4978 = vpack.c.b16 %v3658, %v3654
  %v4979 = vpack.c.b16 %v3659, %v3655
  %v4980 = vpack.c.b16 %v3660, %v3656
  %v4981 = vpack.c.b16 %v3665, %v3661
  %v4982 = vpack.c.b16 %v3666, %v3662
  %v4983 = vpack.c.b16 %v3667, %v3663
  %v4984 = vpack.c.b16 %v3668, %v3664
  %v4985 = vpack.c.b16 %v3673, %v3669
  %v4986 = vpack.c.b16 %v3674, %v3670
  %v4987 = vpack.c.b16 %v3675, %v3671
  %v4988 = vpack.c.b16 %v3676, %v3672
  %v4989 = vpack.c.b16 %v3681, %v3677
  %v4990 = vpack.c.b16 %v3682, %v3678
  %v4991 = vpack.c.b16 %v3683, %v3679
  %v4992 = vpack.c.b16 %v3684, %v3680
  %v4993 = vpack.c.b16 %v3689, %v3685
  %v4994 = vpack.c.b16 %v3690, %v3686
  %v4995 = vpack.c.b16 %v3691, %v3687
  %v4996 = vpack.c.b16 %v3692, %v3688
  %v4997 = vpack.c.b16 %v3697, %v3693
  %v4998 = vpack.c.b16 %v3698, %v3694
  %v4999 = vpack.c.b16 %v3699, %v3695
  %v5000 = vpack.c.b16 %v3700, %v3696
  %v5001 = vpack.c.b16 %v3705, %v3701
  %v5002 = vpack.c.b16 %v3706, %v3702
  %v5003 = vpack.c.b16 %v3707, %v3703
  %v5004 = vpack.c.b16 %v3708, %v3704
  %v5005 = vpack.c.b16 %v3713, %v3709
  %v5006 = vpack.c.b16 %v3714, %v3710
  %v5007 = vpack.c.b16 %v3715, %v3711
  %v5008 = vpack.c.b16 %v3716, %v3712
  %v5009 = vpack.c.b16 %v3721, %v3717
  %v5010 = vpack.c.b16 %v3722, %v3718
  %v5011 = vpack.c.b16 %v3723, %v3719
  %v5012 = vpack.c.b16 %v3724, %v3720
  %v5013 = vpack.c.b16 %v3729, %v3725
  %v5014 = vpack.c.b16 %v3730, %v3726
  %v5015 = vpack.c.b16 %v3731, %v3727
  %v5016 = vpack.c.b16 %v3732, %v3728
  %v5017 = vpack.c.b16 %v3737, %v3733
  %v5018 = vpack.c.b16 %v3738, %v3734
  %v5019 = vpack.c.b16 %v3739, %v3735
  %v5020 = vpack.c.b16 %v3740, %v3736
  %v5021 = vpack.c.b16 %v3745, %v3741
  %v5022 = vpack.c.b16 %v3746, %v3742
  %v5023 = vpack.c.b16 %v3747, %v3743
  %v5024 = vpack.c.b16 %v3748, %v3744
  %v5025 = vpack.c.b16 %v3753, %v3749
  %v5026 = vpack.c.b16 %v3754, %v3750
  %v5027 = vpack.c.b16 %v3755, %v3751
  %v5028 = vpack.c.b16 %v3756, %v3752
  %v5029 = vpack.c.b16 %v3761, %v3757
  %v5030 = vpack.c.b16 %v3762, %v3758
  %v5031 = vpack.c.b16 %v3763, %v3759
  %v5032 = vpack.c.b16 %v3764, %v3760
  %v5033 = vpack.c.b16 %v3769, %v3765
  %v5034 = vpack.c.b16 %v3770, %v3766
  %v5035 = vpack.c.b16 %v3771, %v3767
  %v5036 = vpack.c.b16 %v3772, %v3768
  %v5037 = vpack.c.b16 %v3777, %v3773
  %v5038 = vpack.c.b16 %v3778, %v3774
  %v5039 = vpack.c.b16 %v3779, %v3775
  %v5040 = vpack.c.b16 %v3780, %v3776
  %v5041 = vpack.c.b16 %v3785, %v3781
  %v5042 = vpack.c.b16 %v3786, %v3782
  %v5043 = vpack.c.b16 %v3787, %v3783
  %v5044 = vpack.c.b16 %v3788, %v3784
  %v5045 = vpack.c.b16 %v3793, %v3789
  %v5046 = vpack.c.b16 %v3794, %v3790
  %v5047 = vpack.c.b16 %v3795, %v3791
  %v5048 = vpack.c.b16 %v3796, %v3792
  %v5049 = vpack.c.b16 %v3801, %v3797
  %v5050 = vpack.c.b16 %v3802, %v3798
  %v5051 = vpack.c.b16 %v3803, %v3799
  %v5052 = vpack.c.b16 %v3804, %v3800
  %v5053 = vpack.c.b16 %v3809, %v3805
  %v5054 = vpack.c.b16 %v3810, %v3806
  %v5055 = vpack.c.b16 %v3811, %v3807
  %v5056 = vpack.c.b16 %v3812, %v3808
  %v5057 = vpack.c.b16 %v3817, %v3813
  %v5058 = vpack.c.b16 %v3818, %v3814
  %v5059 = vpack.c.b16 %v3819, %v3815
  %v5060 = vpack.c.b16 %v3820, %v3816
  %v5061 = vpack.c.b16 %v3825, %v3821
  %v5062 = vpack.c.b16 %v3826, %v3822
  %v5063 = vpack.c.b16 %v3827, %v3823
  %v5064 = vpack.c.b16 %v3828, %v3824
  %v5065 = vpack.c.b16 %v3833, %v3829
  %v5066 = vpack.c.b16 %v3834, %v3830
  %v5067 = vpack.c.b16 %v3835, %v3831
  %v5068 = vpack.c.b16 %v3836, %v3832
  %v5069 = vpack.c.b16 %v3841, %v3837
  %v5070 = vpack.c.b16 %v3842, %v3838
  %v5071 = vpack.c.b16 %v3843, %v3839
  %v5072 = vpack.c.b16 %v3844, %v3840
  %v5073 = vpack.c.b16 %v3849, %v3845
  %v5074 = vpack.c.b16 %v3850, %v3846
  %v5075 = vpack.c.b16 %v3851, %v3847
  %v5076 = vpack.c.b16 %v3852, %v3848
  %v5077 = vpack.c.b16 %v3857, %v3853
  %v5078 = vpack.c.b16 %v3858, %v3854
  %v5079 = vpack.c.b16 %v3859, %v3855
  %v5080 = vpack.c.b16 %v3860, %v3856
  %v5081 = vpack.c.b16 %v3865, %v3861
  %v5082 = vpack.c.b16 %v3866, %v3862
  %v5083 = vpack.c.b16 %v3867, %v3863
  %v5084 = vpack.c.b16 %v3868, %v3864
  %v5085 = vpack.c.b16 %v3873, %v3869
  %v5086 = vpack.c.b16 %v3874, %v3870
  %v5087 = vpack.c.b16 %v3875, %v3871
  %v5088 = vpack.c.b16 %v3876, %v3872
  %v5089 = vpack.c.b16 %v3881, %v3877
  %v5090 = vpack.c.b16 %v3882, %v3878
  %v5091 = vpack.c.b16 %v3883, %v3879
  %v5092 = vpack.c.b16 %v3884, %v3880
  %v5093 = vpack.c.b16 %v3889, %v3885
  %v5094 = vpack.c.b16 %v3890, %v3886
  %v5095 = vpack.c.b16 %v3891, %v3887
  %v5096 = vpack.c.b16 %v3892, %v3888
  %v5097 = vpack.c.b16 %v3897, %v3893
  %v5098 = vpack.c.b16 %v3898, %v3894
  %v5099 = vpack.c.b16 %v3899, %v3895
  %v5100 = vpack.c.b16 %v3900, %v3896
  %v5101 = vpack.c.b16 %v3905, %v3901
  %v5102 = vpack.c.b16 %v3906, %v3902
  %v5103 = vpack.c.b16 %v3907, %v3903
  %v5104 = vpack.c.b16 %v3908, %v3904
  %v5105 = vpack.c.b16 %v3913, %v3909
  %v5106 = vpack.c.b16 %v3914, %v3910
  %v5107 = vpack.c.b16 %v3915, %v3911
  %v5108 = vpack.c.b16 %v3916, %v3912
  %v5109 = vpack.c.b16 %v3921, %v3917
  %v5110 = vpack.c.b16 %v3922, %v3918
  %v5111 = vpack.c.b16 %v3923, %v3919
  %v5112 = vpack.c.b16 %v3924, %v3920
  %v5113 = vpack.c.b16 %v3929, %v3925
  %v5114 = vpack.c.b16 %v3930, %v3926
  %v5115 = vpack.c.b16 %v3931, %v3927
  %v5116 = vpack.c.b16 %v3932, %v3928
  %v5117 = vpack.c.b16 %v3937, %v3933
  %v5118 = vpack.c.b16 %v3938, %v3934
  %v5119 = vpack.c.b16 %v3939, %v3935
  %v5120 = vpack.c.b16 %v3940, %v3936
  %v5121 = vpack.c.b16 %v3945, %v3941
  %v5122 = vpack.c.b16 %v3946, %v3942
  %v5123 = vpack.c.b16 %v3947, %v3943
  %v5124 = vpack.c.b16 %v3948, %v3944
  %v5125 = vpack.c.b16 %v3953, %v3949
  %v5126 = vpack.c.b16 %v3954, %v3950
  %v5127 = vpack.c.b16 %v3955, %v3951
  %v5128 = vpack.c.b16 %v3956, %v3952
  %v5129 = vpack.c.b16 %v3961, %v3957
  %v5130 = vpack.c.b16 %v3962, %v3958
  %v5131 = vpack.c.b16 %v3963, %v3959
  %v5132 = vpack.c.b16 %v3964, %v3960
  %v5133 = vpack.c.b16 %v3969, %v3965
  %v5134 = vpack.c.b16 %v3970, %v3966
  %v5135 = vpack.c.b16 %v3971, %v3967
  %v5136 = vpack.c.b16 %v3972, %v3968
  %v5137 = vpack.c.b16 %v3977, %v3973
  %v5138 = vpack.c.b16 %v3978, %v3974
  %v5139 = vpack.c.b16 %v3979, %v3975
  %v5140 = vpack.c.b16 %v3980, %v3976
  %v5141 = vpack.c.b16 %v3985, %v3981
  %v5142 = vpack.c.b16 %v3986, %v3982
  %v5143 = vpack.c.b16 %v3987, %v3983
  %v5144 = vpack.c.b16 %v3988, %v3984
  %v5145 = vpack.c.b16 %v3993, %v3989
  %v5146 = vpack.c.b16 %v3994, %v3990
  %v5147 = vpack.c.b16 %v3995, %v3991
  %v5148 = vpack.c.b16 %v3996, %v3992
  %v5149 = vpack.c.b16 %v4001, %v3997
  %v5150 = vpack.c.b16 %v4002, %v3998
  %v5151 = vpack.c.b16 %v4003, %v3999
  %v5152 = vpack.c.b16 %v4004, %v4000
  %v5153 = vpack.c.b16 %v4009, %v4005
  %v5154 = vpack.c.b16 %v4010, %v4006
  %v5155 = vpack.c.b16 %v4011, %v4007
  %v5156 = vpack.c.b16 %v4012, %v4008
  %v5157 = vpack.c.b16 %v4017, %v4013
  %v5158 = vpack.c.b16 %v4018, %v4014
  %v5159 = vpack.c.b16 %v4019, %v4015
  %v5160 = vpack.c.b16 %v4020, %v4016
  %v5161 = vpack.c.b16 %v4025, %v4021
  %v5162 = vpack.c.b16 %v4026, %v4022
  %v5163 = vpack.c.b16 %v4027, %v4023
  %v5164 = vpack.c.b16 %v4028, %v4024
  %v5165 = vpack.c.b16 %v4033, %v4029
  %v5166 = vpack.c.b16 %v4034, %v4030
  %v5167 = vpack.c.b16 %v4035, %v4031
  %v5168 = vpack.c.b16 %v4036, %v4032
  %v5169 = vpack.c.b16 %v4041, %v4037
  %v5170 = vpack.c.b16 %v4042, %v4038
  %v5171 = vpack.c.b16 %v4043, %v4039
  %v5172 = vpack.c.b16 %v4044, %v4040
  %v5173 = vpack.c.b16 %v4049, %v4045
  %v5174 = vpack.c.b16 %v4050, %v4046
  %v5175 = vpack.c.b16 %v4051, %v4047
  %v5176 = vpack.c.b16 %v4052, %v4048
  %v5177 = vpack.c.b16 %v4057, %v4053
  %v5178 = vpack.c.b16 %v4058, %v4054
  %v5179 = vpack.c.b16 %v4059, %v4055
  %v5180 = vpack.c.b16 %v4060, %v4056
  %v5181 = vpack.c.b16 %v4065, %v4061
  %v5182 = vpack.c.b16 %v4066, %v4062
  %v5183 = vpack.c.b16 %v4067, %v4063
  %v5184 = vpack.c.b16 %v4068, %v4064
  %v5185 = vpack.c.b16 %v4073, %v4069
  %v5186 = vpack.c.b16 %v4074, %v4070
  %v5187 = vpack.c.b16 %v4075, %v4071
  %v5188 = vpack.c.b16 %v4076, %v4072
  %v5189 = vpack.c.b16 %v4081, %v4077
  %v5190 = vpack.c.b16 %v4082, %v4078
  %v5191 = vpack.c.b16 %v4083, %v4079
  %v5192 = vpack.c.b16 %v4084, %v4080
  %v5193 = vpack.c.b16 %v4089, %v4085
  %v5194 = vpack.c.b16 %v4090, %v4086
  %v5195 = vpack.c.b16 %v4091, %v4087
  %v5196 = vpack.c.b16 %v4092, %v4088
  %v5197 = vpack.c.b16 %v4097, %v4093
  %v5198 = vpack.c.b16 %v4098, %v4094
  %v5199 = vpack.c.b16 %v4099, %v4095
  %v5200 = vpack.c.b16 %v4100, %v4096
  %v5201 = vpack.c.b16 %v4105, %v4101
  %v5202 = vpack.c.b16 %v4106, %v4102
  %v5203 = vpack.c.b16 %v4107, %v4103
  %v5204 = vpack.c.b16 %v4108, %v4104
  %v5205 = vpack.c.b16 %v4113, %v4109
  %v5206 = vpack.c.b16 %v4114, %v4110
  %v5207 = vpack.c.b16 %v4115, %v4111
  %v5208 = vpack.c.b16 %v4116, %v4112
  %v5209 = vpack.c.b16 %v4121, %v4117
  %v5210 = vpack.c.b16 %v4122, %v4118
  %v5211 = vpack.c.b16 %v4123, %v4119
  %v5212 = vpack.c.b16 %v4124, %v4120
  %v5213 = vpack.c.b16 %v4129, %v4125
  %v5214 = vpack.c.b16 %v4130, %v4126
  %v5215 = vpack.c.b16 %v4131, %v4127
  %v5216 = vpack.c.b16 %v4132, %v4128
  %v5217 = vpack.c.b16 %v4137, %v4133
  %v5218 = vpack.c.b16 %v4138, %v4134
  %v5219 = vpack.c.b16 %v4139, %v4135
  %v5220 = vpack.c.b16 %v4140, %v4136
  %v5221 = vpack.c.b16 %v4145, %v4141
  %v5222 = vpack.c.b16 %v4146, %v4142
  %v5223 = vpack.c.b16 %v4147, %v4143
  %v5224 = vpack.c.b16 %v4148, %v4144
  %v5225 = vpack.c.b16 %v4153, %v4149
  %v5226 = vpack.c.b16 %v4154, %v4150
  %v5227 = vpack.c.b16 %v4155, %v4151
  %v5228 = vpack.c.b16 %v4156, %v4152
  %v5229 = vpack.c.b16 %v4161, %v4157
  %v5230 = vpack.c.b16 %v4162, %v4158
  %v5231 = vpack.c.b16 %v4163, %v4159
  %v5232 = vpack.c.b16 %v4164, %v4160
  %v5233 = vpack.c.b16 %v4169, %v4165
  %v5234 = vpack.c.b16 %v4170, %v4166
  %v5235 = vpack.c.b16 %v4171, %v4167
  %v5236 = vpack.c.b16 %v4172, %v4168
  %v5237 = vpack.c.b16 %v4177, %v4173
  %v5238 = vpack.c.b16 %v4178, %v4174
  %v5239 = vpack.c.b16 %v4179, %v4175
  %v5240 = vpack.c.b16 %v4180, %v4176
  %v5241 = vpack.c.b16 %v4185, %v4181
  %v5242 = vpack.c.b16 %v4186, %v4182
  %v5243 = vpack.c.b16 %v4187, %v4183
  %v5244 = vpack.c.b16 %v4188, %v4184
  %v5245 = vpack.c.b16 %v4193, %v4189
  %v5246 = vpack.c.b16 %v4194, %v4190
  %v5247 = vpack.c.b16 %v4195, %v4191
  %v5248 = vpack.c.b16 %v4196, %v4192
  %v5249 = vpack.c.b16 %v4201, %v4197
  %v5250 = vpack.c.b16 %v4202, %v4198
  %v5251 = vpack.c.b16 %v4203, %v4199
  %v5252 = vpack.c.b16 %v4204, %v4200
  %v5253 = vpack.c.b16 %v4209, %v4205
  %v5254 = vpack.c.b16 %v4210, %v4206
  %v5255 = vpack.c.b16 %v4211, %v4207
  %v5256 = vpack.c.b16 %v4212, %v4208
  %v5257 = vpack.c.b16 %v4217, %v4213
  %v5258 = vpack.c.b16 %v4218, %v4214
  %v5259 = vpack.c.b16 %v4219, %v4215
  %v5260 = vpack.c.b16 %v4220, %v4216
  %v5261 = vpack.c.b16 %v4225, %v4221
  %v5262 = vpack.c.b16 %v4226, %v4222
  %v5263 = vpack.c.b16 %v4227, %v4223
  %v5264 = vpack.c.b16 %v4228, %v4224
  %v5265 = vpack.c.b16 %v4233, %v4229
  %v5266 = vpack.c.b16 %v4234, %v4230
  %v5267 = vpack.c.b16 %v4235, %v4231
  %v5268 = vpack.c.b16 %v4236, %v4232
  %v5269 = vpack.c.b16 %v4241, %v4237
  %v5270 = vpack.c.b16 %v4242, %v4238
  %v5271 = vpack.c.b16 %v4243, %v4239
  %v5272 = vpack.c.b16 %v4244, %v4240
  %v5273 = vpack.c.b16 %v4249, %v4245
  %v5274 = vpack.c.b16 %v4250, %v4246
  %v5275 = vpack.c.b16 %v4251, %v4247
  %v5276 = vpack.c.b16 %v4252, %v4248
  %6301 = vmatprep.subr.bf16.mxu0 %v4254
  %6302 = vmatpush1.bf16.msra.mxu0 %v4253
  %6303 = vmatprep.subr.bf16.mxu0 %v4258
  %6304 = vmatpush1.bf16.msra.mxu0 %v4257
  %6305 = vmatprep.subr.bf16.mxu0 %v4262
  %6306 = vmatpush1.bf16.msra.mxu0 %v4261
  %6307 = vmatprep.subr.bf16.mxu0 %v4266
  %6308 = vmatpush1.bf16.msra.mxu0 %v4265
  %6309 = vmatprep.subr.bf16.mxu0 %v4270
  %6310 = vmatpush1.bf16.msra.mxu0 %v4269
  %6311 = vmatprep.subr.bf16.mxu0 %v4274
  %6312 = vmatpush1.bf16.msra.mxu0 %v4273
  %6313 = vmatprep.subr.bf16.mxu0 %v4278
  %6314 = vmatpush1.bf16.msra.mxu0 %v4277
  %6315 = vmatprep.subr.bf16.mxu0 %v4282
  %6316 = vmatpush1.bf16.msra.mxu0 %v4281
  %6317 = vmatprep.subr.bf16.mxu0 %v4286
  %6318 = vmatpush1.bf16.msra.mxu0 %v4285
  %6319 = vmatprep.subr.bf16.mxu0 %v4290
  %6320 = vmatpush1.bf16.msra.mxu0 %v4289
  %6321 = vmatprep.subr.bf16.mxu0 %v4294
  %6322 = vmatpush1.bf16.msra.mxu0 %v4293
  %6323 = vmatprep.subr.bf16.mxu0 %v4298
  %6324 = vmatpush1.bf16.msra.mxu0 %v4297
  %6325 = vmatprep.subr.bf16.mxu0 %v4302
  %6326 = vmatpush1.bf16.msra.mxu0 %v4301
  %6327 = vmatprep.subr.bf16.mxu0 %v4306
  %6328 = vmatpush1.bf16.msra.mxu0 %v4305
  %6329 = vmatprep.subr.bf16.mxu0 %v4310
  %6330 = vmatpush1.bf16.msra.mxu0 %v4309
  %6331 = vmatprep.subr.bf16.mxu0 %v4314
  %6332 = vmatpush1.bf16.msra.mxu0 %v4313
  %6333 = vmatprep.mubr.bf16.mxu0 %v1118
  %6334 = vmatmul.mubr.bf16.gmra.mrb[0].mxu0 %v1117
  %v6335 = vpop.f32.mrb[0].mxu0
  %v6336 = vadd.f32 0.0, %v6335
  %v6337 = vpop.f32.mrb[0].mxu0
  %v6338 = vadd.f32 0.0, %v6337
  %v6339 = vpop.f32.mrb[0].mxu0
  %v6340 = vpop.f32.mrb[0].mxu0
  %6341 = vdwg.mxu0
  %6342 = vmatprep.subr.bf16.mxu0 %v4318
  %6343 = vmatpush1.bf16.msra.mxu0 %v4317
  %6344 = vmatprep.subr.bf16.mxu0 %v4322
  %6345 = vmatpush1.bf16.msra.mxu0 %v4321
  %6346 = vmatprep.subr.bf16.mxu0 %v4326
  %6347 = vmatpush1.bf16.msra.mxu0 %v4325
  %6348 = vmatprep.subr.bf16.mxu0 %v4330
  %6349 = vmatpush1.bf16.msra.mxu0 %v4329
  %6350 = vmatprep.subr.bf16.mxu0 %v4334
  %6351 = vmatpush1.bf16.msra.mxu0 %v4333
  %6352 = vmatprep.subr.bf16.mxu0 %v4338
  %6353 = vmatpush1.bf16.msra.mxu0 %v4337
  %6354 = vmatprep.subr.bf16.mxu0 %v4342
  %6355 = vmatpush1.bf16.msra.mxu0 %v4341
  %6356 = vmatprep.subr.bf16.mxu0 %v4346
  %6357 = vmatpush1.bf16.msra.mxu0 %v4345
  %6358 = vmatprep.subr.bf16.mxu0 %v4350
  %6359 = vmatpush1.bf16.msra.mxu0 %v4349
  %6360 = vmatprep.subr.bf16.mxu0 %v4354
  %6361 = vmatpush1.bf16.msra.mxu0 %v4353
  %6362 = vmatprep.subr.bf16.mxu0 %v4358
  %6363 = vmatpush1.bf16.msra.mxu0 %v4357
  %6364 = vmatprep.subr.bf16.mxu0 %v4362
  %6365 = vmatpush1.bf16.msra.mxu0 %v4361
  %6366 = vmatprep.subr.bf16.mxu0 %v4366
  %6367 = vmatpush1.bf16.msra.mxu0 %v4365
  %6368 = vmatprep.subr.bf16.mxu0 %v4370
  %6369 = vmatpush1.bf16.msra.mxu0 %v4369
  %6370 = vmatprep.subr.bf16.mxu0 %v4374
  %6371 = vmatpush1.bf16.msra.mxu0 %v4373
  %6372 = vmatprep.subr.bf16.mxu0 %v4378
  %6373 = vmatpush1.bf16.msra.mxu0 %v4377
  %6374 = vmatprep.mubr.bf16.mxu0 %v1120
  %6375 = vmatmul.mubr.bf16.gmra.mrb[0].mxu0 %v1119
  %v6376 = vpop.f32.mrb[0].mxu0
  %v6377 = vadd.f32 %v6336, %v6376
  %v6378 = vpop.f32.mrb[0].mxu0
  %v6379 = vadd.f32 %v6338, %v6378
  %v6380 = vpop.f32.mrb[0].mxu0
  %v6381 = vpop.f32.mrb[0].mxu0
  %6382 = vdwg.mxu0
  %6383 = vmatprep.subr.bf16.mxu0 %v4382
  %6384 = vmatpush1.bf16.msra.mxu0 %v4381
  %6385 = vmatprep.subr.bf16.mxu0 %v4386
  %6386 = vmatpush1.bf16.msra.mxu0 %v4385
  %6387 = vmatprep.subr.bf16.mxu0 %v4390
  %6388 = vmatpush1.bf16.msra.mxu0 %v4389
  %6389 = vmatprep.subr.bf16.mxu0 %v4394
  %6390 = vmatpush1.bf16.msra.mxu0 %v4393
  %6391 = vmatprep.subr.bf16.mxu0 %v4398
  %6392 = vmatpush1.bf16.msra.mxu0 %v4397
  %6393 = vmatprep.subr.bf16.mxu0 %v4402
  %6394 = vmatpush1.bf16.msra.mxu0 %v4401
  %6395 = vmatprep.subr.bf16.mxu0 %v4406
  %6396 = vmatpush1.bf16.msra.mxu0 %v4405
  %6397 = vmatprep.subr.bf16.mxu0 %v4410
  %6398 = vmatpush1.bf16.msra.mxu0 %v4409
  %6399 = vmatprep.subr.bf16.mxu0 %v4414
  %6400 = vmatpush1.bf16.msra.mxu0 %v4413
  %6401 = vmatprep.subr.bf16.mxu0 %v4418
  %6402 = vmatpush1.bf16.msra.mxu0 %v4417
  %6403 = vmatprep.subr.bf16.mxu0 %v4422
  %6404 = vmatpush1.bf16.msra.mxu0 %v4421
  %6405 = vmatprep.subr.bf16.mxu0 %v4426
  %6406 = vmatpush1.bf16.msra.mxu0 %v4425
  %6407 = vmatprep.subr.bf16.mxu0 %v4430
  %6408 = vmatpush1.bf16.msra.mxu0 %v4429
  %6409 = vmatprep.subr.bf16.mxu0 %v4434
  %6410 = vmatpush1.bf16.msra.mxu0 %v4433
  %6411 = vmatprep.subr.bf16.mxu0 %v4438
  %6412 = vmatpush1.bf16.msra.mxu0 %v4437
  %6413 = vmatprep.subr.bf16.mxu0 %v4442
  %6414 = vmatpush1.bf16.msra.mxu0 %v4441
  %6415 = vmatprep.mubr.bf16.mxu0 %v1122
  %6416 = vmatmul.mubr.bf16.gmra.mrb[0].mxu0 %v1121
  %v6417 = vpop.f32.mrb[0].mxu0
  %v6418 = vadd.f32 %v6377, %v6417
  %v6419 = vpop.f32.mrb[0].mxu0
  %v6420 = vadd.f32 %v6379, %v6419
  %v6421 = vpop.f32.mrb[0].mxu0
  %v6422 = vpop.f32.mrb[0].mxu0
  %6423 = vdwg.mxu0
  %6424 = vmatprep.subr.bf16.mxu0 %v4446
  %6425 = vmatpush1.bf16.msra.mxu0 %v4445
  %6426 = vmatprep.subr.bf16.mxu0 %v4450
  %6427 = vmatpush1.bf16.msra.mxu0 %v4449
  %6428 = vmatprep.subr.bf16.mxu0 %v4454
  %6429 = vmatpush1.bf16.msra.mxu0 %v4453
  %6430 = vmatprep.subr.bf16.mxu0 %v4458
  %6431 = vmatpush1.bf16.msra.mxu0 %v4457
  %6432 = vmatprep.subr.bf16.mxu0 %v4462
  %6433 = vmatpush1.bf16.msra.mxu0 %v4461
  %6434 = vmatprep.subr.bf16.mxu0 %v4466
  %6435 = vmatpush1.bf16.msra.mxu0 %v4465
  %6436 = vmatprep.subr.bf16.mxu0 %v4470
  %6437 = vmatpush1.bf16.msra.mxu0 %v4469
  %6438 = vmatprep.subr.bf16.mxu0 %v4474
  %6439 = vmatpush1.bf16.msra.mxu0 %v4473
  %6440 = vmatprep.subr.bf16.mxu0 %v4478
  %6441 = vmatpush1.bf16.msra.mxu0 %v4477
  %6442 = vmatprep.subr.bf16.mxu0 %v4482
  %6443 = vmatpush1.bf16.msra.mxu0 %v4481
  %6444 = vmatprep.subr.bf16.mxu0 %v4486
  %6445 = vmatpush1.bf16.msra.mxu0 %v4485
  %6446 = vmatprep.subr.bf16.mxu0 %v4490
  %6447 = vmatpush1.bf16.msra.mxu0 %v4489
  %6448 = vmatprep.subr.bf16.mxu0 %v4494
  %6449 = vmatpush1.bf16.msra.mxu0 %v4493
  %6450 = vmatprep.subr.bf16.mxu0 %v4498
  %6451 = vmatpush1.bf16.msra.mxu0 %v4497
  %6452 = vmatprep.subr.bf16.mxu0 %v4502
  %6453 = vmatpush1.bf16.msra.mxu0 %v4501
  %6454 = vmatprep.subr.bf16.mxu0 %v4506
  %6455 = vmatpush1.bf16.msra.mxu0 %v4505
  %6456 = vmatprep.mubr.bf16.mxu0 %v1124
  %6457 = vmatmul.mubr.bf16.gmra.mrb[0].mxu0 %v1123
  %v6458 = vpop.f32.mrb[0].mxu0
  %v6459 = vadd.f32 %v6418, %v6458
  %v6460 = vpop.f32.mrb[0].mxu0
  %v6461 = vadd.f32 %v6420, %v6460
  %v6462 = vpop.f32.mrb[0].mxu0
  %v6463 = vpop.f32.mrb[0].mxu0
  %6464 = vdwg.mxu0
  %6465 = vmatprep.subr.bf16.mxu0 %v4510
  %6466 = vmatpush1.bf16.msra.mxu0 %v4509
  %6467 = vmatprep.subr.bf16.mxu0 %v4514
  %6468 = vmatpush1.bf16.msra.mxu0 %v4513
  %6469 = vmatprep.subr.bf16.mxu0 %v4518
  %6470 = vmatpush1.bf16.msra.mxu0 %v4517
  %6471 = vmatprep.subr.bf16.mxu0 %v4522
  %6472 = vmatpush1.bf16.msra.mxu0 %v4521
  %6473 = vmatprep.subr.bf16.mxu0 %v4526
  %6474 = vmatpush1.bf16.msra.mxu0 %v4525
  %6475 = vmatprep.subr.bf16.mxu0 %v4530
  %6476 = vmatpush1.bf16.msra.mxu0 %v4529
  %6477 = vmatprep.subr.bf16.mxu0 %v4534
  %6478 = vmatpush1.bf16.msra.mxu0 %v4533
  %6479 = vmatprep.subr.bf16.mxu0 %v4538
  %6480 = vmatpush1.bf16.msra.mxu0 %v4537
  %6481 = vmatprep.subr.bf16.mxu0 %v4542
  %6482 = vmatpush1.bf16.msra.mxu0 %v4541
  %6483 = vmatprep.subr.bf16.mxu0 %v4546
  %6484 = vmatpush1.bf16.msra.mxu0 %v4545
  %6485 = vmatprep.subr.bf16.mxu0 %v4550
  %6486 = vmatpush1.bf16.msra.mxu0 %v4549
  %6487 = vmatprep.subr.bf16.mxu0 %v4554
  %6488 = vmatpush1.bf16.msra.mxu0 %v4553
  %6489 = vmatprep.subr.bf16.mxu0 %v4558
  %6490 = vmatpush1.bf16.msra.mxu0 %v4557
  %6491 = vmatprep.subr.bf16.mxu0 %v4562
  %6492 = vmatpush1.bf16.msra.mxu0 %v4561
  %6493 = vmatprep.subr.bf16.mxu0 %v4566
  %6494 = vmatpush1.bf16.msra.mxu0 %v4565
  %6495 = vmatprep.subr.bf16.mxu0 %v4570
  %6496 = vmatpush1.bf16.msra.mxu0 %v4569
  %6497 = vmatprep.mubr.bf16.mxu0 %v1126
  %6498 = vmatmul.mubr.bf16.gmra.mrb[0].mxu0 %v1125
  %v6499 = vpop.f32.mrb[0].mxu0
  %v6500 = vadd.f32 %v6459, %v6499
  %v6501 = vpop.f32.mrb[0].mxu0
  %v6502 = vadd.f32 %v6461, %v6501
  %v6503 = vpop.f32.mrb[0].mxu0
  %v6504 = vpop.f32.mrb[0].mxu0
  %6505 = vdwg.mxu0
  %6506 = vmatprep.subr.bf16.mxu0 %v4574
  %6507 = vmatpush1.bf16.msra.mxu0 %v4573
  %6508 = vmatprep.subr.bf16.mxu0 %v4578
  %6509 = vmatpush1.bf16.msra.mxu0 %v4577
  %6510 = vmatprep.subr.bf16.mxu0 %v4582
  %6511 = vmatpush1.bf16.msra.mxu0 %v4581
  %6512 = vmatprep.subr.bf16.mxu0 %v4586
  %6513 = vmatpush1.bf16.msra.mxu0 %v4585
  %6514 = vmatprep.subr.bf16.mxu0 %v4590
  %6515 = vmatpush1.bf16.msra.mxu0 %v4589
  %6516 = vmatprep.subr.bf16.mxu0 %v4594
  %6517 = vmatpush1.bf16.msra.mxu0 %v4593
  %6518 = vmatprep.subr.bf16.mxu0 %v4598
  %6519 = vmatpush1.bf16.msra.mxu0 %v4597
  %6520 = vmatprep.subr.bf16.mxu0 %v4602
  %6521 = vmatpush1.bf16.msra.mxu0 %v4601
  %6522 = vmatprep.subr.bf16.mxu0 %v4606
  %6523 = vmatpush1.bf16.msra.mxu0 %v4605
  %6524 = vmatprep.subr.bf16.mxu0 %v4610
  %6525 = vmatpush1.bf16.msra.mxu0 %v4609
  %6526 = vmatprep.subr.bf16.mxu0 %v4614
  %6527 = vmatpush1.bf16.msra.mxu0 %v4613
  %6528 = vmatprep.subr.bf16.mxu0 %v4618
  %6529 = vmatpush1.bf16.msra.mxu0 %v4617
  %6530 = vmatprep.subr.bf16.mxu0 %v4622
  %6531 = vmatpush1.bf16.msra.mxu0 %v4621
  %6532 = vmatprep.subr.bf16.mxu0 %v4626
  %6533 = vmatpush1.bf16.msra.mxu0 %v4625
  %6534 = vmatprep.subr.bf16.mxu0 %v4630
  %6535 = vmatpush1.bf16.msra.mxu0 %v4629
  %6536 = vmatprep.subr.bf16.mxu0 %v4634
  %6537 = vmatpush1.bf16.msra.mxu0 %v4633
  %6538 = vmatprep.mubr.bf16.mxu0 %v1128
  %6539 = vmatmul.mubr.bf16.gmra.mrb[0].mxu0 %v1127
  %v6540 = vpop.f32.mrb[0].mxu0
  %v6541 = vadd.f32 %v6500, %v6540
  %v6542 = vpop.f32.mrb[0].mxu0
  %v6543 = vadd.f32 %v6502, %v6542
  %v6544 = vpop.f32.mrb[0].mxu0
  %v6545 = vpop.f32.mrb[0].mxu0
  %6546 = vdwg.mxu0
  %6547 = vmatprep.subr.bf16.mxu0 %v4638
  %6548 = vmatpush1.bf16.msra.mxu0 %v4637
  %6549 = vmatprep.subr.bf16.mxu0 %v4642
  %6550 = vmatpush1.bf16.msra.mxu0 %v4641
  %6551 = vmatprep.subr.bf16.mxu0 %v4646
  %6552 = vmatpush1.bf16.msra.mxu0 %v4645
  %6553 = vmatprep.subr.bf16.mxu0 %v4650
  %6554 = vmatpush1.bf16.msra.mxu0 %v4649
  %6555 = vmatprep.subr.bf16.mxu0 %v4654
  %6556 = vmatpush1.bf16.msra.mxu0 %v4653
  %6557 = vmatprep.subr.bf16.mxu0 %v4658
  %6558 = vmatpush1.bf16.msra.mxu0 %v4657
  %6559 = vmatprep.subr.bf16.mxu0 %v4662
  %6560 = vmatpush1.bf16.msra.mxu0 %v4661
  %6561 = vmatprep.subr.bf16.mxu0 %v4666
  %6562 = vmatpush1.bf16.msra.mxu0 %v4665
  %6563 = vmatprep.subr.bf16.mxu0 %v4670
  %6564 = vmatpush1.bf16.msra.mxu0 %v4669
  %6565 = vmatprep.subr.bf16.mxu0 %v4674
  %6566 = vmatpush1.bf16.msra.mxu0 %v4673
  %6567 = vmatprep.subr.bf16.mxu0 %v4678
  %6568 = vmatpush1.bf16.msra.mxu0 %v4677
  %6569 = vmatprep.subr.bf16.mxu0 %v4682
  %6570 = vmatpush1.bf16.msra.mxu0 %v4681
  %6571 = vmatprep.subr.bf16.mxu0 %v4686
  %6572 = vmatpush1.bf16.msra.mxu0 %v4685
  %6573 = vmatprep.subr.bf16.mxu0 %v4690
  %6574 = vmatpush1.bf16.msra.mxu0 %v4689
  %6575 = vmatprep.subr.bf16.mxu0 %v4694
  %6576 = vmatpush1.bf16.msra.mxu0 %v4693
  %6577 = vmatprep.subr.bf16.mxu0 %v4698
  %6578 = vmatpush1.bf16.msra.mxu0 %v4697
  %6579 = vmatprep.mubr.bf16.mxu0 %v1130
  %6580 = vmatmul.mubr.bf16.gmra.mrb[0].mxu0 %v1129
  %v6581 = vpop.f32.mrb[0].mxu0
  %v6582 = vadd.f32 %v6541, %v6581
  %v6583 = vpop.f32.mrb[0].mxu0
  %v6584 = vadd.f32 %v6543, %v6583
  %v6585 = vpop.f32.mrb[0].mxu0
  %v6586 = vpop.f32.mrb[0].mxu0
  %6587 = vdwg.mxu0
  %6588 = vmatprep.subr.bf16.mxu0 %v4702
  %6589 = vmatpush1.bf16.msra.mxu0 %v4701
  %6590 = vmatprep.subr.bf16.mxu0 %v4706
  %6591 = vmatpush1.bf16.msra.mxu0 %v4705
  %6592 = vmatprep.subr.bf16.mxu0 %v4710
  %6593 = vmatpush1.bf16.msra.mxu0 %v4709
  %6594 = vmatprep.subr.bf16.mxu0 %v4714
  %6595 = vmatpush1.bf16.msra.mxu0 %v4713
  %6596 = vmatprep.subr.bf16.mxu0 %v4718
  %6597 = vmatpush1.bf16.msra.mxu0 %v4717
  %6598 = vmatprep.subr.bf16.mxu0 %v4722
  %6599 = vmatpush1.bf16.msra.mxu0 %v4721
  %6600 = vmatprep.subr.bf16.mxu0 %v4726
  %6601 = vmatpush1.bf16.msra.mxu0 %v4725
  %6602 = vmatprep.subr.bf16.mxu0 %v4730
  %6603 = vmatpush1.bf16.msra.mxu0 %v4729
  %6604 = vmatprep.subr.bf16.mxu0 %v4734
  %6605 = vmatpush1.bf16.msra.mxu0 %v4733
  %6606 = vmatprep.subr.bf16.mxu0 %v4738
  %6607 = vmatpush1.bf16.msra.mxu0 %v4737
  %6608 = vmatprep.subr.bf16.mxu0 %v4742
  %6609 = vmatpush1.bf16.msra.mxu0 %v4741
  %6610 = vmatprep.subr.bf16.mxu0 %v4746
  %6611 = vmatpush1.bf16.msra.mxu0 %v4745
  %6612 = vmatprep.subr.bf16.mxu0 %v4750
  %6613 = vmatpush1.bf16.msra.mxu0 %v4749
  %6614 = vmatprep.subr.bf16.mxu0 %v4754
  %6615 = vmatpush1.bf16.msra.mxu0 %v4753
  %6616 = vmatprep.subr.bf16.mxu0 %v4758
  %6617 = vmatpush1.bf16.msra.mxu0 %v4757
  %6618 = vmatprep.subr.bf16.mxu0 %v4762
  %6619 = vmatpush1.bf16.msra.mxu0 %v4761
  %6620 = vmatprep.mubr.bf16.mxu0 %v1132
  %6621 = vmatmul.mubr.bf16.gmra.mrb[0].mxu0 %v1131
  %v6622 = vpop.f32.mrb[0].mxu0
  %v6623 = vadd.f32 %v6582, %v6622
  %v6624 = vpop.f32.mrb[0].mxu0
  %v6625 = vadd.f32 %v6584, %v6624
  %v6626 = vpop.f32.mrb[0].mxu0
  %v6627 = vpop.f32.mrb[0].mxu0
  %6628 = vdwg.mxu0
  %6629 = vmatprep.subr.bf16.mxu0 %v4766
  %6630 = vmatpush1.bf16.msra.mxu0 %v4765
  %6631 = vmatprep.subr.bf16.mxu0 %v4770
  %6632 = vmatpush1.bf16.msra.mxu0 %v4769
  %6633 = vmatprep.subr.bf16.mxu0 %v4774
  %6634 = vmatpush1.bf16.msra.mxu0 %v4773
  %6635 = vmatprep.subr.bf16.mxu0 %v4778
  %6636 = vmatpush1.bf16.msra.mxu0 %v4777
  %6637 = vmatprep.subr.bf16.mxu0 %v4782
  %6638 = vmatpush1.bf16.msra.mxu0 %v4781
  %6639 = vmatprep.subr.bf16.mxu0 %v4786
  %6640 = vmatpush1.bf16.msra.mxu0 %v4785
  %6641 = vmatprep.subr.bf16.mxu0 %v4790
  %6642 = vmatpush1.bf16.msra.mxu0 %v4789
  %6643 = vmatprep.subr.bf16.mxu0 %v4794
  %6644 = vmatpush1.bf16.msra.mxu0 %v4793
  %6645 = vmatprep.subr.bf16.mxu0 %v4798
  %6646 = vmatpush1.bf16.msra.mxu0 %v4797
  %6647 = vmatprep.subr.bf16.mxu0 %v4802
  %6648 = vmatpush1.bf16.msra.mxu0 %v4801
  %6649 = vmatprep.subr.bf16.mxu0 %v4806
  %6650 = vmatpush1.bf16.msra.mxu0 %v4805
  %6651 = vmatprep.subr.bf16.mxu0 %v4810
  %6652 = vmatpush1.bf16.msra.mxu0 %v4809
  %6653 = vmatprep.subr.bf16.mxu0 %v4814
  %6654 = vmatpush1.bf16.msra.mxu0 %v4813
  %6655 = vmatprep.subr.bf16.mxu0 %v4818
  %6656 = vmatpush1.bf16.msra.mxu0 %v4817
  %6657 = vmatprep.subr.bf16.mxu0 %v4822
  %6658 = vmatpush1.bf16.msra.mxu0 %v4821
  %6659 = vmatprep.subr.bf16.mxu0 %v4826
  %6660 = vmatpush1.bf16.msra.mxu0 %v4825
  %6661 = vmatprep.mubr.bf16.mxu0 %v1134
  %6662 = vmatmul.mubr.bf16.gmra.mrb[0].mxu0 %v1133
  %v6663 = vpop.f32.mrb[0].mxu0
  %v6664 = vadd.f32 %v6623, %v6663
  %v6665 = vpop.f32.mrb[0].mxu0
  %v6666 = vadd.f32 %v6625, %v6665
  %v6667 = vpop.f32.mrb[0].mxu0
  %v6668 = vpop.f32.mrb[0].mxu0
  %6669 = vdwg.mxu0
  %6670 = vmatprep.subr.bf16.mxu0 %v4830
  %6671 = vmatpush1.bf16.msra.mxu0 %v4829
  %6672 = vmatprep.subr.bf16.mxu0 %v4834
  %6673 = vmatpush1.bf16.msra.mxu0 %v4833
  %6674 = vmatprep.subr.bf16.mxu0 %v4838
  %6675 = vmatpush1.bf16.msra.mxu0 %v4837
  %6676 = vmatprep.subr.bf16.mxu0 %v4842
  %6677 = vmatpush1.bf16.msra.mxu0 %v4841
  %6678 = vmatprep.subr.bf16.mxu0 %v4846
  %6679 = vmatpush1.bf16.msra.mxu0 %v4845
  %6680 = vmatprep.subr.bf16.mxu0 %v4850
  %6681 = vmatpush1.bf16.msra.mxu0 %v4849
  %6682 = vmatprep.subr.bf16.mxu0 %v4854
  %6683 = vmatpush1.bf16.msra.mxu0 %v4853
  %6684 = vmatprep.subr.bf16.mxu0 %v4858
  %6685 = vmatpush1.bf16.msra.mxu0 %v4857
  %6686 = vmatprep.subr.bf16.mxu0 %v4862
  %6687 = vmatpush1.bf16.msra.mxu0 %v4861
  %6688 = vmatprep.subr.bf16.mxu0 %v4866
  %6689 = vmatpush1.bf16.msra.mxu0 %v4865
  %6690 = vmatprep.subr.bf16.mxu0 %v4870
  %6691 = vmatpush1.bf16.msra.mxu0 %v4869
  %6692 = vmatprep.subr.bf16.mxu0 %v4874
  %6693 = vmatpush1.bf16.msra.mxu0 %v4873
  %6694 = vmatprep.subr.bf16.mxu0 %v4878
  %6695 = vmatpush1.bf16.msra.mxu0 %v4877
  %6696 = vmatprep.subr.bf16.mxu0 %v4882
  %6697 = vmatpush1.bf16.msra.mxu0 %v4881
  %6698 = vmatprep.subr.bf16.mxu0 %v4886
  %6699 = vmatpush1.bf16.msra.mxu0 %v4885
  %6700 = vmatprep.subr.bf16.mxu0 %v4890
  %6701 = vmatpush1.bf16.msra.mxu0 %v4889
  %6702 = vmatprep.mubr.bf16.mxu0 %v1136
  %6703 = vmatmul.mubr.bf16.gmra.mrb[0].mxu0 %v1135
  %v6704 = vpop.f32.mrb[0].mxu0
  %v6705 = vadd.f32 %v6664, %v6704
  %v6706 = vpop.f32.mrb[0].mxu0
  %v6707 = vadd.f32 %v6666, %v6706
  %v6708 = vpop.f32.mrb[0].mxu0
  %v6709 = vpop.f32.mrb[0].mxu0
  %6710 = vdwg.mxu0
  %6711 = vmatprep.subr.bf16.mxu0 %v4894
  %6712 = vmatpush1.bf16.msra.mxu0 %v4893
  %6713 = vmatprep.subr.bf16.mxu0 %v4898
  %6714 = vmatpush1.bf16.msra.mxu0 %v4897
  %6715 = vmatprep.subr.bf16.mxu0 %v4902
  %6716 = vmatpush1.bf16.msra.mxu0 %v4901
  %6717 = vmatprep.subr.bf16.mxu0 %v4906
  %6718 = vmatpush1.bf16.msra.mxu0 %v4905
  %6719 = vmatprep.subr.bf16.mxu0 %v4910
  %6720 = vmatpush1.bf16.msra.mxu0 %v4909
  %6721 = vmatprep.subr.bf16.mxu0 %v4914
  %6722 = vmatpush1.bf16.msra.mxu0 %v4913
  %6723 = vmatprep.subr.bf16.mxu0 %v4918
  %6724 = vmatpush1.bf16.msra.mxu0 %v4917
  %6725 = vmatprep.subr.bf16.mxu0 %v4922
  %6726 = vmatpush1.bf16.msra.mxu0 %v4921
  %6727 = vmatprep.subr.bf16.mxu0 %v4926
  %6728 = vmatpush1.bf16.msra.mxu0 %v4925
  %6729 = vmatprep.subr.bf16.mxu0 %v4930
  %6730 = vmatpush1.bf16.msra.mxu0 %v4929
  %6731 = vmatprep.subr.bf16.mxu0 %v4934
  %6732 = vmatpush1.bf16.msra.mxu0 %v4933
  %6733 = vmatprep.subr.bf16.mxu0 %v4938
  %6734 = vmatpush1.bf16.msra.mxu0 %v4937
  %6735 = vmatprep.subr.bf16.mxu0 %v4942
  %6736 = vmatpush1.bf16.msra.mxu0 %v4941
  %6737 = vmatprep.subr.bf16.mxu0 %v4946
  %6738 = vmatpush1.bf16.msra.mxu0 %v4945
  %6739 = vmatprep.subr.bf16.mxu0 %v4950
  %6740 = vmatpush1.bf16.msra.mxu0 %v4949
  %6741 = vmatprep.subr.bf16.mxu0 %v4954
  %6742 = vmatpush1.bf16.msra.mxu0 %v4953
  %6743 = vmatprep.mubr.bf16.mxu0 %v1138
  %6744 = vmatmul.mubr.bf16.gmra.mrb[0].mxu0 %v1137
  %v6745 = vpop.f32.mrb[0].mxu0
  %v6746 = vadd.f32 %v6705, %v6745
  %v6747 = vpop.f32.mrb[0].mxu0
  %v6748 = vadd.f32 %v6707, %v6747
  %v6749 = vpop.f32.mrb[0].mxu0
  %v6750 = vpop.f32.mrb[0].mxu0
  %6751 = vdwg.mxu0
  %6752 = vmatprep.subr.bf16.mxu0 %v4958
  %6753 = vmatpush1.bf16.msra.mxu0 %v4957
  %6754 = vmatprep.subr.bf16.mxu0 %v4962
  %6755 = vmatpush1.bf16.msra.mxu0 %v4961
  %6756 = vmatprep.subr.bf16.mxu0 %v4966
  %6757 = vmatpush1.bf16.msra.mxu0 %v4965
  %6758 = vmatprep.subr.bf16.mxu0 %v4970
  %6759 = vmatpush1.bf16.msra.mxu0 %v4969
  %6760 = vmatprep.subr.bf16.mxu0 %v4974
  %6761 = vmatpush1.bf16.msra.mxu0 %v4973
  %6762 = vmatprep.subr.bf16.mxu0 %v4978
  %6763 = vmatpush1.bf16.msra.mxu0 %v4977
  %6764 = vmatprep.subr.bf16.mxu0 %v4982
  %6765 = vmatpush1.bf16.msra.mxu0 %v4981
  %6766 = vmatprep.subr.bf16.mxu0 %v4986
  %6767 = vmatpush1.bf16.msra.mxu0 %v4985
  %6768 = vmatprep.subr.bf16.mxu0 %v4990
  %6769 = vmatpush1.bf16.msra.mxu0 %v4989
  %6770 = vmatprep.subr.bf16.mxu0 %v4994
  %6771 = vmatpush1.bf16.msra.mxu0 %v4993
  %6772 = vmatprep.subr.bf16.mxu0 %v4998
  %6773 = vmatpush1.bf16.msra.mxu0 %v4997
  %6774 = vmatprep.subr.bf16.mxu0 %v5002
  %6775 = vmatpush1.bf16.msra.mxu0 %v5001
  %6776 = vmatprep.subr.bf16.mxu0 %v5006
  %6777 = vmatpush1.bf16.msra.mxu0 %v5005
  %6778 = vmatprep.subr.bf16.mxu0 %v5010
  %6779 = vmatpush1.bf16.msra.mxu0 %v5009
  %6780 = vmatprep.subr.bf16.mxu0 %v5014
  %6781 = vmatpush1.bf16.msra.mxu0 %v5013
  %6782 = vmatprep.subr.bf16.mxu0 %v5018
  %6783 = vmatpush1.bf16.msra.mxu0 %v5017
  %6784 = vmatprep.mubr.bf16.mxu0 %v1140
  %6785 = vmatmul.mubr.bf16.gmra.mrb[0].mxu0 %v1139
  %v6786 = vpop.f32.mrb[0].mxu0
  %v6787 = vadd.f32 %v6746, %v6786
  %v6788 = vpop.f32.mrb[0].mxu0
  %v6789 = vadd.f32 %v6748, %v6788
  %v6790 = vpop.f32.mrb[0].mxu0
  %v6791 = vpop.f32.mrb[0].mxu0
  %6792 = vdwg.mxu0
  %6793 = vmatprep.subr.bf16.mxu0 %v5022
  %6794 = vmatpush1.bf16.msra.mxu0 %v5021
  %6795 = vmatprep.subr.bf16.mxu0 %v5026
  %6796 = vmatpush1.bf16.msra.mxu0 %v5025
  %6797 = vmatprep.subr.bf16.mxu0 %v5030
  %6798 = vmatpush1.bf16.msra.mxu0 %v5029
  %6799 = vmatprep.subr.bf16.mxu0 %v5034
  %6800 = vmatpush1.bf16.msra.mxu0 %v5033
  %6801 = vmatprep.subr.bf16.mxu0 %v5038
  %6802 = vmatpush1.bf16.msra.mxu0 %v5037
  %6803 = vmatprep.subr.bf16.mxu0 %v5042
  %6804 = vmatpush1.bf16.msra.mxu0 %v5041
  %6805 = vmatprep.subr.bf16.mxu0 %v5046
  %6806 = vmatpush1.bf16.msra.mxu0 %v5045
  %6807 = vmatprep.subr.bf16.mxu0 %v5050
  %6808 = vmatpush1.bf16.msra.mxu0 %v5049
  %6809 = vmatprep.subr.bf16.mxu0 %v5054
  %6810 = vmatpush1.bf16.msra.mxu0 %v5053
  %6811 = vmatprep.subr.bf16.mxu0 %v5058
  %6812 = vmatpush1.bf16.msra.mxu0 %v5057
  %6813 = vmatprep.subr.bf16.mxu0 %v5062
  %6814 = vmatpush1.bf16.msra.mxu0 %v5061
  %6815 = vmatprep.subr.bf16.mxu0 %v5066
  %6816 = vmatpush1.bf16.msra.mxu0 %v5065
  %6817 = vmatprep.subr.bf16.mxu0 %v5070
  %6818 = vmatpush1.bf16.msra.mxu0 %v5069
  %6819 = vmatprep.subr.bf16.mxu0 %v5074
  %6820 = vmatpush1.bf16.msra.mxu0 %v5073
  %6821 = vmatprep.subr.bf16.mxu0 %v5078
  %6822 = vmatpush1.bf16.msra.mxu0 %v5077
  %6823 = vmatprep.subr.bf16.mxu0 %v5082
  %6824 = vmatpush1.bf16.msra.mxu0 %v5081
  %6825 = vmatprep.mubr.bf16.mxu0 %v1142
  %6826 = vmatmul.mubr.bf16.gmra.mrb[0].mxu0 %v1141
  %v6827 = vpop.f32.mrb[0].mxu0
  %v6828 = vadd.f32 %v6787, %v6827
  %v6829 = vpop.f32.mrb[0].mxu0
  %v6830 = vadd.f32 %v6789, %v6829
  %v6831 = vpop.f32.mrb[0].mxu0
  %v6832 = vpop.f32.mrb[0].mxu0
  %6833 = vdwg.mxu0
  %6834 = vmatprep.subr.bf16.mxu0 %v5086
  %6835 = vmatpush1.bf16.msra.mxu0 %v5085
  %6836 = vmatprep.subr.bf16.mxu0 %v5090
  %6837 = vmatpush1.bf16.msra.mxu0 %v5089
  %6838 = vmatprep.subr.bf16.mxu0 %v5094
  %6839 = vmatpush1.bf16.msra.mxu0 %v5093
  %6840 = vmatprep.subr.bf16.mxu0 %v5098
  %6841 = vmatpush1.bf16.msra.mxu0 %v5097
  %6842 = vmatprep.subr.bf16.mxu0 %v5102
  %6843 = vmatpush1.bf16.msra.mxu0 %v5101
  %6844 = vmatprep.subr.bf16.mxu0 %v5106
  %6845 = vmatpush1.bf16.msra.mxu0 %v5105
  %6846 = vmatprep.subr.bf16.mxu0 %v5110
  %6847 = vmatpush1.bf16.msra.mxu0 %v5109
  %6848 = vmatprep.subr.bf16.mxu0 %v5114
  %6849 = vmatpush1.bf16.msra.mxu0 %v5113
  %6850 = vmatprep.subr.bf16.mxu0 %v5118
  %6851 = vmatpush1.bf16.msra.mxu0 %v5117
  %6852 = vmatprep.subr.bf16.mxu0 %v5122
  %6853 = vmatpush1.bf16.msra.mxu0 %v5121
  %6854 = vmatprep.subr.bf16.mxu0 %v5126
  %6855 = vmatpush1.bf16.msra.mxu0 %v5125
  %6856 = vmatprep.subr.bf16.mxu0 %v5130
  %6857 = vmatpush1.bf16.msra.mxu0 %v5129
  %6858 = vmatprep.subr.bf16.mxu0 %v5134
  %6859 = vmatpush1.bf16.msra.mxu0 %v5133
  %6860 = vmatprep.subr.bf16.mxu0 %v5138
  %6861 = vmatpush1.bf16.msra.mxu0 %v5137
  %6862 = vmatprep.subr.bf16.mxu0 %v5142
  %6863 = vmatpush1.bf16.msra.mxu0 %v5141
  %6864 = vmatprep.subr.bf16.mxu0 %v5146
  %6865 = vmatpush1.bf16.msra.mxu0 %v5145
  %6866 = vmatprep.mubr.bf16.mxu0 %v1144
  %6867 = vmatmul.mubr.bf16.gmra.mrb[0].mxu0 %v1143
  %v6868 = vpop.f32.mrb[0].mxu0
  %v6869 = vadd.f32 %v6828, %v6868
  %v6870 = vpop.f32.mrb[0].mxu0
  %v6871 = vadd.f32 %v6830, %v6870
  %v6872 = vpop.f32.mrb[0].mxu0
  %v6873 = vpop.f32.mrb[0].mxu0
  %6874 = vdwg.mxu0
  %6875 = vmatprep.subr.bf16.mxu0 %v5150
  %6876 = vmatpush1.bf16.msra.mxu0 %v5149
  %6877 = vmatprep.subr.bf16.mxu0 %v5154
  %6878 = vmatpush1.bf16.msra.mxu0 %v5153
  %6879 = vmatprep.subr.bf16.mxu0 %v5158
  %6880 = vmatpush1.bf16.msra.mxu0 %v5157
  %6881 = vmatprep.subr.bf16.mxu0 %v5162
  %6882 = vmatpush1.bf16.msra.mxu0 %v5161
  %6883 = vmatprep.subr.bf16.mxu0 %v5166
  %6884 = vmatpush1.bf16.msra.mxu0 %v5165
  %6885 = vmatprep.subr.bf16.mxu0 %v5170
  %6886 = vmatpush1.bf16.msra.mxu0 %v5169
  %6887 = vmatprep.subr.bf16.mxu0 %v5174
  %6888 = vmatpush1.bf16.msra.mxu0 %v5173
  %6889 = vmatprep.subr.bf16.mxu0 %v5178
  %6890 = vmatpush1.bf16.msra.mxu0 %v5177
  %6891 = vmatprep.subr.bf16.mxu0 %v5182
  %6892 = vmatpush1.bf16.msra.mxu0 %v5181
  %6893 = vmatprep.subr.bf16.mxu0 %v5186
  %6894 = vmatpush1.bf16.msra.mxu0 %v5185
  %6895 = vmatprep.subr.bf16.mxu0 %v5190
  %6896 = vmatpush1.bf16.msra.mxu0 %v5189
  %6897 = vmatprep.subr.bf16.mxu0 %v5194
  %6898 = vmatpush1.bf16.msra.mxu0 %v5193
  %6899 = vmatprep.subr.bf16.mxu0 %v5198
  %6900 = vmatpush1.bf16.msra.mxu0 %v5197
  %6901 = vmatprep.subr.bf16.mxu0 %v5202
  %6902 = vmatpush1.bf16.msra.mxu0 %v5201
  %6903 = vmatprep.subr.bf16.mxu0 %v5206
  %6904 = vmatpush1.bf16.msra.mxu0 %v5205
  %6905 = vmatprep.subr.bf16.mxu0 %v5210
  %6906 = vmatpush1.bf16.msra.mxu0 %v5209
  %6907 = vmatprep.mubr.bf16.mxu0 %v1146
  %6908 = vmatmul.mubr.bf16.gmra.mrb[0].mxu0 %v1145
  %v6909 = vpop.f32.mrb[0].mxu0
  %v6910 = vadd.f32 %v6869, %v6909
  %v6911 = vpop.f32.mrb[0].mxu0
  %v6912 = vadd.f32 %v6871, %v6911
  %v6913 = vpop.f32.mrb[0].mxu0
  %v6914 = vpop.f32.mrb[0].mxu0
  %6915 = vdwg.mxu0
  %6916 = vmatprep.subr.bf16.mxu0 %v5214
  %6917 = vmatpush1.bf16.msra.mxu0 %v5213
  %6918 = vmatprep.subr.bf16.mxu0 %v5218
  %6919 = vmatpush1.bf16.msra.mxu0 %v5217
  %6920 = vmatprep.subr.bf16.mxu0 %v5222
  %6921 = vmatpush1.bf16.msra.mxu0 %v5221
  %6922 = vmatprep.subr.bf16.mxu0 %v5226
  %6923 = vmatpush1.bf16.msra.mxu0 %v5225
  %6924 = vmatprep.subr.bf16.mxu0 %v5230
  %6925 = vmatpush1.bf16.msra.mxu0 %v5229
  %6926 = vmatprep.subr.bf16.mxu0 %v5234
  %6927 = vmatpush1.bf16.msra.mxu0 %v5233
  %6928 = vmatprep.subr.bf16.mxu0 %v5238
  %6929 = vmatpush1.bf16.msra.mxu0 %v5237
  %6930 = vmatprep.subr.bf16.mxu0 %v5242
  %6931 = vmatpush1.bf16.msra.mxu0 %v5241
  %6932 = vmatprep.subr.bf16.mxu0 %v5246
  %6933 = vmatpush1.bf16.msra.mxu0 %v5245
  %6934 = vmatprep.subr.bf16.mxu0 %v5250
  %6935 = vmatpush1.bf16.msra.mxu0 %v5249
  %6936 = vmatprep.subr.bf16.mxu0 %v5254
  %6937 = vmatpush1.bf16.msra.mxu0 %v5253
  %6938 = vmatprep.subr.bf16.mxu0 %v5258
  %6939 = vmatpush1.bf16.msra.mxu0 %v5257
  %6940 = vmatprep.subr.bf16.mxu0 %v5262
  %6941 = vmatpush1.bf16.msra.mxu0 %v5261
  %6942 = vmatprep.subr.bf16.mxu0 %v5266
  %6943 = vmatpush1.bf16.msra.mxu0 %v5265
  %6944 = vmatprep.subr.bf16.mxu0 %v5270
  %6945 = vmatpush1.bf16.msra.mxu0 %v5269
  %6946 = vmatprep.subr.bf16.mxu0 %v5274
  %6947 = vmatpush1.bf16.msra.mxu0 %v5273
  %6948 = vmatprep.mubr.bf16.mxu0 %v1148
  %6949 = vmatmul.mubr.bf16.gmra.mrb[0].mxu0 %v1147
  %v6950 = vpop.f32.mrb[0].mxu0
  %v6951 = vadd.f32 %v6910, %v6950
  %v6952 = vpop.f32.mrb[0].mxu0
  %v6953 = vadd.f32 %v6912, %v6952
  %v6954 = vpop.f32.mrb[0].mxu0
  %v6955 = vpop.f32.mrb[0].mxu0
  %6956 = vdwg.mxu0
  %6957 = vmatprep.subr.bf16.mxu0 %v4256
  %6958 = vmatpush1.bf16.msra.mxu0 %v4255
  %6959 = vmatprep.subr.bf16.mxu0 %v4260
  %6960 = vmatpush1.bf16.msra.mxu0 %v4259
  %6961 = vmatprep.subr.bf16.mxu0 %v4264
  %6962 = vmatpush1.bf16.msra.mxu0 %v4263
  %6963 = vmatprep.subr.bf16.mxu0 %v4268
  %6964 = vmatpush1.bf16.msra.mxu0 %v4267
  %6965 = vmatprep.subr.bf16.mxu0 %v4272
  %6966 = vmatpush1.bf16.msra.mxu0 %v4271
  %6967 = vmatprep.subr.bf16.mxu0 %v4276
  %6968 = vmatpush1.bf16.msra.mxu0 %v4275
  %6969 = vmatprep.subr.bf16.mxu0 %v4280
  %6970 = vmatpush1.bf16.msra.mxu0 %v4279
  %6971 = vmatprep.subr.bf16.mxu0 %v4284
  %6972 = vmatpush1.bf16.msra.mxu0 %v4283
  %6973 = vmatprep.subr.bf16.mxu0 %v4288
  %6974 = vmatpush1.bf16.msra.mxu0 %v4287
  %6975 = vmatprep.subr.bf16.mxu0 %v4292
  %6976 = vmatpush1.bf16.msra.mxu0 %v4291
  %6977 = vmatprep.subr.bf16.mxu0 %v4296
  %6978 = vmatpush1.bf16.msra.mxu0 %v4295
  %6979 = vmatprep.subr.bf16.mxu0 %v4300
  %6980 = vmatpush1.bf16.msra.mxu0 %v4299
  %6981 = vmatprep.subr.bf16.mxu0 %v4304
  %6982 = vmatpush1.bf16.msra.mxu0 %v4303
  %6983 = vmatprep.subr.bf16.mxu0 %v4308
  %6984 = vmatpush1.bf16.msra.mxu0 %v4307
  %6985 = vmatprep.subr.bf16.mxu0 %v4312
  %6986 = vmatpush1.bf16.msra.mxu0 %v4311
  %6987 = vmatprep.subr.bf16.mxu0 %v4316
  %6988 = vmatpush1.bf16.msra.mxu0 %v4315
  %6989 = vmatprep.mubr.bf16.mxu0 %v1118
  %6990 = vmatmul.mubr.bf16.gmra.mrb[0].mxu0 %v1117
  %v6991 = vpop.f32.mrb[0].mxu0
  %v6992 = vadd.f32 0.0, %v6991
  %v6993 = vpop.f32.mrb[0].mxu0
  %v6994 = vadd.f32 0.0, %v6993
  %v6995 = vpop.f32.mrb[0].mxu0
  %v6996 = vpop.f32.mrb[0].mxu0
  %6997 = vdwg.mxu0
  %6998 = vmatprep.subr.bf16.mxu0 %v4320
  %6999 = vmatpush1.bf16.msra.mxu0 %v4319
  %7000 = vmatprep.subr.bf16.mxu0 %v4324
  %7001 = vmatpush1.bf16.msra.mxu0 %v4323
  %7002 = vmatprep.subr.bf16.mxu0 %v4328
  %7003 = vmatpush1.bf16.msra.mxu0 %v4327
  %7004 = vmatprep.subr.bf16.mxu0 %v4332
  %7005 = vmatpush1.bf16.msra.mxu0 %v4331
  %7006 = vmatprep.subr.bf16.mxu0 %v4336
  %7007 = vmatpush1.bf16.msra.mxu0 %v4335
  %7008 = vmatprep.subr.bf16.mxu0 %v4340
  %7009 = vmatpush1.bf16.msra.mxu0 %v4339
  %7010 = vmatprep.subr.bf16.mxu0 %v4344
  %7011 = vmatpush1.bf16.msra.mxu0 %v4343
  %7012 = vmatprep.subr.bf16.mxu0 %v4348
  %7013 = vmatpush1.bf16.msra.mxu0 %v4347
  %7014 = vmatprep.subr.bf16.mxu0 %v4352
  %7015 = vmatpush1.bf16.msra.mxu0 %v4351
  %7016 = vmatprep.subr.bf16.mxu0 %v4356
  %7017 = vmatpush1.bf16.msra.mxu0 %v4355
  %7018 = vmatprep.subr.bf16.mxu0 %v4360
  %7019 = vmatpush1.bf16.msra.mxu0 %v4359
  %7020 = vmatprep.subr.bf16.mxu0 %v4364
  %7021 = vmatpush1.bf16.msra.mxu0 %v4363
  %7022 = vmatprep.subr.bf16.mxu0 %v4368
  %7023 = vmatpush1.bf16.msra.mxu0 %v4367
  %7024 = vmatprep.subr.bf16.mxu0 %v4372
  %7025 = vmatpush1.bf16.msra.mxu0 %v4371
  %7026 = vmatprep.subr.bf16.mxu0 %v4376
  %7027 = vmatpush1.bf16.msra.mxu0 %v4375
  %7028 = vmatprep.subr.bf16.mxu0 %v4380
  %7029 = vmatpush1.bf16.msra.mxu0 %v4379
  %7030 = vmatprep.mubr.bf16.mxu0 %v1120
  %7031 = vmatmul.mubr.bf16.gmra.mrb[0].mxu0 %v1119
  %v7032 = vpop.f32.mrb[0].mxu0
  %v7033 = vadd.f32 %v6992, %v7032
  %v7034 = vpop.f32.mrb[0].mxu0
  %v7035 = vadd.f32 %v6994, %v7034
  %v7036 = vpop.f32.mrb[0].mxu0
  %v7037 = vpop.f32.mrb[0].mxu0
  %7038 = vdwg.mxu0
  %7039 = vmatprep.subr.bf16.mxu0 %v4384
  %7040 = vmatpush1.bf16.msra.mxu0 %v4383
  %7041 = vmatprep.subr.bf16.mxu0 %v4388
  %7042 = vmatpush1.bf16.msra.mxu0 %v4387
  %7043 = vmatprep.subr.bf16.mxu0 %v4392
  %7044 = vmatpush1.bf16.msra.mxu0 %v4391
  %7045 = vmatprep.subr.bf16.mxu0 %v4396
  %7046 = vmatpush1.bf16.msra.mxu0 %v4395
  %7047 = vmatprep.subr.bf16.mxu0 %v4400
  %7048 = vmatpush1.bf16.msra.mxu0 %v4399
  %7049 = vmatprep.subr.bf16.mxu0 %v4404
  %7050 = vmatpush1.bf16.msra.mxu0 %v4403
  %7051 = vmatprep.subr.bf16.mxu0 %v4408
  %7052 = vmatpush1.bf16.msra.mxu0 %v4407
  %7053 = vmatprep.subr.bf16.mxu0 %v4412
  %7054 = vmatpush1.bf16.msra.mxu0 %v4411
  %7055 = vmatprep.subr.bf16.mxu0 %v4416
  %7056 = vmatpush1.bf16.msra.mxu0 %v4415
  %7057 = vmatprep.subr.bf16.mxu0 %v4420
  %7058 = vmatpush1.bf16.msra.mxu0 %v4419
  %7059 = vmatprep.subr.bf16.mxu0 %v4424
  %7060 = vmatpush1.bf16.msra.mxu0 %v4423
  %7061 = vmatprep.subr.bf16.mxu0 %v4428
  %7062 = vmatpush1.bf16.msra.mxu0 %v4427
  %7063 = vmatprep.subr.bf16.mxu0 %v4432
  %7064 = vmatpush1.bf16.msra.mxu0 %v4431
  %7065 = vmatprep.subr.bf16.mxu0 %v4436
  %7066 = vmatpush1.bf16.msra.mxu0 %v4435
  %7067 = vmatprep.subr.bf16.mxu0 %v4440
  %7068 = vmatpush1.bf16.msra.mxu0 %v4439
  %7069 = vmatprep.subr.bf16.mxu0 %v4444
  %7070 = vmatpush1.bf16.msra.mxu0 %v4443
  %7071 = vmatprep.mubr.bf16.mxu0 %v1122
  %7072 = vmatmul.mubr.bf16.gmra.mrb[0].mxu0 %v1121
  %v7073 = vpop.f32.mrb[0].mxu0
  %v7074 = vadd.f32 %v7033, %v7073
  %v7075 = vpop.f32.mrb[0].mxu0
  %v7076 = vadd.f32 %v7035, %v7075
  %v7077 = vpop.f32.mrb[0].mxu0
  %v7078 = vpop.f32.mrb[0].mxu0
  %7079 = vdwg.mxu0
  %7080 = vmatprep.subr.bf16.mxu0 %v4448
  %7081 = vmatpush1.bf16.msra.mxu0 %v4447
  %7082 = vmatprep.subr.bf16.mxu0 %v4452
  %7083 = vmatpush1.bf16.msra.mxu0 %v4451
  %7084 = vmatprep.subr.bf16.mxu0 %v4456
  %7085 = vmatpush1.bf16.msra.mxu0 %v4455
  %7086 = vmatprep.subr.bf16.mxu0 %v4460
  %7087 = vmatpush1.bf16.msra.mxu0 %v4459
  %7088 = vmatprep.subr.bf16.mxu0 %v4464
  %7089 = vmatpush1.bf16.msra.mxu0 %v4463
  %7090 = vmatprep.subr.bf16.mxu0 %v4468
  %7091 = vmatpush1.bf16.msra.mxu0 %v4467
  %7092 = vmatprep.subr.bf16.mxu0 %v4472
  %7093 = vmatpush1.bf16.msra.mxu0 %v4471
  %7094 = vmatprep.subr.bf16.mxu0 %v4476
  %7095 = vmatpush1.bf16.msra.mxu0 %v4475
  %7096 = vmatprep.subr.bf16.mxu0 %v4480
  %7097 = vmatpush1.bf16.msra.mxu0 %v4479
  %7098 = vmatprep.subr.bf16.mxu0 %v4484
  %7099 = vmatpush1.bf16.msra.mxu0 %v4483
  %7100 = vmatprep.subr.bf16.mxu0 %v4488
  %7101 = vmatpush1.bf16.msra.mxu0 %v4487
  %7102 = vmatprep.subr.bf16.mxu0 %v4492
  %7103 = vmatpush1.bf16.msra.mxu0 %v4491
  %7104 = vmatprep.subr.bf16.mxu0 %v4496
  %7105 = vmatpush1.bf16.msra.mxu0 %v4495
  %7106 = vmatprep.subr.bf16.mxu0 %v4500
  %7107 = vmatpush1.bf16.msra.mxu0 %v4499
  %7108 = vmatprep.subr.bf16.mxu0 %v4504
  %7109 = vmatpush1.bf16.msra.mxu0 %v4503
  %7110 = vmatprep.subr.bf16.mxu0 %v4508
  %7111 = vmatpush1.bf16.msra.mxu0 %v4507
  %7112 = vmatprep.mubr.bf16.mxu0 %v1124
  %7113 = vmatmul.mubr.bf16.gmra.mrb[0].mxu0 %v1123
  %v7114 = vpop.f32.mrb[0].mxu0
  %v7115 = vadd.f32 %v7074, %v7114
  %v7116 = vpop.f32.mrb[0].mxu0
  %v7117 = vadd.f32 %v7076, %v7116
  %v7118 = vpop.f32.mrb[0].mxu0
  %v7119 = vpop.f32.mrb[0].mxu0
  %7120 = vdwg.mxu0
  %7121 = vmatprep.subr.bf16.mxu0 %v4512
  %7122 = vmatpush1.bf16.msra.mxu0 %v4511
  %7123 = vmatprep.subr.bf16.mxu0 %v4516
  %7124 = vmatpush1.bf16.msra.mxu0 %v4515
  %7125 = vmatprep.subr.bf16.mxu0 %v4520
  %7126 = vmatpush1.bf16.msra.mxu0 %v4519
  %7127 = vmatprep.subr.bf16.mxu0 %v4524
  %7128 = vmatpush1.bf16.msra.mxu0 %v4523
  %7129 = vmatprep.subr.bf16.mxu0 %v4528
  %7130 = vmatpush1.bf16.msra.mxu0 %v4527
  %7131 = vmatprep.subr.bf16.mxu0 %v4532
  %7132 = vmatpush1.bf16.msra.mxu0 %v4531
  %7133 = vmatprep.subr.bf16.mxu0 %v4536
  %7134 = vmatpush1.bf16.msra.mxu0 %v4535
  %7135 = vmatprep.subr.bf16.mxu0 %v4540
  %7136 = vmatpush1.bf16.msra.mxu0 %v4539
  %7137 = vmatprep.subr.bf16.mxu0 %v4544
  %7138 = vmatpush1.bf16.msra.mxu0 %v4543
  %7139 = vmatprep.subr.bf16.mxu0 %v4548
  %7140 = vmatpush1.bf16.msra.mxu0 %v4547
  %7141 = vmatprep.subr.bf16.mxu0 %v4552
  %7142 = vmatpush1.bf16.msra.mxu0 %v4551
  %7143 = vmatprep.subr.bf16.mxu0 %v4556
  %7144 = vmatpush1.bf16.msra.mxu0 %v4555
  %7145 = vmatprep.subr.bf16.mxu0 %v4560
  %7146 = vmatpush1.bf16.msra.mxu0 %v4559
  %7147 = vmatprep.subr.bf16.mxu0 %v4564
  %7148 = vmatpush1.bf16.msra.mxu0 %v4563
  %7149 = vmatprep.subr.bf16.mxu0 %v4568
  %7150 = vmatpush1.bf16.msra.mxu0 %v4567
  %7151 = vmatprep.subr.bf16.mxu0 %v4572
  %7152 = vmatpush1.bf16.msra.mxu0 %v4571
  %7153 = vmatprep.mubr.bf16.mxu0 %v1126
  %7154 = vmatmul.mubr.bf16.gmra.mrb[0].mxu0 %v1125
  %v7155 = vpop.f32.mrb[0].mxu0
  %v7156 = vadd.f32 %v7115, %v7155
  %v7157 = vpop.f32.mrb[0].mxu0
  %v7158 = vadd.f32 %v7117, %v7157
  %v7159 = vpop.f32.mrb[0].mxu0
  %v7160 = vpop.f32.mrb[0].mxu0
  %7161 = vdwg.mxu0
  %7162 = vmatprep.subr.bf16.mxu0 %v4576
  %7163 = vmatpush1.bf16.msra.mxu0 %v4575
  %7164 = vmatprep.subr.bf16.mxu0 %v4580
  %7165 = vmatpush1.bf16.msra.mxu0 %v4579
  %7166 = vmatprep.subr.bf16.mxu0 %v4584
  %7167 = vmatpush1.bf16.msra.mxu0 %v4583
  %7168 = vmatprep.subr.bf16.mxu0 %v4588
  %7169 = vmatpush1.bf16.msra.mxu0 %v4587
  %7170 = vmatprep.subr.bf16.mxu0 %v4592
  %7171 = vmatpush1.bf16.msra.mxu0 %v4591
  %7172 = vmatprep.subr.bf16.mxu0 %v4596
  %7173 = vmatpush1.bf16.msra.mxu0 %v4595
  %7174 = vmatprep.subr.bf16.mxu0 %v4600
  %7175 = vmatpush1.bf16.msra.mxu0 %v4599
  %7176 = vmatprep.subr.bf16.mxu0 %v4604
  %7177 = vmatpush1.bf16.msra.mxu0 %v4603
  %7178 = vmatprep.subr.bf16.mxu0 %v4608
  %7179 = vmatpush1.bf16.msra.mxu0 %v4607
  %7180 = vmatprep.subr.bf16.mxu0 %v4612
  %7181 = vmatpush1.bf16.msra.mxu0 %v4611
  %7182 = vmatprep.subr.bf16.mxu0 %v4616
  %7183 = vmatpush1.bf16.msra.mxu0 %v4615
  %7184 = vmatprep.subr.bf16.mxu0 %v4620
  %7185 = vmatpush1.bf16.msra.mxu0 %v4619
  %7186 = vmatprep.subr.bf16.mxu0 %v4624
  %7187 = vmatpush1.bf16.msra.mxu0 %v4623
  %7188 = vmatprep.subr.bf16.mxu0 %v4628
  %7189 = vmatpush1.bf16.msra.mxu0 %v4627
  %7190 = vmatprep.subr.bf16.mxu0 %v4632
  %7191 = vmatpush1.bf16.msra.mxu0 %v4631
  %7192 = vmatprep.subr.bf16.mxu0 %v4636
  %7193 = vmatpush1.bf16.msra.mxu0 %v4635
  %7194 = vmatprep.mubr.bf16.mxu0 %v1128
  %7195 = vmatmul.mubr.bf16.gmra.mrb[0].mxu0 %v1127
  %v7196 = vpop.f32.mrb[0].mxu0
  %v7197 = vadd.f32 %v7156, %v7196
  %v7198 = vpop.f32.mrb[0].mxu0
  %v7199 = vadd.f32 %v7158, %v7198
  %v7200 = vpop.f32.mrb[0].mxu0
  %v7201 = vpop.f32.mrb[0].mxu0
  %7202 = vdwg.mxu0
  %7203 = vmatprep.subr.bf16.mxu0 %v4640
  %7204 = vmatpush1.bf16.msra.mxu0 %v4639
  %7205 = vmatprep.subr.bf16.mxu0 %v4644
  %7206 = vmatpush1.bf16.msra.mxu0 %v4643
  %7207 = vmatprep.subr.bf16.mxu0 %v4648
  %7208 = vmatpush1.bf16.msra.mxu0 %v4647
  %7209 = vmatprep.subr.bf16.mxu0 %v4652
  %7210 = vmatpush1.bf16.msra.mxu0 %v4651
  %7211 = vmatprep.subr.bf16.mxu0 %v4656
  %7212 = vmatpush1.bf16.msra.mxu0 %v4655
  %7213 = vmatprep.subr.bf16.mxu0 %v4660
  %7214 = vmatpush1.bf16.msra.mxu0 %v4659
  %7215 = vmatprep.subr.bf16.mxu0 %v4664
  %7216 = vmatpush1.bf16.msra.mxu0 %v4663
  %7217 = vmatprep.subr.bf16.mxu0 %v4668
  %7218 = vmatpush1.bf16.msra.mxu0 %v4667
  %7219 = vmatprep.subr.bf16.mxu0 %v4672
  %7220 = vmatpush1.bf16.msra.mxu0 %v4671
  %7221 = vmatprep.subr.bf16.mxu0 %v4676
  %7222 = vmatpush1.bf16.msra.mxu0 %v4675
  %7223 = vmatprep.subr.bf16.mxu0 %v4680
  %7224 = vmatpush1.bf16.msra.mxu0 %v4679
  %7225 = vmatprep.subr.bf16.mxu0 %v4684
  %7226 = vmatpush1.bf16.msra.mxu0 %v4683
  %7227 = vmatprep.subr.bf16.mxu0 %v4688
  %7228 = vmatpush1.bf16.msra.mxu0 %v4687
  %7229 = vmatprep.subr.bf16.mxu0 %v4692
  %7230 = vmatpush1.bf16.msra.mxu0 %v4691
  %7231 = vmatprep.subr.bf16.mxu0 %v4696
  %7232 = vmatpush1.bf16.msra.mxu0 %v4695
  %7233 = vmatprep.subr.bf16.mxu0 %v4700
  %7234 = vmatpush1.bf16.msra.mxu0 %v4699
  %7235 = vmatprep.mubr.bf16.mxu0 %v1130
  %7236 = vmatmul.mubr.bf16.gmra.mrb[0].mxu0 %v1129
  %v7237 = vpop.f32.mrb[0].mxu0
  %v7238 = vadd.f32 %v7197, %v7237
  %v7239 = vpop.f32.mrb[0].mxu0
  %v7240 = vadd.f32 %v7199, %v7239
  %v7241 = vpop.f32.mrb[0].mxu0
  %v7242 = vpop.f32.mrb[0].mxu0
  %7243 = vdwg.mxu0
  %7244 = vmatprep.subr.bf16.mxu0 %v4704
  %7245 = vmatpush1.bf16.msra.mxu0 %v4703
  %7246 = vmatprep.subr.bf16.mxu0 %v4708
  %7247 = vmatpush1.bf16.msra.mxu0 %v4707
  %7248 = vmatprep.subr.bf16.mxu0 %v4712
  %7249 = vmatpush1.bf16.msra.mxu0 %v4711
  %7250 = vmatprep.subr.bf16.mxu0 %v4716
  %7251 = vmatpush1.bf16.msra.mxu0 %v4715
  %7252 = vmatprep.subr.bf16.mxu0 %v4720
  %7253 = vmatpush1.bf16.msra.mxu0 %v4719
  %7254 = vmatprep.subr.bf16.mxu0 %v4724
  %7255 = vmatpush1.bf16.msra.mxu0 %v4723
  %7256 = vmatprep.subr.bf16.mxu0 %v4728
  %7257 = vmatpush1.bf16.msra.mxu0 %v4727
  %7258 = vmatprep.subr.bf16.mxu0 %v4732
  %7259 = vmatpush1.bf16.msra.mxu0 %v4731
  %7260 = vmatprep.subr.bf16.mxu0 %v4736
  %7261 = vmatpush1.bf16.msra.mxu0 %v4735
  %7262 = vmatprep.subr.bf16.mxu0 %v4740
  %7263 = vmatpush1.bf16.msra.mxu0 %v4739
  %7264 = vmatprep.subr.bf16.mxu0 %v4744
  %7265 = vmatpush1.bf16.msra.mxu0 %v4743
  %7266 = vmatprep.subr.bf16.mxu0 %v4748
  %7267 = vmatpush1.bf16.msra.mxu0 %v4747
  %7268 = vmatprep.subr.bf16.mxu0 %v4752
  %7269 = vmatpush1.bf16.msra.mxu0 %v4751
  %7270 = vmatprep.subr.bf16.mxu0 %v4756
  %7271 = vmatpush1.bf16.msra.mxu0 %v4755
  %7272 = vmatprep.subr.bf16.mxu0 %v4760
  %7273 = vmatpush1.bf16.msra.mxu0 %v4759
  %7274 = vmatprep.subr.bf16.mxu0 %v4764
  %7275 = vmatpush1.bf16.msra.mxu0 %v4763
  %7276 = vmatprep.mubr.bf16.mxu0 %v1132
  %7277 = vmatmul.mubr.bf16.gmra.mrb[0].mxu0 %v1131
  %v7278 = vpop.f32.mrb[0].mxu0
  %v7279 = vadd.f32 %v7238, %v7278
  %v7280 = vpop.f32.mrb[0].mxu0
  %v7281 = vadd.f32 %v7240, %v7280
  %v7282 = vpop.f32.mrb[0].mxu0
  %v7283 = vpop.f32.mrb[0].mxu0
  %7284 = vdwg.mxu0
  %7285 = vmatprep.subr.bf16.mxu0 %v4768
  %7286 = vmatpush1.bf16.msra.mxu0 %v4767
  %7287 = vmatprep.subr.bf16.mxu0 %v4772
  %7288 = vmatpush1.bf16.msra.mxu0 %v4771
  %7289 = vmatprep.subr.bf16.mxu0 %v4776
  %7290 = vmatpush1.bf16.msra.mxu0 %v4775
  %7291 = vmatprep.subr.bf16.mxu0 %v4780
  %7292 = vmatpush1.bf16.msra.mxu0 %v4779
  %7293 = vmatprep.subr.bf16.mxu0 %v4784
  %7294 = vmatpush1.bf16.msra.mxu0 %v4783
  %7295 = vmatprep.subr.bf16.mxu0 %v4788
  %7296 = vmatpush1.bf16.msra.mxu0 %v4787
  %7297 = vmatprep.subr.bf16.mxu0 %v4792
  %7298 = vmatpush1.bf16.msra.mxu0 %v4791
  %7299 = vmatprep.subr.bf16.mxu0 %v4796
  %7300 = vmatpush1.bf16.msra.mxu0 %v4795
  %7301 = vmatprep.subr.bf16.mxu0 %v4800
  %7302 = vmatpush1.bf16.msra.mxu0 %v4799
  %7303 = vmatprep.subr.bf16.mxu0 %v4804
  %7304 = vmatpush1.bf16.msra.mxu0 %v4803
  %7305 = vmatprep.subr.bf16.mxu0 %v4808
  %7306 = vmatpush1.bf16.msra.mxu0 %v4807
  %7307 = vmatprep.subr.bf16.mxu0 %v4812
  %7308 = vmatpush1.bf16.msra.mxu0 %v4811
  %7309 = vmatprep.subr.bf16.mxu0 %v4816
  %7310 = vmatpush1.bf16.msra.mxu0 %v4815
  %7311 = vmatprep.subr.bf16.mxu0 %v4820
  %7312 = vmatpush1.bf16.msra.mxu0 %v4819
  %7313 = vmatprep.subr.bf16.mxu0 %v4824
  %7314 = vmatpush1.bf16.msra.mxu0 %v4823
  %7315 = vmatprep.subr.bf16.mxu0 %v4828
  %7316 = vmatpush1.bf16.msra.mxu0 %v4827
  %7317 = vmatprep.mubr.bf16.mxu0 %v1134
  %7318 = vmatmul.mubr.bf16.gmra.mrb[0].mxu0 %v1133
  %v7319 = vpop.f32.mrb[0].mxu0
  %v7320 = vadd.f32 %v7279, %v7319
  %v7321 = vpop.f32.mrb[0].mxu0
  %v7322 = vadd.f32 %v7281, %v7321
  %v7323 = vpop.f32.mrb[0].mxu0
  %v7324 = vpop.f32.mrb[0].mxu0
  %7325 = vdwg.mxu0
  %7326 = vmatprep.subr.bf16.mxu0 %v4832
  %7327 = vmatpush1.bf16.msra.mxu0 %v4831
  %7328 = vmatprep.subr.bf16.mxu0 %v4836
  %7329 = vmatpush1.bf16.msra.mxu0 %v4835
  %7330 = vmatprep.subr.bf16.mxu0 %v4840
  %7331 = vmatpush1.bf16.msra.mxu0 %v4839
  %7332 = vmatprep.subr.bf16.mxu0 %v4844
  %7333 = vmatpush1.bf16.msra.mxu0 %v4843
  %7334 = vmatprep.subr.bf16.mxu0 %v4848
  %7335 = vmatpush1.bf16.msra.mxu0 %v4847
  %7336 = vmatprep.subr.bf16.mxu0 %v4852
  %7337 = vmatpush1.bf16.msra.mxu0 %v4851
  %7338 = vmatprep.subr.bf16.mxu0 %v4856
  %7339 = vmatpush1.bf16.msra.mxu0 %v4855
  %7340 = vmatprep.subr.bf16.mxu0 %v4860
  %7341 = vmatpush1.bf16.msra.mxu0 %v4859
  %7342 = vmatprep.subr.bf16.mxu0 %v4864
  %7343 = vmatpush1.bf16.msra.mxu0 %v4863
  %7344 = vmatprep.subr.bf16.mxu0 %v4868
  %7345 = vmatpush1.bf16.msra.mxu0 %v4867
  %7346 = vmatprep.subr.bf16.mxu0 %v4872
  %7347 = vmatpush1.bf16.msra.mxu0 %v4871
  %7348 = vmatprep.subr.bf16.mxu0 %v4876
  %7349 = vmatpush1.bf16.msra.mxu0 %v4875
  %7350 = vmatprep.subr.bf16.mxu0 %v4880
  %7351 = vmatpush1.bf16.msra.mxu0 %v4879
  %7352 = vmatprep.subr.bf16.mxu0 %v4884
  %7353 = vmatpush1.bf16.msra.mxu0 %v4883
  %7354 = vmatprep.subr.bf16.mxu0 %v4888
  %7355 = vmatpush1.bf16.msra.mxu0 %v4887
  %7356 = vmatprep.subr.bf16.mxu0 %v4892
  %7357 = vmatpush1.bf16.msra.mxu0 %v4891
  %7358 = vmatprep.mubr.bf16.mxu0 %v1136
  %7359 = vmatmul.mubr.bf16.gmra.mrb[0].mxu0 %v1135
  %v7360 = vpop.f32.mrb[0].mxu0
  %v7361 = vadd.f32 %v7320, %v7360
  %v7362 = vpop.f32.mrb[0].mxu0
  %v7363 = vadd.f32 %v7322, %v7362
  %v7364 = vpop.f32.mrb[0].mxu0
  %v7365 = vpop.f32.mrb[0].mxu0
  %7366 = vdwg.mxu0
  %7367 = vmatprep.subr.bf16.mxu0 %v4896
  %7368 = vmatpush1.bf16.msra.mxu0 %v4895
  %7369 = vmatprep.subr.bf16.mxu0 %v4900
  %7370 = vmatpush1.bf16.msra.mxu0 %v4899
  %7371 = vmatprep.subr.bf16.mxu0 %v4904
  %7372 = vmatpush1.bf16.msra.mxu0 %v4903
  %7373 = vmatprep.subr.bf16.mxu0 %v4908
  %7374 = vmatpush1.bf16.msra.mxu0 %v4907
  %7375 = vmatprep.subr.bf16.mxu0 %v4912
  %7376 = vmatpush1.bf16.msra.mxu0 %v4911
  %7377 = vmatprep.subr.bf16.mxu0 %v4916
  %7378 = vmatpush1.bf16.msra.mxu0 %v4915
  %7379 = vmatprep.subr.bf16.mxu0 %v4920
  %7380 = vmatpush1.bf16.msra.mxu0 %v4919
  %7381 = vmatprep.subr.bf16.mxu0 %v4924
  %7382 = vmatpush1.bf16.msra.mxu0 %v4923
  %7383 = vmatprep.subr.bf16.mxu0 %v4928
  %7384 = vmatpush1.bf16.msra.mxu0 %v4927
  %7385 = vmatprep.subr.bf16.mxu0 %v4932
  %7386 = vmatpush1.bf16.msra.mxu0 %v4931
  %7387 = vmatprep.subr.bf16.mxu0 %v4936
  %7388 = vmatpush1.bf16.msra.mxu0 %v4935
  %7389 = vmatprep.subr.bf16.mxu0 %v4940
  %7390 = vmatpush1.bf16.msra.mxu0 %v4939
  %7391 = vmatprep.subr.bf16.mxu0 %v4944
  %7392 = vmatpush1.bf16.msra.mxu0 %v4943
  %7393 = vmatprep.subr.bf16.mxu0 %v4948
  %7394 = vmatpush1.bf16.msra.mxu0 %v4947
  %7395 = vmatprep.subr.bf16.mxu0 %v4952
  %7396 = vmatpush1.bf16.msra.mxu0 %v4951
  %7397 = vmatprep.subr.bf16.mxu0 %v4956
  %7398 = vmatpush1.bf16.msra.mxu0 %v4955
  %7399 = vmatprep.mubr.bf16.mxu0 %v1138
  %7400 = vmatmul.mubr.bf16.gmra.mrb[0].mxu0 %v1137
  %v7401 = vpop.f32.mrb[0].mxu0
  %v7402 = vadd.f32 %v7361, %v7401
  %v7403 = vpop.f32.mrb[0].mxu0
  %v7404 = vadd.f32 %v7363, %v7403
  %v7405 = vpop.f32.mrb[0].mxu0
  %v7406 = vpop.f32.mrb[0].mxu0
  %7407 = vdwg.mxu0
  %7408 = vmatprep.subr.bf16.mxu0 %v4960
  %7409 = vmatpush1.bf16.msra.mxu0 %v4959
  %7410 = vmatprep.subr.bf16.mxu0 %v4964
  %7411 = vmatpush1.bf16.msra.mxu0 %v4963
  %7412 = vmatprep.subr.bf16.mxu0 %v4968
  %7413 = vmatpush1.bf16.msra.mxu0 %v4967
  %7414 = vmatprep.subr.bf16.mxu0 %v4972
  %7415 = vmatpush1.bf16.msra.mxu0 %v4971
  %7416 = vmatprep.subr.bf16.mxu0 %v4976
  %7417 = vmatpush1.bf16.msra.mxu0 %v4975
  %7418 = vmatprep.subr.bf16.mxu0 %v4980
  %7419 = vmatpush1.bf16.msra.mxu0 %v4979
  %7420 = vmatprep.subr.bf16.mxu0 %v4984
  %7421 = vmatpush1.bf16.msra.mxu0 %v4983
  %7422 = vmatprep.subr.bf16.mxu0 %v4988
  %7423 = vmatpush1.bf16.msra.mxu0 %v4987
  %7424 = vmatprep.subr.bf16.mxu0 %v4992
  %7425 = vmatpush1.bf16.msra.mxu0 %v4991
  %7426 = vmatprep.subr.bf16.mxu0 %v4996
  %7427 = vmatpush1.bf16.msra.mxu0 %v4995
  %7428 = vmatprep.subr.bf16.mxu0 %v5000
  %7429 = vmatpush1.bf16.msra.mxu0 %v4999
  %7430 = vmatprep.subr.bf16.mxu0 %v5004
  %7431 = vmatpush1.bf16.msra.mxu0 %v5003
  %7432 = vmatprep.subr.bf16.mxu0 %v5008
  %7433 = vmatpush1.bf16.msra.mxu0 %v5007
  %7434 = vmatprep.subr.bf16.mxu0 %v5012
  %7435 = vmatpush1.bf16.msra.mxu0 %v5011
  %7436 = vmatprep.subr.bf16.mxu0 %v5016
  %7437 = vmatpush1.bf16.msra.mxu0 %v5015
  %7438 = vmatprep.subr.bf16.mxu0 %v5020
  %7439 = vmatpush1.bf16.msra.mxu0 %v5019
  %7440 = vmatprep.mubr.bf16.mxu0 %v1140
  %7441 = vmatmul.mubr.bf16.gmra.mrb[0].mxu0 %v1139
  %v7442 = vpop.f32.mrb[0].mxu0
  %v7443 = vadd.f32 %v7402, %v7442
  %v7444 = vpop.f32.mrb[0].mxu0
  %v7445 = vadd.f32 %v7404, %v7444
  %v7446 = vpop.f32.mrb[0].mxu0
  %v7447 = vpop.f32.mrb[0].mxu0
  %7448 = vdwg.mxu0
  %7449 = vmatprep.subr.bf16.mxu0 %v5024
  %7450 = vmatpush1.bf16.msra.mxu0 %v5023
  %7451 = vmatprep.subr.bf16.mxu0 %v5028
  %7452 = vmatpush1.bf16.msra.mxu0 %v5027
  %7453 = vmatprep.subr.bf16.mxu0 %v5032
  %7454 = vmatpush1.bf16.msra.mxu0 %v5031
  %7455 = vmatprep.subr.bf16.mxu0 %v5036
  %7456 = vmatpush1.bf16.msra.mxu0 %v5035
  %7457 = vmatprep.subr.bf16.mxu0 %v5040
  %7458 = vmatpush1.bf16.msra.mxu0 %v5039
  %7459 = vmatprep.subr.bf16.mxu0 %v5044
  %7460 = vmatpush1.bf16.msra.mxu0 %v5043
  %7461 = vmatprep.subr.bf16.mxu0 %v5048
  %7462 = vmatpush1.bf16.msra.mxu0 %v5047
  %7463 = vmatprep.subr.bf16.mxu0 %v5052
  %7464 = vmatpush1.bf16.msra.mxu0 %v5051
  %7465 = vmatprep.subr.bf16.mxu0 %v5056
  %7466 = vmatpush1.bf16.msra.mxu0 %v5055
  %7467 = vmatprep.subr.bf16.mxu0 %v5060
  %7468 = vmatpush1.bf16.msra.mxu0 %v5059
  %7469 = vmatprep.subr.bf16.mxu0 %v5064
  %7470 = vmatpush1.bf16.msra.mxu0 %v5063
  %7471 = vmatprep.subr.bf16.mxu0 %v5068
  %7472 = vmatpush1.bf16.msra.mxu0 %v5067
  %7473 = vmatprep.subr.bf16.mxu0 %v5072
  %7474 = vmatpush1.bf16.msra.mxu0 %v5071
  %7475 = vmatprep.subr.bf16.mxu0 %v5076
  %7476 = vmatpush1.bf16.msra.mxu0 %v5075
  %7477 = vmatprep.subr.bf16.mxu0 %v5080
  %7478 = vmatpush1.bf16.msra.mxu0 %v5079
  %7479 = vmatprep.subr.bf16.mxu0 %v5084
  %7480 = vmatpush1.bf16.msra.mxu0 %v5083
  %7481 = vmatprep.mubr.bf16.mxu0 %v1142
  %7482 = vmatmul.mubr.bf16.gmra.mrb[0].mxu0 %v1141
  %v7483 = vpop.f32.mrb[0].mxu0
  %v7484 = vadd.f32 %v7443, %v7483
  %v7485 = vpop.f32.mrb[0].mxu0
  %v7486 = vadd.f32 %v7445, %v7485
  %v7487 = vpop.f32.mrb[0].mxu0
  %v7488 = vpop.f32.mrb[0].mxu0
  %7489 = vdwg.mxu0
  %7490 = vmatprep.subr.bf16.mxu0 %v5088
  %7491 = vmatpush1.bf16.msra.mxu0 %v5087
  %7492 = vmatprep.subr.bf16.mxu0 %v5092
  %7493 = vmatpush1.bf16.msra.mxu0 %v5091
  %7494 = vmatprep.subr.bf16.mxu0 %v5096
  %7495 = vmatpush1.bf16.msra.mxu0 %v5095
  %7496 = vmatprep.subr.bf16.mxu0 %v5100
  %7497 = vmatpush1.bf16.msra.mxu0 %v5099
  %7498 = vmatprep.subr.bf16.mxu0 %v5104
  %7499 = vmatpush1.bf16.msra.mxu0 %v5103
  %7500 = vmatprep.subr.bf16.mxu0 %v5108
  %7501 = vmatpush1.bf16.msra.mxu0 %v5107
  %7502 = vmatprep.subr.bf16.mxu0 %v5112
  %7503 = vmatpush1.bf16.msra.mxu0 %v5111
  %7504 = vmatprep.subr.bf16.mxu0 %v5116
  %7505 = vmatpush1.bf16.msra.mxu0 %v5115
  %7506 = vmatprep.subr.bf16.mxu0 %v5120
  %7507 = vmatpush1.bf16.msra.mxu0 %v5119
  %7508 = vmatprep.subr.bf16.mxu0 %v5124
  %7509 = vmatpush1.bf16.msra.mxu0 %v5123
  %7510 = vmatprep.subr.bf16.mxu0 %v5128
  %7511 = vmatpush1.bf16.msra.mxu0 %v5127
  %7512 = vmatprep.subr.bf16.mxu0 %v5132
  %7513 = vmatpush1.bf16.msra.mxu0 %v5131
  %7514 = vmatprep.subr.bf16.mxu0 %v5136
  %7515 = vmatpush1.bf16.msra.mxu0 %v5135
  %7516 = vmatprep.subr.bf16.mxu0 %v5140
  %7517 = vmatpush1.bf16.msra.mxu0 %v5139
  %7518 = vmatprep.subr.bf16.mxu0 %v5144
  %7519 = vmatpush1.bf16.msra.mxu0 %v5143
  %7520 = vmatprep.subr.bf16.mxu0 %v5148
  %7521 = vmatpush1.bf16.msra.mxu0 %v5147
  %7522 = vmatprep.mubr.bf16.mxu0 %v1144
  %7523 = vmatmul.mubr.bf16.gmra.mrb[0].mxu0 %v1143
  %v7524 = vpop.f32.mrb[0].mxu0
  %v7525 = vadd.f32 %v7484, %v7524
  %v7526 = vpop.f32.mrb[0].mxu0
  %v7527 = vadd.f32 %v7486, %v7526
  %v7528 = vpop.f32.mrb[0].mxu0
  %v7529 = vpop.f32.mrb[0].mxu0
  %7530 = vdwg.mxu0
  %7531 = vmatprep.subr.bf16.mxu0 %v5152
  %7532 = vmatpush1.bf16.msra.mxu0 %v5151
  %7533 = vmatprep.subr.bf16.mxu0 %v5156
  %7534 = vmatpush1.bf16.msra.mxu0 %v5155
  %7535 = vmatprep.subr.bf16.mxu0 %v5160
  %7536 = vmatpush1.bf16.msra.mxu0 %v5159
  %7537 = vmatprep.subr.bf16.mxu0 %v5164
  %7538 = vmatpush1.bf16.msra.mxu0 %v5163
  %7539 = vmatprep.subr.bf16.mxu0 %v5168
  %7540 = vmatpush1.bf16.msra.mxu0 %v5167
  %7541 = vmatprep.subr.bf16.mxu0 %v5172
  %7542 = vmatpush1.bf16.msra.mxu0 %v5171
  %7543 = vmatprep.subr.bf16.mxu0 %v5176
  %7544 = vmatpush1.bf16.msra.mxu0 %v5175
  %7545 = vmatprep.subr.bf16.mxu0 %v5180
  %7546 = vmatpush1.bf16.msra.mxu0 %v5179
  %7547 = vmatprep.subr.bf16.mxu0 %v5184
  %7548 = vmatpush1.bf16.msra.mxu0 %v5183
  %7549 = vmatprep.subr.bf16.mxu0 %v5188
  %7550 = vmatpush1.bf16.msra.mxu0 %v5187
  %7551 = vmatprep.subr.bf16.mxu0 %v5192
  %7552 = vmatpush1.bf16.msra.mxu0 %v5191
  %7553 = vmatprep.subr.bf16.mxu0 %v5196
  %7554 = vmatpush1.bf16.msra.mxu0 %v5195
  %7555 = vmatprep.subr.bf16.mxu0 %v5200
  %7556 = vmatpush1.bf16.msra.mxu0 %v5199
  %7557 = vmatprep.subr.bf16.mxu0 %v5204
  %7558 = vmatpush1.bf16.msra.mxu0 %v5203
  %7559 = vmatprep.subr.bf16.mxu0 %v5208
  %7560 = vmatpush1.bf16.msra.mxu0 %v5207
  %7561 = vmatprep.subr.bf16.mxu0 %v5212
  %7562 = vmatpush1.bf16.msra.mxu0 %v5211
  %7563 = vmatprep.mubr.bf16.mxu0 %v1146
  %7564 = vmatmul.mubr.bf16.gmra.mrb[0].mxu0 %v1145
  %v7565 = vpop.f32.mrb[0].mxu0
  %v7566 = vadd.f32 %v7525, %v7565
  %v7567 = vpop.f32.mrb[0].mxu0
  %v7568 = vadd.f32 %v7527, %v7567
  %v7569 = vpop.f32.mrb[0].mxu0
  %v7570 = vpop.f32.mrb[0].mxu0
  %7571 = vdwg.mxu0
  %7572 = vmatprep.subr.bf16.mxu0 %v5216
  %7573 = vmatpush1.bf16.msra.mxu0 %v5215
  %7574 = vmatprep.subr.bf16.mxu0 %v5220
  %7575 = vmatpush1.bf16.msra.mxu0 %v5219
  %7576 = vmatprep.subr.bf16.mxu0 %v5224
  %7577 = vmatpush1.bf16.msra.mxu0 %v5223
  %7578 = vmatprep.subr.bf16.mxu0 %v5228
  %7579 = vmatpush1.bf16.msra.mxu0 %v5227
  %7580 = vmatprep.subr.bf16.mxu0 %v5232
  %7581 = vmatpush1.bf16.msra.mxu0 %v5231
  %7582 = vmatprep.subr.bf16.mxu0 %v5236
  %7583 = vmatpush1.bf16.msra.mxu0 %v5235
  %7584 = vmatprep.subr.bf16.mxu0 %v5240
  %7585 = vmatpush1.bf16.msra.mxu0 %v5239
  %7586 = vmatprep.subr.bf16.mxu0 %v5244
  %7587 = vmatpush1.bf16.msra.mxu0 %v5243
  %7588 = vmatprep.subr.bf16.mxu0 %v5248
  %7589 = vmatpush1.bf16.msra.mxu0 %v5247
  %7590 = vmatprep.subr.bf16.mxu0 %v5252
  %7591 = vmatpush1.bf16.msra.mxu0 %v5251
  %7592 = vmatprep.subr.bf16.mxu0 %v5256
  %7593 = vmatpush1.bf16.msra.mxu0 %v5255
  %7594 = vmatprep.subr.bf16.mxu0 %v5260
  %7595 = vmatpush1.bf16.msra.mxu0 %v5259
  %7596 = vmatprep.subr.bf16.mxu0 %v5264
  %7597 = vmatpush1.bf16.msra.mxu0 %v5263
  %7598 = vmatprep.subr.bf16.mxu0 %v5268
  %7599 = vmatpush1.bf16.msra.mxu0 %v5267
  %7600 = vmatprep.subr.bf16.mxu0 %v5272
  %7601 = vmatpush1.bf16.msra.mxu0 %v5271
  %7602 = vmatprep.subr.bf16.mxu0 %v5276
  %7603 = vmatpush1.bf16.msra.mxu0 %v5275
  %7604 = vmatprep.mubr.bf16.mxu0 %v1148
  %7605 = vmatmul.mubr.bf16.gmra.mrb[0].mxu0 %v1147
  %v7606 = vpop.f32.mrb[0].mxu0
  %v7607 = vadd.f32 %v7566, %v7606
  %v7608 = vpop.f32.mrb[0].mxu0
  %v7609 = vadd.f32 %v7568, %v7608
  %v7610 = vpop.f32.mrb[0].mxu0
  %v7611 = vpop.f32.mrb[0].mxu0
  %7612 = vdwg.mxu0
  %v7613 = vadd.f32 %v25, %v6951
  %v7614 = vadd.f32 %v26, %v6953
  %v7615 = vadd.f32 %v27, %v7607
  %v7616 = vadd.f32 %v28, %v7609
  %7617 = vst [vmem:[#allocation2] sm:$0xff] %v7613
  %7618 = vst [vmem:[#allocation2 + $0x8] sm:$0xff] %v7614
  %7619 = vst [vmem:[#allocation2 + $0x10] sm:$0xff] %v7615
  %7620 = vst [vmem:[#allocation2 + $0x18] sm:$0xff] %v7616
  // Predicated region
  $region22: #{encoder_forward.7} parent=0 // pred_check
    %p7621 = pneg %p17
  $region23: #{encoder_forward.7} parent=0 // pred_check_branch
    %7623 = sbr.rel (%p7621) target = $region25
  $region24: #{encoder_forward.7} parent=0 // pred_region
    %v7624 = vld [vmem:[#allocation2] sm:$0xff]
    %v7625 = vld [vmem:[#allocation2 + $0x8] sm:$0xff]
    %v7626 = vld [vmem:[#allocation2 + $0x10] sm:$0xff]
    %v7627 = vld [vmem:[#allocation2 + $0x18] sm:$0xff]
    %v7628 = vlaneseq
    %v7629 = vshrl.u32 %v7628, 7
    %vm7630 = vcmp.lt.s32.totalorder %v7629, 8
    %v7631 = vsel %vm7630, %v7624, 0.0
    %v7632 = vsel %vm7630, %v7625, 0.0
    %v7633 = vsel %vm7630, %v7626, 0.0
    %v7634 = vsel %vm7630, %v7627, 0.0
    %v7635 = vrot.slane %v7631, 4
    %v7636 = vadd.f32 %v7631, %v7635
    %v7637 = vrot.slane %v7636, 2
    %v7638 = vadd.f32 %v7636, %v7637
    %v7639 = vrot.slane %v7638, 1
    %v7640 = vadd.f32 %v7638, %v7639
    %v7641 = vrot.slane %v7632, 4
    %v7642 = vadd.f32 %v7632, %v7641
    %v7643 = vrot.slane %v7642, 2
    %v7644 = vadd.f32 %v7642, %v7643
    %v7645 = vrot.slane %v7644, 1
    %v7646 = vadd.f32 %v7644, %v7645
    %v7647 = vrot.slane %v7633, 4
    %v7648 = vadd.f32 %v7633, %v7647
    %v7649 = vrot.slane %v7648, 2
    %v7650 = vadd.f32 %v7648, %v7649
    %v7651 = vrot.slane %v7650, 1
    %v7652 = vadd.f32 %v7650, %v7651
    %v7653 = vrot.slane %v7634, 4
    %v7654 = vadd.f32 %v7634, %v7653
    %v7655 = vrot.slane %v7654, 2
    %v7656 = vadd.f32 %v7654, %v7655
    %v7657 = vrot.slane %v7656, 1
    %v7658 = vadd.f32 %v7656, %v7657
    %v7659 = vmul.f32 %v7640, 0.125
    %v7660 = vmul.f32 %v7646, 0.125
    %v7661 = vmul.f32 %v7652, 0.125
    %v7662 = vmul.f32 %v7658, 0.125
    %v7663 = vsub.f32 %v7624, %v7659
    %v7664 = vsub.f32 %v7625, %v7660
    %v7665 = vsub.f32 %v7626, %v7661
    %v7666 = vsub.f32 %v7627, %v7662
    %v7667 = vsel %vm7630, %v7663, 0.0
    %v7668 = vsel %vm7630, %v7664, 0.0
    %v7669 = vsel %vm7630, %v7665, 0.0
    %v7670 = vsel %vm7630, %v7666, 0.0
    %v7671 = vmul.f32 %v7667, %v7667
    %v7672 = vmul.f32 %v7668, %v7668
    %v7673 = vmul.f32 %v7669, %v7669
    %v7674 = vmul.f32 %v7670, %v7670
    %v7675 = vrot.slane %v7671, 4
    %v7676 = vadd.f32 %v7671, %v7675
    %v7677 = vrot.slane %v7676, 2
    %v7678 = vadd.f32 %v7676, %v7677
    %v7679 = vrot.slane %v7678, 1
    %v7680 = vadd.f32 %v7678, %v7679
    %v7681 = vrot.slane %v7672, 4
    %v7682 = vadd.f32 %v7672, %v7681
    %v7683 = vrot.slane %v7682, 2
    %v7684 = vadd.f32 %v7682, %v7683
    %v7685 = vrot.slane %v7684, 1
    %v7686 = vadd.f32 %v7684, %v7685
    %v7687 = vrot.slane %v7673, 4
    %v7688 = vadd.f32 %v7673, %v7687
    %v7689 = vrot.slane %v7688, 2
    %v7690 = vadd.f32 %v7688, %v7689
    %v7691 = vrot.slane %v7690, 1
    %v7692 = vadd.f32 %v7690, %v7691
    %v7693 = vrot.slane %v7674, 4
    %v7694 = vadd.f32 %v7674, %v7693
    %v7695 = vrot.slane %v7694, 2
    %v7696 = vadd.f32 %v7694, %v7695
    %v7697 = vrot.slane %v7696, 1
    %v7698 = vadd.f32 %v7696, %v7697
    %v7699 = vmul.f32 %v7680, 0.125
    %v7700 = vmul.f32 %v7686, 0.125
    %v7701 = vmul.f32 %v7692, 0.125
    %v7702 = vmul.f32 %v7698, 0.125
    %v7703 = vadd.f32 %v7699, 1e-05
    %v7704 = vadd.f32 %v7700, 1e-05
    %v7705 = vadd.f32 %v7701, 1e-05
    %v7706 = vadd.f32 %v7702, 1e-05
    %v7707 = vrsqrt.pop %v7703
    %v7708 = vrsqrt.pop %v7704
    %v7709 = vrsqrt.pop %v7705
    %v7710 = vrsqrt.pop %v7706
    %v7711 = vld [vmem:[%s2] sm:$0xf]
    %v7713 = vlaneseq
    %v7714 = vshrl.u32 %v7713, 7
    %v7715 = vsub.s32 0, %v7714
    %v7716 = vrot.slane %v7711, %v7715
    %v7717 = vlaneseq
    %v7718 = vshrl.u32 %v7717, 7
    %v7719 = vsub.s32 1, %v7718
    %v7720 = vrot.slane %v7711, %v7719
    %v7721 = vlaneseq
    %v7722 = vshrl.u32 %v7721, 7
    %v7723 = vsub.s32 2, %v7722
    %v7724 = vrot.slane %v7711, %v7723
    %v7725 = vlaneseq
    %v7726 = vshrl.u32 %v7725, 7
    %v7727 = vsub.s32 3, %v7726
    %v7728 = vrot.slane %v7711, %v7727
    %v7733 = vmul.f32 %v7707, %v7716
    %v7734 = vmul.f32 %v7708, %v7720
    %v7735 = vmul.f32 %v7709, %v7724
    %v7736 = vmul.f32 %v7710, %v7728
    %v7737 = vlaneseq
    %v7738 = vshrl.u32 %v7737, 7
    %v7739 = vsub.s32 0, %v7738
    %v7740 = vrot.slane %v7733, %v7739
    %v7741 = vlaneseq
    %v7742 = vshrl.u32 %v7741, 7
    %v7743 = vsub.s32 0, %v7742
    %v7744 = vrot.slane %v7734, %v7743
    %v7745 = vlaneseq
    %v7746 = vshrl.u32 %v7745, 7
    %v7747 = vsub.s32 0, %v7746
    %v7748 = vrot.slane %v7735, %v7747
    %v7749 = vlaneseq
    %v7750 = vshrl.u32 %v7749, 7
    %v7751 = vsub.s32 0, %v7750
    %v7752 = vrot.slane %v7736, %v7751
    %v7753 = vmul.f32 %v7663, %v7740
    %v7754 = vmul.f32 %v7664, %v7744
    %v7755 = vmul.f32 %v7665, %v7748
    %v7756 = vmul.f32 %v7666, %v7752
    %v7757 = vld [vmem:[%s3] sm:$0xf]
    %v7759 = vlaneseq
    %v7760 = vshrl.u32 %v7759, 7
    %v7761 = vsub.s32 0, %v7760
    %v7762 = vrot.slane %v7757, %v7761
    %v7763 = vlaneseq
    %v7764 = vshrl.u32 %v7763, 7
    %v7765 = vsub.s32 1, %v7764
    %v7766 = vrot.slane %v7757, %v7765
    %v7767 = vlaneseq
    %v7768 = vshrl.u32 %v7767, 7
    %v7769 = vsub.s32 2, %v7768
    %v7770 = vrot.slane %v7757, %v7769
    %v7771 = vlaneseq
    %v7772 = vshrl.u32 %v7771, 7
    %v7773 = vsub.s32 3, %v7772
    %v7774 = vrot.slane %v7757, %v7773
    %v7779 = vadd.f32 %v7753, %v7762
    %v7780 = vadd.f32 %v7754, %v7766
    %v7781 = vadd.f32 %v7755, %v7770
    %v7782 = vadd.f32 %v7756, %v7774
    %v7783 = vmax.f32 %v7779, 0.0
    %v7784 = vmax.f32 %v7780, 0.0
    %v7785 = vmax.f32 %v7781, 0.0
    %v7786 = vmax.f32 %v7782, 0.0
    %7787 = vst [vmem:[%s4] sm:$0xff] %v7783
    %7788 = vst [vmem:[%s4 + $0x8] sm:$0xff] %v7784
    %7789 = vst [vmem:[%s4 + $0x10] sm:$0xff] %v7785
    %7790 = vst [vmem:[%s4 + $0x18] sm:$0xff] %v7786
  $region25: #{encoder_forward.7} parent=0 // pred_fallthru
    _
  // Predicated region
  $region26: #{encoder_forward.7} parent=0 // pred_check
    _
  $region27: #{encoder_forward.7} parent=0 // pred_check_branch
    %7792 = sbr.rel (0) target = $region29
  $region28: #{encoder_forward.7} parent=0 // pred_region
    _
  $region29: #{encoder_forward.7} parent=0 // pred_fallthru
    _
  // Predicated region
  $region30: #{encoder_forward.7} parent=0 // pred_check
    _
  $region31: #{encoder_forward.7} parent=0 // pred_check_branch
    %7794 = sbr.rel (0) target = $region33
  $region32: #{encoder_forward.7} parent=0 // pred_region
    _
  $region33: #{encoder_forward.7} parent=0 // pred_fallthru
    _

</llo_original>
